<compile_context>
chip_gen: v5e
topology: v5e:2x2
jax: 0.10.0
libtpu: 0.0.40
codegen_flags: <defaults>
</compile_context>

<pallas_src>
import functools

import jax
import jax.numpy as jnp
from jax import lax
from jax.experimental import pallas as pl
from jax.experimental.pallas import tpu as pltpu


def _round_up(v, m):
    return -(-v // m) * m


def _aspp_kernel(x_hbm, vimg_ref, w1_ref, wd_ref, wf_ref, o_ref, xbuf, sem,
                 *, rates, pad, th, width):
    n = pl.program_id(0)
    i = pl.program_id(1)
    num_i = pl.num_programs(1)
    halo = th + 2 * pad
    slot = i % 2

    def start_copy(row0, sl):
        pltpu.make_async_copy(x_hbm.at[n, pl.ds(row0, halo)],
                              xbuf.at[sl], sem.at[sl]).start()

    # Prime the pipeline at the first row-tile of every image.
    @pl.when(i == 0)
    def _():
        start_copy(0, 0)

    # Wait for the halo window of the current tile (started at step i-1 or just above).
    pltpu.make_async_copy(x_hbm.at[n, pl.ds(i * th, halo)],
                          xbuf.at[slot], sem.at[slot]).wait()

    # Prefetch the next tile's halo into the other slot; overlaps the compute below.
    @pl.when(i + 1 < num_i)
    def _():
        start_copy((i + 1) * th, 1 - slot)

    xv = xbuf.at[slot]                       # (halo, Wp, Cin_p) VMEM view
    m = th * width
    cdt = w1_ref.dtype                       # MXU operand dtype (bf16 or f32)

    def tap(row0, col0):                     # static offsets -> (th*W, Cin_p)
        xs = xv[row0:row0 + th, col0:col0 + width, :]
        return xs.reshape(m, xs.shape[-1])

    # ---- 1x1 branch, folded straight through its fuse-conv slice ------------
    z = jnp.dot(tap(pad, pad), w1_ref[...], preferred_element_type=jnp.float32)
    z = jnp.maximum(z, 0.0).astype(cdt)
    acc = jnp.dot(z, wf_ref[0], preferred_element_type=jnp.float32)

    # ---- dilated 3x3 branches: 9 shifted 1x1 matmuls each --------------------
    # TODO(synk): on v7x accumulate the 9 taps via an in-place MRB accumulator
    # instead of the vreg add chain.
    taps = tuple((dy, dx) for dy in (-1, 0, 1) for dx in (-1, 0, 1))
    for ri, r in enumerate(rates):
        zr = None
        for k, (dy, dx) in enumerate(taps):
            d = jnp.dot(tap(pad + dy * r, pad + dx * r), wd_ref[ri, k],
                        preferred_element_type=jnp.float32)
            zr = d if zr is None else zr + d
        zr = jnp.maximum(zr, 0.0).astype(cdt)
        acc = acc + jnp.dot(zr, wf_ref[1 + ri], preferred_element_type=jnp.float32)

    # ---- image-pool branch vector + single lane-dense tile store ------------
    acc = acc + vimg_ref[0].astype(jnp.float32)
    o_ref[0] = acc.reshape(th, width, -1).astype(o_ref.dtype)


def block_aspp_forward(x, params, rates, *, compute_dtype=jnp.bfloat16):
    """x: (N, Cin, H, W) NCHW float32.  Returns (N, Cout, H, W) float32."""
    N, Cin, H, W = x.shape
    Cout = params["w1"].shape[0]
    R = max(rates)
    Cin_p = _round_up(Cin, 128)
    Cout_p = _round_up(Cout, 128)
    Wp = W + 2 * R
    in_bytes = jnp.dtype(compute_dtype).itemsize
    out_bytes = jnp.dtype(x.dtype).itemsize

    try:
        vmem_cap = pltpu.get_tpu_info().vmem_capacity_bytes
    except Exception:                                    # pragma: no cover
        vmem_cap = 64 * 1024 * 1024

    # Resident weights (budget 2x in case the pipeline double-buffers them).
    n_w_elems = (Cin_p * Cout_p
                 + len(rates) * 9 * Cin_p * Cout_p
                 + (1 + len(rates)) * Cout_p * Cout_p)
    weight_bytes = 2 * n_w_elems * in_bytes
    # TODO(synk): at very large Cin on v7x (64 MiB/TC), stream the dilated
    # weight stack per rate instead of keeping it fully resident.

    def tile_bytes(th_c):
        return (2 * (th_c + 2 * R) * Wp * Cin_p * in_bytes     # double-buffered halo
                + 2 * th_c * W * Cout_p * out_bytes            # pipelined output tile
                + 4 * th_c * W * Cout_p * 4)                   # in-kernel f32 intermediates

    # ---- row-tile selection: never th=1; trade halo re-read vs padded rows ---
    budget = int(vmem_cap * 0.85) - weight_bytes - (8 << 20)
    best = None
    for th_c in (32, 24, 16, 8):
        if tile_bytes(th_c) > budget and th_c != 8:
            continue
        h_pad_c = _round_up(H, th_c)
        cost = (h_pad_c // th_c) * (th_c + 2 * R) + h_pad_c    # ~rows read + rows computed
        if best is None or cost < best[1]:
            best = (th_c, cost)
    th = best[0]
    H_pad = _round_up(H, th)
    halo = th + 2 * R

    vmem_need = tile_bytes(th) + weight_bytes + 2 * Cout_p * 4
    vmem_limit = min(max(vmem_need + (16 << 20), 32 << 20), int(vmem_cap * 0.9))

    # ---- one-time layout glue: NCHW -> padded NHWC, channels padded to 128 ---
    # TODO(synk): avoid materializing the 2R-padded activation in HBM by
    # clamping the halo DMA row range and zero-filling out-of-range rows
    # in-kernel; also keep a rolling row buffer so the 2R overlap between
    # consecutive tiles is not re-read from HBM.
    xt = jnp.transpose(x, (0, 2, 3, 1))                                   # NHWC
    x_pad = jnp.pad(xt, ((0, 0), (R, R + H_pad - H), (R, R),
                         (0, Cin_p - Cin))).astype(compute_dtype)

    # ---- repack weights for (pixels, Cin) @ (Cin, Cout) matmuls --------------
    def pad2(w, r0, r1):
        return jnp.pad(w, ((0, r0 - w.shape[0]), (0, r1 - w.shape[1])))

    w1_t = pad2(params["w1"][:, :, 0, 0].T, Cin_p, Cout_p).astype(compute_dtype)
    wd_t = jnp.stack([jnp.stack([pad2(wd[:, :, ky, kx].T, Cin_p, Cout_p)
                                 for ky in range(3) for kx in range(3)])
                      for wd in params["wd"]]).astype(compute_dtype)      # (nr, 9, Cin_p, Cout_p)
    wf = params["wfuse"][:, :, 0, 0]                                      # (Cout, 5*Cout)
    wf_slices = [wf[:, b * Cout:(b + 1) * Cout].T for b in range(5)]      # each (Cout, Cout)
    wf_t = jnp.stack([pad2(s, Cout_p, Cout_p)
                      for s in wf_slices[1:]]).astype(compute_dtype)      # (4, Cout_p, Cout_p)

    # ---- image-pooling branch folded through its fuse slice (tiny, f32) ------
    gap = jnp.mean(x, axis=(2, 3))                                        # (N, Cin)
    img_feat = jnp.maximum(gap @ params["wimg"][:, :, 0, 0].T, 0.0)       # (N, Cout)
    v_img = jnp.pad(img_feat @ wf_slices[0], ((0, 0), (0, Cout_p - Cout)))
    v_img = v_img.reshape(N, 1, Cout_p).astype(jnp.float32)

    kernel = functools.partial(_aspp_kernel, rates=tuple(rates), pad=R,
                               th=th, width=W)
    out_nhwc = pl.pallas_call(
        kernel,
        out_shape=jax.ShapeDtypeStruct((N, H_pad, W, Cout_p), x.dtype),
        grid_spec=pltpu.PrefetchScalarGridSpec(
            num_scalar_prefetch=0,
            grid=(N, H_pad // th),
            in_specs=[
                pl.BlockSpec(memory_space=pl.ANY),                        # x_pad stays in HBM
                pl.BlockSpec((1, 1, Cout_p), lambda n, i: (n, 0, 0)),     # image-pool vector
                pl.BlockSpec((Cin_p, Cout_p), lambda n, i: (0, 0)),       # 1x1 weight (resident)
                pl.BlockSpec((len(rates), 9, Cin_p, Cout_p),
                             lambda n, i: (0, 0, 0, 0)),                  # dilated taps (resident)
                pl.BlockSpec((len(rates) + 1, Cout_p, Cout_p),
                             lambda n, i: (0, 0, 0)),                     # fuse slices (resident)
            ],
            out_specs=pl.BlockSpec((1, th, W, Cout_p), lambda n, i: (n, i, 0, 0)),
            scratch_shapes=[
                pltpu.VMEM((2, halo, Wp, Cin_p), compute_dtype),          # double-buffered halo
                pltpu.SemaphoreType.DMA((2,)),
            ]),
        compiler_params=pltpu.CompilerParams(
            dimension_semantics=("parallel", "arbitrary"),
            vmem_limit_bytes=int(vmem_limit)),
    )(x_pad, v_img, w1_t, wd_t, wf_t)

    out = out_nhwc[:, :H, :, :Cout]                                       # crop pads
    return jnp.transpose(out, (0, 3, 1, 2))                               # back to NCHW


class BlockASPPPallas:
    """Forward-only Pallas mirror of the PyTorch block_aspp_moudle."""

    def __init__(self, in_dim, out_dim, output_stride=16, rates=(6, 12, 18), *, key):
        rates = list(rates)
        if output_stride == 8:
            rates = [2 * r for r in rates]
        elif output_stride != 16:
            raise ValueError(f"output stride of {output_stride} not supported")
        self.rates = rates
        self.in_dim, self.out_dim = in_dim, out_dim

        def conv_init(k, cout, cin, kh, kw):
            fan_in = cin * kh * kw
            return jax.random.normal(k, (cout, cin, kh, kw), jnp.float32) * (1.0 / fan_in ** 0.5)

        ks = jax.random.split(key, 3 + len(rates))
        self.params = {
            "w1":    conv_init(ks[0], out_dim, in_dim, 1, 1),
            "wd":    [conv_init(ks[1 + i], out_dim, in_dim, 3, 3) for i in range(len(rates))],
            "wimg":  conv_init(ks[1 + len(rates)], out_dim, in_dim, 1, 1),
            "wfuse": conv_init(ks[2 + len(rates)], out_dim, out_dim * 5, 1, 1),
        }

    def __call__(self, x, compute_dtype=jnp.bfloat16):
        return block_aspp_forward(x, self.params, self.rates, compute_dtype=compute_dtype)


def _ref_forward(x, params, rates):
    """Pure-JAX (XLA) mirror of the torch forward, for correctness checking."""
    dn = ("NCHW", "OIHW", "NCHW")
    N, Cin, H, W = x.shape
    gap = jnp.mean(x, axis=(2, 3), keepdims=True)
    img = jax.lax.conv_general_dilated(gap, params["wimg"], (1, 1), "VALID",
                                       dimension_numbers=dn)
    img = jnp.maximum(img, 0.0)
    # bilinear upsample of a 1x1 map with align_corners=True == broadcast
    img = jnp.broadcast_to(img, (N, img.shape[1], H, W))
    feats = [img]
    y = jax.lax.conv_general_dilated(x, params["w1"], (1, 1), "VALID",
                                     dimension_numbers=dn)
    feats.append(jnp.maximum(y, 0.0))
    for r, wd in zip(rates, params["wd"]):
        y = jax.lax.conv_general_dilated(x, wd, (1, 1), [(r, r), (r, r)],
                                         rhs_dilation=(r, r), dimension_numbers=dn)
        feats.append(jnp.maximum(y, 0.0))
    cat = jnp.concatenate(feats, axis=1)
    return jax.lax.conv_general_dilated(cat, params["wfuse"], (1, 1), "VALID",
                                        dimension_numbers=dn)


if __name__ == "__main__":
    key = jax.random.PRNGKey(0)
    in_dim, out_dim = 8, 8
    N, H, W = 2, 16, 16

    module = BlockASPPPallas(in_dim, out_dim, output_stride=16,
                             rates=(6, 12, 18), key=key)
    x = jax.random.normal(jax.random.fold_in(key, 7), (N, in_dim, H, W),
                          dtype=jnp.float32)

    y_ref = _ref_forward(x, module.params, module.rates)

    # Strict check: f32 operands inside the kernel.
    y32 = jax.block_until_ready(module(x, compute_dtype=jnp.float32))
    assert y32.shape == (N, out_dim, H, W), y32.shape
    err32 = float(jnp.max(jnp.abs(y32 - y_ref)))
    assert err32 < 1e-3, f"f32 max abs error vs reference: {err32}"

    # Default perf configuration: bf16 operands, f32 accumulation.
    y = jax.block_until_ready(module(x))
    assert y.shape == (N, out_dim, H, W), y.shape
    err16 = float(jnp.max(jnp.abs(y - y_ref)))
    assert err16 < 5e-2, f"bf16 max abs error vs reference: {err16}"

    print("KERNEL_OK")
</pallas_src>

<mosaic_0001>
module attributes {stable_mosaic.version = 11 : i64} {
  func.func @_aspp_kernel(%arg0: i32, %arg1: i32, %arg2: memref<2x52x52x128xf32, #tpu.memory_space<any>>, %arg3: memref<1x1x128xf32, #tpu.memory_space<vmem>>, %arg4: memref<128x128xf32, #tpu.memory_space<vmem>>, %arg5: memref<3x9x128x128xf32, #tpu.memory_space<vmem>>, %arg6: memref<4x128x128xf32, #tpu.memory_space<vmem>>, %arg7: memref<1x16x16x128xf32, #tpu.memory_space<vmem>>, %arg8: memref<2x52x52x128xf32, #tpu.memory_space<vmem>>, %arg9: memref<2x!tpu.dma_semaphore, #tpu.memory_space<semaphore_mem>>) attributes {dimension_semantics = [#tpu.dimension_semantics<parallel>, #tpu.dimension_semantics<arbitrary>], iteration_bounds = array<i64: 2, 1>, scalar_prefetch = 0 : i64, scratch_operands = 2 : i64, tpu.core_type = #tpu.core_type<tc>, window_params = [{}, {transform_indices = @transform_1, window_bounds = array<i64: 1, 1, 128>}, {pipeline_mode = #tpu.pipeline_mode<synchronous>, transform_indices = @transform_2, window_bounds = array<i64: 128, 128>}, {pipeline_mode = #tpu.pipeline_mode<synchronous>, transform_indices = @transform_3, window_bounds = array<i64: 3, 9, 128, 128>}, {pipeline_mode = #tpu.pipeline_mode<synchronous>, transform_indices = @transform_4, window_bounds = array<i64: 4, 128, 128>}, {transform_indices = @transform_5, window_bounds = array<i64: 1, 16, 16, 128>}]} {
    %c2_i32 = arith.constant 2 : i32
    %c0_i32 = arith.constant 0 : i32
    %0 = arith.cmpi eq, %c2_i32, %c0_i32 : i32
    %c1_i32 = arith.constant 1 : i32
    %1 = arith.select %0, %c1_i32, %c2_i32 : i32
    %2 = arith.remsi %arg1, %1 : i32
    %c0_i32_0 = arith.constant 0 : i32
    %3 = arith.cmpi ne, %2, %c0_i32_0 : i32
    %c0_i32_1 = arith.constant 0 : i32
    %4 = arith.cmpi slt, %2, %c0_i32_1 : i32
    %c0_i32_2 = arith.constant 0 : i32
    %5 = arith.cmpi slt, %1, %c0_i32_2 : i32
    %6 = arith.xori %4, %5 : i1
    %7 = arith.andi %6, %3 : i1
    %8 = arith.addi %2, %1 : i32
    %9 = arith.select %7, %8, %2 : i32
    %c0_i32_3 = arith.constant 0 : i32
    %10 = arith.cmpi eq, %arg1, %c0_i32_3 : i32
    %11 = arith.extui %10 : i1 to i32
    %c0_i32_4 = arith.constant 0 : i32
    %12 = arith.cmpi ne, %11, %c0_i32_4 : i32
    scf.if %12 {
      %c0_i32_331 = arith.constant 0 : i32
      %c0_i32_332 = arith.constant 0 : i32
      %c0_i32_333 = arith.constant 0 : i32
      %c0_i32_334 = arith.constant 0 : i32
      %c0_i32_335 = arith.constant 0 : i32
      %274 = tpu.memref_slice %arg2[%arg0, %c0_i32_333, %c0_i32_334, %c0_i32_335] : memref<2x52x52x128xf32, #tpu.memory_space<any>> -> memref<1x52x52x128xf32, #tpu.memory_space<any>>
      %275 = tpu.memref_squeeze %274 : memref<1x52x52x128xf32, #tpu.memory_space<any>> -> memref<52x52x128xf32, #tpu.memory_space<any>>
      %c0_i32_336 = arith.constant 0 : i32
      %c0_i32_337 = arith.constant 0 : i32
      %c0_i32_338 = arith.constant 0 : i32
      %276 = tpu.memref_slice %arg8[%c0_i32_331, %c0_i32_336, %c0_i32_337, %c0_i32_338] : memref<2x52x52x128xf32, #tpu.memory_space<vmem>> -> memref<1x52x52x128xf32, #tpu.memory_space<vmem>>
      %277 = tpu.memref_squeeze %276 : memref<1x52x52x128xf32, #tpu.memory_space<vmem>> -> memref<52x52x128xf32, #tpu.memory_space<vmem>>
      %278 = tpu.memref_slice %arg9[%c0_i32_332] : memref<2x!tpu.dma_semaphore, #tpu.memory_space<semaphore_mem>> -> memref<1x!tpu.dma_semaphore, #tpu.memory_space<semaphore_mem>>
      %279 = tpu.memref_squeeze %278 : memref<1x!tpu.dma_semaphore, #tpu.memory_space<semaphore_mem>> -> memref<!tpu.dma_semaphore, #tpu.memory_space<semaphore_mem>>
      tpu.enqueue_dma source(%275 : memref<52x52x128xf32, #tpu.memory_space<any>>) target(%277 : memref<52x52x128xf32, #tpu.memory_space<vmem>>) target_semaphore(%279 : memref<!tpu.dma_semaphore, #tpu.memory_space<semaphore_mem>>)
    } else {
    }
    %c16_i32 = arith.constant 16 : i32
    %13 = arith.muli %arg1, %c16_i32 : i32
    %c0_i32_5 = arith.constant 0 : i32
    %c0_i32_6 = arith.constant 0 : i32
    %14 = tpu.memref_slice %arg2[%arg0, %13, %c0_i32_5, %c0_i32_6] : memref<2x52x52x128xf32, #tpu.memory_space<any>> -> memref<1x52x52x128xf32, #tpu.memory_space<any>>
    %15 = tpu.memref_squeeze %14 : memref<1x52x52x128xf32, #tpu.memory_space<any>> -> memref<52x52x128xf32, #tpu.memory_space<any>>
    %c0_i32_7 = arith.constant 0 : i32
    %c0_i32_8 = arith.constant 0 : i32
    %c0_i32_9 = arith.constant 0 : i32
    %16 = tpu.memref_slice %arg8[%9, %c0_i32_7, %c0_i32_8, %c0_i32_9] : memref<2x52x52x128xf32, #tpu.memory_space<vmem>> -> memref<1x52x52x128xf32, #tpu.memory_space<vmem>>
    %17 = tpu.memref_squeeze %16 : memref<1x52x52x128xf32, #tpu.memory_space<vmem>> -> memref<52x52x128xf32, #tpu.memory_space<vmem>>
    %18 = tpu.memref_slice %arg9[%9] : memref<2x!tpu.dma_semaphore, #tpu.memory_space<semaphore_mem>> -> memref<1x!tpu.dma_semaphore, #tpu.memory_space<semaphore_mem>>
    %19 = tpu.memref_squeeze %18 : memref<1x!tpu.dma_semaphore, #tpu.memory_space<semaphore_mem>> -> memref<!tpu.dma_semaphore, #tpu.memory_space<semaphore_mem>>
    tpu.wait_dma2 semaphore(%19 : memref<!tpu.dma_semaphore, #tpu.memory_space<semaphore_mem>>) src(%15 : memref<52x52x128xf32, #tpu.memory_space<any>>) dst(%17 : memref<52x52x128xf32, #tpu.memory_space<vmem>>)
    %c1_i32_10 = arith.constant 1 : i32
    %20 = arith.addi %arg1, %c1_i32_10 : i32
    %c1_i32_11 = arith.constant 1 : i32
    %21 = arith.cmpi slt, %20, %c1_i32_11 : i32
    %22 = arith.extui %21 : i1 to i32
    %c0_i32_12 = arith.constant 0 : i32
    %23 = arith.cmpi ne, %22, %c0_i32_12 : i32
    scf.if %23 {
      %c1_i32_331 = arith.constant 1 : i32
      %274 = arith.addi %arg1, %c1_i32_331 : i32
      %c16_i32_332 = arith.constant 16 : i32
      %275 = arith.muli %274, %c16_i32_332 : i32
      %c1_i32_333 = arith.constant 1 : i32
      %276 = arith.subi %c1_i32_333, %9 : i32
      %c0_i32_334 = arith.constant 0 : i32
      %c0_i32_335 = arith.constant 0 : i32
      %277 = tpu.memref_slice %arg2[%arg0, %275, %c0_i32_334, %c0_i32_335] : memref<2x52x52x128xf32, #tpu.memory_space<any>> -> memref<1x52x52x128xf32, #tpu.memory_space<any>>
      %278 = tpu.memref_squeeze %277 : memref<1x52x52x128xf32, #tpu.memory_space<any>> -> memref<52x52x128xf32, #tpu.memory_space<any>>
      %c0_i32_336 = arith.constant 0 : i32
      %c0_i32_337 = arith.constant 0 : i32
      %c0_i32_338 = arith.constant 0 : i32
      %279 = tpu.memref_slice %arg8[%276, %c0_i32_336, %c0_i32_337, %c0_i32_338] : memref<2x52x52x128xf32, #tpu.memory_space<vmem>> -> memref<1x52x52x128xf32, #tpu.memory_space<vmem>>
      %280 = tpu.memref_squeeze %279 : memref<1x52x52x128xf32, #tpu.memory_space<vmem>> -> memref<52x52x128xf32, #tpu.memory_space<vmem>>
      %281 = tpu.memref_slice %arg9[%276] : memref<2x!tpu.dma_semaphore, #tpu.memory_space<semaphore_mem>> -> memref<1x!tpu.dma_semaphore, #tpu.memory_space<semaphore_mem>>
      %282 = tpu.memref_squeeze %281 : memref<1x!tpu.dma_semaphore, #tpu.memory_space<semaphore_mem>> -> memref<!tpu.dma_semaphore, #tpu.memory_space<semaphore_mem>>
      tpu.enqueue_dma source(%278 : memref<52x52x128xf32, #tpu.memory_space<any>>) target(%280 : memref<52x52x128xf32, #tpu.memory_space<vmem>>) target_semaphore(%282 : memref<!tpu.dma_semaphore, #tpu.memory_space<semaphore_mem>>)
    } else {
    }
    %c0_i32_13 = arith.constant 0 : i32
    %c0_i32_14 = arith.constant 0 : i32
    %c0_i32_15 = arith.constant 0 : i32
    %24 = tpu.memref_slice %arg8[%9, %c0_i32_13, %c0_i32_14, %c0_i32_15] : memref<2x52x52x128xf32, #tpu.memory_space<vmem>> -> memref<1x52x52x128xf32, #tpu.memory_space<vmem>>
    %25 = tpu.memref_squeeze %24 : memref<1x52x52x128xf32, #tpu.memory_space<vmem>> -> memref<52x52x128xf32, #tpu.memory_space<vmem>>
    %c18 = arith.constant 18 : index
    %c18_16 = arith.constant 18 : index
    %c0 = arith.constant 0 : index
    %26 = vector.load %25[%c18, %c18_16, %c0] : memref<52x52x128xf32, #tpu.memory_space<vmem>>, vector<16x16x128xf32>
    %27 = vector.shape_cast %26 : vector<16x16x128xf32> to vector<256x128xf32>
    %c0_17 = arith.constant 0 : index
    %c0_18 = arith.constant 0 : index
    %28 = vector.load %arg4[%c0_17, %c0_18] : memref<128x128xf32, #tpu.memory_space<vmem>>, vector<128x128xf32>
    %cst = arith.constant dense<0.000000e+00> : vector<256x128xf32>
    %29 = tpu.matmul %27, %28, %cst {dimension_numbers = #tpu.dot_dimension_numbers<[1], [0], [0], [1], [0, 0, 1, 1], [], []>} : vector<256x128xf32>, vector<128x128xf32>, vector<256x128xf32> -> vector<256x128xf32>
    %cst_19 = arith.constant 0.000000e+00 : f32
    %30 = vector.broadcast %cst_19 : f32 to vector<256x128xf32>
    %31 = arith.maximumf %29, %30 : vector<256x128xf32>
    %c0_20 = arith.constant 0 : index
    %c0_21 = arith.constant 0 : index
    %c0_22 = arith.constant 0 : index
    %32 = vector.load %arg6[%c0_20, %c0_21, %c0_22] : memref<4x128x128xf32, #tpu.memory_space<vmem>>, vector<1x128x128xf32>
    %33 = vector.shape_cast %32 : vector<1x128x128xf32> to vector<128x128xf32>
    %cst_23 = arith.constant dense<0.000000e+00> : vector<256x128xf32>
    %34 = tpu.matmul %31, %33, %cst_23 {dimension_numbers = #tpu.dot_dimension_numbers<[1], [0], [0], [1], [0, 0, 1, 1], [], []>} : vector<256x128xf32>, vector<128x128xf32>, vector<256x128xf32> -> vector<256x128xf32>
    %c0_i32_24 = arith.constant 0 : i32
    %c0_i32_25 = arith.constant 0 : i32
    %c0_i32_26 = arith.constant 0 : i32
    %35 = tpu.memref_slice %arg8[%9, %c0_i32_24, %c0_i32_25, %c0_i32_26] : memref<2x52x52x128xf32, #tpu.memory_space<vmem>> -> memref<1x52x52x128xf32, #tpu.memory_space<vmem>>
    %36 = tpu.memref_squeeze %35 : memref<1x52x52x128xf32, #tpu.memory_space<vmem>> -> memref<52x52x128xf32, #tpu.memory_space<vmem>>
    %c12 = arith.constant 12 : index
    %c12_27 = arith.constant 12 : index
    %c0_28 = arith.constant 0 : index
    %37 = vector.load %36[%c12, %c12_27, %c0_28] : memref<52x52x128xf32, #tpu.memory_space<vmem>>, vector<16x16x128xf32>
    %38 = vector.shape_cast %37 : vector<16x16x128xf32> to vector<256x128xf32>
    %c0_29 = arith.constant 0 : index
    %c0_30 = arith.constant 0 : index
    %c0_31 = arith.constant 0 : index
    %c0_32 = arith.constant 0 : index
    %39 = vector.load %arg5[%c0_29, %c0_30, %c0_31, %c0_32] : memref<3x9x128x128xf32, #tpu.memory_space<vmem>>, vector<1x1x128x128xf32>
    %40 = vector.shape_cast %39 : vector<1x1x128x128xf32> to vector<128x128xf32>
    %cst_33 = arith.constant dense<0.000000e+00> : vector<256x128xf32>
    %41 = tpu.matmul %38, %40, %cst_33 {dimension_numbers = #tpu.dot_dimension_numbers<[1], [0], [0], [1], [0, 0, 1, 1], [], []>} : vector<256x128xf32>, vector<128x128xf32>, vector<256x128xf32> -> vector<256x128xf32>
    %c0_i32_34 = arith.constant 0 : i32
    %c0_i32_35 = arith.constant 0 : i32
    %c0_i32_36 = arith.constant 0 : i32
    %42 = tpu.memref_slice %arg8[%9, %c0_i32_34, %c0_i32_35, %c0_i32_36] : memref<2x52x52x128xf32, #tpu.memory_space<vmem>> -> memref<1x52x52x128xf32, #tpu.memory_space<vmem>>
    %43 = tpu.memref_squeeze %42 : memref<1x52x52x128xf32, #tpu.memory_space<vmem>> -> memref<52x52x128xf32, #tpu.memory_space<vmem>>
    %c12_37 = arith.constant 12 : index
    %c18_38 = arith.constant 18 : index
    %c0_39 = arith.constant 0 : index
    %44 = vector.load %43[%c12_37, %c18_38, %c0_39] : memref<52x52x128xf32, #tpu.memory_space<vmem>>, vector<16x16x128xf32>
    %45 = vector.shape_cast %44 : vector<16x16x128xf32> to vector<256x128xf32>
    %c0_40 = arith.constant 0 : index
    %c1 = arith.constant 1 : index
    %c0_41 = arith.constant 0 : index
    %c0_42 = arith.constant 0 : index
    %46 = vector.load %arg5[%c0_40, %c1, %c0_41, %c0_42] : memref<3x9x128x128xf32, #tpu.memory_space<vmem>>, vector<1x1x128x128xf32>
    %47 = vector.shape_cast %46 : vector<1x1x128x128xf32> to vector<128x128xf32>
    %cst_43 = arith.constant dense<0.000000e+00> : vector<256x128xf32>
    %48 = tpu.matmul %45, %47, %cst_43 {dimension_numbers = #tpu.dot_dimension_numbers<[1], [0], [0], [1], [0, 0, 1, 1], [], []>} : vector<256x128xf32>, vector<128x128xf32>, vector<256x128xf32> -> vector<256x128xf32>
    %49 = arith.addf %41, %48 : vector<256x128xf32>
    %c0_i32_44 = arith.constant 0 : i32
    %c0_i32_45 = arith.constant 0 : i32
    %c0_i32_46 = arith.constant 0 : i32
    %50 = tpu.memref_slice %arg8[%9, %c0_i32_44, %c0_i32_45, %c0_i32_46] : memref<2x52x52x128xf32, #tpu.memory_space<vmem>> -> memref<1x52x52x128xf32, #tpu.memory_space<vmem>>
    %51 = tpu.memref_squeeze %50 : memref<1x52x52x128xf32, #tpu.memory_space<vmem>> -> memref<52x52x128xf32, #tpu.memory_space<vmem>>
    %c12_47 = arith.constant 12 : index
    %c24 = arith.constant 24 : index
    %c0_48 = arith.constant 0 : index
    %52 = vector.load %51[%c12_47, %c24, %c0_48] : memref<52x52x128xf32, #tpu.memory_space<vmem>>, vector<16x16x128xf32>
    %53 = vector.shape_cast %52 : vector<16x16x128xf32> to vector<256x128xf32>
    %c0_49 = arith.constant 0 : index
    %c2 = arith.constant 2 : index
    %c0_50 = arith.constant 0 : index
    %c0_51 = arith.constant 0 : index
    %54 = vector.load %arg5[%c0_49, %c2, %c0_50, %c0_51] : memref<3x9x128x128xf32, #tpu.memory_space<vmem>>, vector<1x1x128x128xf32>
    %55 = vector.shape_cast %54 : vector<1x1x128x128xf32> to vector<128x128xf32>
    %cst_52 = arith.constant dense<0.000000e+00> : vector<256x128xf32>
    %56 = tpu.matmul %53, %55, %cst_52 {dimension_numbers = #tpu.dot_dimension_numbers<[1], [0], [0], [1], [0, 0, 1, 1], [], []>} : vector<256x128xf32>, vector<128x128xf32>, vector<256x128xf32> -> vector<256x128xf32>
    %57 = arith.addf %49, %56 : vector<256x128xf32>
    %c0_i32_53 = arith.constant 0 : i32
    %c0_i32_54 = arith.constant 0 : i32
    %c0_i32_55 = arith.constant 0 : i32
    %58 = tpu.memref_slice %arg8[%9, %c0_i32_53, %c0_i32_54, %c0_i32_55] : memref<2x52x52x128xf32, #tpu.memory_space<vmem>> -> memref<1x52x52x128xf32, #tpu.memory_space<vmem>>
    %59 = tpu.memref_squeeze %58 : memref<1x52x52x128xf32, #tpu.memory_space<vmem>> -> memref<52x52x128xf32, #tpu.memory_space<vmem>>
    %c18_56 = arith.constant 18 : index
    %c12_57 = arith.constant 12 : index
    %c0_58 = arith.constant 0 : index
    %60 = vector.load %59[%c18_56, %c12_57, %c0_58] : memref<52x52x128xf32, #tpu.memory_space<vmem>>, vector<16x16x128xf32>
    %61 = vector.shape_cast %60 : vector<16x16x128xf32> to vector<256x128xf32>
    %c0_59 = arith.constant 0 : index
    %c3 = arith.constant 3 : index
    %c0_60 = arith.constant 0 : index
    %c0_61 = arith.constant 0 : index
    %62 = vector.load %arg5[%c0_59, %c3, %c0_60, %c0_61] : memref<3x9x128x128xf32, #tpu.memory_space<vmem>>, vector<1x1x128x128xf32>
    %63 = vector.shape_cast %62 : vector<1x1x128x128xf32> to vector<128x128xf32>
    %cst_62 = arith.constant dense<0.000000e+00> : vector<256x128xf32>
    %64 = tpu.matmul %61, %63, %cst_62 {dimension_numbers = #tpu.dot_dimension_numbers<[1], [0], [0], [1], [0, 0, 1, 1], [], []>} : vector<256x128xf32>, vector<128x128xf32>, vector<256x128xf32> -> vector<256x128xf32>
    %65 = arith.addf %57, %64 : vector<256x128xf32>
    %c0_i32_63 = arith.constant 0 : i32
    %c0_i32_64 = arith.constant 0 : i32
    %c0_i32_65 = arith.constant 0 : i32
    %66 = tpu.memref_slice %arg8[%9, %c0_i32_63, %c0_i32_64, %c0_i32_65] : memref<2x52x52x128xf32, #tpu.memory_space<vmem>> -> memref<1x52x52x128xf32, #tpu.memory_space<vmem>>
    %67 = tpu.memref_squeeze %66 : memref<1x52x52x128xf32, #tpu.memory_space<vmem>> -> memref<52x52x128xf32, #tpu.memory_space<vmem>>
    %c18_66 = arith.constant 18 : index
    %c18_67 = arith.constant 18 : index
    %c0_68 = arith.constant 0 : index
    %68 = vector.load %67[%c18_66, %c18_67, %c0_68] : memref<52x52x128xf32, #tpu.memory_space<vmem>>, vector<16x16x128xf32>
    %69 = vector.shape_cast %68 : vector<16x16x128xf32> to vector<256x128xf32>
    %c0_69 = arith.constant 0 : index
    %c4 = arith.constant 4 : index
    %c0_70 = arith.constant 0 : index
    %c0_71 = arith.constant 0 : index
    %70 = vector.load %arg5[%c0_69, %c4, %c0_70, %c0_71] : memref<3x9x128x128xf32, #tpu.memory_space<vmem>>, vector<1x1x128x128xf32>
    %71 = vector.shape_cast %70 : vector<1x1x128x128xf32> to vector<128x128xf32>
    %cst_72 = arith.constant dense<0.000000e+00> : vector<256x128xf32>
    %72 = tpu.matmul %69, %71, %cst_72 {dimension_numbers = #tpu.dot_dimension_numbers<[1], [0], [0], [1], [0, 0, 1, 1], [], []>} : vector<256x128xf32>, vector<128x128xf32>, vector<256x128xf32> -> vector<256x128xf32>
    %73 = arith.addf %65, %72 : vector<256x128xf32>
    %c0_i32_73 = arith.constant 0 : i32
    %c0_i32_74 = arith.constant 0 : i32
    %c0_i32_75 = arith.constant 0 : i32
    %74 = tpu.memref_slice %arg8[%9, %c0_i32_73, %c0_i32_74, %c0_i32_75] : memref<2x52x52x128xf32, #tpu.memory_space<vmem>> -> memref<1x52x52x128xf32, #tpu.memory_space<vmem>>
    %75 = tpu.memref_squeeze %74 : memref<1x52x52x128xf32, #tpu.memory_space<vmem>> -> memref<52x52x128xf32, #tpu.memory_space<vmem>>
    %c18_76 = arith.constant 18 : index
    %c24_77 = arith.constant 24 : index
    %c0_78 = arith.constant 0 : index
    %76 = vector.load %75[%c18_76, %c24_77, %c0_78] : memref<52x52x128xf32, #tpu.memory_space<vmem>>, vector<16x16x128xf32>
    %77 = vector.shape_cast %76 : vector<16x16x128xf32> to vector<256x128xf32>
    %c0_79 = arith.constant 0 : index
    %c5 = arith.constant 5 : index
    %c0_80 = arith.constant 0 : index
    %c0_81 = arith.constant 0 : index
    %78 = vector.load %arg5[%c0_79, %c5, %c0_80, %c0_81] : memref<3x9x128x128xf32, #tpu.memory_space<vmem>>, vector<1x1x128x128xf32>
    %79 = vector.shape_cast %78 : vector<1x1x128x128xf32> to vector<128x128xf32>
    %cst_82 = arith.constant dense<0.000000e+00> : vector<256x128xf32>
    %80 = tpu.matmul %77, %79, %cst_82 {dimension_numbers = #tpu.dot_dimension_numbers<[1], [0], [0], [1], [0, 0, 1, 1], [], []>} : vector<256x128xf32>, vector<128x128xf32>, vector<256x128xf32> -> vector<256x128xf32>
    %81 = arith.addf %73, %80 : vector<256x128xf32>
    %c0_i32_83 = arith.constant 0 : i32
    %c0_i32_84 = arith.constant 0 : i32
    %c0_i32_85 = arith.constant 0 : i32
    %82 = tpu.memref_slice %arg8[%9, %c0_i32_83, %c0_i32_84, %c0_i32_85] : memref<2x52x52x128xf32, #tpu.memory_space<vmem>> -> memref<1x52x52x128xf32, #tpu.memory_space<vmem>>
    %83 = tpu.memref_squeeze %82 : memref<1x52x52x128xf32, #tpu.memory_space<vmem>> -> memref<52x52x128xf32, #tpu.memory_space<vmem>>
    %c24_86 = arith.constant 24 : index
    %c12_87 = arith.constant 12 : index
    %c0_88 = arith.constant 0 : index
    %84 = vector.load %83[%c24_86, %c12_87, %c0_88] : memref<52x52x128xf32, #tpu.memory_space<vmem>>, vector<16x16x128xf32>
    %85 = vector.shape_cast %84 : vector<16x16x128xf32> to vector<256x128xf32>
    %c0_89 = arith.constant 0 : index
    %c6 = arith.constant 6 : index
    %c0_90 = arith.constant 0 : index
    %c0_91 = arith.constant 0 : index
    %86 = vector.load %arg5[%c0_89, %c6, %c0_90, %c0_91] : memref<3x9x128x128xf32, #tpu.memory_space<vmem>>, vector<1x1x128x128xf32>
    %87 = vector.shape_cast %86 : vector<1x1x128x128xf32> to vector<128x128xf32>
    %cst_92 = arith.constant dense<0.000000e+00> : vector<256x128xf32>
    %88 = tpu.matmul %85, %87, %cst_92 {dimension_numbers = #tpu.dot_dimension_numbers<[1], [0], [0], [1], [0, 0, 1, 1], [], []>} : vector<256x128xf32>, vector<128x128xf32>, vector<256x128xf32> -> vector<256x128xf32>
    %89 = arith.addf %81, %88 : vector<256x128xf32>
    %c0_i32_93 = arith.constant 0 : i32
    %c0_i32_94 = arith.constant 0 : i32
    %c0_i32_95 = arith.constant 0 : i32
    %90 = tpu.memref_slice %arg8[%9, %c0_i32_93, %c0_i32_94, %c0_i32_95] : memref<2x52x52x128xf32, #tpu.memory_space<vmem>> -> memref<1x52x52x128xf32, #tpu.memory_space<vmem>>
    %91 = tpu.memref_squeeze %90 : memref<1x52x52x128xf32, #tpu.memory_space<vmem>> -> memref<52x52x128xf32, #tpu.memory_space<vmem>>
    %c24_96 = arith.constant 24 : index
    %c18_97 = arith.constant 18 : index
    %c0_98 = arith.constant 0 : index
    %92 = vector.load %91[%c24_96, %c18_97, %c0_98] : memref<52x52x128xf32, #tpu.memory_space<vmem>>, vector<16x16x128xf32>
    %93 = vector.shape_cast %92 : vector<16x16x128xf32> to vector<256x128xf32>
    %c0_99 = arith.constant 0 : index
    %c7 = arith.constant 7 : index
    %c0_100 = arith.constant 0 : index
    %c0_101 = arith.constant 0 : index
    %94 = vector.load %arg5[%c0_99, %c7, %c0_100, %c0_101] : memref<3x9x128x128xf32, #tpu.memory_space<vmem>>, vector<1x1x128x128xf32>
    %95 = vector.shape_cast %94 : vector<1x1x128x128xf32> to vector<128x128xf32>
    %cst_102 = arith.constant dense<0.000000e+00> : vector<256x128xf32>
    %96 = tpu.matmul %93, %95, %cst_102 {dimension_numbers = #tpu.dot_dimension_numbers<[1], [0], [0], [1], [0, 0, 1, 1], [], []>} : vector<256x128xf32>, vector<128x128xf32>, vector<256x128xf32> -> vector<256x128xf32>
    %97 = arith.addf %89, %96 : vector<256x128xf32>
    %c0_i32_103 = arith.constant 0 : i32
    %c0_i32_104 = arith.constant 0 : i32
    %c0_i32_105 = arith.constant 0 : i32
    %98 = tpu.memref_slice %arg8[%9, %c0_i32_103, %c0_i32_104, %c0_i32_105] : memref<2x52x52x128xf32, #tpu.memory_space<vmem>> -> memref<1x52x52x128xf32, #tpu.memory_space<vmem>>
    %99 = tpu.memref_squeeze %98 : memref<1x52x52x128xf32, #tpu.memory_space<vmem>> -> memref<52x52x128xf32, #tpu.memory_space<vmem>>
    %c24_106 = arith.constant 24 : index
    %c24_107 = arith.constant 24 : index
    %c0_108 = arith.constant 0 : index
    %100 = vector.load %99[%c24_106, %c24_107, %c0_108] : memref<52x52x128xf32, #tpu.memory_space<vmem>>, vector<16x16x128xf32>
    %101 = vector.shape_cast %100 : vector<16x16x128xf32> to vector<256x128xf32>
    %c0_109 = arith.constant 0 : index
    %c8 = arith.constant 8 : index
    %c0_110 = arith.constant 0 : index
    %c0_111 = arith.constant 0 : index
    %102 = vector.load %arg5[%c0_109, %c8, %c0_110, %c0_111] : memref<3x9x128x128xf32, #tpu.memory_space<vmem>>, vector<1x1x128x128xf32>
    %103 = vector.shape_cast %102 : vector<1x1x128x128xf32> to vector<128x128xf32>
    %cst_112 = arith.constant dense<0.000000e+00> : vector<256x128xf32>
    %104 = tpu.matmul %101, %103, %cst_112 {dimension_numbers = #tpu.dot_dimension_numbers<[1], [0], [0], [1], [0, 0, 1, 1], [], []>} : vector<256x128xf32>, vector<128x128xf32>, vector<256x128xf32> -> vector<256x128xf32>
    %105 = arith.addf %97, %104 : vector<256x128xf32>
    %cst_113 = arith.constant 0.000000e+00 : f32
    %106 = vector.broadcast %cst_113 : f32 to vector<256x128xf32>
    %107 = arith.maximumf %105, %106 : vector<256x128xf32>
    %c1_114 = arith.constant 1 : index
    %c0_115 = arith.constant 0 : index
    %c0_116 = arith.constant 0 : index
    %108 = vector.load %arg6[%c1_114, %c0_115, %c0_116] : memref<4x128x128xf32, #tpu.memory_space<vmem>>, vector<1x128x128xf32>
    %109 = vector.shape_cast %108 : vector<1x128x128xf32> to vector<128x128xf32>
    %cst_117 = arith.constant dense<0.000000e+00> : vector<256x128xf32>
    %110 = tpu.matmul %107, %109, %cst_117 {dimension_numbers = #tpu.dot_dimension_numbers<[1], [0], [0], [1], [0, 0, 1, 1], [], []>} : vector<256x128xf32>, vector<128x128xf32>, vector<256x128xf32> -> vector<256x128xf32>
    %111 = arith.addf %34, %110 : vector<256x128xf32>
    %c0_i32_118 = arith.constant 0 : i32
    %c0_i32_119 = arith.constant 0 : i32
    %c0_i32_120 = arith.constant 0 : i32
    %112 = tpu.memref_slice %arg8[%9, %c0_i32_118, %c0_i32_119, %c0_i32_120] : memref<2x52x52x128xf32, #tpu.memory_space<vmem>> -> memref<1x52x52x128xf32, #tpu.memory_space<vmem>>
    %113 = tpu.memref_squeeze %112 : memref<1x52x52x128xf32, #tpu.memory_space<vmem>> -> memref<52x52x128xf32, #tpu.memory_space<vmem>>
    %c6_121 = arith.constant 6 : index
    %c6_122 = arith.constant 6 : index
    %c0_123 = arith.constant 0 : index
    %114 = vector.load %113[%c6_121, %c6_122, %c0_123] : memref<52x52x128xf32, #tpu.memory_space<vmem>>, vector<16x16x128xf32>
    %115 = vector.shape_cast %114 : vector<16x16x128xf32> to vector<256x128xf32>
    %c1_124 = arith.constant 1 : index
    %c0_125 = arith.constant 0 : index
    %c0_126 = arith.constant 0 : index
    %c0_127 = arith.constant 0 : index
    %116 = vector.load %arg5[%c1_124, %c0_125, %c0_126, %c0_127] : memref<3x9x128x128xf32, #tpu.memory_space<vmem>>, vector<1x1x128x128xf32>
    %117 = vector.shape_cast %116 : vector<1x1x128x128xf32> to vector<128x128xf32>
    %cst_128 = arith.constant dense<0.000000e+00> : vector<256x128xf32>
    %118 = tpu.matmul %115, %117, %cst_128 {dimension_numbers = #tpu.dot_dimension_numbers<[1], [0], [0], [1], [0, 0, 1, 1], [], []>} : vector<256x128xf32>, vector<128x128xf32>, vector<256x128xf32> -> vector<256x128xf32>
    %c0_i32_129 = arith.constant 0 : i32
    %c0_i32_130 = arith.constant 0 : i32
    %c0_i32_131 = arith.constant 0 : i32
    %119 = tpu.memref_slice %arg8[%9, %c0_i32_129, %c0_i32_130, %c0_i32_131] : memref<2x52x52x128xf32, #tpu.memory_space<vmem>> -> memref<1x52x52x128xf32, #tpu.memory_space<vmem>>
    %120 = tpu.memref_squeeze %119 : memref<1x52x52x128xf32, #tpu.memory_space<vmem>> -> memref<52x52x128xf32, #tpu.memory_space<vmem>>
    %c6_132 = arith.constant 6 : index
    %c18_133 = arith.constant 18 : index
    %c0_134 = arith.constant 0 : index
    %121 = vector.load %120[%c6_132, %c18_133, %c0_134] : memref<52x52x128xf32, #tpu.memory_space<vmem>>, vector<16x16x128xf32>
    %122 = vector.shape_cast %121 : vector<16x16x128xf32> to vector<256x128xf32>
    %c1_135 = arith.constant 1 : index
    %c1_136 = arith.constant 1 : index
    %c0_137 = arith.constant 0 : index
    %c0_138 = arith.constant 0 : index
    %123 = vector.load %arg5[%c1_135, %c1_136, %c0_137, %c0_138] : memref<3x9x128x128xf32, #tpu.memory_space<vmem>>, vector<1x1x128x128xf32>
    %124 = vector.shape_cast %123 : vector<1x1x128x128xf32> to vector<128x128xf32>
    %cst_139 = arith.constant dense<0.000000e+00> : vector<256x128xf32>
    %125 = tpu.matmul %122, %124, %cst_139 {dimension_numbers = #tpu.dot_dimension_numbers<[1], [0], [0], [1], [0, 0, 1, 1], [], []>} : vector<256x128xf32>, vector<128x128xf32>, vector<256x128xf32> -> vector<256x128xf32>
    %126 = arith.addf %118, %125 : vector<256x128xf32>
    %c0_i32_140 = arith.constant 0 : i32
    %c0_i32_141 = arith.constant 0 : i32
    %c0_i32_142 = arith.constant 0 : i32
    %127 = tpu.memref_slice %arg8[%9, %c0_i32_140, %c0_i32_141, %c0_i32_142] : memref<2x52x52x128xf32, #tpu.memory_space<vmem>> -> memref<1x52x52x128xf32, #tpu.memory_space<vmem>>
    %128 = tpu.memref_squeeze %127 : memref<1x52x52x128xf32, #tpu.memory_space<vmem>> -> memref<52x52x128xf32, #tpu.memory_space<vmem>>
    %c6_143 = arith.constant 6 : index
    %c30 = arith.constant 30 : index
    %c0_144 = arith.constant 0 : index
    %129 = vector.load %128[%c6_143, %c30, %c0_144] : memref<52x52x128xf32, #tpu.memory_space<vmem>>, vector<16x16x128xf32>
    %130 = vector.shape_cast %129 : vector<16x16x128xf32> to vector<256x128xf32>
    %c1_145 = arith.constant 1 : index
    %c2_146 = arith.constant 2 : index
    %c0_147 = arith.constant 0 : index
    %c0_148 = arith.constant 0 : index
    %131 = vector.load %arg5[%c1_145, %c2_146, %c0_147, %c0_148] : memref<3x9x128x128xf32, #tpu.memory_space<vmem>>, vector<1x1x128x128xf32>
    %132 = vector.shape_cast %131 : vector<1x1x128x128xf32> to vector<128x128xf32>
    %cst_149 = arith.constant dense<0.000000e+00> : vector<256x128xf32>
    %133 = tpu.matmul %130, %132, %cst_149 {dimension_numbers = #tpu.dot_dimension_numbers<[1], [0], [0], [1], [0, 0, 1, 1], [], []>} : vector<256x128xf32>, vector<128x128xf32>, vector<256x128xf32> -> vector<256x128xf32>
    %134 = arith.addf %126, %133 : vector<256x128xf32>
    %c0_i32_150 = arith.constant 0 : i32
    %c0_i32_151 = arith.constant 0 : i32
    %c0_i32_152 = arith.constant 0 : i32
    %135 = tpu.memref_slice %arg8[%9, %c0_i32_150, %c0_i32_151, %c0_i32_152] : memref<2x52x52x128xf32, #tpu.memory_space<vmem>> -> memref<1x52x52x128xf32, #tpu.memory_space<vmem>>
    %136 = tpu.memref_squeeze %135 : memref<1x52x52x128xf32, #tpu.memory_space<vmem>> -> memref<52x52x128xf32, #tpu.memory_space<vmem>>
    %c18_153 = arith.constant 18 : index
    %c6_154 = arith.constant 6 : index
    %c0_155 = arith.constant 0 : index
    %137 = vector.load %136[%c18_153, %c6_154, %c0_155] : memref<52x52x128xf32, #tpu.memory_space<vmem>>, vector<16x16x128xf32>
    %138 = vector.shape_cast %137 : vector<16x16x128xf32> to vector<256x128xf32>
    %c1_156 = arith.constant 1 : index
    %c3_157 = arith.constant 3 : index
    %c0_158 = arith.constant 0 : index
    %c0_159 = arith.constant 0 : index
    %139 = vector.load %arg5[%c1_156, %c3_157, %c0_158, %c0_159] : memref<3x9x128x128xf32, #tpu.memory_space<vmem>>, vector<1x1x128x128xf32>
    %140 = vector.shape_cast %139 : vector<1x1x128x128xf32> to vector<128x128xf32>
    %cst_160 = arith.constant dense<0.000000e+00> : vector<256x128xf32>
    %141 = tpu.matmul %138, %140, %cst_160 {dimension_numbers = #tpu.dot_dimension_numbers<[1], [0], [0], [1], [0, 0, 1, 1], [], []>} : vector<256x128xf32>, vector<128x128xf32>, vector<256x128xf32> -> vector<256x128xf32>
    %142 = arith.addf %134, %141 : vector<256x128xf32>
    %c0_i32_161 = arith.constant 0 : i32
    %c0_i32_162 = arith.constant 0 : i32
    %c0_i32_163 = arith.constant 0 : i32
    %143 = tpu.memref_slice %arg8[%9, %c0_i32_161, %c0_i32_162, %c0_i32_163] : memref<2x52x52x128xf32, #tpu.memory_space<vmem>> -> memref<1x52x52x128xf32, #tpu.memory_space<vmem>>
    %144 = tpu.memref_squeeze %143 : memref<1x52x52x128xf32, #tpu.memory_space<vmem>> -> memref<52x52x128xf32, #tpu.memory_space<vmem>>
    %c18_164 = arith.constant 18 : index
    %c18_165 = arith.constant 18 : index
    %c0_166 = arith.constant 0 : index
    %145 = vector.load %144[%c18_164, %c18_165, %c0_166] : memref<52x52x128xf32, #tpu.memory_space<vmem>>, vector<16x16x128xf32>
    %146 = vector.shape_cast %145 : vector<16x16x128xf32> to vector<256x128xf32>
    %c1_167 = arith.constant 1 : index
    %c4_168 = arith.constant 4 : index
    %c0_169 = arith.constant 0 : index
    %c0_170 = arith.constant 0 : index
    %147 = vector.load %arg5[%c1_167, %c4_168, %c0_169, %c0_170] : memref<3x9x128x128xf32, #tpu.memory_space<vmem>>, vector<1x1x128x128xf32>
    %148 = vector.shape_cast %147 : vector<1x1x128x128xf32> to vector<128x128xf32>
    %cst_171 = arith.constant dense<0.000000e+00> : vector<256x128xf32>
    %149 = tpu.matmul %146, %148, %cst_171 {dimension_numbers = #tpu.dot_dimension_numbers<[1], [0], [0], [1], [0, 0, 1, 1], [], []>} : vector<256x128xf32>, vector<128x128xf32>, vector<256x128xf32> -> vector<256x128xf32>
    %150 = arith.addf %142, %149 : vector<256x128xf32>
    %c0_i32_172 = arith.constant 0 : i32
    %c0_i32_173 = arith.constant 0 : i32
    %c0_i32_174 = arith.constant 0 : i32
    %151 = tpu.memref_slice %arg8[%9, %c0_i32_172, %c0_i32_173, %c0_i32_174] : memref<2x52x52x128xf32, #tpu.memory_space<vmem>> -> memref<1x52x52x128xf32, #tpu.memory_space<vmem>>
    %152 = tpu.memref_squeeze %151 : memref<1x52x52x128xf32, #tpu.memory_space<vmem>> -> memref<52x52x128xf32, #tpu.memory_space<vmem>>
    %c18_175 = arith.constant 18 : index
    %c30_176 = arith.constant 30 : index
    %c0_177 = arith.constant 0 : index
    %153 = vector.load %152[%c18_175, %c30_176, %c0_177] : memref<52x52x128xf32, #tpu.memory_space<vmem>>, vector<16x16x128xf32>
    %154 = vector.shape_cast %153 : vector<16x16x128xf32> to vector<256x128xf32>
    %c1_178 = arith.constant 1 : index
    %c5_179 = arith.constant 5 : index
    %c0_180 = arith.constant 0 : index
    %c0_181 = arith.constant 0 : index
    %155 = vector.load %arg5[%c1_178, %c5_179, %c0_180, %c0_181] : memref<3x9x128x128xf32, #tpu.memory_space<vmem>>, vector<1x1x128x128xf32>
    %156 = vector.shape_cast %155 : vector<1x1x128x128xf32> to vector<128x128xf32>
    %cst_182 = arith.constant dense<0.000000e+00> : vector<256x128xf32>
    %157 = tpu.matmul %154, %156, %cst_182 {dimension_numbers = #tpu.dot_dimension_numbers<[1], [0], [0], [1], [0, 0, 1, 1], [], []>} : vector<256x128xf32>, vector<128x128xf32>, vector<256x128xf32> -> vector<256x128xf32>
    %158 = arith.addf %150, %157 : vector<256x128xf32>
    %c0_i32_183 = arith.constant 0 : i32
    %c0_i32_184 = arith.constant 0 : i32
    %c0_i32_185 = arith.constant 0 : i32
    %159 = tpu.memref_slice %arg8[%9, %c0_i32_183, %c0_i32_184, %c0_i32_185] : memref<2x52x52x128xf32, #tpu.memory_space<vmem>> -> memref<1x52x52x128xf32, #tpu.memory_space<vmem>>
    %160 = tpu.memref_squeeze %159 : memref<1x52x52x128xf32, #tpu.memory_space<vmem>> -> memref<52x52x128xf32, #tpu.memory_space<vmem>>
    %c30_186 = arith.constant 30 : index
    %c6_187 = arith.constant 6 : index
    %c0_188 = arith.constant 0 : index
    %161 = vector.load %160[%c30_186, %c6_187, %c0_188] : memref<52x52x128xf32, #tpu.memory_space<vmem>>, vector<16x16x128xf32>
    %162 = vector.shape_cast %161 : vector<16x16x128xf32> to vector<256x128xf32>
    %c1_189 = arith.constant 1 : index
    %c6_190 = arith.constant 6 : index
    %c0_191 = arith.constant 0 : index
    %c0_192 = arith.constant 0 : index
    %163 = vector.load %arg5[%c1_189, %c6_190, %c0_191, %c0_192] : memref<3x9x128x128xf32, #tpu.memory_space<vmem>>, vector<1x1x128x128xf32>
    %164 = vector.shape_cast %163 : vector<1x1x128x128xf32> to vector<128x128xf32>
    %cst_193 = arith.constant dense<0.000000e+00> : vector<256x128xf32>
    %165 = tpu.matmul %162, %164, %cst_193 {dimension_numbers = #tpu.dot_dimension_numbers<[1], [0], [0], [1], [0, 0, 1, 1], [], []>} : vector<256x128xf32>, vector<128x128xf32>, vector<256x128xf32> -> vector<256x128xf32>
    %166 = arith.addf %158, %165 : vector<256x128xf32>
    %c0_i32_194 = arith.constant 0 : i32
    %c0_i32_195 = arith.constant 0 : i32
    %c0_i32_196 = arith.constant 0 : i32
    %167 = tpu.memref_slice %arg8[%9, %c0_i32_194, %c0_i32_195, %c0_i32_196] : memref<2x52x52x128xf32, #tpu.memory_space<vmem>> -> memref<1x52x52x128xf32, #tpu.memory_space<vmem>>
    %168 = tpu.memref_squeeze %167 : memref<1x52x52x128xf32, #tpu.memory_space<vmem>> -> memref<52x52x128xf32, #tpu.memory_space<vmem>>
    %c30_197 = arith.constant 30 : index
    %c18_198 = arith.constant 18 : index
    %c0_199 = arith.constant 0 : index
    %169 = vector.load %168[%c30_197, %c18_198, %c0_199] : memref<52x52x128xf32, #tpu.memory_space<vmem>>, vector<16x16x128xf32>
    %170 = vector.shape_cast %169 : vector<16x16x128xf32> to vector<256x128xf32>
    %c1_200 = arith.constant 1 : index
    %c7_201 = arith.constant 7 : index
    %c0_202 = arith.constant 0 : index
    %c0_203 = arith.constant 0 : index
    %171 = vector.load %arg5[%c1_200, %c7_201, %c0_202, %c0_203] : memref<3x9x128x128xf32, #tpu.memory_space<vmem>>, vector<1x1x128x128xf32>
    %172 = vector.shape_cast %171 : vector<1x1x128x128xf32> to vector<128x128xf32>
    %cst_204 = arith.constant dense<0.000000e+00> : vector<256x128xf32>
    %173 = tpu.matmul %170, %172, %cst_204 {dimension_numbers = #tpu.dot_dimension_numbers<[1], [0], [0], [1], [0, 0, 1, 1], [], []>} : vector<256x128xf32>, vector<128x128xf32>, vector<256x128xf32> -> vector<256x128xf32>
    %174 = arith.addf %166, %173 : vector<256x128xf32>
    %c0_i32_205 = arith.constant 0 : i32
    %c0_i32_206 = arith.constant 0 : i32
    %c0_i32_207 = arith.constant 0 : i32
    %175 = tpu.memref_slice %arg8[%9, %c0_i32_205, %c0_i32_206, %c0_i32_207] : memref<2x52x52x128xf32, #tpu.memory_space<vmem>> -> memref<1x52x52x128xf32, #tpu.memory_space<vmem>>
    %176 = tpu.memref_squeeze %175 : memref<1x52x52x128xf32, #tpu.memory_space<vmem>> -> memref<52x52x128xf32, #tpu.memory_space<vmem>>
    %c30_208 = arith.constant 30 : index
    %c30_209 = arith.constant 30 : index
    %c0_210 = arith.constant 0 : index
    %177 = vector.load %176[%c30_208, %c30_209, %c0_210] : memref<52x52x128xf32, #tpu.memory_space<vmem>>, vector<16x16x128xf32>
    %178 = vector.shape_cast %177 : vector<16x16x128xf32> to vector<256x128xf32>
    %c1_211 = arith.constant 1 : index
    %c8_212 = arith.constant 8 : index
    %c0_213 = arith.constant 0 : index
    %c0_214 = arith.constant 0 : index
    %179 = vector.load %arg5[%c1_211, %c8_212, %c0_213, %c0_214] : memref<3x9x128x128xf32, #tpu.memory_space<vmem>>, vector<1x1x128x128xf32>
    %180 = vector.shape_cast %179 : vector<1x1x128x128xf32> to vector<128x128xf32>
    %cst_215 = arith.constant dense<0.000000e+00> : vector<256x128xf32>
    %181 = tpu.matmul %178, %180, %cst_215 {dimension_numbers = #tpu.dot_dimension_numbers<[1], [0], [0], [1], [0, 0, 1, 1], [], []>} : vector<256x128xf32>, vector<128x128xf32>, vector<256x128xf32> -> vector<256x128xf32>
    %182 = arith.addf %174, %181 : vector<256x128xf32>
    %cst_216 = arith.constant 0.000000e+00 : f32
    %183 = vector.broadcast %cst_216 : f32 to vector<256x128xf32>
    %184 = arith.maximumf %182, %183 : vector<256x128xf32>
    %c2_217 = arith.constant 2 : index
    %c0_218 = arith.constant 0 : index
    %c0_219 = arith.constant 0 : index
    %185 = vector.load %arg6[%c2_217, %c0_218, %c0_219] : memref<4x128x128xf32, #tpu.memory_space<vmem>>, vector<1x128x128xf32>
    %186 = vector.shape_cast %185 : vector<1x128x128xf32> to vector<128x128xf32>
    %cst_220 = arith.constant dense<0.000000e+00> : vector<256x128xf32>
    %187 = tpu.matmul %184, %186, %cst_220 {dimension_numbers = #tpu.dot_dimension_numbers<[1], [0], [0], [1], [0, 0, 1, 1], [], []>} : vector<256x128xf32>, vector<128x128xf32>, vector<256x128xf32> -> vector<256x128xf32>
    %188 = arith.addf %111, %187 : vector<256x128xf32>
    %c0_i32_221 = arith.constant 0 : i32
    %c0_i32_222 = arith.constant 0 : i32
    %c0_i32_223 = arith.constant 0 : i32
    %189 = tpu.memref_slice %arg8[%9, %c0_i32_221, %c0_i32_222, %c0_i32_223] : memref<2x52x52x128xf32, #tpu.memory_space<vmem>> -> memref<1x52x52x128xf32, #tpu.memory_space<vmem>>
    %190 = tpu.memref_squeeze %189 : memref<1x52x52x128xf32, #tpu.memory_space<vmem>> -> memref<52x52x128xf32, #tpu.memory_space<vmem>>
    %c0_224 = arith.constant 0 : index
    %c0_225 = arith.constant 0 : index
    %c0_226 = arith.constant 0 : index
    %191 = vector.load %190[%c0_224, %c0_225, %c0_226] : memref<52x52x128xf32, #tpu.memory_space<vmem>>, vector<16x16x128xf32>
    %192 = vector.shape_cast %191 : vector<16x16x128xf32> to vector<256x128xf32>
    %c2_227 = arith.constant 2 : index
    %c0_228 = arith.constant 0 : index
    %c0_229 = arith.constant 0 : index
    %c0_230 = arith.constant 0 : index
    %193 = vector.load %arg5[%c2_227, %c0_228, %c0_229, %c0_230] : memref<3x9x128x128xf32, #tpu.memory_space<vmem>>, vector<1x1x128x128xf32>
    %194 = vector.shape_cast %193 : vector<1x1x128x128xf32> to vector<128x128xf32>
    %cst_231 = arith.constant dense<0.000000e+00> : vector<256x128xf32>
    %195 = tpu.matmul %192, %194, %cst_231 {dimension_numbers = #tpu.dot_dimension_numbers<[1], [0], [0], [1], [0, 0, 1, 1], [], []>} : vector<256x128xf32>, vector<128x128xf32>, vector<256x128xf32> -> vector<256x128xf32>
    %c0_i32_232 = arith.constant 0 : i32
    %c0_i32_233 = arith.constant 0 : i32
    %c0_i32_234 = arith.constant 0 : i32
    %196 = tpu.memref_slice %arg8[%9, %c0_i32_232, %c0_i32_233, %c0_i32_234] : memref<2x52x52x128xf32, #tpu.memory_space<vmem>> -> memref<1x52x52x128xf32, #tpu.memory_space<vmem>>
    %197 = tpu.memref_squeeze %196 : memref<1x52x52x128xf32, #tpu.memory_space<vmem>> -> memref<52x52x128xf32, #tpu.memory_space<vmem>>
    %c0_235 = arith.constant 0 : index
    %c18_236 = arith.constant 18 : index
    %c0_237 = arith.constant 0 : index
    %198 = vector.load %197[%c0_235, %c18_236, %c0_237] : memref<52x52x128xf32, #tpu.memory_space<vmem>>, vector<16x16x128xf32>
    %199 = vector.shape_cast %198 : vector<16x16x128xf32> to vector<256x128xf32>
    %c2_238 = arith.constant 2 : index
    %c1_239 = arith.constant 1 : index
    %c0_240 = arith.constant 0 : index
    %c0_241 = arith.constant 0 : index
    %200 = vector.load %arg5[%c2_238, %c1_239, %c0_240, %c0_241] : memref<3x9x128x128xf32, #tpu.memory_space<vmem>>, vector<1x1x128x128xf32>
    %201 = vector.shape_cast %200 : vector<1x1x128x128xf32> to vector<128x128xf32>
    %cst_242 = arith.constant dense<0.000000e+00> : vector<256x128xf32>
    %202 = tpu.matmul %199, %201, %cst_242 {dimension_numbers = #tpu.dot_dimension_numbers<[1], [0], [0], [1], [0, 0, 1, 1], [], []>} : vector<256x128xf32>, vector<128x128xf32>, vector<256x128xf32> -> vector<256x128xf32>
    %203 = arith.addf %195, %202 : vector<256x128xf32>
    %c0_i32_243 = arith.constant 0 : i32
    %c0_i32_244 = arith.constant 0 : i32
    %c0_i32_245 = arith.constant 0 : i32
    %204 = tpu.memref_slice %arg8[%9, %c0_i32_243, %c0_i32_244, %c0_i32_245] : memref<2x52x52x128xf32, #tpu.memory_space<vmem>> -> memref<1x52x52x128xf32, #tpu.memory_space<vmem>>
    %205 = tpu.memref_squeeze %204 : memref<1x52x52x128xf32, #tpu.memory_space<vmem>> -> memref<52x52x128xf32, #tpu.memory_space<vmem>>
    %c0_246 = arith.constant 0 : index
    %c36 = arith.constant 36 : index
    %c0_247 = arith.constant 0 : index
    %206 = vector.load %205[%c0_246, %c36, %c0_247] : memref<52x52x128xf32, #tpu.memory_space<vmem>>, vector<16x16x128xf32>
    %207 = vector.shape_cast %206 : vector<16x16x128xf32> to vector<256x128xf32>
    %c2_248 = arith.constant 2 : index
    %c2_249 = arith.constant 2 : index
    %c0_250 = arith.constant 0 : index
    %c0_251 = arith.constant 0 : index
    %208 = vector.load %arg5[%c2_248, %c2_249, %c0_250, %c0_251] : memref<3x9x128x128xf32, #tpu.memory_space<vmem>>, vector<1x1x128x128xf32>
    %209 = vector.shape_cast %208 : vector<1x1x128x128xf32> to vector<128x128xf32>
    %cst_252 = arith.constant dense<0.000000e+00> : vector<256x128xf32>
    %210 = tpu.matmul %207, %209, %cst_252 {dimension_numbers = #tpu.dot_dimension_numbers<[1], [0], [0], [1], [0, 0, 1, 1], [], []>} : vector<256x128xf32>, vector<128x128xf32>, vector<256x128xf32> -> vector<256x128xf32>
    %211 = arith.addf %203, %210 : vector<256x128xf32>
    %c0_i32_253 = arith.constant 0 : i32
    %c0_i32_254 = arith.constant 0 : i32
    %c0_i32_255 = arith.constant 0 : i32
    %212 = tpu.memref_slice %arg8[%9, %c0_i32_253, %c0_i32_254, %c0_i32_255] : memref<2x52x52x128xf32, #tpu.memory_space<vmem>> -> memref<1x52x52x128xf32, #tpu.memory_space<vmem>>
    %213 = tpu.memref_squeeze %212 : memref<1x52x52x128xf32, #tpu.memory_space<vmem>> -> memref<52x52x128xf32, #tpu.memory_space<vmem>>
    %c18_256 = arith.constant 18 : index
    %c0_257 = arith.constant 0 : index
    %c0_258 = arith.constant 0 : index
    %214 = vector.load %213[%c18_256, %c0_257, %c0_258] : memref<52x52x128xf32, #tpu.memory_space<vmem>>, vector<16x16x128xf32>
    %215 = vector.shape_cast %214 : vector<16x16x128xf32> to vector<256x128xf32>
    %c2_259 = arith.constant 2 : index
    %c3_260 = arith.constant 3 : index
    %c0_261 = arith.constant 0 : index
    %c0_262 = arith.constant 0 : index
    %216 = vector.load %arg5[%c2_259, %c3_260, %c0_261, %c0_262] : memref<3x9x128x128xf32, #tpu.memory_space<vmem>>, vector<1x1x128x128xf32>
    %217 = vector.shape_cast %216 : vector<1x1x128x128xf32> to vector<128x128xf32>
    %cst_263 = arith.constant dense<0.000000e+00> : vector<256x128xf32>
    %218 = tpu.matmul %215, %217, %cst_263 {dimension_numbers = #tpu.dot_dimension_numbers<[1], [0], [0], [1], [0, 0, 1, 1], [], []>} : vector<256x128xf32>, vector<128x128xf32>, vector<256x128xf32> -> vector<256x128xf32>
    %219 = arith.addf %211, %218 : vector<256x128xf32>
    %c0_i32_264 = arith.constant 0 : i32
    %c0_i32_265 = arith.constant 0 : i32
    %c0_i32_266 = arith.constant 0 : i32
    %220 = tpu.memref_slice %arg8[%9, %c0_i32_264, %c0_i32_265, %c0_i32_266] : memref<2x52x52x128xf32, #tpu.memory_space<vmem>> -> memref<1x52x52x128xf32, #tpu.memory_space<vmem>>
    %221 = tpu.memref_squeeze %220 : memref<1x52x52x128xf32, #tpu.memory_space<vmem>> -> memref<52x52x128xf32, #tpu.memory_space<vmem>>
    %c18_267 = arith.constant 18 : index
    %c18_268 = arith.constant 18 : index
    %c0_269 = arith.constant 0 : index
    %222 = vector.load %221[%c18_267, %c18_268, %c0_269] : memref<52x52x128xf32, #tpu.memory_space<vmem>>, vector<16x16x128xf32>
    %223 = vector.shape_cast %222 : vector<16x16x128xf32> to vector<256x128xf32>
    %c2_270 = arith.constant 2 : index
    %c4_271 = arith.constant 4 : index
    %c0_272 = arith.constant 0 : index
    %c0_273 = arith.constant 0 : index
    %224 = vector.load %arg5[%c2_270, %c4_271, %c0_272, %c0_273] : memref<3x9x128x128xf32, #tpu.memory_space<vmem>>, vector<1x1x128x128xf32>
    %225 = vector.shape_cast %224 : vector<1x1x128x128xf32> to vector<128x128xf32>
    %cst_274 = arith.constant dense<0.000000e+00> : vector<256x128xf32>
    %226 = tpu.matmul %223, %225, %cst_274 {dimension_numbers = #tpu.dot_dimension_numbers<[1], [0], [0], [1], [0, 0, 1, 1], [], []>} : vector<256x128xf32>, vector<128x128xf32>, vector<256x128xf32> -> vector<256x128xf32>
    %227 = arith.addf %219, %226 : vector<256x128xf32>
    %c0_i32_275 = arith.constant 0 : i32
    %c0_i32_276 = arith.constant 0 : i32
    %c0_i32_277 = arith.constant 0 : i32
    %228 = tpu.memref_slice %arg8[%9, %c0_i32_275, %c0_i32_276, %c0_i32_277] : memref<2x52x52x128xf32, #tpu.memory_space<vmem>> -> memref<1x52x52x128xf32, #tpu.memory_space<vmem>>
    %229 = tpu.memref_squeeze %228 : memref<1x52x52x128xf32, #tpu.memory_space<vmem>> -> memref<52x52x128xf32, #tpu.memory_space<vmem>>
    %c18_278 = arith.constant 18 : index
    %c36_279 = arith.constant 36 : index
    %c0_280 = arith.constant 0 : index
    %230 = vector.load %229[%c18_278, %c36_279, %c0_280] : memref<52x52x128xf32, #tpu.memory_space<vmem>>, vector<16x16x128xf32>
    %231 = vector.shape_cast %230 : vector<16x16x128xf32> to vector<256x128xf32>
    %c2_281 = arith.constant 2 : index
    %c5_282 = arith.constant 5 : index
    %c0_283 = arith.constant 0 : index
    %c0_284 = arith.constant 0 : index
    %232 = vector.load %arg5[%c2_281, %c5_282, %c0_283, %c0_284] : memref<3x9x128x128xf32, #tpu.memory_space<vmem>>, vector<1x1x128x128xf32>
    %233 = vector.shape_cast %232 : vector<1x1x128x128xf32> to vector<128x128xf32>
    %cst_285 = arith.constant dense<0.000000e+00> : vector<256x128xf32>
    %234 = tpu.matmul %231, %233, %cst_285 {dimension_numbers = #tpu.dot_dimension_numbers<[1], [0], [0], [1], [0, 0, 1, 1], [], []>} : vector<256x128xf32>, vector<128x128xf32>, vector<256x128xf32> -> vector<256x128xf32>
    %235 = arith.addf %227, %234 : vector<256x128xf32>
    %c0_i32_286 = arith.constant 0 : i32
    %c0_i32_287 = arith.constant 0 : i32
    %c0_i32_288 = arith.constant 0 : i32
    %236 = tpu.memref_slice %arg8[%9, %c0_i32_286, %c0_i32_287, %c0_i32_288] : memref<2x52x52x128xf32, #tpu.memory_space<vmem>> -> memref<1x52x52x128xf32, #tpu.memory_space<vmem>>
    %237 = tpu.memref_squeeze %236 : memref<1x52x52x128xf32, #tpu.memory_space<vmem>> -> memref<52x52x128xf32, #tpu.memory_space<vmem>>
    %c36_289 = arith.constant 36 : index
    %c0_290 = arith.constant 0 : index
    %c0_291 = arith.constant 0 : index
    %238 = vector.load %237[%c36_289, %c0_290, %c0_291] : memref<52x52x128xf32, #tpu.memory_space<vmem>>, vector<16x16x128xf32>
    %239 = vector.shape_cast %238 : vector<16x16x128xf32> to vector<256x128xf32>
    %c2_292 = arith.constant 2 : index
    %c6_293 = arith.constant 6 : index
    %c0_294 = arith.constant 0 : index
    %c0_295 = arith.constant 0 : index
    %240 = vector.load %arg5[%c2_292, %c6_293, %c0_294, %c0_295] : memref<3x9x128x128xf32, #tpu.memory_space<vmem>>, vector<1x1x128x128xf32>
    %241 = vector.shape_cast %240 : vector<1x1x128x128xf32> to vector<128x128xf32>
    %cst_296 = arith.constant dense<0.000000e+00> : vector<256x128xf32>
    %242 = tpu.matmul %239, %241, %cst_296 {dimension_numbers = #tpu.dot_dimension_numbers<[1], [0], [0], [1], [0, 0, 1, 1], [], []>} : vector<256x128xf32>, vector<128x128xf32>, vector<256x128xf32> -> vector<256x128xf32>
    %243 = arith.addf %235, %242 : vector<256x128xf32>
    %c0_i32_297 = arith.constant 0 : i32
    %c0_i32_298 = arith.constant 0 : i32
    %c0_i32_299 = arith.constant 0 : i32
    %244 = tpu.memref_slice %arg8[%9, %c0_i32_297, %c0_i32_298, %c0_i32_299] : memref<2x52x52x128xf32, #tpu.memory_space<vmem>> -> memref<1x52x52x128xf32, #tpu.memory_space<vmem>>
    %245 = tpu.memref_squeeze %244 : memref<1x52x52x128xf32, #tpu.memory_space<vmem>> -> memref<52x52x128xf32, #tpu.memory_space<vmem>>
    %c36_300 = arith.constant 36 : index
    %c18_301 = arith.constant 18 : index
    %c0_302 = arith.constant 0 : index
    %246 = vector.load %245[%c36_300, %c18_301, %c0_302] : memref<52x52x128xf32, #tpu.memory_space<vmem>>, vector<16x16x128xf32>
    %247 = vector.shape_cast %246 : vector<16x16x128xf32> to vector<256x128xf32>
    %c2_303 = arith.constant 2 : index
    %c7_304 = arith.constant 7 : index
    %c0_305 = arith.constant 0 : index
    %c0_306 = arith.constant 0 : index
    %248 = vector.load %arg5[%c2_303, %c7_304, %c0_305, %c0_306] : memref<3x9x128x128xf32, #tpu.memory_space<vmem>>, vector<1x1x128x128xf32>
    %249 = vector.shape_cast %248 : vector<1x1x128x128xf32> to vector<128x128xf32>
    %cst_307 = arith.constant dense<0.000000e+00> : vector<256x128xf32>
    %250 = tpu.matmul %247, %249, %cst_307 {dimension_numbers = #tpu.dot_dimension_numbers<[1], [0], [0], [1], [0, 0, 1, 1], [], []>} : vector<256x128xf32>, vector<128x128xf32>, vector<256x128xf32> -> vector<256x128xf32>
    %251 = arith.addf %243, %250 : vector<256x128xf32>
    %c0_i32_308 = arith.constant 0 : i32
    %c0_i32_309 = arith.constant 0 : i32
    %c0_i32_310 = arith.constant 0 : i32
    %252 = tpu.memref_slice %arg8[%9, %c0_i32_308, %c0_i32_309, %c0_i32_310] : memref<2x52x52x128xf32, #tpu.memory_space<vmem>> -> memref<1x52x52x128xf32, #tpu.memory_space<vmem>>
    %253 = tpu.memref_squeeze %252 : memref<1x52x52x128xf32, #tpu.memory_space<vmem>> -> memref<52x52x128xf32, #tpu.memory_space<vmem>>
    %c36_311 = arith.constant 36 : index
    %c36_312 = arith.constant 36 : index
    %c0_313 = arith.constant 0 : index
    %254 = vector.load %253[%c36_311, %c36_312, %c0_313] : memref<52x52x128xf32, #tpu.memory_space<vmem>>, vector<16x16x128xf32>
    %255 = vector.shape_cast %254 : vector<16x16x128xf32> to vector<256x128xf32>
    %c2_314 = arith.constant 2 : index
    %c8_315 = arith.constant 8 : index
    %c0_316 = arith.constant 0 : index
    %c0_317 = arith.constant 0 : index
    %256 = vector.load %arg5[%c2_314, %c8_315, %c0_316, %c0_317] : memref<3x9x128x128xf32, #tpu.memory_space<vmem>>, vector<1x1x128x128xf32>
    %257 = vector.shape_cast %256 : vector<1x1x128x128xf32> to vector<128x128xf32>
    %cst_318 = arith.constant dense<0.000000e+00> : vector<256x128xf32>
    %258 = tpu.matmul %255, %257, %cst_318 {dimension_numbers = #tpu.dot_dimension_numbers<[1], [0], [0], [1], [0, 0, 1, 1], [], []>} : vector<256x128xf32>, vector<128x128xf32>, vector<256x128xf32> -> vector<256x128xf32>
    %259 = arith.addf %251, %258 : vector<256x128xf32>
    %cst_319 = arith.constant 0.000000e+00 : f32
    %260 = vector.broadcast %cst_319 : f32 to vector<256x128xf32>
    %261 = arith.maximumf %259, %260 : vector<256x128xf32>
    %c3_320 = arith.constant 3 : index
    %c0_321 = arith.constant 0 : index
    %c0_322 = arith.constant 0 : index
    %262 = vector.load %arg6[%c3_320, %c0_321, %c0_322] : memref<4x128x128xf32, #tpu.memory_space<vmem>>, vector<1x128x128xf32>
    %263 = vector.shape_cast %262 : vector<1x128x128xf32> to vector<128x128xf32>
    %cst_323 = arith.constant dense<0.000000e+00> : vector<256x128xf32>
    %264 = tpu.matmul %261, %263, %cst_323 {dimension_numbers = #tpu.dot_dimension_numbers<[1], [0], [0], [1], [0, 0, 1, 1], [], []>} : vector<256x128xf32>, vector<128x128xf32>, vector<256x128xf32> -> vector<256x128xf32>
    %265 = arith.addf %188, %264 : vector<256x128xf32>
    %c0_324 = arith.constant 0 : index
    %c0_325 = arith.constant 0 : index
    %c0_326 = arith.constant 0 : index
    %266 = vector.load %arg3[%c0_324, %c0_325, %c0_326] : memref<1x1x128xf32, #tpu.memory_space<vmem>>, vector<1x1x128xf32>
    %267 = vector.shape_cast %266 : vector<1x1x128xf32> to vector<1x128xf32>
    %268 = vector.broadcast %267 : vector<1x128xf32> to vector<256x128xf32>
    %269 = arith.addf %265, %268 : vector<256x128xf32>
    %270 = vector.shape_cast %269 : vector<256x128xf32> to vector<16x16x128xf32>
    %c0_327 = arith.constant 0 : index
    %c0_328 = arith.constant 0 : index
    %c0_329 = arith.constant 0 : index
    %c0_330 = arith.constant 0 : index
    %271 = vector.load %arg7[%c0_327, %c0_328, %c0_329, %c0_330] : memref<1x16x16x128xf32, #tpu.memory_space<vmem>>, vector<1x16x16x128xf32>
    %272 = vector.shape_cast %271 : vector<1x16x16x128xf32> to vector<16x16x128xf32>
    %273 = vector.shape_cast %270 : vector<16x16x128xf32> to vector<1x16x16x128xf32>
    tpu.vector_store %arg7[%c0_327, %c0_328, %c0_329, %c0_330], %273 {strides = array<i32>} : memref<1x16x16x128xf32, #tpu.memory_space<vmem>>, vector<1x16x16x128xf32>,
    return
  }
  func.func @transform_1(%arg0: i32, %arg1: i32) -> (i32, i32, i32) {
    %c0_i32 = arith.constant 0 : i32
    %c0_i32_0 = arith.constant 0 : i32
    %c0_i32_1 = arith.constant 0 : i32
    return %arg0, %c0_i32, %c0_i32_0 : i32, i32, i32
  }
  func.func @transform_2(%arg0: i32, %arg1: i32) -> (i32, i32) {
    %c0_i32 = arith.constant 0 : i32
    %c0_i32_0 = arith.constant 0 : i32
    %c0_i32_1 = arith.constant 0 : i32
    return %c0_i32, %c0_i32_0 : i32, i32
  }
  func.func @transform_3(%arg0: i32, %arg1: i32) -> (i32, i32, i32, i32) {
    %c0_i32 = arith.constant 0 : i32
    %c0_i32_0 = arith.constant 0 : i32
    %c0_i32_1 = arith.constant 0 : i32
    %c0_i32_2 = arith.constant 0 : i32
    %c0_i32_3 = arith.constant 0 : i32
    return %c0_i32, %c0_i32_0, %c0_i32_1, %c0_i32_2 : i32, i32, i32, i32
  }
  func.func @transform_4(%arg0: i32, %arg1: i32) -> (i32, i32, i32) {
    %c0_i32 = arith.constant 0 : i32
    %c0_i32_0 = arith.constant 0 : i32
    %c0_i32_1 = arith.constant 0 : i32
    %c0_i32_2 = arith.constant 0 : i32
    return %c0_i32, %c0_i32_0, %c0_i32_1 : i32, i32, i32
  }
  func.func @transform_5(%arg0: i32, %arg1: i32) -> (i32, i32, i32, i32) {
    %c0_i32 = arith.constant 0 : i32
    %c0_i32_0 = arith.constant 0 : i32
    %c0_i32_1 = arith.constant 0 : i32
    return %arg0, %arg1, %c0_i32, %c0_i32_0 : i32, i32, i32, i32
  }
}

</mosaic_0001>

<llo_original>
// kernel: tpu_custom_call.1
$region0: #{tpu_custom_call.1}
  #allocation0 [shape = 'u32[]', space=smem, size = 0x4, offset = 0x4, fixed_abs, tag = 'smem constant byte address 0x4 - core index']
  #allocation1 [shape = 'u32[72,128]{1,0:T(1,128)}', space=vmem, size = 0x9000, scoped, tag = 'internal scratch']
  #allocation2 [shape = 'f32[2,52,52,128]{3,2,1,0:T(8,128)}', space=vmem, size = 0x2d8000, scoped, tag = 'scratch operand']
  #allocation3 [shape = 's32[2]{0}', space=sflag, size = 0x8, scoped, tag = 'scratch operand']
  #allocation6 [shape = 's32[]', space=sflag, size = 0x4, offset = 0, fixed_abs, tag = 'sflag constant byte address 0x0 - dummy sync flag']
  #allocation7 [shape = 's32[]', space=sflag, size = 0x4, offset = 0, fixed_abs, tag = 'sflag constant byte address 0x0 - dummy sync flag']
  %s0 = inlined_call_operand.vmem [shape: f32[2,52,52,128], index: 0, kind: input, shape index: {}]
  %s1 = inlined_call_operand.vmem [shape: f32[2,1,128], index: 1, kind: input, shape index: {}]
  %s2 = inlined_call_operand.vmem [shape: f32[128,128], index: 2, kind: input, shape index: {}]
  %s3 = inlined_call_operand.vmem [shape: f32[3,9,128,128], index: 3, kind: input, shape index: {}]
  %s4 = inlined_call_operand.vmem [shape: f32[4,128,128], index: 4, kind: input, shape index: {}]
  %s5 = inlined_call_operand.hbm [shape: f32[2,16,16,128], index: 5, kind: output, shape index: {}]
  %s6 = sld [smem:[#allocation0]]
  $region101: #{tpu_custom_call.1} parent=0
    _
  %s8 = ssub.s32 1, %s6
  %s9 = scalar_select 0, %s8, %s6
  $region1: #{tpu_custom_call.1} parent=0
    #allocation4 [shape = 'u8[262144]{0}', space=vmem, size = 0x40000, scoped, tag = 'output window, operand 0']
    #allocation5 [shape = 's32[2]{0}', space=sflag, size = 0x8, scoped, tag = 'scoped memory for tpu_custom_call.1']
    %10 = vsyncpa [#allocation5], 0
    %s11 = scalar_lea.sflag [#allocation5], 1
    %12 = vsyncpa %s11, 0
    loop: start=0, step=1, limit=4
    $region2: #{tpu_custom_call.1} parent=1 // loop_pre_header
      _
    $region3: #{tpu_custom_call.1} parent=1 // loop_header
      %s14 = sphi 0, %s18
      %p15 = scmp.ge.s32.totalorder %s14, 4
      %s21 = sphi 0, %s33
      %s22 = sphi 0, %s29
      %s23 = sphi 0, %s21
      %s24 = sphi 0, %s22
      %s25 = sphi 0, %s23
      %s26 = sphi 0, %s24
      %s36 = sphi 0, %s38
      %s39 = sphi 0, %s36
      %s40 = sphi 0, %s39
      %s56 = sphi 0, %s40
      %s60 = sphi 0, %s60
      %s62 = sphi 0, %s60
      %s63 = sphi 0, %s62
      %s77 = sphi 0, %s63
      %s81 = sphi 0, %s81
      %s83 = sphi 0, %s81
      %s84 = sphi 0, %s83
      %s98 = sphi 0, %s84
      %s102 = sphi 0, %s102
      %s104 = sphi 0, %s102
      %s105 = sphi 0, %s104
      %s119 = sphi 0, %s105
      %s127 = sphi 0, %s129
      %s130 = sphi 0, %s127
      %s131 = sphi 0, %s130
      %s147 = sphi 0, %s131
    $region4: #{tpu_custom_call.1} parent=1 // loop_header_branch
      %17 = sbr.rel (%p15) target = $region8
    $region5: #{tpu_custom_call.1} parent=1 // loop_body
      %s19 = ssub.s32 %s14, 1
      %s20 = ssub.s32 %s14, 2
      %s27 = sadd.s32 1, %s22
      %p28 = scmp.ge.s32.totalorder %s27, 1
      %s29 = scalar_select %p28, 0, %s27
      %s30 = sadd.s32 1, %s21
      %s31 = scalar_select %p28, %s30, %s21
      %p32 = scmp.ge.s32.totalorder %s31, 2
      %s33 = scalar_select %p32, 0, %s31
      %s34 = ssub.s32 %s21, %s33
      %p35 = scmp.eq.s32.totalorder %s34, 0
      %s37 = sadd.s32 %s36, 1
      %s38 = scalar_select %p35, %s36, %s37
      %p41 = pneg %p35
      %p42 = scmp.eq.s32.totalorder %s14, 1
      %p43 = por %p41, %p42
      %p44 = scmp.ne.s32.totalorder %s36, %s39
      %p45 = scmp.eq.s32.totalorder %s14, 0
      %p46 = por %p44, %p45
      %p47 = scmp.ne.s32.totalorder %s36, %s39
      %p48 = scmp.eq.s32.totalorder %s19, 1
      %p49 = por %p47, %p48
      %p50 = scmp.ne.s32.totalorder %s39, %s40
      %p51 = scmp.eq.s32.totalorder %s19, 0
      %p52 = por %p50, %p51
      %p53 = scmp.ne.s32.totalorder %s39, %s40
      %p54 = scmp.eq.s32.totalorder %s20, 1
      %p55 = por %p53, %p54
      %p57 = scmp.ne.s32.totalorder %s40, %s56
      %p58 = scmp.eq.s32.totalorder %s20, 0
      %p59 = por %p57, %p58
      %s61 = sadd.s32 %s60, 1
      %p64 = scmp.eq.s32.totalorder %s14, 1
      %p65 = scmp.ne.s32.totalorder %s60, %s62
      %p66 = scmp.eq.s32.totalorder %s14, 0
      %p67 = por %p65, %p66
      %p68 = scmp.ne.s32.totalorder %s60, %s62
      %p69 = scmp.eq.s32.totalorder %s19, 1
      %p70 = por %p68, %p69
      %p71 = scmp.ne.s32.totalorder %s62, %s63
      %p72 = scmp.eq.s32.totalorder %s19, 0
      %p73 = por %p71, %p72
      %p74 = scmp.ne.s32.totalorder %s62, %s63
      %p75 = scmp.eq.s32.totalorder %s20, 1
      %p76 = por %p74, %p75
      %p78 = scmp.ne.s32.totalorder %s63, %s77
      %p79 = scmp.eq.s32.totalorder %s20, 0
      %p80 = por %p78, %p79
      %s82 = sadd.s32 %s81, 1
      %p85 = scmp.eq.s32.totalorder %s14, 1
      %p86 = scmp.ne.s32.totalorder %s81, %s83
      %p87 = scmp.eq.s32.totalorder %s14, 0
      %p88 = por %p86, %p87
      %p89 = scmp.ne.s32.totalorder %s81, %s83
      %p90 = scmp.eq.s32.totalorder %s19, 1
      %p91 = por %p89, %p90
      %p92 = scmp.ne.s32.totalorder %s83, %s84
      %p93 = scmp.eq.s32.totalorder %s19, 0
      %p94 = por %p92, %p93
      %p95 = scmp.ne.s32.totalorder %s83, %s84
      %p96 = scmp.eq.s32.totalorder %s20, 1
      %p97 = por %p95, %p96
      %p99 = scmp.ne.s32.totalorder %s84, %s98
      %p100 = scmp.eq.s32.totalorder %s20, 0
      %p101 = por %p99, %p100
      %s103 = sadd.s32 %s102, 1
      %p106 = scmp.eq.s32.totalorder %s14, 1
      %p107 = scmp.ne.s32.totalorder %s102, %s104
      %p108 = scmp.eq.s32.totalorder %s14, 0
      %p109 = por %p107, %p108
      %p110 = scmp.ne.s32.totalorder %s102, %s104
      %p111 = scmp.eq.s32.totalorder %s19, 1
      %p112 = por %p110, %p111
      %p113 = scmp.ne.s32.totalorder %s104, %s105
      %p114 = scmp.eq.s32.totalorder %s19, 0
      %p115 = por %p113, %p114
      %p116 = scmp.ne.s32.totalorder %s104, %s105
      %p117 = scmp.eq.s32.totalorder %s20, 1
      %p118 = por %p116, %p117
      %p120 = scmp.ne.s32.totalorder %s105, %s119
      %p121 = scmp.eq.s32.totalorder %s20, 0
      %p122 = por %p120, %p121
      %s123 = ssub.s32 %s21, %s33
      %s124 = ssub.s32 %s22, %s29
      %s125 = sor.u32 %s123, %s124
      %p126 = scmp.eq.s32.totalorder %s125, 0
      %s128 = sadd.s32 %s127, 1
      %s129 = scalar_select %p126, %s127, %s128
      %p132 = pneg %p126
      %p133 = scmp.eq.s32.totalorder %s14, 1
      %p134 = por %p132, %p133
      %p135 = scmp.ne.s32.totalorder %s127, %s130
      %p136 = scmp.eq.s32.totalorder %s14, 0
      %p137 = por %p135, %p136
      %p138 = scmp.ne.s32.totalorder %s127, %s130
      %p139 = scmp.eq.s32.totalorder %s19, 1
      %p140 = por %p138, %p139
      %p141 = scmp.ne.s32.totalorder %s130, %s131
      %p142 = scmp.eq.s32.totalorder %s19, 0
      %p143 = por %p141, %p142
      %p144 = scmp.ne.s32.totalorder %s130, %s131
      %p145 = scmp.eq.s32.totalorder %s20, 1
      %p146 = por %p144, %p145
      %p148 = scmp.ne.s32.totalorder %s131, %s147
      %p149 = scmp.eq.s32.totalorder %s20, 0
      %p150 = por %p148, %p149
      %p151 = scmp.le.s32.totalorder 1, %s14
      %p152 = scmp.lt.s32.totalorder %s14, 3
      %p153 = pnand %p151, %p152
      %p154 = pneg %p153
      // Predicated region
      $region9: #{tpu_custom_call.1} parent=5 // pred_check
        _
      $region10: #{tpu_custom_call.1} parent=5 // pred_check_branch
        %156 = sbr.rel (%p153) target = $region12
      $region11: #{tpu_custom_call.1} parent=5 // pred_region
        %s157 = ssub.s32 %s14, 1
        // Predicated region
        $region13: #{tpu_custom_call.1} parent=11 // pred_check
          %p158 = pneg %p73
        $region14: #{tpu_custom_call.1} parent=11 // pred_check_branch
          %160 = sbr.rel (%p158) target = $region16
        $region15: #{tpu_custom_call.1} parent=11 // pred_region
          _
        $region16: #{tpu_custom_call.1} parent=11 // pred_fallthru
          _
        // Predicated region
        $region17: #{tpu_custom_call.1} parent=11 // pred_check
          %p161 = pneg %p94
        $region18: #{tpu_custom_call.1} parent=11 // pred_check_branch
          %163 = sbr.rel (%p161) target = $region20
        $region19: #{tpu_custom_call.1} parent=11 // pred_region
          _
        $region20: #{tpu_custom_call.1} parent=11 // pred_fallthru
          _
        // Predicated region
        $region21: #{tpu_custom_call.1} parent=11 // pred_check
          %p164 = pneg %p115
        $region22: #{tpu_custom_call.1} parent=11 // pred_check_branch
          %166 = sbr.rel (%p164) target = $region24
        $region23: #{tpu_custom_call.1} parent=11 // pred_region
          _
        $region24: #{tpu_custom_call.1} parent=11 // pred_fallthru
          _
      $region12: #{tpu_custom_call.1} parent=5 // pred_fallthru
        _
      %p167 = scmp.lt.s32.totalorder %s14, 2
      // Predicated region
      $region25: #{tpu_custom_call.1} parent=5 // pred_check
        %p168 = pneg %p167
      $region26: #{tpu_custom_call.1} parent=5 // pred_check_branch
        %170 = sbr.rel (%p168) target = $region28
      $region27: #{tpu_custom_call.1} parent=5 // pred_region
        // Predicated region
        $region29: #{tpu_custom_call.1} parent=27 // pred_check
          %p171 = pneg %p46
        $region30: #{tpu_custom_call.1} parent=27 // pred_check_branch
          %173 = sbr.rel (%p171) target = $region32
        $region31: #{tpu_custom_call.1} parent=27 // pred_region
          %p174 = scmp.lt.s32.totalorder %s21, 1
          %s175 = scalar_select %p174, %s21, 1
          %s176 = scalar_lea.vmem %s1, %s175
        $region32: #{tpu_custom_call.1} parent=27 // pred_fallthru
          _
      $region28: #{tpu_custom_call.1} parent=5 // pred_fallthru
        _
      %p177 = scmp.le.s32.totalorder 1, %s14
      %p178 = scmp.lt.s32.totalorder %s14, 3
      %p179 = pnand %p177, %p178
      %p180 = pneg %p179
      // Predicated region
      $region33: #{tpu_custom_call.1} parent=5 // pred_check
        _
      $region34: #{tpu_custom_call.1} parent=5 // pred_check_branch
        %182 = sbr.rel (%p179) target = $region36
      $region35: #{tpu_custom_call.1} parent=5 // pred_region
        %s183 = ssub.s32 %s14, 1
        %p184 = scmp.lt.s32.totalorder %s23, 1
        %s185 = scalar_select %p184, %s23, 1
        %s186 = scalar_lea.vmem %s1, %s185
        %p187 = pneg %p52
        %p188 = pneg %p49
        %p189 = pneg %p73
        %p190 = pneg %p70
        %p191 = pneg %p94
        %p192 = pneg %p91
        %p193 = pneg %p115
        %p194 = pneg %p112
        %p195 = pneg %p143
        %p196 = pneg %p140
        %s197 = sand.u32 %s130, 1
        %s198 = scalar_lea.sflag [#allocation5], %s197
        %s199 = sand.u32 %s130, 1
        %s200 = smul.addr %s199, 256
        %s201 = scalar_lea.vmem [#allocation4], %s200
        %p202 = scmp.lt.s32.totalorder %s23, 1
        %s203 = scalar_select %p202, %s23, 1
        %s204 = scalar_lea.vmem %s1, %s203
        %s205 = smul.u32 16, %s24
        %p206 = scmp.lt.s32.totalorder %s24, 0
        %s207 = ssub.s32 0, %s24
        %s208 = scalar_select %p206, %s207, %s24
        %s209 = sand.u32 %s208, 1
        %s210 = ssub.s32 0, %s209
        %s211 = scalar_select %p206, %s210, %s209
        %p212 = scmp.ne.s32.totalorder %s211, 0
        %p213 = scmp.lt.s32.totalorder %s211, 0
        %p214 = pnand %p213, %p212
        %p215 = pneg %p214
        %s216 = sadd.s32 %s211, 2
        %s217 = scalar_select %p215, %s216, %s211
        %p218 = scmp.eq.s32.totalorder %s24, 0
        // Predicated region
        $region37: #{tpu_custom_call.1} parent=35 // pred_check
          %p219 = pneg %p218
        $region38: #{tpu_custom_call.1} parent=35 // pred_check_branch
          %221 = sbr.rel (%p219) target = $region40
        $region39: #{tpu_custom_call.1} parent=35 // pred_region
          %s222 = smul.u32 %s23, 2912
          %s223 = scalar_lea.vmem %s0, %s222
          // Predicated region
          $region41: #{tpu_custom_call.1} parent=39 // pred_check
            _
          $region42: #{tpu_custom_call.1} parent=39 // pred_check_branch
            %225 = sbr.rel (0) target = $region44
          $region43: #{tpu_custom_call.1} parent=39 // pred_region
            %s226 = scalar_lea.vmem %s223, 48
            %s227 = scalar_lea.vmem [#allocation2], 48
            loop: start=0, step=1, limit=1
            $region45: #{tpu_custom_call.1} parent=43 // loop_pre_header
              _
            $region46: #{tpu_custom_call.1} parent=43 // loop_header
              %s229 = sphi 0, %s233
              %p230 = scmp.ge.s32.totalorder %s229, 1
              %s234 = sphi %s223, %s223
              %s235 = sphi [#allocation2], [#allocation2]
            $region47: #{tpu_custom_call.1} parent=43 // loop_header_branch
              %232 = sbr.rel (%p230) target = $region51
            $region48: #{tpu_custom_call.1} parent=43 // loop_body
              %v236 = vld [vmem:[%s234] sm:$0xff]
              %237 = vst [vmem:[%s235] sm:$0xff] %v236
              %v238 = vld [vmem:[%s234 + $0x8] sm:$0xff]
              %239 = vst [vmem:[%s235 + $0x8] sm:$0xff] %v238
              %v240 = vld [vmem:[%s234 + $0x10] sm:$0xff]
              %241 = vst [vmem:[%s235 + $0x10] sm:$0xff] %v240
              %v242 = vld [vmem:[%s234 + $0x18] sm:$0xff]
              %243 = vst [vmem:[%s235 + $0x18] sm:$0xff] %v242
              %v244 = vld [vmem:[%s234 + $0x20] sm:$0xff]
              %245 = vst [vmem:[%s235 + $0x20] sm:$0xff] %v244
              %v246 = vld [vmem:[%s234 + $0x28] sm:$0xff]
              %247 = vst [vmem:[%s235 + $0x28] sm:$0xff] %v246
              %v248 = vld [vmem:[%s234 + $0x38] sm:$0xff]
              %249 = vst [vmem:[%s235 + $0x38] sm:$0xff] %v248
              %v250 = vld [vmem:[%s234 + $0x40] sm:$0xff]
              %251 = vst [vmem:[%s235 + $0x40] sm:$0xff] %v250
              %v252 = vld [vmem:[%s234 + $0x48] sm:$0xff]
              %253 = vst [vmem:[%s235 + $0x48] sm:$0xff] %v252
              %v254 = vld [vmem:[%s234 + $0x50] sm:$0xff]
              %255 = vst [vmem:[%s235 + $0x50] sm:$0xff] %v254
              %v256 = vld [vmem:[%s234 + $0x58] sm:$0xff]
              %257 = vst [vmem:[%s235 + $0x58] sm:$0xff] %v256
              %v258 = vld [vmem:[%s234 + $0x60] sm:$0xff]
              %259 = vst [vmem:[%s235 + $0x60] sm:$0xff] %v258
              %v260 = vld [vmem:[%s234 + $0x70] sm:$0xff]
              %261 = vst [vmem:[%s235 + $0x70] sm:$0xff] %v260
              %v262 = vld [vmem:[%s234 + $0x78] sm:$0xff]
              %263 = vst [vmem:[%s235 + $0x78] sm:$0xff] %v262
              %v264 = vld [vmem:[%s234 + $0x80] sm:$0xff]
              %265 = vst [vmem:[%s235 + $0x80] sm:$0xff] %v264
              %v266 = vld [vmem:[%s234 + $0x88] sm:$0xff]
              %267 = vst [vmem:[%s235 + $0x88] sm:$0xff] %v266
              %v268 = vld [vmem:[%s234 + $0x90] sm:$0xff]
              %269 = vst [vmem:[%s235 + $0x90] sm:$0xff] %v268
              %v270 = vld [vmem:[%s234 + $0x98] sm:$0xff]
              %271 = vst [vmem:[%s235 + $0x98] sm:$0xff] %v270
              %v272 = vld [vmem:[%s234 + $0xa8] sm:$0xff]
              %273 = vst [vmem:[%s235 + $0xa8] sm:$0xff] %v272
              %v274 = vld [vmem:[%s234 + $0xb0] sm:$0xff]
              %275 = vst [vmem:[%s235 + $0xb0] sm:$0xff] %v274
              %v276 = vld [vmem:[%s234 + $0xb8] sm:$0xff]
              %277 = vst [vmem:[%s235 + $0xb8] sm:$0xff] %v276
              %v278 = vld [vmem:[%s234 + $0xc0] sm:$0xff]
              %279 = vst [vmem:[%s235 + $0xc0] sm:$0xff] %v278
              %v280 = vld [vmem:[%s234 + $0xc8] sm:$0xff]
              %281 = vst [vmem:[%s235 + $0xc8] sm:$0xff] %v280
              %v282 = vld [vmem:[%s234 + $0xd0] sm:$0xff]
              %283 = vst [vmem:[%s235 + $0xd0] sm:$0xff] %v282
              %v284 = vld [vmem:[%s234 + $0xe0] sm:$0xff]
              %285 = vst [vmem:[%s235 + $0xe0] sm:$0xff] %v284
              %v286 = vld [vmem:[%s234 + $0xe8] sm:$0xff]
              %287 = vst [vmem:[%s235 + $0xe8] sm:$0xff] %v286
              %v288 = vld [vmem:[%s234 + $0xf0] sm:$0xff]
              %289 = vst [vmem:[%s235 + $0xf0] sm:$0xff] %v288
              %v290 = vld [vmem:[%s234 + $0xf8] sm:$0xff]
              %291 = vst [vmem:[%s235 + $0xf8] sm:$0xff] %v290
              %v292 = vld [vmem:[%s234 + $0x100] sm:$0xff]
              %293 = vst [vmem:[%s235 + $0x100] sm:$0xff] %v292
              %v294 = vld [vmem:[%s234 + $0x108] sm:$0xff]
              %295 = vst [vmem:[%s235 + $0x108] sm:$0xff] %v294
              %v296 = vld [vmem:[%s234 + $0x118] sm:$0xff]
              %297 = vst [vmem:[%s235 + $0x118] sm:$0xff] %v296
              %v298 = vld [vmem:[%s234 + $0x120] sm:$0xff]
              %299 = vst [vmem:[%s235 + $0x120] sm:$0xff] %v298
              %v300 = vld [vmem:[%s234 + $0x128] sm:$0xff]
              %301 = vst [vmem:[%s235 + $0x128] sm:$0xff] %v300
              %v302 = vld [vmem:[%s234 + $0x130] sm:$0xff]
              %303 = vst [vmem:[%s235 + $0x130] sm:$0xff] %v302
              %v304 = vld [vmem:[%s234 + $0x138] sm:$0xff]
              %305 = vst [vmem:[%s235 + $0x138] sm:$0xff] %v304
              %v306 = vld [vmem:[%s234 + $0x140] sm:$0xff]
              %307 = vst [vmem:[%s235 + $0x140] sm:$0xff] %v306
              %v308 = vld [vmem:[%s234 + $0x150] sm:$0xff]
              %309 = vst [vmem:[%s235 + $0x150] sm:$0xff] %v308
              %v310 = vld [vmem:[%s234 + $0x158] sm:$0xff]
              %311 = vst [vmem:[%s235 + $0x158] sm:$0xff] %v310
              %v312 = vld [vmem:[%s234 + $0x160] sm:$0xff]
              %313 = vst [vmem:[%s235 + $0x160] sm:$0xff] %v312
              %v314 = vld [vmem:[%s234 + $0x168] sm:$0xff]
              %315 = vst [vmem:[%s235 + $0x168] sm:$0xff] %v314
              %v316 = vld [vmem:[%s234 + $0x170] sm:$0xff]
              %317 = vst [vmem:[%s235 + $0x170] sm:$0xff] %v316
              %v318 = vld [vmem:[%s234 + $0x178] sm:$0xff]
              %319 = vst [vmem:[%s235 + $0x178] sm:$0xff] %v318
              %v320 = vld [vmem:[%s234 + $0x188] sm:$0xff]
              %321 = vst [vmem:[%s235 + $0x188] sm:$0xff] %v320
              %v322 = vld [vmem:[%s234 + $0x190] sm:$0xff]
              %323 = vst [vmem:[%s235 + $0x190] sm:$0xff] %v322
              %v324 = vld [vmem:[%s234 + $0x198] sm:$0xff]
              %325 = vst [vmem:[%s235 + $0x198] sm:$0xff] %v324
              %v326 = vld [vmem:[%s234 + $0x1a0] sm:$0xff]
              %327 = vst [vmem:[%s235 + $0x1a0] sm:$0xff] %v326
              %v328 = vld [vmem:[%s234 + $0x1a8] sm:$0xff]
              %329 = vst [vmem:[%s235 + $0x1a8] sm:$0xff] %v328
              %v330 = vld [vmem:[%s234 + $0x1b0] sm:$0xff]
              %331 = vst [vmem:[%s235 + $0x1b0] sm:$0xff] %v330
              %v332 = vld [vmem:[%s234 + $0x1c0] sm:$0xff]
              %333 = vst [vmem:[%s235 + $0x1c0] sm:$0xff] %v332
              %v334 = vld [vmem:[%s234 + $0x1c8] sm:$0xff]
              %335 = vst [vmem:[%s235 + $0x1c8] sm:$0xff] %v334
              %v336 = vld [vmem:[%s234 + $0x1d0] sm:$0xff]
              %337 = vst [vmem:[%s235 + $0x1d0] sm:$0xff] %v336
              %v338 = vld [vmem:[%s234 + $0x1d8] sm:$0xff]
              %339 = vst [vmem:[%s235 + $0x1d8] sm:$0xff] %v338
              %v340 = vld [vmem:[%s234 + $0x1e0] sm:$0xff]
              %341 = vst [vmem:[%s235 + $0x1e0] sm:$0xff] %v340
              %v342 = vld [vmem:[%s234 + $0x1e8] sm:$0xff]
              %343 = vst [vmem:[%s235 + $0x1e8] sm:$0xff] %v342
              %v344 = vld [vmem:[%s234 + $0x1f8] sm:$0xff]
              %345 = vst [vmem:[%s235 + $0x1f8] sm:$0xff] %v344
              %v346 = vld [vmem:[%s234 + $0x200] sm:$0xff]
              %347 = vst [vmem:[%s235 + $0x200] sm:$0xff] %v346
              %v348 = vld [vmem:[%s234 + $0x208] sm:$0xff]
              %349 = vst [vmem:[%s235 + $0x208] sm:$0xff] %v348
              %v350 = vld [vmem:[%s234 + $0x210] sm:$0xff]
              %351 = vst [vmem:[%s235 + $0x210] sm:$0xff] %v350
              %v352 = vld [vmem:[%s234 + $0x218] sm:$0xff]
              %353 = vst [vmem:[%s235 + $0x218] sm:$0xff] %v352
              %v354 = vld [vmem:[%s234 + $0x220] sm:$0xff]
              %355 = vst [vmem:[%s235 + $0x220] sm:$0xff] %v354
              %v356 = vld [vmem:[%s234 + $0x230] sm:$0xff]
              %357 = vst [vmem:[%s235 + $0x230] sm:$0xff] %v356
              %v358 = vld [vmem:[%s234 + $0x238] sm:$0xff]
              %359 = vst [vmem:[%s235 + $0x238] sm:$0xff] %v358
              %v360 = vld [vmem:[%s234 + $0x240] sm:$0xff]
              %361 = vst [vmem:[%s235 + $0x240] sm:$0xff] %v360
              %v362 = vld [vmem:[%s234 + $0x248] sm:$0xff]
              %363 = vst [vmem:[%s235 + $0x248] sm:$0xff] %v362
              %v364 = vld [vmem:[%s234 + $0x250] sm:$0xff]
              %365 = vst [vmem:[%s235 + $0x250] sm:$0xff] %v364
              %v366 = vld [vmem:[%s234 + $0x258] sm:$0xff]
              %367 = vst [vmem:[%s235 + $0x258] sm:$0xff] %v366
              %v368 = vld [vmem:[%s234 + $0x268] sm:$0xff]
              %369 = vst [vmem:[%s235 + $0x268] sm:$0xff] %v368
              %v370 = vld [vmem:[%s234 + $0x270] sm:$0xff]
              %371 = vst [vmem:[%s235 + $0x270] sm:$0xff] %v370
              %v372 = vld [vmem:[%s234 + $0x278] sm:$0xff]
              %373 = vst [vmem:[%s235 + $0x278] sm:$0xff] %v372
              %v374 = vld [vmem:[%s234 + $0x280] sm:$0xff]
              %375 = vst [vmem:[%s235 + $0x280] sm:$0xff] %v374
              %v376 = vld [vmem:[%s234 + $0x288] sm:$0xff]
              %377 = vst [vmem:[%s235 + $0x288] sm:$0xff] %v376
              %v378 = vld [vmem:[%s234 + $0x290] sm:$0xff]
              %379 = vst [vmem:[%s235 + $0x290] sm:$0xff] %v378
              %v380 = vld [vmem:[%s234 + $0x2a0] sm:$0xff]
              %381 = vst [vmem:[%s235 + $0x2a0] sm:$0xff] %v380
              %v382 = vld [vmem:[%s234 + $0x2a8] sm:$0xff]
              %383 = vst [vmem:[%s235 + $0x2a8] sm:$0xff] %v382
              %v384 = vld [vmem:[%s234 + $0x2b0] sm:$0xff]
              %385 = vst [vmem:[%s235 + $0x2b0] sm:$0xff] %v384
              %v386 = vld [vmem:[%s234 + $0x2b8] sm:$0xff]
              %387 = vst [vmem:[%s235 + $0x2b8] sm:$0xff] %v386
              %v388 = vld [vmem:[%s234 + $0x2c0] sm:$0xff]
              %389 = vst [vmem:[%s235 + $0x2c0] sm:$0xff] %v388
              %v390 = vld [vmem:[%s234 + $0x2c8] sm:$0xff]
              %391 = vst [vmem:[%s235 + $0x2c8] sm:$0xff] %v390
              %v392 = vld [vmem:[%s234 + $0x2d8] sm:$0xff]
              %393 = vst [vmem:[%s235 + $0x2d8] sm:$0xff] %v392
              %v394 = vld [vmem:[%s234 + $0x2e0] sm:$0xff]
              %395 = vst [vmem:[%s235 + $0x2e0] sm:$0xff] %v394
              %v396 = vld [vmem:[%s234 + $0x2e8] sm:$0xff]
              %397 = vst [vmem:[%s235 + $0x2e8] sm:$0xff] %v396
              %v398 = vld [vmem:[%s234 + $0x2f0] sm:$0xff]
              %399 = vst [vmem:[%s235 + $0x2f0] sm:$0xff] %v398
              %v400 = vld [vmem:[%s234 + $0x2f8] sm:$0xff]
              %401 = vst [vmem:[%s235 + $0x2f8] sm:$0xff] %v400
              %v402 = vld [vmem:[%s234 + $0x300] sm:$0xff]
              %403 = vst [vmem:[%s235 + $0x300] sm:$0xff] %v402
              %v404 = vld [vmem:[%s234 + $0x310] sm:$0xff]
              %405 = vst [vmem:[%s235 + $0x310] sm:$0xff] %v404
              %v406 = vld [vmem:[%s234 + $0x318] sm:$0xff]
              %407 = vst [vmem:[%s235 + $0x318] sm:$0xff] %v406
              %v408 = vld [vmem:[%s234 + $0x320] sm:$0xff]
              %409 = vst [vmem:[%s235 + $0x320] sm:$0xff] %v408
              %v410 = vld [vmem:[%s234 + $0x328] sm:$0xff]
              %411 = vst [vmem:[%s235 + $0x328] sm:$0xff] %v410
              %v412 = vld [vmem:[%s234 + $0x330] sm:$0xff]
              %413 = vst [vmem:[%s235 + $0x330] sm:$0xff] %v412
              %v414 = vld [vmem:[%s234 + $0x338] sm:$0xff]
              %415 = vst [vmem:[%s235 + $0x338] sm:$0xff] %v414
              %v416 = vld [vmem:[%s234 + $0x348] sm:$0xff]
              %417 = vst [vmem:[%s235 + $0x348] sm:$0xff] %v416
              %v418 = vld [vmem:[%s234 + $0x350] sm:$0xff]
              %419 = vst [vmem:[%s235 + $0x350] sm:$0xff] %v418
              %v420 = vld [vmem:[%s234 + $0x358] sm:$0xff]
              %421 = vst [vmem:[%s235 + $0x358] sm:$0xff] %v420
              %v422 = vld [vmem:[%s234 + $0x360] sm:$0xff]
              %423 = vst [vmem:[%s235 + $0x360] sm:$0xff] %v422
              %v424 = vld [vmem:[%s234 + $0x368] sm:$0xff]
              %425 = vst [vmem:[%s235 + $0x368] sm:$0xff] %v424
              %v426 = vld [vmem:[%s234 + $0x370] sm:$0xff]
              %427 = vst [vmem:[%s235 + $0x370] sm:$0xff] %v426
              %v428 = vld [vmem:[%s234 + $0x380] sm:$0xff]
              %429 = vst [vmem:[%s235 + $0x380] sm:$0xff] %v428
              %v430 = vld [vmem:[%s234 + $0x388] sm:$0xff]
              %431 = vst [vmem:[%s235 + $0x388] sm:$0xff] %v430
              %v432 = vld [vmem:[%s234 + $0x390] sm:$0xff]
              %433 = vst [vmem:[%s235 + $0x390] sm:$0xff] %v432
              %v434 = vld [vmem:[%s234 + $0x398] sm:$0xff]
              %435 = vst [vmem:[%s235 + $0x398] sm:$0xff] %v434
              %v436 = vld [vmem:[%s234 + $0x3a0] sm:$0xff]
              %437 = vst [vmem:[%s235 + $0x3a0] sm:$0xff] %v436
              %v438 = vld [vmem:[%s234 + $0x3a8] sm:$0xff]
              %439 = vst [vmem:[%s235 + $0x3a8] sm:$0xff] %v438
              %v440 = vld [vmem:[%s234 + $0x3b8] sm:$0xff]
              %441 = vst [vmem:[%s235 + $0x3b8] sm:$0xff] %v440
              %v442 = vld [vmem:[%s234 + $0x3c0] sm:$0xff]
              %443 = vst [vmem:[%s235 + $0x3c0] sm:$0xff] %v442
              %v444 = vld [vmem:[%s234 + $0x3c8] sm:$0xff]
              %445 = vst [vmem:[%s235 + $0x3c8] sm:$0xff] %v444
              %v446 = vld [vmem:[%s234 + $0x3d0] sm:$0xff]
              %447 = vst [vmem:[%s235 + $0x3d0] sm:$0xff] %v446
              %v448 = vld [vmem:[%s234 + $0x3d8] sm:$0xff]
              %449 = vst [vmem:[%s235 + $0x3d8] sm:$0xff] %v448
              %v450 = vld [vmem:[%s234 + $0x3e0] sm:$0xff]
              %451 = vst [vmem:[%s235 + $0x3e0] sm:$0xff] %v450
              %v452 = vld [vmem:[%s234 + $0x3f0] sm:$0xff]
              %453 = vst [vmem:[%s235 + $0x3f0] sm:$0xff] %v452
              %v454 = vld [vmem:[%s234 + $0x3f8] sm:$0xff]
              %455 = vst [vmem:[%s235 + $0x3f8] sm:$0xff] %v454
              %v456 = vld [vmem:[%s234 + $0x400] sm:$0xff]
              %457 = vst [vmem:[%s235 + $0x400] sm:$0xff] %v456
              %v458 = vld [vmem:[%s234 + $0x408] sm:$0xff]
              %459 = vst [vmem:[%s235 + $0x408] sm:$0xff] %v458
              %v460 = vld [vmem:[%s234 + $0x410] sm:$0xff]
              %461 = vst [vmem:[%s235 + $0x410] sm:$0xff] %v460
              %v462 = vld [vmem:[%s234 + $0x418] sm:$0xff]
              %463 = vst [vmem:[%s235 + $0x418] sm:$0xff] %v462
              %v464 = vld [vmem:[%s234 + $0x428] sm:$0xff]
              %465 = vst [vmem:[%s235 + $0x428] sm:$0xff] %v464
              %v466 = vld [vmem:[%s234 + $0x430] sm:$0xff]
              %467 = vst [vmem:[%s235 + $0x430] sm:$0xff] %v466
              %v468 = vld [vmem:[%s234 + $0x438] sm:$0xff]
              %469 = vst [vmem:[%s235 + $0x438] sm:$0xff] %v468
              %v470 = vld [vmem:[%s234 + $0x440] sm:$0xff]
              %471 = vst [vmem:[%s235 + $0x440] sm:$0xff] %v470
              %v472 = vld [vmem:[%s234 + $0x448] sm:$0xff]
              %473 = vst [vmem:[%s235 + $0x448] sm:$0xff] %v472
              %v474 = vld [vmem:[%s234 + $0x450] sm:$0xff]
              %475 = vst [vmem:[%s235 + $0x450] sm:$0xff] %v474
              %v476 = vld [vmem:[%s234 + $0x460] sm:$0xff]
              %477 = vst [vmem:[%s235 + $0x460] sm:$0xff] %v476
              %v478 = vld [vmem:[%s234 + $0x468] sm:$0xff]
              %479 = vst [vmem:[%s235 + $0x468] sm:$0xff] %v478
              %v480 = vld [vmem:[%s234 + $0x470] sm:$0xff]
              %481 = vst [vmem:[%s235 + $0x470] sm:$0xff] %v480
              %v482 = vld [vmem:[%s234 + $0x478] sm:$0xff]
              %483 = vst [vmem:[%s235 + $0x478] sm:$0xff] %v482
              %v484 = vld [vmem:[%s234 + $0x480] sm:$0xff]
              %485 = vst [vmem:[%s235 + $0x480] sm:$0xff] %v484
              %v486 = vld [vmem:[%s234 + $0x488] sm:$0xff]
              %487 = vst [vmem:[%s235 + $0x488] sm:$0xff] %v486
              %v488 = vld [vmem:[%s234 + $0x498] sm:$0xff]
              %489 = vst [vmem:[%s235 + $0x498] sm:$0xff] %v488
              %v490 = vld [vmem:[%s234 + $0x4a0] sm:$0xff]
              %491 = vst [vmem:[%s235 + $0x4a0] sm:$0xff] %v490
              %v492 = vld [vmem:[%s234 + $0x4a8] sm:$0xff]
              %493 = vst [vmem:[%s235 + $0x4a8] sm:$0xff] %v492
              %v494 = vld [vmem:[%s234 + $0x4b0] sm:$0xff]
              %495 = vst [vmem:[%s235 + $0x4b0] sm:$0xff] %v494
              %v496 = vld [vmem:[%s234 + $0x4b8] sm:$0xff]
              %497 = vst [vmem:[%s235 + $0x4b8] sm:$0xff] %v496
              %v498 = vld [vmem:[%s234 + $0x4c0] sm:$0xff]
              %499 = vst [vmem:[%s235 + $0x4c0] sm:$0xff] %v498
              %v500 = vld [vmem:[%s234 + $0x4d0] sm:$0xff]
              %501 = vst [vmem:[%s235 + $0x4d0] sm:$0xff] %v500
              %v502 = vld [vmem:[%s234 + $0x4d8] sm:$0xff]
              %503 = vst [vmem:[%s235 + $0x4d8] sm:$0xff] %v502
              %v504 = vld [vmem:[%s234 + $0x4e0] sm:$0xff]
              %505 = vst [vmem:[%s235 + $0x4e0] sm:$0xff] %v504
              %v506 = vld [vmem:[%s234 + $0x4e8] sm:$0xff]
              %507 = vst [vmem:[%s235 + $0x4e8] sm:$0xff] %v506
              %v508 = vld [vmem:[%s234 + $0x4f0] sm:$0xff]
              %509 = vst [vmem:[%s235 + $0x4f0] sm:$0xff] %v508
              %v510 = vld [vmem:[%s234 + $0x4f8] sm:$0xff]
              %511 = vst [vmem:[%s235 + $0x4f8] sm:$0xff] %v510
              %v512 = vld [vmem:[%s234 + $0x508] sm:$0xff]
              %513 = vst [vmem:[%s235 + $0x508] sm:$0xff] %v512
              %v514 = vld [vmem:[%s234 + $0x510] sm:$0xff]
              %515 = vst [vmem:[%s235 + $0x510] sm:$0xff] %v514
              %v516 = vld [vmem:[%s234 + $0x518] sm:$0xff]
              %517 = vst [vmem:[%s235 + $0x518] sm:$0xff] %v516
              %v518 = vld [vmem:[%s234 + $0x520] sm:$0xff]
              %519 = vst [vmem:[%s235 + $0x520] sm:$0xff] %v518
              %v520 = vld [vmem:[%s234 + $0x528] sm:$0xff]
              %521 = vst [vmem:[%s235 + $0x528] sm:$0xff] %v520
              %v522 = vld [vmem:[%s234 + $0x530] sm:$0xff]
              %523 = vst [vmem:[%s235 + $0x530] sm:$0xff] %v522
              %v524 = vld [vmem:[%s234 + $0x540] sm:$0xff]
              %525 = vst [vmem:[%s235 + $0x540] sm:$0xff] %v524
              %v526 = vld [vmem:[%s234 + $0x548] sm:$0xff]
              %527 = vst [vmem:[%s235 + $0x548] sm:$0xff] %v526
              %v528 = vld [vmem:[%s234 + $0x550] sm:$0xff]
              %529 = vst [vmem:[%s235 + $0x550] sm:$0xff] %v528
              %v530 = vld [vmem:[%s234 + $0x558] sm:$0xff]
              %531 = vst [vmem:[%s235 + $0x558] sm:$0xff] %v530
              %v532 = vld [vmem:[%s234 + $0x560] sm:$0xff]
              %533 = vst [vmem:[%s235 + $0x560] sm:$0xff] %v532
              %v534 = vld [vmem:[%s234 + $0x568] sm:$0xff]
              %535 = vst [vmem:[%s235 + $0x568] sm:$0xff] %v534
              %v536 = vld [vmem:[%s234 + $0x578] sm:$0xff]
              %537 = vst [vmem:[%s235 + $0x578] sm:$0xff] %v536
              %v538 = vld [vmem:[%s234 + $0x580] sm:$0xff]
              %539 = vst [vmem:[%s235 + $0x580] sm:$0xff] %v538
              %v540 = vld [vmem:[%s234 + $0x588] sm:$0xff]
              %541 = vst [vmem:[%s235 + $0x588] sm:$0xff] %v540
              %v542 = vld [vmem:[%s234 + $0x590] sm:$0xff]
              %543 = vst [vmem:[%s235 + $0x590] sm:$0xff] %v542
              %v544 = vld [vmem:[%s234 + $0x598] sm:$0xff]
              %545 = vst [vmem:[%s235 + $0x598] sm:$0xff] %v544
              %v546 = vld [vmem:[%s234 + $0x5a0] sm:$0xff]
              %547 = vst [vmem:[%s235 + $0x5a0] sm:$0xff] %v546
              %v548 = vld [vmem:[%s234 + $0x5b0] sm:$0xff]
              %549 = vst [vmem:[%s235 + $0x5b0] sm:$0xff] %v548
              %v550 = vld [vmem:[%s234 + $0x5b8] sm:$0xff]
              %551 = vst [vmem:[%s235 + $0x5b8] sm:$0xff] %v550
              %v552 = vld [vmem:[%s234 + $0x5c0] sm:$0xff]
              %553 = vst [vmem:[%s235 + $0x5c0] sm:$0xff] %v552
              %v554 = vld [vmem:[%s234 + $0x5c8] sm:$0xff]
              %555 = vst [vmem:[%s235 + $0x5c8] sm:$0xff] %v554
              %v556 = vld [vmem:[%s234 + $0x5d0] sm:$0xff]
              %557 = vst [vmem:[%s235 + $0x5d0] sm:$0xff] %v556
              %v558 = vld [vmem:[%s234 + $0x5d8] sm:$0xff]
              %559 = vst [vmem:[%s235 + $0x5d8] sm:$0xff] %v558
              %v560 = vld [vmem:[%s234 + $0x5e8] sm:$0xff]
              %561 = vst [vmem:[%s235 + $0x5e8] sm:$0xff] %v560
              %v562 = vld [vmem:[%s234 + $0x5f0] sm:$0xff]
              %563 = vst [vmem:[%s235 + $0x5f0] sm:$0xff] %v562
              %v564 = vld [vmem:[%s234 + $0x5f8] sm:$0xff]
              %565 = vst [vmem:[%s235 + $0x5f8] sm:$0xff] %v564
              %v566 = vld [vmem:[%s234 + $0x600] sm:$0xff]
              %567 = vst [vmem:[%s235 + $0x600] sm:$0xff] %v566
              %v568 = vld [vmem:[%s234 + $0x608] sm:$0xff]
              %569 = vst [vmem:[%s235 + $0x608] sm:$0xff] %v568
              %v570 = vld [vmem:[%s234 + $0x610] sm:$0xff]
              %571 = vst [vmem:[%s235 + $0x610] sm:$0xff] %v570
              %v572 = vld [vmem:[%s234 + $0x620] sm:$0xff]
              %573 = vst [vmem:[%s235 + $0x620] sm:$0xff] %v572
              %v574 = vld [vmem:[%s234 + $0x628] sm:$0xff]
              %575 = vst [vmem:[%s235 + $0x628] sm:$0xff] %v574
              %v576 = vld [vmem:[%s234 + $0x630] sm:$0xff]
              %577 = vst [vmem:[%s235 + $0x630] sm:$0xff] %v576
              %v578 = vld [vmem:[%s234 + $0x638] sm:$0xff]
              %579 = vst [vmem:[%s235 + $0x638] sm:$0xff] %v578
              %v580 = vld [vmem:[%s234 + $0x640] sm:$0xff]
              %581 = vst [vmem:[%s235 + $0x640] sm:$0xff] %v580
              %v582 = vld [vmem:[%s234 + $0x648] sm:$0xff]
              %583 = vst [vmem:[%s235 + $0x648] sm:$0xff] %v582
              %v584 = vld [vmem:[%s234 + $0x658] sm:$0xff]
              %585 = vst [vmem:[%s235 + $0x658] sm:$0xff] %v584
              %v586 = vld [vmem:[%s234 + $0x660] sm:$0xff]
              %587 = vst [vmem:[%s235 + $0x660] sm:$0xff] %v586
              %v588 = vld [vmem:[%s234 + $0x668] sm:$0xff]
              %589 = vst [vmem:[%s235 + $0x668] sm:$0xff] %v588
              %v590 = vld [vmem:[%s234 + $0x670] sm:$0xff]
              %591 = vst [vmem:[%s235 + $0x670] sm:$0xff] %v590
              %v592 = vld [vmem:[%s234 + $0x678] sm:$0xff]
              %593 = vst [vmem:[%s235 + $0x678] sm:$0xff] %v592
              %v594 = vld [vmem:[%s234 + $0x680] sm:$0xff]
              %595 = vst [vmem:[%s235 + $0x680] sm:$0xff] %v594
              %v596 = vld [vmem:[%s234 + $0x690] sm:$0xff]
              %597 = vst [vmem:[%s235 + $0x690] sm:$0xff] %v596
              %v598 = vld [vmem:[%s234 + $0x698] sm:$0xff]
              %599 = vst [vmem:[%s235 + $0x698] sm:$0xff] %v598
              %v600 = vld [vmem:[%s234 + $0x6a0] sm:$0xff]
              %601 = vst [vmem:[%s235 + $0x6a0] sm:$0xff] %v600
              %v602 = vld [vmem:[%s234 + $0x6a8] sm:$0xff]
              %603 = vst [vmem:[%s235 + $0x6a8] sm:$0xff] %v602
              %v604 = vld [vmem:[%s234 + $0x6b0] sm:$0xff]
              %605 = vst [vmem:[%s235 + $0x6b0] sm:$0xff] %v604
              %v606 = vld [vmem:[%s234 + $0x6b8] sm:$0xff]
              %607 = vst [vmem:[%s235 + $0x6b8] sm:$0xff] %v606
              %v608 = vld [vmem:[%s234 + $0x6c8] sm:$0xff]
              %609 = vst [vmem:[%s235 + $0x6c8] sm:$0xff] %v608
              %v610 = vld [vmem:[%s234 + $0x6d0] sm:$0xff]
              %611 = vst [vmem:[%s235 + $0x6d0] sm:$0xff] %v610
              %v612 = vld [vmem:[%s234 + $0x6d8] sm:$0xff]
              %613 = vst [vmem:[%s235 + $0x6d8] sm:$0xff] %v612
              %v614 = vld [vmem:[%s234 + $0x6e0] sm:$0xff]
              %615 = vst [vmem:[%s235 + $0x6e0] sm:$0xff] %v614
              %v616 = vld [vmem:[%s234 + $0x6e8] sm:$0xff]
              %617 = vst [vmem:[%s235 + $0x6e8] sm:$0xff] %v616
              %v618 = vld [vmem:[%s234 + $0x6f0] sm:$0xff]
              %619 = vst [vmem:[%s235 + $0x6f0] sm:$0xff] %v618
              %v620 = vld [vmem:[%s234 + $0x700] sm:$0xff]
              %621 = vst [vmem:[%s235 + $0x700] sm:$0xff] %v620
              %v622 = vld [vmem:[%s234 + $0x708] sm:$0xff]
              %623 = vst [vmem:[%s235 + $0x708] sm:$0xff] %v622
              %v624 = vld [vmem:[%s234 + $0x710] sm:$0xff]
              %625 = vst [vmem:[%s235 + $0x710] sm:$0xff] %v624
              %v626 = vld [vmem:[%s234 + $0x718] sm:$0xff]
              %627 = vst [vmem:[%s235 + $0x718] sm:$0xff] %v626
              %v628 = vld [vmem:[%s234 + $0x720] sm:$0xff]
              %629 = vst [vmem:[%s235 + $0x720] sm:$0xff] %v628
              %v630 = vld [vmem:[%s234 + $0x728] sm:$0xff]
              %631 = vst [vmem:[%s235 + $0x728] sm:$0xff] %v630
              %v632 = vld [vmem:[%s234 + $0x738] sm:$0xff]
              %633 = vst [vmem:[%s235 + $0x738] sm:$0xff] %v632
              %v634 = vld [vmem:[%s234 + $0x740] sm:$0xff]
              %635 = vst [vmem:[%s235 + $0x740] sm:$0xff] %v634
              %v636 = vld [vmem:[%s234 + $0x748] sm:$0xff]
              %637 = vst [vmem:[%s235 + $0x748] sm:$0xff] %v636
              %v638 = vld [vmem:[%s234 + $0x750] sm:$0xff]
              %639 = vst [vmem:[%s235 + $0x750] sm:$0xff] %v638
              %v640 = vld [vmem:[%s234 + $0x758] sm:$0xff]
              %641 = vst [vmem:[%s235 + $0x758] sm:$0xff] %v640
              %v642 = vld [vmem:[%s234 + $0x760] sm:$0xff]
              %643 = vst [vmem:[%s235 + $0x760] sm:$0xff] %v642
              %v644 = vld [vmem:[%s234 + $0x770] sm:$0xff]
              %645 = vst [vmem:[%s235 + $0x770] sm:$0xff] %v644
              %v646 = vld [vmem:[%s234 + $0x778] sm:$0xff]
              %647 = vst [vmem:[%s235 + $0x778] sm:$0xff] %v646
              %v648 = vld [vmem:[%s234 + $0x780] sm:$0xff]
              %649 = vst [vmem:[%s235 + $0x780] sm:$0xff] %v648
              %v650 = vld [vmem:[%s234 + $0x788] sm:$0xff]
              %651 = vst [vmem:[%s235 + $0x788] sm:$0xff] %v650
              %v652 = vld [vmem:[%s234 + $0x790] sm:$0xff]
              %653 = vst [vmem:[%s235 + $0x790] sm:$0xff] %v652
              %v654 = vld [vmem:[%s234 + $0x798] sm:$0xff]
              %655 = vst [vmem:[%s235 + $0x798] sm:$0xff] %v654
              %v656 = vld [vmem:[%s234 + $0x7a8] sm:$0xff]
              %657 = vst [vmem:[%s235 + $0x7a8] sm:$0xff] %v656
              %v658 = vld [vmem:[%s234 + $0x7b0] sm:$0xff]
              %659 = vst [vmem:[%s235 + $0x7b0] sm:$0xff] %v658
              %v660 = vld [vmem:[%s234 + $0x7b8] sm:$0xff]
              %661 = vst [vmem:[%s235 + $0x7b8] sm:$0xff] %v660
              %v662 = vld [vmem:[%s234 + $0x7c0] sm:$0xff]
              %663 = vst [vmem:[%s235 + $0x7c0] sm:$0xff] %v662
              %v664 = vld [vmem:[%s234 + $0x7c8] sm:$0xff]
              %665 = vst [vmem:[%s235 + $0x7c8] sm:$0xff] %v664
              %v666 = vld [vmem:[%s234 + $0x7d0] sm:$0xff]
              %667 = vst [vmem:[%s235 + $0x7d0] sm:$0xff] %v666
              %v668 = vld [vmem:[%s234 + $0x7e0] sm:$0xff]
              %669 = vst [vmem:[%s235 + $0x7e0] sm:$0xff] %v668
              %v670 = vld [vmem:[%s234 + $0x7e8] sm:$0xff]
              %671 = vst [vmem:[%s235 + $0x7e8] sm:$0xff] %v670
              %v672 = vld [vmem:[%s234 + $0x7f0] sm:$0xff]
              %673 = vst [vmem:[%s235 + $0x7f0] sm:$0xff] %v672
              %v674 = vld [vmem:[%s234 + $0x7f8] sm:$0xff]
              %675 = vst [vmem:[%s235 + $0x7f8] sm:$0xff] %v674
              %v676 = vld [vmem:[%s234 + $0x800] sm:$0xff]
              %677 = vst [vmem:[%s235 + $0x800] sm:$0xff] %v676
              %v678 = vld [vmem:[%s234 + $0x808] sm:$0xff]
              %679 = vst [vmem:[%s235 + $0x808] sm:$0xff] %v678
              %v680 = vld [vmem:[%s234 + $0x818] sm:$0xff]
              %681 = vst [vmem:[%s235 + $0x818] sm:$0xff] %v680
              %v682 = vld [vmem:[%s234 + $0x820] sm:$0xff]
              %683 = vst [vmem:[%s235 + $0x820] sm:$0xff] %v682
              %v684 = vld [vmem:[%s234 + $0x828] sm:$0xff]
              %685 = vst [vmem:[%s235 + $0x828] sm:$0xff] %v684
              %v686 = vld [vmem:[%s234 + $0x830] sm:$0xff]
              %687 = vst [vmem:[%s235 + $0x830] sm:$0xff] %v686
              %v688 = vld [vmem:[%s234 + $0x838] sm:$0xff]
              %689 = vst [vmem:[%s235 + $0x838] sm:$0xff] %v688
              %v690 = vld [vmem:[%s234 + $0x840] sm:$0xff]
              %691 = vst [vmem:[%s235 + $0x840] sm:$0xff] %v690
              %v692 = vld [vmem:[%s234 + $0x850] sm:$0xff]
              %693 = vst [vmem:[%s235 + $0x850] sm:$0xff] %v692
              %v694 = vld [vmem:[%s234 + $0x858] sm:$0xff]
              %695 = vst [vmem:[%s235 + $0x858] sm:$0xff] %v694
              %v696 = vld [vmem:[%s234 + $0x860] sm:$0xff]
              %697 = vst [vmem:[%s235 + $0x860] sm:$0xff] %v696
              %v698 = vld [vmem:[%s234 + $0x868] sm:$0xff]
              %699 = vst [vmem:[%s235 + $0x868] sm:$0xff] %v698
              %v700 = vld [vmem:[%s234 + $0x870] sm:$0xff]
              %701 = vst [vmem:[%s235 + $0x870] sm:$0xff] %v700
              %v702 = vld [vmem:[%s234 + $0x878] sm:$0xff]
              %703 = vst [vmem:[%s235 + $0x878] sm:$0xff] %v702
              %v704 = vld [vmem:[%s234 + $0x888] sm:$0xff]
              %705 = vst [vmem:[%s235 + $0x888] sm:$0xff] %v704
              %v706 = vld [vmem:[%s234 + $0x890] sm:$0xff]
              %707 = vst [vmem:[%s235 + $0x890] sm:$0xff] %v706
              %v708 = vld [vmem:[%s234 + $0x898] sm:$0xff]
              %709 = vst [vmem:[%s235 + $0x898] sm:$0xff] %v708
              %v710 = vld [vmem:[%s234 + $0x8a0] sm:$0xff]
              %711 = vst [vmem:[%s235 + $0x8a0] sm:$0xff] %v710
              %v712 = vld [vmem:[%s234 + $0x8a8] sm:$0xff]
              %713 = vst [vmem:[%s235 + $0x8a8] sm:$0xff] %v712
              %v714 = vld [vmem:[%s234 + $0x8b0] sm:$0xff]
              %715 = vst [vmem:[%s235 + $0x8b0] sm:$0xff] %v714
              %v716 = vld [vmem:[%s234 + $0x8c0] sm:$0xff]
              %717 = vst [vmem:[%s235 + $0x8c0] sm:$0xff] %v716
              %v718 = vld [vmem:[%s234 + $0x8c8] sm:$0xff]
              %719 = vst [vmem:[%s235 + $0x8c8] sm:$0xff] %v718
              %v720 = vld [vmem:[%s234 + $0x8d0] sm:$0xff]
              %721 = vst [vmem:[%s235 + $0x8d0] sm:$0xff] %v720
              %v722 = vld [vmem:[%s234 + $0x8d8] sm:$0xff]
              %723 = vst [vmem:[%s235 + $0x8d8] sm:$0xff] %v722
              %v724 = vld [vmem:[%s234 + $0x8e0] sm:$0xff]
              %725 = vst [vmem:[%s235 + $0x8e0] sm:$0xff] %v724
              %v726 = vld [vmem:[%s234 + $0x8e8] sm:$0xff]
              %727 = vst [vmem:[%s235 + $0x8e8] sm:$0xff] %v726
              %v728 = vld [vmem:[%s234 + $0x8f8] sm:$0xff]
              %729 = vst [vmem:[%s235 + $0x8f8] sm:$0xff] %v728
              %v730 = vld [vmem:[%s234 + $0x900] sm:$0xff]
              %731 = vst [vmem:[%s235 + $0x900] sm:$0xff] %v730
              %v732 = vld [vmem:[%s234 + $0x908] sm:$0xff]
              %733 = vst [vmem:[%s235 + $0x908] sm:$0xff] %v732
              %v734 = vld [vmem:[%s234 + $0x910] sm:$0xff]
              %735 = vst [vmem:[%s235 + $0x910] sm:$0xff] %v734
              %v736 = vld [vmem:[%s234 + $0x918] sm:$0xff]
              %737 = vst [vmem:[%s235 + $0x918] sm:$0xff] %v736
              %v738 = vld [vmem:[%s234 + $0x920] sm:$0xff]
              %739 = vst [vmem:[%s235 + $0x920] sm:$0xff] %v738
              %v740 = vld [vmem:[%s234 + $0x930] sm:$0xff]
              %741 = vst [vmem:[%s235 + $0x930] sm:$0xff] %v740
              %v742 = vld [vmem:[%s234 + $0x938] sm:$0xff]
              %743 = vst [vmem:[%s235 + $0x938] sm:$0xff] %v742
              %v744 = vld [vmem:[%s234 + $0x940] sm:$0xff]
              %745 = vst [vmem:[%s235 + $0x940] sm:$0xff] %v744
              %v746 = vld [vmem:[%s234 + $0x948] sm:$0xff]
              %747 = vst [vmem:[%s235 + $0x948] sm:$0xff] %v746
              %v748 = vld [vmem:[%s234 + $0x950] sm:$0xff]
              %749 = vst [vmem:[%s235 + $0x950] sm:$0xff] %v748
              %v750 = vld [vmem:[%s234 + $0x958] sm:$0xff]
              %751 = vst [vmem:[%s235 + $0x958] sm:$0xff] %v750
              %v752 = vld [vmem:[%s234 + $0x968] sm:$0xff]
              %753 = vst [vmem:[%s235 + $0x968] sm:$0xff] %v752
              %v754 = vld [vmem:[%s234 + $0x970] sm:$0xff]
              %755 = vst [vmem:[%s235 + $0x970] sm:$0xff] %v754
              %v756 = vld [vmem:[%s234 + $0x978] sm:$0xff]
              %757 = vst [vmem:[%s235 + $0x978] sm:$0xff] %v756
              %v758 = vld [vmem:[%s234 + $0x980] sm:$0xff]
              %759 = vst [vmem:[%s235 + $0x980] sm:$0xff] %v758
              %v760 = vld [vmem:[%s234 + $0x988] sm:$0xff]
              %761 = vst [vmem:[%s235 + $0x988] sm:$0xff] %v760
              %v762 = vld [vmem:[%s234 + $0x990] sm:$0xff]
              %763 = vst [vmem:[%s235 + $0x990] sm:$0xff] %v762
              %v764 = vld [vmem:[%s234 + $0x9a0] sm:$0xff]
              %765 = vst [vmem:[%s235 + $0x9a0] sm:$0xff] %v764
              %v766 = vld [vmem:[%s234 + $0x9a8] sm:$0xff]
              %767 = vst [vmem:[%s235 + $0x9a8] sm:$0xff] %v766
              %v768 = vld [vmem:[%s234 + $0x9b0] sm:$0xff]
              %769 = vst [vmem:[%s235 + $0x9b0] sm:$0xff] %v768
              %v770 = vld [vmem:[%s234 + $0x9b8] sm:$0xff]
              %771 = vst [vmem:[%s235 + $0x9b8] sm:$0xff] %v770
              %v772 = vld [vmem:[%s234 + $0x9c0] sm:$0xff]
              %773 = vst [vmem:[%s235 + $0x9c0] sm:$0xff] %v772
              %v774 = vld [vmem:[%s234 + $0x9c8] sm:$0xff]
              %775 = vst [vmem:[%s235 + $0x9c8] sm:$0xff] %v774
              %v776 = vld [vmem:[%s234 + $0x9d8] sm:$0xff]
              %777 = vst [vmem:[%s235 + $0x9d8] sm:$0xff] %v776
              %v778 = vld [vmem:[%s234 + $0x9e0] sm:$0xff]
              %779 = vst [vmem:[%s235 + $0x9e0] sm:$0xff] %v778
              %v780 = vld [vmem:[%s234 + $0x9e8] sm:$0xff]
              %781 = vst [vmem:[%s235 + $0x9e8] sm:$0xff] %v780
              %v782 = vld [vmem:[%s234 + $0x9f0] sm:$0xff]
              %783 = vst [vmem:[%s235 + $0x9f0] sm:$0xff] %v782
              %v784 = vld [vmem:[%s234 + $0x9f8] sm:$0xff]
              %785 = vst [vmem:[%s235 + $0x9f8] sm:$0xff] %v784
              %v786 = vld [vmem:[%s234 + $0xa00] sm:$0xff]
              %787 = vst [vmem:[%s235 + $0xa00] sm:$0xff] %v786
              %v788 = vld [vmem:[%s234 + $0xa10] sm:$0xff]
              %789 = vst [vmem:[%s235 + $0xa10] sm:$0xff] %v788
              %v790 = vld [vmem:[%s234 + $0xa18] sm:$0xff]
              %791 = vst [vmem:[%s235 + $0xa18] sm:$0xff] %v790
              %v792 = vld [vmem:[%s234 + $0xa20] sm:$0xff]
              %793 = vst [vmem:[%s235 + $0xa20] sm:$0xff] %v792
              %v794 = vld [vmem:[%s234 + $0xa28] sm:$0xff]
              %795 = vst [vmem:[%s235 + $0xa28] sm:$0xff] %v794
              %v796 = vld [vmem:[%s234 + $0xa30] sm:$0xff]
              %797 = vst [vmem:[%s235 + $0xa30] sm:$0xff] %v796
              %v798 = vld [vmem:[%s234 + $0xa38] sm:$0xff]
              %799 = vst [vmem:[%s235 + $0xa38] sm:$0xff] %v798
              %v800 = vld [vmem:[%s234 + $0xa48] sm:$0xff]
              %801 = vst [vmem:[%s235 + $0xa48] sm:$0xff] %v800
              %v802 = vld [vmem:[%s234 + $0xa50] sm:$0xff]
              %803 = vst [vmem:[%s235 + $0xa50] sm:$0xff] %v802
              %v804 = vld [vmem:[%s234 + $0xa58] sm:$0xff]
              %805 = vst [vmem:[%s235 + $0xa58] sm:$0xff] %v804
              %v806 = vld [vmem:[%s234 + $0xa60] sm:$0xff]
              %807 = vst [vmem:[%s235 + $0xa60] sm:$0xff] %v806
              %v808 = vld [vmem:[%s234 + $0xa68] sm:$0xff]
              %809 = vst [vmem:[%s235 + $0xa68] sm:$0xff] %v808
              %v810 = vld [vmem:[%s234 + $0xa70] sm:$0xff]
              %811 = vst [vmem:[%s235 + $0xa70] sm:$0xff] %v810
              %v812 = vld [vmem:[%s234 + $0xa80] sm:$0xff]
              %813 = vst [vmem:[%s235 + $0xa80] sm:$0xff] %v812
              %v814 = vld [vmem:[%s234 + $0xa88] sm:$0xff]
              %815 = vst [vmem:[%s235 + $0xa88] sm:$0xff] %v814
              %v816 = vld [vmem:[%s234 + $0xa90] sm:$0xff]
              %817 = vst [vmem:[%s235 + $0xa90] sm:$0xff] %v816
              %v818 = vld [vmem:[%s234 + $0xa98] sm:$0xff]
              %819 = vst [vmem:[%s235 + $0xa98] sm:$0xff] %v818
              %v820 = vld [vmem:[%s234 + $0xaa0] sm:$0xff]
              %821 = vst [vmem:[%s235 + $0xaa0] sm:$0xff] %v820
              %v822 = vld [vmem:[%s234 + $0xaa8] sm:$0xff]
              %823 = vst [vmem:[%s235 + $0xaa8] sm:$0xff] %v822
              %v824 = vld [vmem:[%s234 + $0xab8] sm:$0xff]
              %825 = vst [vmem:[%s235 + $0xab8] sm:$0xff] %v824
              %v826 = vld [vmem:[%s234 + $0xac0] sm:$0xff]
              %827 = vst [vmem:[%s235 + $0xac0] sm:$0xff] %v826
              %v828 = vld [vmem:[%s234 + $0xac8] sm:$0xff]
              %829 = vst [vmem:[%s235 + $0xac8] sm:$0xff] %v828
              %v830 = vld [vmem:[%s234 + $0xad0] sm:$0xff]
              %831 = vst [vmem:[%s235 + $0xad0] sm:$0xff] %v830
              %v832 = vld [vmem:[%s234 + $0xad8] sm:$0xff]
              %833 = vst [vmem:[%s235 + $0xad8] sm:$0xff] %v832
              %v834 = vld [vmem:[%s234 + $0xae0] sm:$0xff]
              %835 = vst [vmem:[%s235 + $0xae0] sm:$0xff] %v834
              %v836 = vld [vmem:[%s234 + $0xaf0] sm:$0xff]
              %837 = vst [vmem:[%s235 + $0xaf0] sm:$0xff] %v836
              %v838 = vld [vmem:[%s234 + $0xaf8] sm:$0xff]
              %839 = vst [vmem:[%s235 + $0xaf8] sm:$0xff] %v838
              %v840 = vld [vmem:[%s234 + $0xb00] sm:$0xff]
              %841 = vst [vmem:[%s235 + $0xb00] sm:$0xff] %v840
              %v842 = vld [vmem:[%s234 + $0xb08] sm:$0xff]
              %843 = vst [vmem:[%s235 + $0xb08] sm:$0xff] %v842
              %v844 = vld [vmem:[%s234 + $0xb10] sm:$0xff]
              %845 = vst [vmem:[%s235 + $0xb10] sm:$0xff] %v844
              %v846 = vld [vmem:[%s234 + $0xb18] sm:$0xff]
              %847 = vst [vmem:[%s235 + $0xb18] sm:$0xff] %v846
              %v848 = vld [vmem:[%s234 + $0xb28] sm:$0xff]
              %849 = vst [vmem:[%s235 + $0xb28] sm:$0xff] %v848
              %v850 = vld [vmem:[%s234 + $0xb30] sm:$0xff]
              %851 = vst [vmem:[%s235 + $0xb30] sm:$0xff] %v850
              %v852 = vld [vmem:[%s234 + $0xb38] sm:$0xff]
              %853 = vst [vmem:[%s235 + $0xb38] sm:$0xff] %v852
              %v854 = vld [vmem:[%s234 + $0xb40] sm:$0xff]
              %855 = vst [vmem:[%s235 + $0xb40] sm:$0xff] %v854
              %v856 = vld [vmem:[%s234 + $0xb48] sm:$0xff]
              %857 = vst [vmem:[%s235 + $0xb48] sm:$0xff] %v856
              %v858 = vld [vmem:[%s234 + $0xb50] sm:$0xff]
              %859 = vst [vmem:[%s235 + $0xb50] sm:$0xff] %v858
            $region49: #{tpu_custom_call.1} parent=43 // loop_footer
              %s233 = sadd.s32 1, %s229
            $region50: #{tpu_custom_call.1} parent=43 // loop_footer_branch
              %228 = sbr.rel target = $region46
            $region51: #{tpu_custom_call.1} parent=43 // loop_exit
              _
            %s861 = ssub.s32 16, 1
            loop: start=0, step=1, limit=1
            $region52: #{tpu_custom_call.1} parent=43 // loop_pre_header
              _
            $region53: #{tpu_custom_call.1} parent=43 // loop_header
              %s863 = sphi 0, %s867
              %p864 = scmp.ge.s32.totalorder %s863, 1
              %s868 = sphi %s226, %s226
              %s869 = sphi %s227, %s227
            $region54: #{tpu_custom_call.1} parent=43 // loop_header_branch
              %866 = sbr.rel (%p864) target = $region58
            $region55: #{tpu_custom_call.1} parent=43 // loop_body
              %v870 = vld [vmem:[%s868] sm:%s861]
              %871 = vst [vmem:[%s869] sm:%s861] %v870
              %v872 = vld [vmem:[%s868 + $0x38] sm:%s861]
              %873 = vst [vmem:[%s869 + $0x38] sm:%s861] %v872
              %v874 = vld [vmem:[%s868 + $0x70] sm:%s861]
              %875 = vst [vmem:[%s869 + $0x70] sm:%s861] %v874
              %v876 = vld [vmem:[%s868 + $0xa8] sm:%s861]
              %877 = vst [vmem:[%s869 + $0xa8] sm:%s861] %v876
              %v878 = vld [vmem:[%s868 + $0xe0] sm:%s861]
              %879 = vst [vmem:[%s869 + $0xe0] sm:%s861] %v878
              %v880 = vld [vmem:[%s868 + $0x118] sm:%s861]
              %881 = vst [vmem:[%s869 + $0x118] sm:%s861] %v880
              %v882 = vld [vmem:[%s868 + $0x150] sm:%s861]
              %883 = vst [vmem:[%s869 + $0x150] sm:%s861] %v882
              %v884 = vld [vmem:[%s868 + $0x188] sm:%s861]
              %885 = vst [vmem:[%s869 + $0x188] sm:%s861] %v884
              %v886 = vld [vmem:[%s868 + $0x1c0] sm:%s861]
              %887 = vst [vmem:[%s869 + $0x1c0] sm:%s861] %v886
              %v888 = vld [vmem:[%s868 + $0x1f8] sm:%s861]
              %889 = vst [vmem:[%s869 + $0x1f8] sm:%s861] %v888
              %v890 = vld [vmem:[%s868 + $0x230] sm:%s861]
              %891 = vst [vmem:[%s869 + $0x230] sm:%s861] %v890
              %v892 = vld [vmem:[%s868 + $0x268] sm:%s861]
              %893 = vst [vmem:[%s869 + $0x268] sm:%s861] %v892
              %v894 = vld [vmem:[%s868 + $0x2a0] sm:%s861]
              %895 = vst [vmem:[%s869 + $0x2a0] sm:%s861] %v894
              %v896 = vld [vmem:[%s868 + $0x2d8] sm:%s861]
              %897 = vst [vmem:[%s869 + $0x2d8] sm:%s861] %v896
              %v898 = vld [vmem:[%s868 + $0x310] sm:%s861]
              %899 = vst [vmem:[%s869 + $0x310] sm:%s861] %v898
              %v900 = vld [vmem:[%s868 + $0x348] sm:%s861]
              %901 = vst [vmem:[%s869 + $0x348] sm:%s861] %v900
              %v902 = vld [vmem:[%s868 + $0x380] sm:%s861]
              %903 = vst [vmem:[%s869 + $0x380] sm:%s861] %v902
              %v904 = vld [vmem:[%s868 + $0x3b8] sm:%s861]
              %905 = vst [vmem:[%s869 + $0x3b8] sm:%s861] %v904
              %v906 = vld [vmem:[%s868 + $0x3f0] sm:%s861]
              %907 = vst [vmem:[%s869 + $0x3f0] sm:%s861] %v906
              %v908 = vld [vmem:[%s868 + $0x428] sm:%s861]
              %909 = vst [vmem:[%s869 + $0x428] sm:%s861] %v908
              %v910 = vld [vmem:[%s868 + $0x460] sm:%s861]
              %911 = vst [vmem:[%s869 + $0x460] sm:%s861] %v910
              %v912 = vld [vmem:[%s868 + $0x498] sm:%s861]
              %913 = vst [vmem:[%s869 + $0x498] sm:%s861] %v912
              %v914 = vld [vmem:[%s868 + $0x4d0] sm:%s861]
              %915 = vst [vmem:[%s869 + $0x4d0] sm:%s861] %v914
              %v916 = vld [vmem:[%s868 + $0x508] sm:%s861]
              %917 = vst [vmem:[%s869 + $0x508] sm:%s861] %v916
              %v918 = vld [vmem:[%s868 + $0x540] sm:%s861]
              %919 = vst [vmem:[%s869 + $0x540] sm:%s861] %v918
              %v920 = vld [vmem:[%s868 + $0x578] sm:%s861]
              %921 = vst [vmem:[%s869 + $0x578] sm:%s861] %v920
              %v922 = vld [vmem:[%s868 + $0x5b0] sm:%s861]
              %923 = vst [vmem:[%s869 + $0x5b0] sm:%s861] %v922
              %v924 = vld [vmem:[%s868 + $0x5e8] sm:%s861]
              %925 = vst [vmem:[%s869 + $0x5e8] sm:%s861] %v924
              %v926 = vld [vmem:[%s868 + $0x620] sm:%s861]
              %927 = vst [vmem:[%s869 + $0x620] sm:%s861] %v926
              %v928 = vld [vmem:[%s868 + $0x658] sm:%s861]
              %929 = vst [vmem:[%s869 + $0x658] sm:%s861] %v928
              %v930 = vld [vmem:[%s868 + $0x690] sm:%s861]
              %931 = vst [vmem:[%s869 + $0x690] sm:%s861] %v930
              %v932 = vld [vmem:[%s868 + $0x6c8] sm:%s861]
              %933 = vst [vmem:[%s869 + $0x6c8] sm:%s861] %v932
              %v934 = vld [vmem:[%s868 + $0x700] sm:%s861]
              %935 = vst [vmem:[%s869 + $0x700] sm:%s861] %v934
              %v936 = vld [vmem:[%s868 + $0x738] sm:%s861]
              %937 = vst [vmem:[%s869 + $0x738] sm:%s861] %v936
              %v938 = vld [vmem:[%s868 + $0x770] sm:%s861]
              %939 = vst [vmem:[%s869 + $0x770] sm:%s861] %v938
              %v940 = vld [vmem:[%s868 + $0x7a8] sm:%s861]
              %941 = vst [vmem:[%s869 + $0x7a8] sm:%s861] %v940
              %v942 = vld [vmem:[%s868 + $0x7e0] sm:%s861]
              %943 = vst [vmem:[%s869 + $0x7e0] sm:%s861] %v942
              %v944 = vld [vmem:[%s868 + $0x818] sm:%s861]
              %945 = vst [vmem:[%s869 + $0x818] sm:%s861] %v944
              %v946 = vld [vmem:[%s868 + $0x850] sm:%s861]
              %947 = vst [vmem:[%s869 + $0x850] sm:%s861] %v946
              %v948 = vld [vmem:[%s868 + $0x888] sm:%s861]
              %949 = vst [vmem:[%s869 + $0x888] sm:%s861] %v948
              %v950 = vld [vmem:[%s868 + $0x8c0] sm:%s861]
              %951 = vst [vmem:[%s869 + $0x8c0] sm:%s861] %v950
              %v952 = vld [vmem:[%s868 + $0x8f8] sm:%s861]
              %953 = vst [vmem:[%s869 + $0x8f8] sm:%s861] %v952
              %v954 = vld [vmem:[%s868 + $0x930] sm:%s861]
              %955 = vst [vmem:[%s869 + $0x930] sm:%s861] %v954
              %v956 = vld [vmem:[%s868 + $0x968] sm:%s861]
              %957 = vst [vmem:[%s869 + $0x968] sm:%s861] %v956
              %v958 = vld [vmem:[%s868 + $0x9a0] sm:%s861]
              %959 = vst [vmem:[%s869 + $0x9a0] sm:%s861] %v958
              %v960 = vld [vmem:[%s868 + $0x9d8] sm:%s861]
              %961 = vst [vmem:[%s869 + $0x9d8] sm:%s861] %v960
              %v962 = vld [vmem:[%s868 + $0xa10] sm:%s861]
              %963 = vst [vmem:[%s869 + $0xa10] sm:%s861] %v962
              %v964 = vld [vmem:[%s868 + $0xa48] sm:%s861]
              %965 = vst [vmem:[%s869 + $0xa48] sm:%s861] %v964
              %v966 = vld [vmem:[%s868 + $0xa80] sm:%s861]
              %967 = vst [vmem:[%s869 + $0xa80] sm:%s861] %v966
              %v968 = vld [vmem:[%s868 + $0xab8] sm:%s861]
              %969 = vst [vmem:[%s869 + $0xab8] sm:%s861] %v968
              %v970 = vld [vmem:[%s868 + $0xaf0] sm:%s861]
              %971 = vst [vmem:[%s869 + $0xaf0] sm:%s861] %v970
              %v972 = vld [vmem:[%s868 + $0xb28] sm:%s861]
              %973 = vst [vmem:[%s869 + $0xb28] sm:%s861] %v972
            $region56: #{tpu_custom_call.1} parent=43 // loop_footer
              %s867 = sadd.s32 1, %s863
            $region57: #{tpu_custom_call.1} parent=43 // loop_footer_branch
              %862 = sbr.rel target = $region53
            $region58: #{tpu_custom_call.1} parent=43 // loop_exit
              _
          $region44: #{tpu_custom_call.1} parent=39 // pred_fallthru
            _
          // Predicated region
          $region59: #{tpu_custom_call.1} parent=39 // pred_check
            _
          $region60: #{tpu_custom_call.1} parent=39 // pred_check_branch
            %976 = sbr.rel (0) target = $region62
          $region61: #{tpu_custom_call.1} parent=39 // pred_region
            %977 = vsyncadd [#allocation3], 43264
          $region62: #{tpu_custom_call.1} parent=39 // pred_fallthru
            _
        $region40: #{tpu_custom_call.1} parent=35 // pred_fallthru
          _
        %s978 = smul.u32 %s217, 2912
        %s979 = scalar_lea.vmem [#allocation2], %s978
        %s980 = scalar_lea.sflag [#allocation3], %s217
        %s981 = smul.u32 52, 52
        %s982 = smul.u32 %s981, 1
        %s983 = sshll.u32 %s982, 4
        %984 = dma.done %s980, %s983
        %s985 = sadd.s32 %s24, 1
        %p986 = scmp.lt.s32.totalorder %s985, 1
        // Predicated region
        $region63: #{tpu_custom_call.1} parent=35 // pred_check
          %p987 = pneg %p986
        $region64: #{tpu_custom_call.1} parent=35 // pred_check_branch
          %989 = sbr.rel (%p987) target = $region66
        $region65: #{tpu_custom_call.1} parent=35 // pred_region
          %s990 = smul.u32 %s985, 16
          %s991 = ssub.s32 1, %s217
          %s992 = smul.u32 %s990, 56
          %s993 = smul.u32 %s23, 2912
          %s994 = sadd.s32 %s992, %s993
          %s995 = scalar_lea.vmem %s0, %s994
          %s996 = smul.u32 %s991, 2912
          %s997 = scalar_lea.vmem [#allocation2], %s996
          %s998 = scalar_lea.sflag [#allocation3], %s991
          // Predicated region
          $region67: #{tpu_custom_call.1} parent=65 // pred_check
            _
          $region68: #{tpu_custom_call.1} parent=65 // pred_check_branch
            %1000 = sbr.rel (0) target = $region70
          $region69: #{tpu_custom_call.1} parent=65 // pred_region
            %s1001 = scalar_lea.vmem %s995, 48
            %s1002 = scalar_lea.vmem %s997, 48 [#allocation2]
            loop: start=0, step=1, limit=1
            $region71: #{tpu_custom_call.1} parent=69 // loop_pre_header
              _
            $region72: #{tpu_custom_call.1} parent=69 // loop_header
              %s1004 = sphi 0, %s1008
              %p1005 = scmp.ge.s32.totalorder %s1004, 1
              %s1009 = sphi %s995, %s995
              %s1010 = sphi %s997, %s997
            $region73: #{tpu_custom_call.1} parent=69 // loop_header_branch
              %1007 = sbr.rel (%p1005) target = $region77
            $region74: #{tpu_custom_call.1} parent=69 // loop_body
              %v1011 = vld [vmem:[%s1009] sm:$0xff]
              %1012 = vst [vmem:[%s1010] sm:$0xff] %v1011
              %v1013 = vld [vmem:[%s1009 + $0x8] sm:$0xff]
              %1014 = vst [vmem:[%s1010 + $0x8] sm:$0xff] %v1013
              %v1015 = vld [vmem:[%s1009 + $0x10] sm:$0xff]
              %1016 = vst [vmem:[%s1010 + $0x10] sm:$0xff] %v1015
              %v1017 = vld [vmem:[%s1009 + $0x18] sm:$0xff]
              %1018 = vst [vmem:[%s1010 + $0x18] sm:$0xff] %v1017
              %v1019 = vld [vmem:[%s1009 + $0x20] sm:$0xff]
              %1020 = vst [vmem:[%s1010 + $0x20] sm:$0xff] %v1019
              %v1021 = vld [vmem:[%s1009 + $0x28] sm:$0xff]
              %1022 = vst [vmem:[%s1010 + $0x28] sm:$0xff] %v1021
              %v1023 = vld [vmem:[%s1009 + $0x38] sm:$0xff]
              %1024 = vst [vmem:[%s1010 + $0x38] sm:$0xff] %v1023
              %v1025 = vld [vmem:[%s1009 + $0x40] sm:$0xff]
              %1026 = vst [vmem:[%s1010 + $0x40] sm:$0xff] %v1025
              %v1027 = vld [vmem:[%s1009 + $0x48] sm:$0xff]
              %1028 = vst [vmem:[%s1010 + $0x48] sm:$0xff] %v1027
              %v1029 = vld [vmem:[%s1009 + $0x50] sm:$0xff]
              %1030 = vst [vmem:[%s1010 + $0x50] sm:$0xff] %v1029
              %v1031 = vld [vmem:[%s1009 + $0x58] sm:$0xff]
              %1032 = vst [vmem:[%s1010 + $0x58] sm:$0xff] %v1031
              %v1033 = vld [vmem:[%s1009 + $0x60] sm:$0xff]
              %1034 = vst [vmem:[%s1010 + $0x60] sm:$0xff] %v1033
              %v1035 = vld [vmem:[%s1009 + $0x70] sm:$0xff]
              %1036 = vst [vmem:[%s1010 + $0x70] sm:$0xff] %v1035
              %v1037 = vld [vmem:[%s1009 + $0x78] sm:$0xff]
              %1038 = vst [vmem:[%s1010 + $0x78] sm:$0xff] %v1037
              %v1039 = vld [vmem:[%s1009 + $0x80] sm:$0xff]
              %1040 = vst [vmem:[%s1010 + $0x80] sm:$0xff] %v1039
              %v1041 = vld [vmem:[%s1009 + $0x88] sm:$0xff]
              %1042 = vst [vmem:[%s1010 + $0x88] sm:$0xff] %v1041
              %v1043 = vld [vmem:[%s1009 + $0x90] sm:$0xff]
              %1044 = vst [vmem:[%s1010 + $0x90] sm:$0xff] %v1043
              %v1045 = vld [vmem:[%s1009 + $0x98] sm:$0xff]
              %1046 = vst [vmem:[%s1010 + $0x98] sm:$0xff] %v1045
              %v1047 = vld [vmem:[%s1009 + $0xa8] sm:$0xff]
              %1048 = vst [vmem:[%s1010 + $0xa8] sm:$0xff] %v1047
              %v1049 = vld [vmem:[%s1009 + $0xb0] sm:$0xff]
              %1050 = vst [vmem:[%s1010 + $0xb0] sm:$0xff] %v1049
              %v1051 = vld [vmem:[%s1009 + $0xb8] sm:$0xff]
              %1052 = vst [vmem:[%s1010 + $0xb8] sm:$0xff] %v1051
              %v1053 = vld [vmem:[%s1009 + $0xc0] sm:$0xff]
              %1054 = vst [vmem:[%s1010 + $0xc0] sm:$0xff] %v1053
              %v1055 = vld [vmem:[%s1009 + $0xc8] sm:$0xff]
              %1056 = vst [vmem:[%s1010 + $0xc8] sm:$0xff] %v1055
              %v1057 = vld [vmem:[%s1009 + $0xd0] sm:$0xff]
              %1058 = vst [vmem:[%s1010 + $0xd0] sm:$0xff] %v1057
              %v1059 = vld [vmem:[%s1009 + $0xe0] sm:$0xff]
              %1060 = vst [vmem:[%s1010 + $0xe0] sm:$0xff] %v1059
              %v1061 = vld [vmem:[%s1009 + $0xe8] sm:$0xff]
              %1062 = vst [vmem:[%s1010 + $0xe8] sm:$0xff] %v1061
              %v1063 = vld [vmem:[%s1009 + $0xf0] sm:$0xff]
              %1064 = vst [vmem:[%s1010 + $0xf0] sm:$0xff] %v1063
              %v1065 = vld [vmem:[%s1009 + $0xf8] sm:$0xff]
              %1066 = vst [vmem:[%s1010 + $0xf8] sm:$0xff] %v1065
              %v1067 = vld [vmem:[%s1009 + $0x100] sm:$0xff]
              %1068 = vst [vmem:[%s1010 + $0x100] sm:$0xff] %v1067
              %v1069 = vld [vmem:[%s1009 + $0x108] sm:$0xff]
              %1070 = vst [vmem:[%s1010 + $0x108] sm:$0xff] %v1069
              %v1071 = vld [vmem:[%s1009 + $0x118] sm:$0xff]
              %1072 = vst [vmem:[%s1010 + $0x118] sm:$0xff] %v1071
              %v1073 = vld [vmem:[%s1009 + $0x120] sm:$0xff]
              %1074 = vst [vmem:[%s1010 + $0x120] sm:$0xff] %v1073
              %v1075 = vld [vmem:[%s1009 + $0x128] sm:$0xff]
              %1076 = vst [vmem:[%s1010 + $0x128] sm:$0xff] %v1075
              %v1077 = vld [vmem:[%s1009 + $0x130] sm:$0xff]
              %1078 = vst [vmem:[%s1010 + $0x130] sm:$0xff] %v1077
              %v1079 = vld [vmem:[%s1009 + $0x138] sm:$0xff]
              %1080 = vst [vmem:[%s1010 + $0x138] sm:$0xff] %v1079
              %v1081 = vld [vmem:[%s1009 + $0x140] sm:$0xff]
              %1082 = vst [vmem:[%s1010 + $0x140] sm:$0xff] %v1081
              %v1083 = vld [vmem:[%s1009 + $0x150] sm:$0xff]
              %1084 = vst [vmem:[%s1010 + $0x150] sm:$0xff] %v1083
              %v1085 = vld [vmem:[%s1009 + $0x158] sm:$0xff]
              %1086 = vst [vmem:[%s1010 + $0x158] sm:$0xff] %v1085
              %v1087 = vld [vmem:[%s1009 + $0x160] sm:$0xff]
              %1088 = vst [vmem:[%s1010 + $0x160] sm:$0xff] %v1087
              %v1089 = vld [vmem:[%s1009 + $0x168] sm:$0xff]
              %1090 = vst [vmem:[%s1010 + $0x168] sm:$0xff] %v1089
              %v1091 = vld [vmem:[%s1009 + $0x170] sm:$0xff]
              %1092 = vst [vmem:[%s1010 + $0x170] sm:$0xff] %v1091
              %v1093 = vld [vmem:[%s1009 + $0x178] sm:$0xff]
              %1094 = vst [vmem:[%s1010 + $0x178] sm:$0xff] %v1093
              %v1095 = vld [vmem:[%s1009 + $0x188] sm:$0xff]
              %1096 = vst [vmem:[%s1010 + $0x188] sm:$0xff] %v1095
              %v1097 = vld [vmem:[%s1009 + $0x190] sm:$0xff]
              %1098 = vst [vmem:[%s1010 + $0x190] sm:$0xff] %v1097
              %v1099 = vld [vmem:[%s1009 + $0x198] sm:$0xff]
              %1100 = vst [vmem:[%s1010 + $0x198] sm:$0xff] %v1099
              %v1101 = vld [vmem:[%s1009 + $0x1a0] sm:$0xff]
              %1102 = vst [vmem:[%s1010 + $0x1a0] sm:$0xff] %v1101
              %v1103 = vld [vmem:[%s1009 + $0x1a8] sm:$0xff]
              %1104 = vst [vmem:[%s1010 + $0x1a8] sm:$0xff] %v1103
              %v1105 = vld [vmem:[%s1009 + $0x1b0] sm:$0xff]
              %1106 = vst [vmem:[%s1010 + $0x1b0] sm:$0xff] %v1105
              %v1107 = vld [vmem:[%s1009 + $0x1c0] sm:$0xff]
              %1108 = vst [vmem:[%s1010 + $0x1c0] sm:$0xff] %v1107
              %v1109 = vld [vmem:[%s1009 + $0x1c8] sm:$0xff]
              %1110 = vst [vmem:[%s1010 + $0x1c8] sm:$0xff] %v1109
              %v1111 = vld [vmem:[%s1009 + $0x1d0] sm:$0xff]
              %1112 = vst [vmem:[%s1010 + $0x1d0] sm:$0xff] %v1111
              %v1113 = vld [vmem:[%s1009 + $0x1d8] sm:$0xff]
              %1114 = vst [vmem:[%s1010 + $0x1d8] sm:$0xff] %v1113
              %v1115 = vld [vmem:[%s1009 + $0x1e0] sm:$0xff]
              %1116 = vst [vmem:[%s1010 + $0x1e0] sm:$0xff] %v1115
              %v1117 = vld [vmem:[%s1009 + $0x1e8] sm:$0xff]
              %1118 = vst [vmem:[%s1010 + $0x1e8] sm:$0xff] %v1117
              %v1119 = vld [vmem:[%s1009 + $0x1f8] sm:$0xff]
              %1120 = vst [vmem:[%s1010 + $0x1f8] sm:$0xff] %v1119
              %v1121 = vld [vmem:[%s1009 + $0x200] sm:$0xff]
              %1122 = vst [vmem:[%s1010 + $0x200] sm:$0xff] %v1121
              %v1123 = vld [vmem:[%s1009 + $0x208] sm:$0xff]
              %1124 = vst [vmem:[%s1010 + $0x208] sm:$0xff] %v1123
              %v1125 = vld [vmem:[%s1009 + $0x210] sm:$0xff]
              %1126 = vst [vmem:[%s1010 + $0x210] sm:$0xff] %v1125
              %v1127 = vld [vmem:[%s1009 + $0x218] sm:$0xff]
              %1128 = vst [vmem:[%s1010 + $0x218] sm:$0xff] %v1127
              %v1129 = vld [vmem:[%s1009 + $0x220] sm:$0xff]
              %1130 = vst [vmem:[%s1010 + $0x220] sm:$0xff] %v1129
              %v1131 = vld [vmem:[%s1009 + $0x230] sm:$0xff]
              %1132 = vst [vmem:[%s1010 + $0x230] sm:$0xff] %v1131
              %v1133 = vld [vmem:[%s1009 + $0x238] sm:$0xff]
              %1134 = vst [vmem:[%s1010 + $0x238] sm:$0xff] %v1133
              %v1135 = vld [vmem:[%s1009 + $0x240] sm:$0xff]
              %1136 = vst [vmem:[%s1010 + $0x240] sm:$0xff] %v1135
              %v1137 = vld [vmem:[%s1009 + $0x248] sm:$0xff]
              %1138 = vst [vmem:[%s1010 + $0x248] sm:$0xff] %v1137
              %v1139 = vld [vmem:[%s1009 + $0x250] sm:$0xff]
              %1140 = vst [vmem:[%s1010 + $0x250] sm:$0xff] %v1139
              %v1141 = vld [vmem:[%s1009 + $0x258] sm:$0xff]
              %1142 = vst [vmem:[%s1010 + $0x258] sm:$0xff] %v1141
              %v1143 = vld [vmem:[%s1009 + $0x268] sm:$0xff]
              %1144 = vst [vmem:[%s1010 + $0x268] sm:$0xff] %v1143
              %v1145 = vld [vmem:[%s1009 + $0x270] sm:$0xff]
              %1146 = vst [vmem:[%s1010 + $0x270] sm:$0xff] %v1145
              %v1147 = vld [vmem:[%s1009 + $0x278] sm:$0xff]
              %1148 = vst [vmem:[%s1010 + $0x278] sm:$0xff] %v1147
              %v1149 = vld [vmem:[%s1009 + $0x280] sm:$0xff]
              %1150 = vst [vmem:[%s1010 + $0x280] sm:$0xff] %v1149
              %v1151 = vld [vmem:[%s1009 + $0x288] sm:$0xff]
              %1152 = vst [vmem:[%s1010 + $0x288] sm:$0xff] %v1151
              %v1153 = vld [vmem:[%s1009 + $0x290] sm:$0xff]
              %1154 = vst [vmem:[%s1010 + $0x290] sm:$0xff] %v1153
              %v1155 = vld [vmem:[%s1009 + $0x2a0] sm:$0xff]
              %1156 = vst [vmem:[%s1010 + $0x2a0] sm:$0xff] %v1155
              %v1157 = vld [vmem:[%s1009 + $0x2a8] sm:$0xff]
              %1158 = vst [vmem:[%s1010 + $0x2a8] sm:$0xff] %v1157
              %v1159 = vld [vmem:[%s1009 + $0x2b0] sm:$0xff]
              %1160 = vst [vmem:[%s1010 + $0x2b0] sm:$0xff] %v1159
              %v1161 = vld [vmem:[%s1009 + $0x2b8] sm:$0xff]
              %1162 = vst [vmem:[%s1010 + $0x2b8] sm:$0xff] %v1161
              %v1163 = vld [vmem:[%s1009 + $0x2c0] sm:$0xff]
              %1164 = vst [vmem:[%s1010 + $0x2c0] sm:$0xff] %v1163
              %v1165 = vld [vmem:[%s1009 + $0x2c8] sm:$0xff]
              %1166 = vst [vmem:[%s1010 + $0x2c8] sm:$0xff] %v1165
              %v1167 = vld [vmem:[%s1009 + $0x2d8] sm:$0xff]
              %1168 = vst [vmem:[%s1010 + $0x2d8] sm:$0xff] %v1167
              %v1169 = vld [vmem:[%s1009 + $0x2e0] sm:$0xff]
              %1170 = vst [vmem:[%s1010 + $0x2e0] sm:$0xff] %v1169
              %v1171 = vld [vmem:[%s1009 + $0x2e8] sm:$0xff]
              %1172 = vst [vmem:[%s1010 + $0x2e8] sm:$0xff] %v1171
              %v1173 = vld [vmem:[%s1009 + $0x2f0] sm:$0xff]
              %1174 = vst [vmem:[%s1010 + $0x2f0] sm:$0xff] %v1173
              %v1175 = vld [vmem:[%s1009 + $0x2f8] sm:$0xff]
              %1176 = vst [vmem:[%s1010 + $0x2f8] sm:$0xff] %v1175
              %v1177 = vld [vmem:[%s1009 + $0x300] sm:$0xff]
              %1178 = vst [vmem:[%s1010 + $0x300] sm:$0xff] %v1177
              %v1179 = vld [vmem:[%s1009 + $0x310] sm:$0xff]
              %1180 = vst [vmem:[%s1010 + $0x310] sm:$0xff] %v1179
              %v1181 = vld [vmem:[%s1009 + $0x318] sm:$0xff]
              %1182 = vst [vmem:[%s1010 + $0x318] sm:$0xff] %v1181
              %v1183 = vld [vmem:[%s1009 + $0x320] sm:$0xff]
              %1184 = vst [vmem:[%s1010 + $0x320] sm:$0xff] %v1183
              %v1185 = vld [vmem:[%s1009 + $0x328] sm:$0xff]
              %1186 = vst [vmem:[%s1010 + $0x328] sm:$0xff] %v1185
              %v1187 = vld [vmem:[%s1009 + $0x330] sm:$0xff]
              %1188 = vst [vmem:[%s1010 + $0x330] sm:$0xff] %v1187
              %v1189 = vld [vmem:[%s1009 + $0x338] sm:$0xff]
              %1190 = vst [vmem:[%s1010 + $0x338] sm:$0xff] %v1189
              %v1191 = vld [vmem:[%s1009 + $0x348] sm:$0xff]
              %1192 = vst [vmem:[%s1010 + $0x348] sm:$0xff] %v1191
              %v1193 = vld [vmem:[%s1009 + $0x350] sm:$0xff]
              %1194 = vst [vmem:[%s1010 + $0x350] sm:$0xff] %v1193
              %v1195 = vld [vmem:[%s1009 + $0x358] sm:$0xff]
              %1196 = vst [vmem:[%s1010 + $0x358] sm:$0xff] %v1195
              %v1197 = vld [vmem:[%s1009 + $0x360] sm:$0xff]
              %1198 = vst [vmem:[%s1010 + $0x360] sm:$0xff] %v1197
              %v1199 = vld [vmem:[%s1009 + $0x368] sm:$0xff]
              %1200 = vst [vmem:[%s1010 + $0x368] sm:$0xff] %v1199
              %v1201 = vld [vmem:[%s1009 + $0x370] sm:$0xff]
              %1202 = vst [vmem:[%s1010 + $0x370] sm:$0xff] %v1201
              %v1203 = vld [vmem:[%s1009 + $0x380] sm:$0xff]
              %1204 = vst [vmem:[%s1010 + $0x380] sm:$0xff] %v1203
              %v1205 = vld [vmem:[%s1009 + $0x388] sm:$0xff]
              %1206 = vst [vmem:[%s1010 + $0x388] sm:$0xff] %v1205
              %v1207 = vld [vmem:[%s1009 + $0x390] sm:$0xff]
              %1208 = vst [vmem:[%s1010 + $0x390] sm:$0xff] %v1207
              %v1209 = vld [vmem:[%s1009 + $0x398] sm:$0xff]
              %1210 = vst [vmem:[%s1010 + $0x398] sm:$0xff] %v1209
              %v1211 = vld [vmem:[%s1009 + $0x3a0] sm:$0xff]
              %1212 = vst [vmem:[%s1010 + $0x3a0] sm:$0xff] %v1211
              %v1213 = vld [vmem:[%s1009 + $0x3a8] sm:$0xff]
              %1214 = vst [vmem:[%s1010 + $0x3a8] sm:$0xff] %v1213
              %v1215 = vld [vmem:[%s1009 + $0x3b8] sm:$0xff]
              %1216 = vst [vmem:[%s1010 + $0x3b8] sm:$0xff] %v1215
              %v1217 = vld [vmem:[%s1009 + $0x3c0] sm:$0xff]
              %1218 = vst [vmem:[%s1010 + $0x3c0] sm:$0xff] %v1217
              %v1219 = vld [vmem:[%s1009 + $0x3c8] sm:$0xff]
              %1220 = vst [vmem:[%s1010 + $0x3c8] sm:$0xff] %v1219
              %v1221 = vld [vmem:[%s1009 + $0x3d0] sm:$0xff]
              %1222 = vst [vmem:[%s1010 + $0x3d0] sm:$0xff] %v1221
              %v1223 = vld [vmem:[%s1009 + $0x3d8] sm:$0xff]
              %1224 = vst [vmem:[%s1010 + $0x3d8] sm:$0xff] %v1223
              %v1225 = vld [vmem:[%s1009 + $0x3e0] sm:$0xff]
              %1226 = vst [vmem:[%s1010 + $0x3e0] sm:$0xff] %v1225
              %v1227 = vld [vmem:[%s1009 + $0x3f0] sm:$0xff]
              %1228 = vst [vmem:[%s1010 + $0x3f0] sm:$0xff] %v1227
              %v1229 = vld [vmem:[%s1009 + $0x3f8] sm:$0xff]
              %1230 = vst [vmem:[%s1010 + $0x3f8] sm:$0xff] %v1229
              %v1231 = vld [vmem:[%s1009 + $0x400] sm:$0xff]
              %1232 = vst [vmem:[%s1010 + $0x400] sm:$0xff] %v1231
              %v1233 = vld [vmem:[%s1009 + $0x408] sm:$0xff]
              %1234 = vst [vmem:[%s1010 + $0x408] sm:$0xff] %v1233
              %v1235 = vld [vmem:[%s1009 + $0x410] sm:$0xff]
              %1236 = vst [vmem:[%s1010 + $0x410] sm:$0xff] %v1235
              %v1237 = vld [vmem:[%s1009 + $0x418] sm:$0xff]
              %1238 = vst [vmem:[%s1010 + $0x418] sm:$0xff] %v1237
              %v1239 = vld [vmem:[%s1009 + $0x428] sm:$0xff]
              %1240 = vst [vmem:[%s1010 + $0x428] sm:$0xff] %v1239
              %v1241 = vld [vmem:[%s1009 + $0x430] sm:$0xff]
              %1242 = vst [vmem:[%s1010 + $0x430] sm:$0xff] %v1241
              %v1243 = vld [vmem:[%s1009 + $0x438] sm:$0xff]
              %1244 = vst [vmem:[%s1010 + $0x438] sm:$0xff] %v1243
              %v1245 = vld [vmem:[%s1009 + $0x440] sm:$0xff]
              %1246 = vst [vmem:[%s1010 + $0x440] sm:$0xff] %v1245
              %v1247 = vld [vmem:[%s1009 + $0x448] sm:$0xff]
              %1248 = vst [vmem:[%s1010 + $0x448] sm:$0xff] %v1247
              %v1249 = vld [vmem:[%s1009 + $0x450] sm:$0xff]
              %1250 = vst [vmem:[%s1010 + $0x450] sm:$0xff] %v1249
              %v1251 = vld [vmem:[%s1009 + $0x460] sm:$0xff]
              %1252 = vst [vmem:[%s1010 + $0x460] sm:$0xff] %v1251
              %v1253 = vld [vmem:[%s1009 + $0x468] sm:$0xff]
              %1254 = vst [vmem:[%s1010 + $0x468] sm:$0xff] %v1253
              %v1255 = vld [vmem:[%s1009 + $0x470] sm:$0xff]
              %1256 = vst [vmem:[%s1010 + $0x470] sm:$0xff] %v1255
              %v1257 = vld [vmem:[%s1009 + $0x478] sm:$0xff]
              %1258 = vst [vmem:[%s1010 + $0x478] sm:$0xff] %v1257
              %v1259 = vld [vmem:[%s1009 + $0x480] sm:$0xff]
              %1260 = vst [vmem:[%s1010 + $0x480] sm:$0xff] %v1259
              %v1261 = vld [vmem:[%s1009 + $0x488] sm:$0xff]
              %1262 = vst [vmem:[%s1010 + $0x488] sm:$0xff] %v1261
              %v1263 = vld [vmem:[%s1009 + $0x498] sm:$0xff]
              %1264 = vst [vmem:[%s1010 + $0x498] sm:$0xff] %v1263
              %v1265 = vld [vmem:[%s1009 + $0x4a0] sm:$0xff]
              %1266 = vst [vmem:[%s1010 + $0x4a0] sm:$0xff] %v1265
              %v1267 = vld [vmem:[%s1009 + $0x4a8] sm:$0xff]
              %1268 = vst [vmem:[%s1010 + $0x4a8] sm:$0xff] %v1267
              %v1269 = vld [vmem:[%s1009 + $0x4b0] sm:$0xff]
              %1270 = vst [vmem:[%s1010 + $0x4b0] sm:$0xff] %v1269
              %v1271 = vld [vmem:[%s1009 + $0x4b8] sm:$0xff]
              %1272 = vst [vmem:[%s1010 + $0x4b8] sm:$0xff] %v1271
              %v1273 = vld [vmem:[%s1009 + $0x4c0] sm:$0xff]
              %1274 = vst [vmem:[%s1010 + $0x4c0] sm:$0xff] %v1273
              %v1275 = vld [vmem:[%s1009 + $0x4d0] sm:$0xff]
              %1276 = vst [vmem:[%s1010 + $0x4d0] sm:$0xff] %v1275
              %v1277 = vld [vmem:[%s1009 + $0x4d8] sm:$0xff]
              %1278 = vst [vmem:[%s1010 + $0x4d8] sm:$0xff] %v1277
              %v1279 = vld [vmem:[%s1009 + $0x4e0] sm:$0xff]
              %1280 = vst [vmem:[%s1010 + $0x4e0] sm:$0xff] %v1279
              %v1281 = vld [vmem:[%s1009 + $0x4e8] sm:$0xff]
              %1282 = vst [vmem:[%s1010 + $0x4e8] sm:$0xff] %v1281
              %v1283 = vld [vmem:[%s1009 + $0x4f0] sm:$0xff]
              %1284 = vst [vmem:[%s1010 + $0x4f0] sm:$0xff] %v1283
              %v1285 = vld [vmem:[%s1009 + $0x4f8] sm:$0xff]
              %1286 = vst [vmem:[%s1010 + $0x4f8] sm:$0xff] %v1285
              %v1287 = vld [vmem:[%s1009 + $0x508] sm:$0xff]
              %1288 = vst [vmem:[%s1010 + $0x508] sm:$0xff] %v1287
              %v1289 = vld [vmem:[%s1009 + $0x510] sm:$0xff]
              %1290 = vst [vmem:[%s1010 + $0x510] sm:$0xff] %v1289
              %v1291 = vld [vmem:[%s1009 + $0x518] sm:$0xff]
              %1292 = vst [vmem:[%s1010 + $0x518] sm:$0xff] %v1291
              %v1293 = vld [vmem:[%s1009 + $0x520] sm:$0xff]
              %1294 = vst [vmem:[%s1010 + $0x520] sm:$0xff] %v1293
              %v1295 = vld [vmem:[%s1009 + $0x528] sm:$0xff]
              %1296 = vst [vmem:[%s1010 + $0x528] sm:$0xff] %v1295
              %v1297 = vld [vmem:[%s1009 + $0x530] sm:$0xff]
              %1298 = vst [vmem:[%s1010 + $0x530] sm:$0xff] %v1297
              %v1299 = vld [vmem:[%s1009 + $0x540] sm:$0xff]
              %1300 = vst [vmem:[%s1010 + $0x540] sm:$0xff] %v1299
              %v1301 = vld [vmem:[%s1009 + $0x548] sm:$0xff]
              %1302 = vst [vmem:[%s1010 + $0x548] sm:$0xff] %v1301
              %v1303 = vld [vmem:[%s1009 + $0x550] sm:$0xff]
              %1304 = vst [vmem:[%s1010 + $0x550] sm:$0xff] %v1303
              %v1305 = vld [vmem:[%s1009 + $0x558] sm:$0xff]
              %1306 = vst [vmem:[%s1010 + $0x558] sm:$0xff] %v1305
              %v1307 = vld [vmem:[%s1009 + $0x560] sm:$0xff]
              %1308 = vst [vmem:[%s1010 + $0x560] sm:$0xff] %v1307
              %v1309 = vld [vmem:[%s1009 + $0x568] sm:$0xff]
              %1310 = vst [vmem:[%s1010 + $0x568] sm:$0xff] %v1309
              %v1311 = vld [vmem:[%s1009 + $0x578] sm:$0xff]
              %1312 = vst [vmem:[%s1010 + $0x578] sm:$0xff] %v1311
              %v1313 = vld [vmem:[%s1009 + $0x580] sm:$0xff]
              %1314 = vst [vmem:[%s1010 + $0x580] sm:$0xff] %v1313
              %v1315 = vld [vmem:[%s1009 + $0x588] sm:$0xff]
              %1316 = vst [vmem:[%s1010 + $0x588] sm:$0xff] %v1315
              %v1317 = vld [vmem:[%s1009 + $0x590] sm:$0xff]
              %1318 = vst [vmem:[%s1010 + $0x590] sm:$0xff] %v1317
              %v1319 = vld [vmem:[%s1009 + $0x598] sm:$0xff]
              %1320 = vst [vmem:[%s1010 + $0x598] sm:$0xff] %v1319
              %v1321 = vld [vmem:[%s1009 + $0x5a0] sm:$0xff]
              %1322 = vst [vmem:[%s1010 + $0x5a0] sm:$0xff] %v1321
              %v1323 = vld [vmem:[%s1009 + $0x5b0] sm:$0xff]
              %1324 = vst [vmem:[%s1010 + $0x5b0] sm:$0xff] %v1323
              %v1325 = vld [vmem:[%s1009 + $0x5b8] sm:$0xff]
              %1326 = vst [vmem:[%s1010 + $0x5b8] sm:$0xff] %v1325
              %v1327 = vld [vmem:[%s1009 + $0x5c0] sm:$0xff]
              %1328 = vst [vmem:[%s1010 + $0x5c0] sm:$0xff] %v1327
              %v1329 = vld [vmem:[%s1009 + $0x5c8] sm:$0xff]
              %1330 = vst [vmem:[%s1010 + $0x5c8] sm:$0xff] %v1329
              %v1331 = vld [vmem:[%s1009 + $0x5d0] sm:$0xff]
              %1332 = vst [vmem:[%s1010 + $0x5d0] sm:$0xff] %v1331
              %v1333 = vld [vmem:[%s1009 + $0x5d8] sm:$0xff]
              %1334 = vst [vmem:[%s1010 + $0x5d8] sm:$0xff] %v1333
              %v1335 = vld [vmem:[%s1009 + $0x5e8] sm:$0xff]
              %1336 = vst [vmem:[%s1010 + $0x5e8] sm:$0xff] %v1335
              %v1337 = vld [vmem:[%s1009 + $0x5f0] sm:$0xff]
              %1338 = vst [vmem:[%s1010 + $0x5f0] sm:$0xff] %v1337
              %v1339 = vld [vmem:[%s1009 + $0x5f8] sm:$0xff]
              %1340 = vst [vmem:[%s1010 + $0x5f8] sm:$0xff] %v1339
              %v1341 = vld [vmem:[%s1009 + $0x600] sm:$0xff]
              %1342 = vst [vmem:[%s1010 + $0x600] sm:$0xff] %v1341
              %v1343 = vld [vmem:[%s1009 + $0x608] sm:$0xff]
              %1344 = vst [vmem:[%s1010 + $0x608] sm:$0xff] %v1343
              %v1345 = vld [vmem:[%s1009 + $0x610] sm:$0xff]
              %1346 = vst [vmem:[%s1010 + $0x610] sm:$0xff] %v1345
              %v1347 = vld [vmem:[%s1009 + $0x620] sm:$0xff]
              %1348 = vst [vmem:[%s1010 + $0x620] sm:$0xff] %v1347
              %v1349 = vld [vmem:[%s1009 + $0x628] sm:$0xff]
              %1350 = vst [vmem:[%s1010 + $0x628] sm:$0xff] %v1349
              %v1351 = vld [vmem:[%s1009 + $0x630] sm:$0xff]
              %1352 = vst [vmem:[%s1010 + $0x630] sm:$0xff] %v1351
              %v1353 = vld [vmem:[%s1009 + $0x638] sm:$0xff]
              %1354 = vst [vmem:[%s1010 + $0x638] sm:$0xff] %v1353
              %v1355 = vld [vmem:[%s1009 + $0x640] sm:$0xff]
              %1356 = vst [vmem:[%s1010 + $0x640] sm:$0xff] %v1355
              %v1357 = vld [vmem:[%s1009 + $0x648] sm:$0xff]
              %1358 = vst [vmem:[%s1010 + $0x648] sm:$0xff] %v1357
              %v1359 = vld [vmem:[%s1009 + $0x658] sm:$0xff]
              %1360 = vst [vmem:[%s1010 + $0x658] sm:$0xff] %v1359
              %v1361 = vld [vmem:[%s1009 + $0x660] sm:$0xff]
              %1362 = vst [vmem:[%s1010 + $0x660] sm:$0xff] %v1361
              %v1363 = vld [vmem:[%s1009 + $0x668] sm:$0xff]
              %1364 = vst [vmem:[%s1010 + $0x668] sm:$0xff] %v1363
              %v1365 = vld [vmem:[%s1009 + $0x670] sm:$0xff]
              %1366 = vst [vmem:[%s1010 + $0x670] sm:$0xff] %v1365
              %v1367 = vld [vmem:[%s1009 + $0x678] sm:$0xff]
              %1368 = vst [vmem:[%s1010 + $0x678] sm:$0xff] %v1367
              %v1369 = vld [vmem:[%s1009 + $0x680] sm:$0xff]
              %1370 = vst [vmem:[%s1010 + $0x680] sm:$0xff] %v1369
              %v1371 = vld [vmem:[%s1009 + $0x690] sm:$0xff]
              %1372 = vst [vmem:[%s1010 + $0x690] sm:$0xff] %v1371
              %v1373 = vld [vmem:[%s1009 + $0x698] sm:$0xff]
              %1374 = vst [vmem:[%s1010 + $0x698] sm:$0xff] %v1373
              %v1375 = vld [vmem:[%s1009 + $0x6a0] sm:$0xff]
              %1376 = vst [vmem:[%s1010 + $0x6a0] sm:$0xff] %v1375
              %v1377 = vld [vmem:[%s1009 + $0x6a8] sm:$0xff]
              %1378 = vst [vmem:[%s1010 + $0x6a8] sm:$0xff] %v1377
              %v1379 = vld [vmem:[%s1009 + $0x6b0] sm:$0xff]
              %1380 = vst [vmem:[%s1010 + $0x6b0] sm:$0xff] %v1379
              %v1381 = vld [vmem:[%s1009 + $0x6b8] sm:$0xff]
              %1382 = vst [vmem:[%s1010 + $0x6b8] sm:$0xff] %v1381
              %v1383 = vld [vmem:[%s1009 + $0x6c8] sm:$0xff]
              %1384 = vst [vmem:[%s1010 + $0x6c8] sm:$0xff] %v1383
              %v1385 = vld [vmem:[%s1009 + $0x6d0] sm:$0xff]
              %1386 = vst [vmem:[%s1010 + $0x6d0] sm:$0xff] %v1385
              %v1387 = vld [vmem:[%s1009 + $0x6d8] sm:$0xff]
              %1388 = vst [vmem:[%s1010 + $0x6d8] sm:$0xff] %v1387
              %v1389 = vld [vmem:[%s1009 + $0x6e0] sm:$0xff]
              %1390 = vst [vmem:[%s1010 + $0x6e0] sm:$0xff] %v1389
              %v1391 = vld [vmem:[%s1009 + $0x6e8] sm:$0xff]
              %1392 = vst [vmem:[%s1010 + $0x6e8] sm:$0xff] %v1391
              %v1393 = vld [vmem:[%s1009 + $0x6f0] sm:$0xff]
              %1394 = vst [vmem:[%s1010 + $0x6f0] sm:$0xff] %v1393
              %v1395 = vld [vmem:[%s1009 + $0x700] sm:$0xff]
              %1396 = vst [vmem:[%s1010 + $0x700] sm:$0xff] %v1395
              %v1397 = vld [vmem:[%s1009 + $0x708] sm:$0xff]
              %1398 = vst [vmem:[%s1010 + $0x708] sm:$0xff] %v1397
              %v1399 = vld [vmem:[%s1009 + $0x710] sm:$0xff]
              %1400 = vst [vmem:[%s1010 + $0x710] sm:$0xff] %v1399
              %v1401 = vld [vmem:[%s1009 + $0x718] sm:$0xff]
              %1402 = vst [vmem:[%s1010 + $0x718] sm:$0xff] %v1401
              %v1403 = vld [vmem:[%s1009 + $0x720] sm:$0xff]
              %1404 = vst [vmem:[%s1010 + $0x720] sm:$0xff] %v1403
              %v1405 = vld [vmem:[%s1009 + $0x728] sm:$0xff]
              %1406 = vst [vmem:[%s1010 + $0x728] sm:$0xff] %v1405
              %v1407 = vld [vmem:[%s1009 + $0x738] sm:$0xff]
              %1408 = vst [vmem:[%s1010 + $0x738] sm:$0xff] %v1407
              %v1409 = vld [vmem:[%s1009 + $0x740] sm:$0xff]
              %1410 = vst [vmem:[%s1010 + $0x740] sm:$0xff] %v1409
              %v1411 = vld [vmem:[%s1009 + $0x748] sm:$0xff]
              %1412 = vst [vmem:[%s1010 + $0x748] sm:$0xff] %v1411
              %v1413 = vld [vmem:[%s1009 + $0x750] sm:$0xff]
              %1414 = vst [vmem:[%s1010 + $0x750] sm:$0xff] %v1413
              %v1415 = vld [vmem:[%s1009 + $0x758] sm:$0xff]
              %1416 = vst [vmem:[%s1010 + $0x758] sm:$0xff] %v1415
              %v1417 = vld [vmem:[%s1009 + $0x760] sm:$0xff]
              %1418 = vst [vmem:[%s1010 + $0x760] sm:$0xff] %v1417
              %v1419 = vld [vmem:[%s1009 + $0x770] sm:$0xff]
              %1420 = vst [vmem:[%s1010 + $0x770] sm:$0xff] %v1419
              %v1421 = vld [vmem:[%s1009 + $0x778] sm:$0xff]
              %1422 = vst [vmem:[%s1010 + $0x778] sm:$0xff] %v1421
              %v1423 = vld [vmem:[%s1009 + $0x780] sm:$0xff]
              %1424 = vst [vmem:[%s1010 + $0x780] sm:$0xff] %v1423
              %v1425 = vld [vmem:[%s1009 + $0x788] sm:$0xff]
              %1426 = vst [vmem:[%s1010 + $0x788] sm:$0xff] %v1425
              %v1427 = vld [vmem:[%s1009 + $0x790] sm:$0xff]
              %1428 = vst [vmem:[%s1010 + $0x790] sm:$0xff] %v1427
              %v1429 = vld [vmem:[%s1009 + $0x798] sm:$0xff]
              %1430 = vst [vmem:[%s1010 + $0x798] sm:$0xff] %v1429
              %v1431 = vld [vmem:[%s1009 + $0x7a8] sm:$0xff]
              %1432 = vst [vmem:[%s1010 + $0x7a8] sm:$0xff] %v1431
              %v1433 = vld [vmem:[%s1009 + $0x7b0] sm:$0xff]
              %1434 = vst [vmem:[%s1010 + $0x7b0] sm:$0xff] %v1433
              %v1435 = vld [vmem:[%s1009 + $0x7b8] sm:$0xff]
              %1436 = vst [vmem:[%s1010 + $0x7b8] sm:$0xff] %v1435
              %v1437 = vld [vmem:[%s1009 + $0x7c0] sm:$0xff]
              %1438 = vst [vmem:[%s1010 + $0x7c0] sm:$0xff] %v1437
              %v1439 = vld [vmem:[%s1009 + $0x7c8] sm:$0xff]
              %1440 = vst [vmem:[%s1010 + $0x7c8] sm:$0xff] %v1439
              %v1441 = vld [vmem:[%s1009 + $0x7d0] sm:$0xff]
              %1442 = vst [vmem:[%s1010 + $0x7d0] sm:$0xff] %v1441
              %v1443 = vld [vmem:[%s1009 + $0x7e0] sm:$0xff]
              %1444 = vst [vmem:[%s1010 + $0x7e0] sm:$0xff] %v1443
              %v1445 = vld [vmem:[%s1009 + $0x7e8] sm:$0xff]
              %1446 = vst [vmem:[%s1010 + $0x7e8] sm:$0xff] %v1445
              %v1447 = vld [vmem:[%s1009 + $0x7f0] sm:$0xff]
              %1448 = vst [vmem:[%s1010 + $0x7f0] sm:$0xff] %v1447
              %v1449 = vld [vmem:[%s1009 + $0x7f8] sm:$0xff]
              %1450 = vst [vmem:[%s1010 + $0x7f8] sm:$0xff] %v1449
              %v1451 = vld [vmem:[%s1009 + $0x800] sm:$0xff]
              %1452 = vst [vmem:[%s1010 + $0x800] sm:$0xff] %v1451
              %v1453 = vld [vmem:[%s1009 + $0x808] sm:$0xff]
              %1454 = vst [vmem:[%s1010 + $0x808] sm:$0xff] %v1453
              %v1455 = vld [vmem:[%s1009 + $0x818] sm:$0xff]
              %1456 = vst [vmem:[%s1010 + $0x818] sm:$0xff] %v1455
              %v1457 = vld [vmem:[%s1009 + $0x820] sm:$0xff]
              %1458 = vst [vmem:[%s1010 + $0x820] sm:$0xff] %v1457
              %v1459 = vld [vmem:[%s1009 + $0x828] sm:$0xff]
              %1460 = vst [vmem:[%s1010 + $0x828] sm:$0xff] %v1459
              %v1461 = vld [vmem:[%s1009 + $0x830] sm:$0xff]
              %1462 = vst [vmem:[%s1010 + $0x830] sm:$0xff] %v1461
              %v1463 = vld [vmem:[%s1009 + $0x838] sm:$0xff]
              %1464 = vst [vmem:[%s1010 + $0x838] sm:$0xff] %v1463
              %v1465 = vld [vmem:[%s1009 + $0x840] sm:$0xff]
              %1466 = vst [vmem:[%s1010 + $0x840] sm:$0xff] %v1465
              %v1467 = vld [vmem:[%s1009 + $0x850] sm:$0xff]
              %1468 = vst [vmem:[%s1010 + $0x850] sm:$0xff] %v1467
              %v1469 = vld [vmem:[%s1009 + $0x858] sm:$0xff]
              %1470 = vst [vmem:[%s1010 + $0x858] sm:$0xff] %v1469
              %v1471 = vld [vmem:[%s1009 + $0x860] sm:$0xff]
              %1472 = vst [vmem:[%s1010 + $0x860] sm:$0xff] %v1471
              %v1473 = vld [vmem:[%s1009 + $0x868] sm:$0xff]
              %1474 = vst [vmem:[%s1010 + $0x868] sm:$0xff] %v1473
              %v1475 = vld [vmem:[%s1009 + $0x870] sm:$0xff]
              %1476 = vst [vmem:[%s1010 + $0x870] sm:$0xff] %v1475
              %v1477 = vld [vmem:[%s1009 + $0x878] sm:$0xff]
              %1478 = vst [vmem:[%s1010 + $0x878] sm:$0xff] %v1477
              %v1479 = vld [vmem:[%s1009 + $0x888] sm:$0xff]
              %1480 = vst [vmem:[%s1010 + $0x888] sm:$0xff] %v1479
              %v1481 = vld [vmem:[%s1009 + $0x890] sm:$0xff]
              %1482 = vst [vmem:[%s1010 + $0x890] sm:$0xff] %v1481
              %v1483 = vld [vmem:[%s1009 + $0x898] sm:$0xff]
              %1484 = vst [vmem:[%s1010 + $0x898] sm:$0xff] %v1483
              %v1485 = vld [vmem:[%s1009 + $0x8a0] sm:$0xff]
              %1486 = vst [vmem:[%s1010 + $0x8a0] sm:$0xff] %v1485
              %v1487 = vld [vmem:[%s1009 + $0x8a8] sm:$0xff]
              %1488 = vst [vmem:[%s1010 + $0x8a8] sm:$0xff] %v1487
              %v1489 = vld [vmem:[%s1009 + $0x8b0] sm:$0xff]
              %1490 = vst [vmem:[%s1010 + $0x8b0] sm:$0xff] %v1489
              %v1491 = vld [vmem:[%s1009 + $0x8c0] sm:$0xff]
              %1492 = vst [vmem:[%s1010 + $0x8c0] sm:$0xff] %v1491
              %v1493 = vld [vmem:[%s1009 + $0x8c8] sm:$0xff]
              %1494 = vst [vmem:[%s1010 + $0x8c8] sm:$0xff] %v1493
              %v1495 = vld [vmem:[%s1009 + $0x8d0] sm:$0xff]
              %1496 = vst [vmem:[%s1010 + $0x8d0] sm:$0xff] %v1495
              %v1497 = vld [vmem:[%s1009 + $0x8d8] sm:$0xff]
              %1498 = vst [vmem:[%s1010 + $0x8d8] sm:$0xff] %v1497
              %v1499 = vld [vmem:[%s1009 + $0x8e0] sm:$0xff]
              %1500 = vst [vmem:[%s1010 + $0x8e0] sm:$0xff] %v1499
              %v1501 = vld [vmem:[%s1009 + $0x8e8] sm:$0xff]
              %1502 = vst [vmem:[%s1010 + $0x8e8] sm:$0xff] %v1501
              %v1503 = vld [vmem:[%s1009 + $0x8f8] sm:$0xff]
              %1504 = vst [vmem:[%s1010 + $0x8f8] sm:$0xff] %v1503
              %v1505 = vld [vmem:[%s1009 + $0x900] sm:$0xff]
              %1506 = vst [vmem:[%s1010 + $0x900] sm:$0xff] %v1505
              %v1507 = vld [vmem:[%s1009 + $0x908] sm:$0xff]
              %1508 = vst [vmem:[%s1010 + $0x908] sm:$0xff] %v1507
              %v1509 = vld [vmem:[%s1009 + $0x910] sm:$0xff]
              %1510 = vst [vmem:[%s1010 + $0x910] sm:$0xff] %v1509
              %v1511 = vld [vmem:[%s1009 + $0x918] sm:$0xff]
              %1512 = vst [vmem:[%s1010 + $0x918] sm:$0xff] %v1511
              %v1513 = vld [vmem:[%s1009 + $0x920] sm:$0xff]
              %1514 = vst [vmem:[%s1010 + $0x920] sm:$0xff] %v1513
              %v1515 = vld [vmem:[%s1009 + $0x930] sm:$0xff]
              %1516 = vst [vmem:[%s1010 + $0x930] sm:$0xff] %v1515
              %v1517 = vld [vmem:[%s1009 + $0x938] sm:$0xff]
              %1518 = vst [vmem:[%s1010 + $0x938] sm:$0xff] %v1517
              %v1519 = vld [vmem:[%s1009 + $0x940] sm:$0xff]
              %1520 = vst [vmem:[%s1010 + $0x940] sm:$0xff] %v1519
              %v1521 = vld [vmem:[%s1009 + $0x948] sm:$0xff]
              %1522 = vst [vmem:[%s1010 + $0x948] sm:$0xff] %v1521
              %v1523 = vld [vmem:[%s1009 + $0x950] sm:$0xff]
              %1524 = vst [vmem:[%s1010 + $0x950] sm:$0xff] %v1523
              %v1525 = vld [vmem:[%s1009 + $0x958] sm:$0xff]
              %1526 = vst [vmem:[%s1010 + $0x958] sm:$0xff] %v1525
              %v1527 = vld [vmem:[%s1009 + $0x968] sm:$0xff]
              %1528 = vst [vmem:[%s1010 + $0x968] sm:$0xff] %v1527
              %v1529 = vld [vmem:[%s1009 + $0x970] sm:$0xff]
              %1530 = vst [vmem:[%s1010 + $0x970] sm:$0xff] %v1529
              %v1531 = vld [vmem:[%s1009 + $0x978] sm:$0xff]
              %1532 = vst [vmem:[%s1010 + $0x978] sm:$0xff] %v1531
              %v1533 = vld [vmem:[%s1009 + $0x980] sm:$0xff]
              %1534 = vst [vmem:[%s1010 + $0x980] sm:$0xff] %v1533
              %v1535 = vld [vmem:[%s1009 + $0x988] sm:$0xff]
              %1536 = vst [vmem:[%s1010 + $0x988] sm:$0xff] %v1535
              %v1537 = vld [vmem:[%s1009 + $0x990] sm:$0xff]
              %1538 = vst [vmem:[%s1010 + $0x990] sm:$0xff] %v1537
              %v1539 = vld [vmem:[%s1009 + $0x9a0] sm:$0xff]
              %1540 = vst [vmem:[%s1010 + $0x9a0] sm:$0xff] %v1539
              %v1541 = vld [vmem:[%s1009 + $0x9a8] sm:$0xff]
              %1542 = vst [vmem:[%s1010 + $0x9a8] sm:$0xff] %v1541
              %v1543 = vld [vmem:[%s1009 + $0x9b0] sm:$0xff]
              %1544 = vst [vmem:[%s1010 + $0x9b0] sm:$0xff] %v1543
              %v1545 = vld [vmem:[%s1009 + $0x9b8] sm:$0xff]
              %1546 = vst [vmem:[%s1010 + $0x9b8] sm:$0xff] %v1545
              %v1547 = vld [vmem:[%s1009 + $0x9c0] sm:$0xff]
              %1548 = vst [vmem:[%s1010 + $0x9c0] sm:$0xff] %v1547
              %v1549 = vld [vmem:[%s1009 + $0x9c8] sm:$0xff]
              %1550 = vst [vmem:[%s1010 + $0x9c8] sm:$0xff] %v1549
              %v1551 = vld [vmem:[%s1009 + $0x9d8] sm:$0xff]
              %1552 = vst [vmem:[%s1010 + $0x9d8] sm:$0xff] %v1551
              %v1553 = vld [vmem:[%s1009 + $0x9e0] sm:$0xff]
              %1554 = vst [vmem:[%s1010 + $0x9e0] sm:$0xff] %v1553
              %v1555 = vld [vmem:[%s1009 + $0x9e8] sm:$0xff]
              %1556 = vst [vmem:[%s1010 + $0x9e8] sm:$0xff] %v1555
              %v1557 = vld [vmem:[%s1009 + $0x9f0] sm:$0xff]
              %1558 = vst [vmem:[%s1010 + $0x9f0] sm:$0xff] %v1557
              %v1559 = vld [vmem:[%s1009 + $0x9f8] sm:$0xff]
              %1560 = vst [vmem:[%s1010 + $0x9f8] sm:$0xff] %v1559
              %v1561 = vld [vmem:[%s1009 + $0xa00] sm:$0xff]
              %1562 = vst [vmem:[%s1010 + $0xa00] sm:$0xff] %v1561
              %v1563 = vld [vmem:[%s1009 + $0xa10] sm:$0xff]
              %1564 = vst [vmem:[%s1010 + $0xa10] sm:$0xff] %v1563
              %v1565 = vld [vmem:[%s1009 + $0xa18] sm:$0xff]
              %1566 = vst [vmem:[%s1010 + $0xa18] sm:$0xff] %v1565
              %v1567 = vld [vmem:[%s1009 + $0xa20] sm:$0xff]
              %1568 = vst [vmem:[%s1010 + $0xa20] sm:$0xff] %v1567
              %v1569 = vld [vmem:[%s1009 + $0xa28] sm:$0xff]
              %1570 = vst [vmem:[%s1010 + $0xa28] sm:$0xff] %v1569
              %v1571 = vld [vmem:[%s1009 + $0xa30] sm:$0xff]
              %1572 = vst [vmem:[%s1010 + $0xa30] sm:$0xff] %v1571
              %v1573 = vld [vmem:[%s1009 + $0xa38] sm:$0xff]
              %1574 = vst [vmem:[%s1010 + $0xa38] sm:$0xff] %v1573
              %v1575 = vld [vmem:[%s1009 + $0xa48] sm:$0xff]
              %1576 = vst [vmem:[%s1010 + $0xa48] sm:$0xff] %v1575
              %v1577 = vld [vmem:[%s1009 + $0xa50] sm:$0xff]
              %1578 = vst [vmem:[%s1010 + $0xa50] sm:$0xff] %v1577
              %v1579 = vld [vmem:[%s1009 + $0xa58] sm:$0xff]
              %1580 = vst [vmem:[%s1010 + $0xa58] sm:$0xff] %v1579
              %v1581 = vld [vmem:[%s1009 + $0xa60] sm:$0xff]
              %1582 = vst [vmem:[%s1010 + $0xa60] sm:$0xff] %v1581
              %v1583 = vld [vmem:[%s1009 + $0xa68] sm:$0xff]
              %1584 = vst [vmem:[%s1010 + $0xa68] sm:$0xff] %v1583
              %v1585 = vld [vmem:[%s1009 + $0xa70] sm:$0xff]
              %1586 = vst [vmem:[%s1010 + $0xa70] sm:$0xff] %v1585
              %v1587 = vld [vmem:[%s1009 + $0xa80] sm:$0xff]
              %1588 = vst [vmem:[%s1010 + $0xa80] sm:$0xff] %v1587
              %v1589 = vld [vmem:[%s1009 + $0xa88] sm:$0xff]
              %1590 = vst [vmem:[%s1010 + $0xa88] sm:$0xff] %v1589
              %v1591 = vld [vmem:[%s1009 + $0xa90] sm:$0xff]
              %1592 = vst [vmem:[%s1010 + $0xa90] sm:$0xff] %v1591
              %v1593 = vld [vmem:[%s1009 + $0xa98] sm:$0xff]
              %1594 = vst [vmem:[%s1010 + $0xa98] sm:$0xff] %v1593
              %v1595 = vld [vmem:[%s1009 + $0xaa0] sm:$0xff]
              %1596 = vst [vmem:[%s1010 + $0xaa0] sm:$0xff] %v1595
              %v1597 = vld [vmem:[%s1009 + $0xaa8] sm:$0xff]
              %1598 = vst [vmem:[%s1010 + $0xaa8] sm:$0xff] %v1597
              %v1599 = vld [vmem:[%s1009 + $0xab8] sm:$0xff]
              %1600 = vst [vmem:[%s1010 + $0xab8] sm:$0xff] %v1599
              %v1601 = vld [vmem:[%s1009 + $0xac0] sm:$0xff]
              %1602 = vst [vmem:[%s1010 + $0xac0] sm:$0xff] %v1601
              %v1603 = vld [vmem:[%s1009 + $0xac8] sm:$0xff]
              %1604 = vst [vmem:[%s1010 + $0xac8] sm:$0xff] %v1603
              %v1605 = vld [vmem:[%s1009 + $0xad0] sm:$0xff]
              %1606 = vst [vmem:[%s1010 + $0xad0] sm:$0xff] %v1605
              %v1607 = vld [vmem:[%s1009 + $0xad8] sm:$0xff]
              %1608 = vst [vmem:[%s1010 + $0xad8] sm:$0xff] %v1607
              %v1609 = vld [vmem:[%s1009 + $0xae0] sm:$0xff]
              %1610 = vst [vmem:[%s1010 + $0xae0] sm:$0xff] %v1609
              %v1611 = vld [vmem:[%s1009 + $0xaf0] sm:$0xff]
              %1612 = vst [vmem:[%s1010 + $0xaf0] sm:$0xff] %v1611
              %v1613 = vld [vmem:[%s1009 + $0xaf8] sm:$0xff]
              %1614 = vst [vmem:[%s1010 + $0xaf8] sm:$0xff] %v1613
              %v1615 = vld [vmem:[%s1009 + $0xb00] sm:$0xff]
              %1616 = vst [vmem:[%s1010 + $0xb00] sm:$0xff] %v1615
              %v1617 = vld [vmem:[%s1009 + $0xb08] sm:$0xff]
              %1618 = vst [vmem:[%s1010 + $0xb08] sm:$0xff] %v1617
              %v1619 = vld [vmem:[%s1009 + $0xb10] sm:$0xff]
              %1620 = vst [vmem:[%s1010 + $0xb10] sm:$0xff] %v1619
              %v1621 = vld [vmem:[%s1009 + $0xb18] sm:$0xff]
              %1622 = vst [vmem:[%s1010 + $0xb18] sm:$0xff] %v1621
              %v1623 = vld [vmem:[%s1009 + $0xb28] sm:$0xff]
              %1624 = vst [vmem:[%s1010 + $0xb28] sm:$0xff] %v1623
              %v1625 = vld [vmem:[%s1009 + $0xb30] sm:$0xff]
              %1626 = vst [vmem:[%s1010 + $0xb30] sm:$0xff] %v1625
              %v1627 = vld [vmem:[%s1009 + $0xb38] sm:$0xff]
              %1628 = vst [vmem:[%s1010 + $0xb38] sm:$0xff] %v1627
              %v1629 = vld [vmem:[%s1009 + $0xb40] sm:$0xff]
              %1630 = vst [vmem:[%s1010 + $0xb40] sm:$0xff] %v1629
              %v1631 = vld [vmem:[%s1009 + $0xb48] sm:$0xff]
              %1632 = vst [vmem:[%s1010 + $0xb48] sm:$0xff] %v1631
              %v1633 = vld [vmem:[%s1009 + $0xb50] sm:$0xff]
              %1634 = vst [vmem:[%s1010 + $0xb50] sm:$0xff] %v1633
            $region75: #{tpu_custom_call.1} parent=69 // loop_footer
              %s1008 = sadd.s32 1, %s1004
            $region76: #{tpu_custom_call.1} parent=69 // loop_footer_branch
              %1003 = sbr.rel target = $region72
            $region77: #{tpu_custom_call.1} parent=69 // loop_exit
              _
            %s1636 = ssub.s32 16, 1
            loop: start=0, step=1, limit=1
            $region78: #{tpu_custom_call.1} parent=69 // loop_pre_header
              _
            $region79: #{tpu_custom_call.1} parent=69 // loop_header
              %s1638 = sphi 0, %s1642
              %p1639 = scmp.ge.s32.totalorder %s1638, 1
              %s1643 = sphi %s1001, %s1001
              %s1644 = sphi %s1002, %s1002
            $region80: #{tpu_custom_call.1} parent=69 // loop_header_branch
              %1641 = sbr.rel (%p1639) target = $region84
            $region81: #{tpu_custom_call.1} parent=69 // loop_body
              %v1645 = vld [vmem:[%s1643] sm:%s1636]
              %1646 = vst [vmem:[%s1644] sm:%s1636] %v1645
              %v1647 = vld [vmem:[%s1643 + $0x38] sm:%s1636]
              %1648 = vst [vmem:[%s1644 + $0x38] sm:%s1636] %v1647
              %v1649 = vld [vmem:[%s1643 + $0x70] sm:%s1636]
              %1650 = vst [vmem:[%s1644 + $0x70] sm:%s1636] %v1649
              %v1651 = vld [vmem:[%s1643 + $0xa8] sm:%s1636]
              %1652 = vst [vmem:[%s1644 + $0xa8] sm:%s1636] %v1651
              %v1653 = vld [vmem:[%s1643 + $0xe0] sm:%s1636]
              %1654 = vst [vmem:[%s1644 + $0xe0] sm:%s1636] %v1653
              %v1655 = vld [vmem:[%s1643 + $0x118] sm:%s1636]
              %1656 = vst [vmem:[%s1644 + $0x118] sm:%s1636] %v1655
              %v1657 = vld [vmem:[%s1643 + $0x150] sm:%s1636]
              %1658 = vst [vmem:[%s1644 + $0x150] sm:%s1636] %v1657
              %v1659 = vld [vmem:[%s1643 + $0x188] sm:%s1636]
              %1660 = vst [vmem:[%s1644 + $0x188] sm:%s1636] %v1659
              %v1661 = vld [vmem:[%s1643 + $0x1c0] sm:%s1636]
              %1662 = vst [vmem:[%s1644 + $0x1c0] sm:%s1636] %v1661
              %v1663 = vld [vmem:[%s1643 + $0x1f8] sm:%s1636]
              %1664 = vst [vmem:[%s1644 + $0x1f8] sm:%s1636] %v1663
              %v1665 = vld [vmem:[%s1643 + $0x230] sm:%s1636]
              %1666 = vst [vmem:[%s1644 + $0x230] sm:%s1636] %v1665
              %v1667 = vld [vmem:[%s1643 + $0x268] sm:%s1636]
              %1668 = vst [vmem:[%s1644 + $0x268] sm:%s1636] %v1667
              %v1669 = vld [vmem:[%s1643 + $0x2a0] sm:%s1636]
              %1670 = vst [vmem:[%s1644 + $0x2a0] sm:%s1636] %v1669
              %v1671 = vld [vmem:[%s1643 + $0x2d8] sm:%s1636]
              %1672 = vst [vmem:[%s1644 + $0x2d8] sm:%s1636] %v1671
              %v1673 = vld [vmem:[%s1643 + $0x310] sm:%s1636]
              %1674 = vst [vmem:[%s1644 + $0x310] sm:%s1636] %v1673
              %v1675 = vld [vmem:[%s1643 + $0x348] sm:%s1636]
              %1676 = vst [vmem:[%s1644 + $0x348] sm:%s1636] %v1675
              %v1677 = vld [vmem:[%s1643 + $0x380] sm:%s1636]
              %1678 = vst [vmem:[%s1644 + $0x380] sm:%s1636] %v1677
              %v1679 = vld [vmem:[%s1643 + $0x3b8] sm:%s1636]
              %1680 = vst [vmem:[%s1644 + $0x3b8] sm:%s1636] %v1679
              %v1681 = vld [vmem:[%s1643 + $0x3f0] sm:%s1636]
              %1682 = vst [vmem:[%s1644 + $0x3f0] sm:%s1636] %v1681
              %v1683 = vld [vmem:[%s1643 + $0x428] sm:%s1636]
              %1684 = vst [vmem:[%s1644 + $0x428] sm:%s1636] %v1683
              %v1685 = vld [vmem:[%s1643 + $0x460] sm:%s1636]
              %1686 = vst [vmem:[%s1644 + $0x460] sm:%s1636] %v1685
              %v1687 = vld [vmem:[%s1643 + $0x498] sm:%s1636]
              %1688 = vst [vmem:[%s1644 + $0x498] sm:%s1636] %v1687
              %v1689 = vld [vmem:[%s1643 + $0x4d0] sm:%s1636]
              %1690 = vst [vmem:[%s1644 + $0x4d0] sm:%s1636] %v1689
              %v1691 = vld [vmem:[%s1643 + $0x508] sm:%s1636]
              %1692 = vst [vmem:[%s1644 + $0x508] sm:%s1636] %v1691
              %v1693 = vld [vmem:[%s1643 + $0x540] sm:%s1636]
              %1694 = vst [vmem:[%s1644 + $0x540] sm:%s1636] %v1693
              %v1695 = vld [vmem:[%s1643 + $0x578] sm:%s1636]
              %1696 = vst [vmem:[%s1644 + $0x578] sm:%s1636] %v1695
              %v1697 = vld [vmem:[%s1643 + $0x5b0] sm:%s1636]
              %1698 = vst [vmem:[%s1644 + $0x5b0] sm:%s1636] %v1697
              %v1699 = vld [vmem:[%s1643 + $0x5e8] sm:%s1636]
              %1700 = vst [vmem:[%s1644 + $0x5e8] sm:%s1636] %v1699
              %v1701 = vld [vmem:[%s1643 + $0x620] sm:%s1636]
              %1702 = vst [vmem:[%s1644 + $0x620] sm:%s1636] %v1701
              %v1703 = vld [vmem:[%s1643 + $0x658] sm:%s1636]
              %1704 = vst [vmem:[%s1644 + $0x658] sm:%s1636] %v1703
              %v1705 = vld [vmem:[%s1643 + $0x690] sm:%s1636]
              %1706 = vst [vmem:[%s1644 + $0x690] sm:%s1636] %v1705
              %v1707 = vld [vmem:[%s1643 + $0x6c8] sm:%s1636]
              %1708 = vst [vmem:[%s1644 + $0x6c8] sm:%s1636] %v1707
              %v1709 = vld [vmem:[%s1643 + $0x700] sm:%s1636]
              %1710 = vst [vmem:[%s1644 + $0x700] sm:%s1636] %v1709
              %v1711 = vld [vmem:[%s1643 + $0x738] sm:%s1636]
              %1712 = vst [vmem:[%s1644 + $0x738] sm:%s1636] %v1711
              %v1713 = vld [vmem:[%s1643 + $0x770] sm:%s1636]
              %1714 = vst [vmem:[%s1644 + $0x770] sm:%s1636] %v1713
              %v1715 = vld [vmem:[%s1643 + $0x7a8] sm:%s1636]
              %1716 = vst [vmem:[%s1644 + $0x7a8] sm:%s1636] %v1715
              %v1717 = vld [vmem:[%s1643 + $0x7e0] sm:%s1636]
              %1718 = vst [vmem:[%s1644 + $0x7e0] sm:%s1636] %v1717
              %v1719 = vld [vmem:[%s1643 + $0x818] sm:%s1636]
              %1720 = vst [vmem:[%s1644 + $0x818] sm:%s1636] %v1719
              %v1721 = vld [vmem:[%s1643 + $0x850] sm:%s1636]
              %1722 = vst [vmem:[%s1644 + $0x850] sm:%s1636] %v1721
              %v1723 = vld [vmem:[%s1643 + $0x888] sm:%s1636]
              %1724 = vst [vmem:[%s1644 + $0x888] sm:%s1636] %v1723
              %v1725 = vld [vmem:[%s1643 + $0x8c0] sm:%s1636]
              %1726 = vst [vmem:[%s1644 + $0x8c0] sm:%s1636] %v1725
              %v1727 = vld [vmem:[%s1643 + $0x8f8] sm:%s1636]
              %1728 = vst [vmem:[%s1644 + $0x8f8] sm:%s1636] %v1727
              %v1729 = vld [vmem:[%s1643 + $0x930] sm:%s1636]
              %1730 = vst [vmem:[%s1644 + $0x930] sm:%s1636] %v1729
              %v1731 = vld [vmem:[%s1643 + $0x968] sm:%s1636]
              %1732 = vst [vmem:[%s1644 + $0x968] sm:%s1636] %v1731
              %v1733 = vld [vmem:[%s1643 + $0x9a0] sm:%s1636]
              %1734 = vst [vmem:[%s1644 + $0x9a0] sm:%s1636] %v1733
              %v1735 = vld [vmem:[%s1643 + $0x9d8] sm:%s1636]
              %1736 = vst [vmem:[%s1644 + $0x9d8] sm:%s1636] %v1735
              %v1737 = vld [vmem:[%s1643 + $0xa10] sm:%s1636]
              %1738 = vst [vmem:[%s1644 + $0xa10] sm:%s1636] %v1737
              %v1739 = vld [vmem:[%s1643 + $0xa48] sm:%s1636]
              %1740 = vst [vmem:[%s1644 + $0xa48] sm:%s1636] %v1739
              %v1741 = vld [vmem:[%s1643 + $0xa80] sm:%s1636]
              %1742 = vst [vmem:[%s1644 + $0xa80] sm:%s1636] %v1741
              %v1743 = vld [vmem:[%s1643 + $0xab8] sm:%s1636]
              %1744 = vst [vmem:[%s1644 + $0xab8] sm:%s1636] %v1743
              %v1745 = vld [vmem:[%s1643 + $0xaf0] sm:%s1636]
              %1746 = vst [vmem:[%s1644 + $0xaf0] sm:%s1636] %v1745
              %v1747 = vld [vmem:[%s1643 + $0xb28] sm:%s1636]
              %1748 = vst [vmem:[%s1644 + $0xb28] sm:%s1636] %v1747
            $region82: #{tpu_custom_call.1} parent=69 // loop_footer
              %s1642 = sadd.s32 1, %s1638
            $region83: #{tpu_custom_call.1} parent=69 // loop_footer_branch
              %1637 = sbr.rel target = $region79
            $region84: #{tpu_custom_call.1} parent=69 // loop_exit
              _
          $region70: #{tpu_custom_call.1} parent=65 // pred_fallthru
            _
          // Predicated region
          $region85: #{tpu_custom_call.1} parent=65 // pred_check
            _
          $region86: #{tpu_custom_call.1} parent=65 // pred_check_branch
            %1751 = sbr.rel (0) target = $region88
          $region87: #{tpu_custom_call.1} parent=65 // pred_region
            %1752 = vsyncadd %s998, 43264
          $region88: #{tpu_custom_call.1} parent=65 // pred_fallthru
            _
        $region66: #{tpu_custom_call.1} parent=35 // pred_fallthru
          _
        %s1753 = scalar_lea.vmem %s979, 1008 [#allocation2]
        %v1754 = vld [vmem:[%s1753 + $0x12] sm:$0xff]
        %v1755 = vld [vmem:[%s1753 + $0x1a] sm:$0xff]
        %v1756 = vld [vmem:[%s1753 + $0x4a] sm:$0xff]
        %v1757 = vld [vmem:[%s1753 + $0x52] sm:$0xff]
        %v1758 = vld [vmem:[%s1753 + $0x82] sm:$0xff]
        %v1759 = vld [vmem:[%s1753 + $0x8a] sm:$0xff]
        %v1760 = vld [vmem:[%s1753 + $0xba] sm:$0xff]
        %v1761 = vld [vmem:[%s1753 + $0xc2] sm:$0xff]
        %v1762 = vld [vmem:[%s1753 + $0xf2] sm:$0xff]
        %v1763 = vld [vmem:[%s1753 + $0xfa] sm:$0xff]
        %v1764 = vld [vmem:[%s1753 + $0x12a] sm:$0xff]
        %v1765 = vld [vmem:[%s1753 + $0x132] sm:$0xff]
        %v1766 = vld [vmem:[%s1753 + $0x162] sm:$0xff]
        %v1767 = vld [vmem:[%s1753 + $0x16a] sm:$0xff]
        %v1768 = vld [vmem:[%s1753 + $0x19a] sm:$0xff]
        %v1769 = vld [vmem:[%s1753 + $0x1a2] sm:$0xff]
        %v1770 = vld [vmem:[%s1753 + $0x1d2] sm:$0xff]
        %v1771 = vld [vmem:[%s1753 + $0x1da] sm:$0xff]
        %v1772 = vld [vmem:[%s1753 + $0x20a] sm:$0xff]
        %v1773 = vld [vmem:[%s1753 + $0x212] sm:$0xff]
        %v1774 = vld [vmem:[%s1753 + $0x242] sm:$0xff]
        %v1775 = vld [vmem:[%s1753 + $0x24a] sm:$0xff]
        %v1776 = vld [vmem:[%s1753 + $0x27a] sm:$0xff]
        %v1777 = vld [vmem:[%s1753 + $0x282] sm:$0xff]
        %v1778 = vld [vmem:[%s1753 + $0x2b2] sm:$0xff]
        %v1779 = vld [vmem:[%s1753 + $0x2ba] sm:$0xff]
        %v1780 = vld [vmem:[%s1753 + $0x2ea] sm:$0xff]
        %v1781 = vld [vmem:[%s1753 + $0x2f2] sm:$0xff]
        %v1782 = vld [vmem:[%s1753 + $0x322] sm:$0xff]
        %v1783 = vld [vmem:[%s1753 + $0x32a] sm:$0xff]
        %v1784 = vld [vmem:[%s1753 + $0x35a] sm:$0xff]
        %v1785 = vld [vmem:[%s1753 + $0x362] sm:$0xff]
        %v1786 = vld [vmem:[%s2] sm:$0xff]
        %v1787 = vld [vmem:[%s2 + $0x8] sm:$0xff]
        %v1788 = vld [vmem:[%s2 + $0x10] sm:$0xff]
        %v1789 = vld [vmem:[%s2 + $0x18] sm:$0xff]
        %v1790 = vld [vmem:[%s2 + $0x20] sm:$0xff]
        %v1791 = vld [vmem:[%s2 + $0x28] sm:$0xff]
        %v1792 = vld [vmem:[%s2 + $0x30] sm:$0xff]
        %v1793 = vld [vmem:[%s2 + $0x38] sm:$0xff]
        %v1794 = vld [vmem:[%s2 + $0x40] sm:$0xff]
        %v1795 = vld [vmem:[%s2 + $0x48] sm:$0xff]
        %v1796 = vld [vmem:[%s2 + $0x50] sm:$0xff]
        %v1797 = vld [vmem:[%s2 + $0x58] sm:$0xff]
        %v1798 = vld [vmem:[%s2 + $0x60] sm:$0xff]
        %v1799 = vld [vmem:[%s2 + $0x68] sm:$0xff]
        %v1800 = vld [vmem:[%s2 + $0x70] sm:$0xff]
        %v1801 = vld [vmem:[%s2 + $0x78] sm:$0xff]
        %1802 = vmatpush.msra.mxu0 %v1801
        %1803 = vmatpush.msra.mxu0 %v1800
        %1804 = vmatpush.msra.mxu0 %v1799
        %1805 = vmatpush.msra.mxu0 %v1798
        %1806 = vmatpush.msra.mxu0 %v1797
        %1807 = vmatpush.msra.mxu0 %v1796
        %1808 = vmatpush.msra.mxu0 %v1795
        %1809 = vmatpush.msra.mxu0 %v1794
        %1810 = vmatpush.msra.mxu0 %v1793
        %1811 = vmatpush.msra.mxu0 %v1792
        %1812 = vmatpush.msra.mxu0 %v1791
        %1813 = vmatpush.msra.mxu0 %v1790
        %1814 = vmatpush.msra.mxu0 %v1789
        %1815 = vmatpush.msra.mxu0 %v1788
        %1816 = vmatpush.msra.mxu0 %v1787
        %1817 = vmatpush.msra.mxu0 %v1786
        %1818 = vmatmul.f32.gmra.mxu0 %v1754
        %v1819 = vpop.f32.mrf.mxu0
        %v1820 = vadd.f32 0.0, %v1819
        %1821 = vmatmul.f32.gmra.mxu0 %v1755
        %v1822 = vpop.f32.mrf.mxu0
        %v1823 = vadd.f32 0.0, %v1822
        %1824 = vmatmul.f32.gmra.mxu0 %v1756
        %v1825 = vpop.f32.mrf.mxu0
        %v1826 = vadd.f32 0.0, %v1825
        %1827 = vmatmul.f32.gmra.mxu0 %v1757
        %v1828 = vpop.f32.mrf.mxu0
        %v1829 = vadd.f32 0.0, %v1828
        %1830 = vmatmul.f32.gmra.mxu0 %v1758
        %v1831 = vpop.f32.mrf.mxu0
        %v1832 = vadd.f32 0.0, %v1831
        %1833 = vmatmul.f32.gmra.mxu0 %v1759
        %v1834 = vpop.f32.mrf.mxu0
        %v1835 = vadd.f32 0.0, %v1834
        %1836 = vmatmul.f32.gmra.mxu0 %v1760
        %v1837 = vpop.f32.mrf.mxu0
        %v1838 = vadd.f32 0.0, %v1837
        %1839 = vmatmul.f32.gmra.mxu0 %v1761
        %v1840 = vpop.f32.mrf.mxu0
        %v1841 = vadd.f32 0.0, %v1840
        %1842 = vmatmul.f32.gmra.mxu0 %v1762
        %v1843 = vpop.f32.mrf.mxu0
        %v1844 = vadd.f32 0.0, %v1843
        %1845 = vmatmul.f32.gmra.mxu0 %v1763
        %v1846 = vpop.f32.mrf.mxu0
        %v1847 = vadd.f32 0.0, %v1846
        %1848 = vmatmul.f32.gmra.mxu0 %v1764
        %v1849 = vpop.f32.mrf.mxu0
        %v1850 = vadd.f32 0.0, %v1849
        %1851 = vmatmul.f32.gmra.mxu0 %v1765
        %v1852 = vpop.f32.mrf.mxu0
        %v1853 = vadd.f32 0.0, %v1852
        %1854 = vmatmul.f32.gmra.mxu0 %v1766
        %v1855 = vpop.f32.mrf.mxu0
        %v1856 = vadd.f32 0.0, %v1855
        %1857 = vmatmul.f32.gmra.mxu0 %v1767
        %v1858 = vpop.f32.mrf.mxu0
        %v1859 = vadd.f32 0.0, %v1858
        %1860 = vmatmul.f32.gmra.mxu0 %v1768
        %v1861 = vpop.f32.mrf.mxu0
        %v1862 = vadd.f32 0.0, %v1861
        %1863 = vmatmul.f32.gmra.mxu0 %v1769
        %v1864 = vpop.f32.mrf.mxu0
        %v1865 = vadd.f32 0.0, %v1864
        %1866 = vmatmul.f32.gmra.mxu0 %v1770
        %v1867 = vpop.f32.mrf.mxu0
        %v1868 = vadd.f32 0.0, %v1867
        %1869 = vmatmul.f32.gmra.mxu0 %v1771
        %v1870 = vpop.f32.mrf.mxu0
        %v1871 = vadd.f32 0.0, %v1870
        %1872 = vmatmul.f32.gmra.mxu0 %v1772
        %v1873 = vpop.f32.mrf.mxu0
        %v1874 = vadd.f32 0.0, %v1873
        %1875 = vmatmul.f32.gmra.mxu0 %v1773
        %v1876 = vpop.f32.mrf.mxu0
        %v1877 = vadd.f32 0.0, %v1876
        %1878 = vmatmul.f32.gmra.mxu0 %v1774
        %v1879 = vpop.f32.mrf.mxu0
        %v1880 = vadd.f32 0.0, %v1879
        %1881 = vmatmul.f32.gmra.mxu0 %v1775
        %v1882 = vpop.f32.mrf.mxu0
        %v1883 = vadd.f32 0.0, %v1882
        %1884 = vmatmul.f32.gmra.mxu0 %v1776
        %v1885 = vpop.f32.mrf.mxu0
        %v1886 = vadd.f32 0.0, %v1885
        %1887 = vmatmul.f32.gmra.mxu0 %v1777
        %v1888 = vpop.f32.mrf.mxu0
        %v1889 = vadd.f32 0.0, %v1888
        %1890 = vmatmul.f32.gmra.mxu0 %v1778
        %v1891 = vpop.f32.mrf.mxu0
        %v1892 = vadd.f32 0.0, %v1891
        %1893 = vmatmul.f32.gmra.mxu0 %v1779
        %v1894 = vpop.f32.mrf.mxu0
        %v1895 = vadd.f32 0.0, %v1894
        %1896 = vmatmul.f32.gmra.mxu0 %v1780
        %v1897 = vpop.f32.mrf.mxu0
        %v1898 = vadd.f32 0.0, %v1897
        %1899 = vmatmul.f32.gmra.mxu0 %v1781
        %v1900 = vpop.f32.mrf.mxu0
        %v1901 = vadd.f32 0.0, %v1900
        %1902 = vmatmul.f32.gmra.mxu0 %v1782
        %v1903 = vpop.f32.mrf.mxu0
        %v1904 = vadd.f32 0.0, %v1903
        %1905 = vmatmul.f32.gmra.mxu0 %v1783
        %v1906 = vpop.f32.mrf.mxu0
        %v1907 = vadd.f32 0.0, %v1906
        %1908 = vmatmul.f32.gmra.mxu0 %v1784
        %v1909 = vpop.f32.mrf.mxu0
        %v1910 = vadd.f32 0.0, %v1909
        %1911 = vmatmul.f32.gmra.mxu0 %v1785
        %v1912 = vpop.f32.mrf.mxu0
        %v1913 = vadd.f32 0.0, %v1912
        %1914 = vdwg.mxu0
        %v1915 = vmax.f32 %v1820, 0.0
        %v1916 = vmax.f32 %v1823, 0.0
        %v1917 = vmax.f32 %v1826, 0.0
        %v1918 = vmax.f32 %v1829, 0.0
        %v1919 = vmax.f32 %v1832, 0.0
        %v1920 = vmax.f32 %v1835, 0.0
        %v1921 = vmax.f32 %v1838, 0.0
        %v1922 = vmax.f32 %v1841, 0.0
        %v1923 = vmax.f32 %v1844, 0.0
        %v1924 = vmax.f32 %v1847, 0.0
        %v1925 = vmax.f32 %v1850, 0.0
        %v1926 = vmax.f32 %v1853, 0.0
        %v1927 = vmax.f32 %v1856, 0.0
        %v1928 = vmax.f32 %v1859, 0.0
        %v1929 = vmax.f32 %v1862, 0.0
        %v1930 = vmax.f32 %v1865, 0.0
        %v1931 = vmax.f32 %v1868, 0.0
        %v1932 = vmax.f32 %v1871, 0.0
        %v1933 = vmax.f32 %v1874, 0.0
        %v1934 = vmax.f32 %v1877, 0.0
        %v1935 = vmax.f32 %v1880, 0.0
        %v1936 = vmax.f32 %v1883, 0.0
        %v1937 = vmax.f32 %v1886, 0.0
        %v1938 = vmax.f32 %v1889, 0.0
        %v1939 = vmax.f32 %v1892, 0.0
        %v1940 = vmax.f32 %v1895, 0.0
        %v1941 = vmax.f32 %v1898, 0.0
        %v1942 = vmax.f32 %v1901, 0.0
        %v1943 = vmax.f32 %v1904, 0.0
        %v1944 = vmax.f32 %v1907, 0.0
        %v1945 = vmax.f32 %v1910, 0.0
        %v1946 = vmax.f32 %v1913, 0.0
        %v1947 = vld [vmem:[%s4] sm:$0xff]
        %v1948 = vld [vmem:[%s4 + $0x8] sm:$0xff]
        %v1949 = vld [vmem:[%s4 + $0x10] sm:$0xff]
        %v1950 = vld [vmem:[%s4 + $0x18] sm:$0xff]
        %v1951 = vld [vmem:[%s4 + $0x20] sm:$0xff]
        %v1952 = vld [vmem:[%s4 + $0x28] sm:$0xff]
        %v1953 = vld [vmem:[%s4 + $0x30] sm:$0xff]
        %v1954 = vld [vmem:[%s4 + $0x38] sm:$0xff]
        %v1955 = vld [vmem:[%s4 + $0x40] sm:$0xff]
        %v1956 = vld [vmem:[%s4 + $0x48] sm:$0xff]
        %v1957 = vld [vmem:[%s4 + $0x50] sm:$0xff]
        %v1958 = vld [vmem:[%s4 + $0x58] sm:$0xff]
        %v1959 = vld [vmem:[%s4 + $0x60] sm:$0xff]
        %v1960 = vld [vmem:[%s4 + $0x68] sm:$0xff]
        %v1961 = vld [vmem:[%s4 + $0x70] sm:$0xff]
        %v1962 = vld [vmem:[%s4 + $0x78] sm:$0xff]
        %s1963 = scalar_lea.vmem %s979, 672 [#allocation2]
        %v1964 = vld [vmem:[%s1963 + $0xc] sm:$0xff]
        %v1965 = vld [vmem:[%s1963 + $0x14] sm:$0xff]
        %v1966 = vld [vmem:[%s1963 + $0x44] sm:$0xff]
        %v1967 = vld [vmem:[%s1963 + $0x4c] sm:$0xff]
        %v1968 = vld [vmem:[%s1963 + $0x7c] sm:$0xff]
        %v1969 = vld [vmem:[%s1963 + $0x84] sm:$0xff]
        %v1970 = vld [vmem:[%s1963 + $0xb4] sm:$0xff]
        %v1971 = vld [vmem:[%s1963 + $0xbc] sm:$0xff]
        %v1972 = vld [vmem:[%s1963 + $0xec] sm:$0xff]
        %v1973 = vld [vmem:[%s1963 + $0xf4] sm:$0xff]
        %v1974 = vld [vmem:[%s1963 + $0x124] sm:$0xff]
        %v1975 = vld [vmem:[%s1963 + $0x12c] sm:$0xff]
        %v1976 = vld [vmem:[%s1963 + $0x15c] sm:$0xff]
        %v1977 = vld [vmem:[%s1963 + $0x164] sm:$0xff]
        %v1978 = vld [vmem:[%s1963 + $0x194] sm:$0xff]
        %v1979 = vld [vmem:[%s1963 + $0x19c] sm:$0xff]
        %v1980 = vld [vmem:[%s1963 + $0x1cc] sm:$0xff]
        %v1981 = vld [vmem:[%s1963 + $0x1d4] sm:$0xff]
        %v1982 = vld [vmem:[%s1963 + $0x204] sm:$0xff]
        %v1983 = vld [vmem:[%s1963 + $0x20c] sm:$0xff]
        %v1984 = vld [vmem:[%s1963 + $0x23c] sm:$0xff]
        %v1985 = vld [vmem:[%s1963 + $0x244] sm:$0xff]
        %v1986 = vld [vmem:[%s1963 + $0x274] sm:$0xff]
        %v1987 = vld [vmem:[%s1963 + $0x27c] sm:$0xff]
        %v1988 = vld [vmem:[%s1963 + $0x2ac] sm:$0xff]
        %v1989 = vld [vmem:[%s1963 + $0x2b4] sm:$0xff]
        %v1990 = vld [vmem:[%s1963 + $0x2e4] sm:$0xff]
        %v1991 = vld [vmem:[%s1963 + $0x2ec] sm:$0xff]
        %v1992 = vld [vmem:[%s1963 + $0x31c] sm:$0xff]
        %v1993 = vld [vmem:[%s1963 + $0x324] sm:$0xff]
        %v1994 = vld [vmem:[%s1963 + $0x354] sm:$0xff]
        %v1995 = vld [vmem:[%s1963 + $0x35c] sm:$0xff]
        %v1996 = vld [vmem:[%s3] sm:$0xff]
        %v1997 = vld [vmem:[%s3 + $0x8] sm:$0xff]
        %v1998 = vld [vmem:[%s3 + $0x10] sm:$0xff]
        %v1999 = vld [vmem:[%s3 + $0x18] sm:$0xff]
        %v2000 = vld [vmem:[%s3 + $0x20] sm:$0xff]
        %v2001 = vld [vmem:[%s3 + $0x28] sm:$0xff]
        %v2002 = vld [vmem:[%s3 + $0x30] sm:$0xff]
        %v2003 = vld [vmem:[%s3 + $0x38] sm:$0xff]
        %v2004 = vld [vmem:[%s3 + $0x40] sm:$0xff]
        %v2005 = vld [vmem:[%s3 + $0x48] sm:$0xff]
        %v2006 = vld [vmem:[%s3 + $0x50] sm:$0xff]
        %v2007 = vld [vmem:[%s3 + $0x58] sm:$0xff]
        %v2008 = vld [vmem:[%s3 + $0x60] sm:$0xff]
        %v2009 = vld [vmem:[%s3 + $0x68] sm:$0xff]
        %v2010 = vld [vmem:[%s3 + $0x70] sm:$0xff]
        %v2011 = vld [vmem:[%s3 + $0x78] sm:$0xff]
        %v2012 = vld [vmem:[%s1963 + $0x12] sm:$0xff]
        %v2013 = vld [vmem:[%s1963 + $0x1a] sm:$0xff]
        %v2014 = vld [vmem:[%s1963 + $0x4a] sm:$0xff]
        %v2015 = vld [vmem:[%s1963 + $0x52] sm:$0xff]
        %v2016 = vld [vmem:[%s1963 + $0x82] sm:$0xff]
        %v2017 = vld [vmem:[%s1963 + $0x8a] sm:$0xff]
        %v2018 = vld [vmem:[%s1963 + $0xba] sm:$0xff]
        %v2019 = vld [vmem:[%s1963 + $0xc2] sm:$0xff]
        %v2020 = vld [vmem:[%s1963 + $0xf2] sm:$0xff]
        %v2021 = vld [vmem:[%s1963 + $0xfa] sm:$0xff]
        %v2022 = vld [vmem:[%s1963 + $0x12a] sm:$0xff]
        %v2023 = vld [vmem:[%s1963 + $0x132] sm:$0xff]
        %v2024 = vld [vmem:[%s1963 + $0x162] sm:$0xff]
        %v2025 = vld [vmem:[%s1963 + $0x16a] sm:$0xff]
        %v2026 = vld [vmem:[%s1963 + $0x19a] sm:$0xff]
        %v2027 = vld [vmem:[%s1963 + $0x1a2] sm:$0xff]
        %v2028 = vld [vmem:[%s1963 + $0x1d2] sm:$0xff]
        %v2029 = vld [vmem:[%s1963 + $0x1da] sm:$0xff]
        %v2030 = vld [vmem:[%s1963 + $0x20a] sm:$0xff]
        %v2031 = vld [vmem:[%s1963 + $0x212] sm:$0xff]
        %v2032 = vld [vmem:[%s1963 + $0x242] sm:$0xff]
        %v2033 = vld [vmem:[%s1963 + $0x24a] sm:$0xff]
        %v2034 = vld [vmem:[%s1963 + $0x27a] sm:$0xff]
        %v2035 = vld [vmem:[%s1963 + $0x282] sm:$0xff]
        %v2036 = vld [vmem:[%s1963 + $0x2b2] sm:$0xff]
        %v2037 = vld [vmem:[%s1963 + $0x2ba] sm:$0xff]
        %v2038 = vld [vmem:[%s1963 + $0x2ea] sm:$0xff]
        %v2039 = vld [vmem:[%s1963 + $0x2f2] sm:$0xff]
        %v2040 = vld [vmem:[%s1963 + $0x322] sm:$0xff]
        %v2041 = vld [vmem:[%s1963 + $0x32a] sm:$0xff]
        %v2042 = vld [vmem:[%s1963 + $0x35a] sm:$0xff]
        %v2043 = vld [vmem:[%s1963 + $0x362] sm:$0xff]
        %s2044 = scalar_lea.vmem %s3, 128
        %v2045 = vld [vmem:[%s2044] sm:$0xff]
        %v2046 = vld [vmem:[%s2044 + $0x8] sm:$0xff]
        %v2047 = vld [vmem:[%s2044 + $0x10] sm:$0xff]
        %v2048 = vld [vmem:[%s2044 + $0x18] sm:$0xff]
        %v2049 = vld [vmem:[%s2044 + $0x20] sm:$0xff]
        %v2050 = vld [vmem:[%s2044 + $0x28] sm:$0xff]
        %v2051 = vld [vmem:[%s2044 + $0x30] sm:$0xff]
        %v2052 = vld [vmem:[%s2044 + $0x38] sm:$0xff]
        %v2053 = vld [vmem:[%s2044 + $0x40] sm:$0xff]
        %v2054 = vld [vmem:[%s2044 + $0x48] sm:$0xff]
        %v2055 = vld [vmem:[%s2044 + $0x50] sm:$0xff]
        %v2056 = vld [vmem:[%s2044 + $0x58] sm:$0xff]
        %v2057 = vld [vmem:[%s2044 + $0x60] sm:$0xff]
        %v2058 = vld [vmem:[%s2044 + $0x68] sm:$0xff]
        %v2059 = vld [vmem:[%s2044 + $0x70] sm:$0xff]
        %v2060 = vld [vmem:[%s2044 + $0x78] sm:$0xff]
        %2061 = vmatpush.msra.mxu0 %v2060
        %2062 = vmatpush.msra.mxu0 %v2059
        %2063 = vmatpush.msra.mxu0 %v2058
        %2064 = vmatpush.msra.mxu0 %v2057
        %2065 = vmatpush.msra.mxu0 %v2056
        %2066 = vmatpush.msra.mxu0 %v2055
        %2067 = vmatpush.msra.mxu0 %v2054
        %2068 = vmatpush.msra.mxu0 %v2053
        %2069 = vmatpush.msra.mxu0 %v2052
        %2070 = vmatpush.msra.mxu0 %v2051
        %2071 = vmatpush.msra.mxu0 %v2050
        %2072 = vmatpush.msra.mxu0 %v2049
        %2073 = vmatpush.msra.mxu0 %v2048
        %2074 = vmatpush.msra.mxu0 %v2047
        %2075 = vmatpush.msra.mxu0 %v2046
        %2076 = vmatpush.msra.mxu0 %v2045
        %2077 = vmatmul.f32.gmra.mxu0 %v2012
        %v2078 = vpop.f32.mrf.mxu0
        %v2079 = vadd.f32 0.0, %v2078
        %2080 = vmatmul.f32.gmra.mxu0 %v2013
        %v2081 = vpop.f32.mrf.mxu0
        %v2082 = vadd.f32 0.0, %v2081
        %2083 = vmatmul.f32.gmra.mxu0 %v2014
        %v2084 = vpop.f32.mrf.mxu0
        %v2085 = vadd.f32 0.0, %v2084
        %2086 = vmatmul.f32.gmra.mxu0 %v2015
        %v2087 = vpop.f32.mrf.mxu0
        %v2088 = vadd.f32 0.0, %v2087
        %2089 = vmatmul.f32.gmra.mxu0 %v2016
        %v2090 = vpop.f32.mrf.mxu0
        %v2091 = vadd.f32 0.0, %v2090
        %2092 = vmatmul.f32.gmra.mxu0 %v2017
        %v2093 = vpop.f32.mrf.mxu0
        %v2094 = vadd.f32 0.0, %v2093
        %2095 = vmatmul.f32.gmra.mxu0 %v2018
        %v2096 = vpop.f32.mrf.mxu0
        %v2097 = vadd.f32 0.0, %v2096
        %2098 = vmatmul.f32.gmra.mxu0 %v2019
        %v2099 = vpop.f32.mrf.mxu0
        %v2100 = vadd.f32 0.0, %v2099
        %2101 = vmatmul.f32.gmra.mxu0 %v2020
        %v2102 = vpop.f32.mrf.mxu0
        %v2103 = vadd.f32 0.0, %v2102
        %2104 = vmatmul.f32.gmra.mxu0 %v2021
        %v2105 = vpop.f32.mrf.mxu0
        %v2106 = vadd.f32 0.0, %v2105
        %2107 = vmatmul.f32.gmra.mxu0 %v2022
        %v2108 = vpop.f32.mrf.mxu0
        %v2109 = vadd.f32 0.0, %v2108
        %2110 = vmatmul.f32.gmra.mxu0 %v2023
        %v2111 = vpop.f32.mrf.mxu0
        %v2112 = vadd.f32 0.0, %v2111
        %2113 = vmatmul.f32.gmra.mxu0 %v2024
        %v2114 = vpop.f32.mrf.mxu0
        %v2115 = vadd.f32 0.0, %v2114
        %2116 = vmatmul.f32.gmra.mxu0 %v2025
        %v2117 = vpop.f32.mrf.mxu0
        %v2118 = vadd.f32 0.0, %v2117
        %2119 = vmatmul.f32.gmra.mxu0 %v2026
        %v2120 = vpop.f32.mrf.mxu0
        %v2121 = vadd.f32 0.0, %v2120
        %2122 = vmatmul.f32.gmra.mxu0 %v2027
        %v2123 = vpop.f32.mrf.mxu0
        %v2124 = vadd.f32 0.0, %v2123
        %2125 = vmatmul.f32.gmra.mxu0 %v2028
        %v2126 = vpop.f32.mrf.mxu0
        %v2127 = vadd.f32 0.0, %v2126
        %2128 = vmatmul.f32.gmra.mxu0 %v2029
        %v2129 = vpop.f32.mrf.mxu0
        %v2130 = vadd.f32 0.0, %v2129
        %2131 = vmatmul.f32.gmra.mxu0 %v2030
        %v2132 = vpop.f32.mrf.mxu0
        %v2133 = vadd.f32 0.0, %v2132
        %2134 = vmatmul.f32.gmra.mxu0 %v2031
        %v2135 = vpop.f32.mrf.mxu0
        %v2136 = vadd.f32 0.0, %v2135
        %2137 = vmatmul.f32.gmra.mxu0 %v2032
        %v2138 = vpop.f32.mrf.mxu0
        %v2139 = vadd.f32 0.0, %v2138
        %2140 = vmatmul.f32.gmra.mxu0 %v2033
        %v2141 = vpop.f32.mrf.mxu0
        %v2142 = vadd.f32 0.0, %v2141
        %2143 = vmatmul.f32.gmra.mxu0 %v2034
        %v2144 = vpop.f32.mrf.mxu0
        %v2145 = vadd.f32 0.0, %v2144
        %2146 = vmatmul.f32.gmra.mxu0 %v2035
        %v2147 = vpop.f32.mrf.mxu0
        %v2148 = vadd.f32 0.0, %v2147
        %2149 = vmatmul.f32.gmra.mxu0 %v2036
        %v2150 = vpop.f32.mrf.mxu0
        %v2151 = vadd.f32 0.0, %v2150
        %2152 = vmatmul.f32.gmra.mxu0 %v2037
        %v2153 = vpop.f32.mrf.mxu0
        %v2154 = vadd.f32 0.0, %v2153
        %2155 = vmatmul.f32.gmra.mxu0 %v2038
        %v2156 = vpop.f32.mrf.mxu0
        %v2157 = vadd.f32 0.0, %v2156
        %2158 = vmatmul.f32.gmra.mxu0 %v2039
        %v2159 = vpop.f32.mrf.mxu0
        %v2160 = vadd.f32 0.0, %v2159
        %2161 = vmatmul.f32.gmra.mxu0 %v2040
        %v2162 = vpop.f32.mrf.mxu0
        %v2163 = vadd.f32 0.0, %v2162
        %2164 = vmatmul.f32.gmra.mxu0 %v2041
        %v2165 = vpop.f32.mrf.mxu0
        %v2166 = vadd.f32 0.0, %v2165
        %2167 = vmatmul.f32.gmra.mxu0 %v2042
        %v2168 = vpop.f32.mrf.mxu0
        %v2169 = vadd.f32 0.0, %v2168
        %2170 = vmatmul.f32.gmra.mxu0 %v2043
        %v2171 = vpop.f32.mrf.mxu0
        %v2172 = vadd.f32 0.0, %v2171
        %2173 = vdwg.mxu0
        %2174 = vmatpush.msra.mxu0 %v2011
        %2175 = vmatpush.msra.mxu0 %v2010
        %2176 = vmatpush.msra.mxu0 %v2009
        %2177 = vmatpush.msra.mxu0 %v2008
        %2178 = vmatpush.msra.mxu0 %v2007
        %2179 = vmatpush.msra.mxu0 %v2006
        %2180 = vmatpush.msra.mxu0 %v2005
        %2181 = vmatpush.msra.mxu0 %v2004
        %2182 = vmatpush.msra.mxu0 %v2003
        %2183 = vmatpush.msra.mxu0 %v2002
        %2184 = vmatpush.msra.mxu0 %v2001
        %2185 = vmatpush.msra.mxu0 %v2000
        %2186 = vmatpush.msra.mxu0 %v1999
        %2187 = vmatpush.msra.mxu0 %v1998
        %2188 = vmatpush.msra.mxu0 %v1997
        %2189 = vmatpush.msra.mxu0 %v1996
        %2190 = vmatmul.f32.gmra.mxu0 %v1964
        %v2191 = vpop.f32.mrf.mxu0
        %v2192 = vadd.f32 %v2079, %v2191
        %2193 = vmatmul.f32.gmra.mxu0 %v1965
        %v2194 = vpop.f32.mrf.mxu0
        %v2195 = vadd.f32 %v2082, %v2194
        %2196 = vmatmul.f32.gmra.mxu0 %v1966
        %v2197 = vpop.f32.mrf.mxu0
        %v2198 = vadd.f32 %v2085, %v2197
        %2199 = vmatmul.f32.gmra.mxu0 %v1967
        %v2200 = vpop.f32.mrf.mxu0
        %v2201 = vadd.f32 %v2088, %v2200
        %2202 = vmatmul.f32.gmra.mxu0 %v1968
        %v2203 = vpop.f32.mrf.mxu0
        %v2204 = vadd.f32 %v2091, %v2203
        %2205 = vmatmul.f32.gmra.mxu0 %v1969
        %v2206 = vpop.f32.mrf.mxu0
        %v2207 = vadd.f32 %v2094, %v2206
        %2208 = vmatmul.f32.gmra.mxu0 %v1970
        %v2209 = vpop.f32.mrf.mxu0
        %v2210 = vadd.f32 %v2097, %v2209
        %2211 = vmatmul.f32.gmra.mxu0 %v1971
        %v2212 = vpop.f32.mrf.mxu0
        %v2213 = vadd.f32 %v2100, %v2212
        %2214 = vmatmul.f32.gmra.mxu0 %v1972
        %v2215 = vpop.f32.mrf.mxu0
        %v2216 = vadd.f32 %v2103, %v2215
        %2217 = vmatmul.f32.gmra.mxu0 %v1973
        %v2218 = vpop.f32.mrf.mxu0
        %v2219 = vadd.f32 %v2106, %v2218
        %2220 = vmatmul.f32.gmra.mxu0 %v1974
        %v2221 = vpop.f32.mrf.mxu0
        %v2222 = vadd.f32 %v2109, %v2221
        %2223 = vmatmul.f32.gmra.mxu0 %v1975
        %v2224 = vpop.f32.mrf.mxu0
        %v2225 = vadd.f32 %v2112, %v2224
        %2226 = vmatmul.f32.gmra.mxu0 %v1976
        %v2227 = vpop.f32.mrf.mxu0
        %v2228 = vadd.f32 %v2115, %v2227
        %2229 = vmatmul.f32.gmra.mxu0 %v1977
        %v2230 = vpop.f32.mrf.mxu0
        %v2231 = vadd.f32 %v2118, %v2230
        %2232 = vmatmul.f32.gmra.mxu0 %v1978
        %v2233 = vpop.f32.mrf.mxu0
        %v2234 = vadd.f32 %v2121, %v2233
        %2235 = vmatmul.f32.gmra.mxu0 %v1979
        %v2236 = vpop.f32.mrf.mxu0
        %v2237 = vadd.f32 %v2124, %v2236
        %2238 = vmatmul.f32.gmra.mxu0 %v1980
        %v2239 = vpop.f32.mrf.mxu0
        %v2240 = vadd.f32 %v2127, %v2239
        %2241 = vmatmul.f32.gmra.mxu0 %v1981
        %v2242 = vpop.f32.mrf.mxu0
        %v2243 = vadd.f32 %v2130, %v2242
        %2244 = vmatmul.f32.gmra.mxu0 %v1982
        %v2245 = vpop.f32.mrf.mxu0
        %v2246 = vadd.f32 %v2133, %v2245
        %2247 = vmatmul.f32.gmra.mxu0 %v1983
        %v2248 = vpop.f32.mrf.mxu0
        %v2249 = vadd.f32 %v2136, %v2248
        %2250 = vmatmul.f32.gmra.mxu0 %v1984
        %v2251 = vpop.f32.mrf.mxu0
        %v2252 = vadd.f32 %v2139, %v2251
        %2253 = vmatmul.f32.gmra.mxu0 %v1985
        %v2254 = vpop.f32.mrf.mxu0
        %v2255 = vadd.f32 %v2142, %v2254
        %2256 = vmatmul.f32.gmra.mxu0 %v1986
        %v2257 = vpop.f32.mrf.mxu0
        %v2258 = vadd.f32 %v2145, %v2257
        %2259 = vmatmul.f32.gmra.mxu0 %v1987
        %v2260 = vpop.f32.mrf.mxu0
        %v2261 = vadd.f32 %v2148, %v2260
        %2262 = vmatmul.f32.gmra.mxu0 %v1988
        %v2263 = vpop.f32.mrf.mxu0
        %v2264 = vadd.f32 %v2151, %v2263
        %2265 = vmatmul.f32.gmra.mxu0 %v1989
        %v2266 = vpop.f32.mrf.mxu0
        %v2267 = vadd.f32 %v2154, %v2266
        %2268 = vmatmul.f32.gmra.mxu0 %v1990
        %v2269 = vpop.f32.mrf.mxu0
        %v2270 = vadd.f32 %v2157, %v2269
        %2271 = vmatmul.f32.gmra.mxu0 %v1991
        %v2272 = vpop.f32.mrf.mxu0
        %v2273 = vadd.f32 %v2160, %v2272
        %2274 = vmatmul.f32.gmra.mxu0 %v1992
        %v2275 = vpop.f32.mrf.mxu0
        %v2276 = vadd.f32 %v2163, %v2275
        %2277 = vmatmul.f32.gmra.mxu0 %v1993
        %v2278 = vpop.f32.mrf.mxu0
        %v2279 = vadd.f32 %v2166, %v2278
        %2280 = vmatmul.f32.gmra.mxu0 %v1994
        %v2281 = vpop.f32.mrf.mxu0
        %v2282 = vadd.f32 %v2169, %v2281
        %2283 = vmatmul.f32.gmra.mxu0 %v1995
        %v2284 = vpop.f32.mrf.mxu0
        %v2285 = vadd.f32 %v2172, %v2284
        %2286 = vdwg.mxu0
        %v2287 = vld [vmem:[%s1963 + $0x18] sm:$0xff]
        %v2288 = vld [vmem:[%s1963 + $0x20] sm:$0xff]
        %v2289 = vld [vmem:[%s1963 + $0x50] sm:$0xff]
        %v2290 = vld [vmem:[%s1963 + $0x58] sm:$0xff]
        %v2291 = vld [vmem:[%s1963 + $0x88] sm:$0xff]
        %v2292 = vld [vmem:[%s1963 + $0x90] sm:$0xff]
        %v2293 = vld [vmem:[%s1963 + $0xc0] sm:$0xff]
        %v2294 = vld [vmem:[%s1963 + $0xc8] sm:$0xff]
        %v2295 = vld [vmem:[%s1963 + $0xf8] sm:$0xff]
        %v2296 = vld [vmem:[%s1963 + $0x100] sm:$0xff]
        %v2297 = vld [vmem:[%s1963 + $0x130] sm:$0xff]
        %v2298 = vld [vmem:[%s1963 + $0x138] sm:$0xff]
        %v2299 = vld [vmem:[%s1963 + $0x168] sm:$0xff]
        %v2300 = vld [vmem:[%s1963 + $0x170] sm:$0xff]
        %v2301 = vld [vmem:[%s1963 + $0x1a0] sm:$0xff]
        %v2302 = vld [vmem:[%s1963 + $0x1a8] sm:$0xff]
        %v2303 = vld [vmem:[%s1963 + $0x1d8] sm:$0xff]
        %v2304 = vld [vmem:[%s1963 + $0x1e0] sm:$0xff]
        %v2305 = vld [vmem:[%s1963 + $0x210] sm:$0xff]
        %v2306 = vld [vmem:[%s1963 + $0x218] sm:$0xff]
        %v2307 = vld [vmem:[%s1963 + $0x248] sm:$0xff]
        %v2308 = vld [vmem:[%s1963 + $0x250] sm:$0xff]
        %v2309 = vld [vmem:[%s1963 + $0x280] sm:$0xff]
        %v2310 = vld [vmem:[%s1963 + $0x288] sm:$0xff]
        %v2311 = vld [vmem:[%s1963 + $0x2b8] sm:$0xff]
        %v2312 = vld [vmem:[%s1963 + $0x2c0] sm:$0xff]
        %v2313 = vld [vmem:[%s1963 + $0x2f0] sm:$0xff]
        %v2314 = vld [vmem:[%s1963 + $0x2f8] sm:$0xff]
        %v2315 = vld [vmem:[%s1963 + $0x328] sm:$0xff]
        %v2316 = vld [vmem:[%s1963 + $0x330] sm:$0xff]
        %v2317 = vld [vmem:[%s1963 + $0x360] sm:$0xff]
        %v2318 = vld [vmem:[%s1963 + $0x368] sm:$0xff]
        %s2319 = scalar_lea.vmem %s3, 256
        %v2320 = vld [vmem:[%s2319] sm:$0xff]
        %v2321 = vld [vmem:[%s2319 + $0x8] sm:$0xff]
        %v2322 = vld [vmem:[%s2319 + $0x10] sm:$0xff]
        %v2323 = vld [vmem:[%s2319 + $0x18] sm:$0xff]
        %v2324 = vld [vmem:[%s2319 + $0x20] sm:$0xff]
        %v2325 = vld [vmem:[%s2319 + $0x28] sm:$0xff]
        %v2326 = vld [vmem:[%s2319 + $0x30] sm:$0xff]
        %v2327 = vld [vmem:[%s2319 + $0x38] sm:$0xff]
        %v2328 = vld [vmem:[%s2319 + $0x40] sm:$0xff]
        %v2329 = vld [vmem:[%s2319 + $0x48] sm:$0xff]
        %v2330 = vld [vmem:[%s2319 + $0x50] sm:$0xff]
        %v2331 = vld [vmem:[%s2319 + $0x58] sm:$0xff]
        %v2332 = vld [vmem:[%s2319 + $0x60] sm:$0xff]
        %v2333 = vld [vmem:[%s2319 + $0x68] sm:$0xff]
        %v2334 = vld [vmem:[%s2319 + $0x70] sm:$0xff]
        %v2335 = vld [vmem:[%s2319 + $0x78] sm:$0xff]
        %2336 = vmatpush.msra.mxu0 %v2335
        %2337 = vmatpush.msra.mxu0 %v2334
        %2338 = vmatpush.msra.mxu0 %v2333
        %2339 = vmatpush.msra.mxu0 %v2332
        %2340 = vmatpush.msra.mxu0 %v2331
        %2341 = vmatpush.msra.mxu0 %v2330
        %2342 = vmatpush.msra.mxu0 %v2329
        %2343 = vmatpush.msra.mxu0 %v2328
        %2344 = vmatpush.msra.mxu0 %v2327
        %2345 = vmatpush.msra.mxu0 %v2326
        %2346 = vmatpush.msra.mxu0 %v2325
        %2347 = vmatpush.msra.mxu0 %v2324
        %2348 = vmatpush.msra.mxu0 %v2323
        %2349 = vmatpush.msra.mxu0 %v2322
        %2350 = vmatpush.msra.mxu0 %v2321
        %2351 = vmatpush.msra.mxu0 %v2320
        %2352 = vmatmul.f32.gmra.mxu0 %v2287
        %v2353 = vpop.f32.mrf.mxu0
        %v2354 = vadd.f32 0.0, %v2353
        %2355 = vmatmul.f32.gmra.mxu0 %v2288
        %v2356 = vpop.f32.mrf.mxu0
        %v2357 = vadd.f32 0.0, %v2356
        %2358 = vmatmul.f32.gmra.mxu0 %v2289
        %v2359 = vpop.f32.mrf.mxu0
        %v2360 = vadd.f32 0.0, %v2359
        %2361 = vmatmul.f32.gmra.mxu0 %v2290
        %v2362 = vpop.f32.mrf.mxu0
        %v2363 = vadd.f32 0.0, %v2362
        %2364 = vmatmul.f32.gmra.mxu0 %v2291
        %v2365 = vpop.f32.mrf.mxu0
        %v2366 = vadd.f32 0.0, %v2365
        %2367 = vmatmul.f32.gmra.mxu0 %v2292
        %v2368 = vpop.f32.mrf.mxu0
        %v2369 = vadd.f32 0.0, %v2368
        %2370 = vmatmul.f32.gmra.mxu0 %v2293
        %v2371 = vpop.f32.mrf.mxu0
        %v2372 = vadd.f32 0.0, %v2371
        %2373 = vmatmul.f32.gmra.mxu0 %v2294
        %v2374 = vpop.f32.mrf.mxu0
        %v2375 = vadd.f32 0.0, %v2374
        %2376 = vmatmul.f32.gmra.mxu0 %v2295
        %v2377 = vpop.f32.mrf.mxu0
        %v2378 = vadd.f32 0.0, %v2377
        %2379 = vmatmul.f32.gmra.mxu0 %v2296
        %v2380 = vpop.f32.mrf.mxu0
        %v2381 = vadd.f32 0.0, %v2380
        %2382 = vmatmul.f32.gmra.mxu0 %v2297
        %v2383 = vpop.f32.mrf.mxu0
        %v2384 = vadd.f32 0.0, %v2383
        %2385 = vmatmul.f32.gmra.mxu0 %v2298
        %v2386 = vpop.f32.mrf.mxu0
        %v2387 = vadd.f32 0.0, %v2386
        %2388 = vmatmul.f32.gmra.mxu0 %v2299
        %v2389 = vpop.f32.mrf.mxu0
        %v2390 = vadd.f32 0.0, %v2389
        %2391 = vmatmul.f32.gmra.mxu0 %v2300
        %v2392 = vpop.f32.mrf.mxu0
        %v2393 = vadd.f32 0.0, %v2392
        %2394 = vmatmul.f32.gmra.mxu0 %v2301
        %v2395 = vpop.f32.mrf.mxu0
        %v2396 = vadd.f32 0.0, %v2395
        %2397 = vmatmul.f32.gmra.mxu0 %v2302
        %v2398 = vpop.f32.mrf.mxu0
        %v2399 = vadd.f32 0.0, %v2398
        %2400 = vmatmul.f32.gmra.mxu0 %v2303
        %v2401 = vpop.f32.mrf.mxu0
        %v2402 = vadd.f32 0.0, %v2401
        %2403 = vmatmul.f32.gmra.mxu0 %v2304
        %v2404 = vpop.f32.mrf.mxu0
        %v2405 = vadd.f32 0.0, %v2404
        %2406 = vmatmul.f32.gmra.mxu0 %v2305
        %v2407 = vpop.f32.mrf.mxu0
        %v2408 = vadd.f32 0.0, %v2407
        %2409 = vmatmul.f32.gmra.mxu0 %v2306
        %v2410 = vpop.f32.mrf.mxu0
        %v2411 = vadd.f32 0.0, %v2410
        %2412 = vmatmul.f32.gmra.mxu0 %v2307
        %v2413 = vpop.f32.mrf.mxu0
        %v2414 = vadd.f32 0.0, %v2413
        %2415 = vmatmul.f32.gmra.mxu0 %v2308
        %v2416 = vpop.f32.mrf.mxu0
        %v2417 = vadd.f32 0.0, %v2416
        %2418 = vmatmul.f32.gmra.mxu0 %v2309
        %v2419 = vpop.f32.mrf.mxu0
        %v2420 = vadd.f32 0.0, %v2419
        %2421 = vmatmul.f32.gmra.mxu0 %v2310
        %v2422 = vpop.f32.mrf.mxu0
        %v2423 = vadd.f32 0.0, %v2422
        %2424 = vmatmul.f32.gmra.mxu0 %v2311
        %v2425 = vpop.f32.mrf.mxu0
        %v2426 = vadd.f32 0.0, %v2425
        %2427 = vmatmul.f32.gmra.mxu0 %v2312
        %v2428 = vpop.f32.mrf.mxu0
        %v2429 = vadd.f32 0.0, %v2428
        %2430 = vmatmul.f32.gmra.mxu0 %v2313
        %v2431 = vpop.f32.mrf.mxu0
        %v2432 = vadd.f32 0.0, %v2431
        %2433 = vmatmul.f32.gmra.mxu0 %v2314
        %v2434 = vpop.f32.mrf.mxu0
        %v2435 = vadd.f32 0.0, %v2434
        %2436 = vmatmul.f32.gmra.mxu0 %v2315
        %v2437 = vpop.f32.mrf.mxu0
        %v2438 = vadd.f32 0.0, %v2437
        %2439 = vmatmul.f32.gmra.mxu0 %v2316
        %v2440 = vpop.f32.mrf.mxu0
        %v2441 = vadd.f32 0.0, %v2440
        %2442 = vmatmul.f32.gmra.mxu0 %v2317
        %v2443 = vpop.f32.mrf.mxu0
        %v2444 = vadd.f32 0.0, %v2443
        %2445 = vmatmul.f32.gmra.mxu0 %v2318
        %v2446 = vpop.f32.mrf.mxu0
        %v2447 = vadd.f32 0.0, %v2446
        %2448 = vdwg.mxu0
        %v2449 = vadd.f32 %v2192, %v2354
        %v2450 = vadd.f32 %v2195, %v2357
        %v2451 = vadd.f32 %v2198, %v2360
        %v2452 = vadd.f32 %v2201, %v2363
        %v2453 = vadd.f32 %v2204, %v2366
        %v2454 = vadd.f32 %v2207, %v2369
        %v2455 = vadd.f32 %v2210, %v2372
        %v2456 = vadd.f32 %v2213, %v2375
        %v2457 = vadd.f32 %v2216, %v2378
        %v2458 = vadd.f32 %v2219, %v2381
        %v2459 = vadd.f32 %v2222, %v2384
        %v2460 = vadd.f32 %v2225, %v2387
        %v2461 = vadd.f32 %v2228, %v2390
        %v2462 = vadd.f32 %v2231, %v2393
        %v2463 = vadd.f32 %v2234, %v2396
        %v2464 = vadd.f32 %v2237, %v2399
        %v2465 = vadd.f32 %v2240, %v2402
        %v2466 = vadd.f32 %v2243, %v2405
        %v2467 = vadd.f32 %v2246, %v2408
        %v2468 = vadd.f32 %v2249, %v2411
        %v2469 = vadd.f32 %v2252, %v2414
        %v2470 = vadd.f32 %v2255, %v2417
        %v2471 = vadd.f32 %v2258, %v2420
        %v2472 = vadd.f32 %v2261, %v2423
        %v2473 = vadd.f32 %v2264, %v2426
        %v2474 = vadd.f32 %v2267, %v2429
        %v2475 = vadd.f32 %v2270, %v2432
        %v2476 = vadd.f32 %v2273, %v2435
        %v2477 = vadd.f32 %v2276, %v2438
        %v2478 = vadd.f32 %v2279, %v2441
        %v2479 = vadd.f32 %v2282, %v2444
        %v2480 = vadd.f32 %v2285, %v2447
        %v2481 = vld [vmem:[%s1753 + $0xc] sm:$0xff]
        %v2482 = vld [vmem:[%s1753 + $0x14] sm:$0xff]
        %v2483 = vld [vmem:[%s1753 + $0x44] sm:$0xff]
        %v2484 = vld [vmem:[%s1753 + $0x4c] sm:$0xff]
        %v2485 = vld [vmem:[%s1753 + $0x7c] sm:$0xff]
        %v2486 = vld [vmem:[%s1753 + $0x84] sm:$0xff]
        %v2487 = vld [vmem:[%s1753 + $0xb4] sm:$0xff]
        %v2488 = vld [vmem:[%s1753 + $0xbc] sm:$0xff]
        %v2489 = vld [vmem:[%s1753 + $0xec] sm:$0xff]
        %v2490 = vld [vmem:[%s1753 + $0xf4] sm:$0xff]
        %v2491 = vld [vmem:[%s1753 + $0x124] sm:$0xff]
        %v2492 = vld [vmem:[%s1753 + $0x12c] sm:$0xff]
        %v2493 = vld [vmem:[%s1753 + $0x15c] sm:$0xff]
        %v2494 = vld [vmem:[%s1753 + $0x164] sm:$0xff]
        %v2495 = vld [vmem:[%s1753 + $0x194] sm:$0xff]
        %v2496 = vld [vmem:[%s1753 + $0x19c] sm:$0xff]
        %v2497 = vld [vmem:[%s1753 + $0x1cc] sm:$0xff]
        %v2498 = vld [vmem:[%s1753 + $0x1d4] sm:$0xff]
        %v2499 = vld [vmem:[%s1753 + $0x204] sm:$0xff]
        %v2500 = vld [vmem:[%s1753 + $0x20c] sm:$0xff]
        %v2501 = vld [vmem:[%s1753 + $0x23c] sm:$0xff]
        %v2502 = vld [vmem:[%s1753 + $0x244] sm:$0xff]
        %v2503 = vld [vmem:[%s1753 + $0x274] sm:$0xff]
        %v2504 = vld [vmem:[%s1753 + $0x27c] sm:$0xff]
        %v2505 = vld [vmem:[%s1753 + $0x2ac] sm:$0xff]
        %v2506 = vld [vmem:[%s1753 + $0x2b4] sm:$0xff]
        %v2507 = vld [vmem:[%s1753 + $0x2e4] sm:$0xff]
        %v2508 = vld [vmem:[%s1753 + $0x2ec] sm:$0xff]
        %v2509 = vld [vmem:[%s1753 + $0x31c] sm:$0xff]
        %v2510 = vld [vmem:[%s1753 + $0x324] sm:$0xff]
        %v2511 = vld [vmem:[%s1753 + $0x354] sm:$0xff]
        %v2512 = vld [vmem:[%s1753 + $0x35c] sm:$0xff]
        %s2513 = scalar_lea.vmem %s3, 384
        %v2514 = vld [vmem:[%s2513] sm:$0xff]
        %v2515 = vld [vmem:[%s2513 + $0x8] sm:$0xff]
        %v2516 = vld [vmem:[%s2513 + $0x10] sm:$0xff]
        %v2517 = vld [vmem:[%s2513 + $0x18] sm:$0xff]
        %v2518 = vld [vmem:[%s2513 + $0x20] sm:$0xff]
        %v2519 = vld [vmem:[%s2513 + $0x28] sm:$0xff]
        %v2520 = vld [vmem:[%s2513 + $0x30] sm:$0xff]
        %v2521 = vld [vmem:[%s2513 + $0x38] sm:$0xff]
        %v2522 = vld [vmem:[%s2513 + $0x40] sm:$0xff]
        %v2523 = vld [vmem:[%s2513 + $0x48] sm:$0xff]
        %v2524 = vld [vmem:[%s2513 + $0x50] sm:$0xff]
        %v2525 = vld [vmem:[%s2513 + $0x58] sm:$0xff]
        %v2526 = vld [vmem:[%s2513 + $0x60] sm:$0xff]
        %v2527 = vld [vmem:[%s2513 + $0x68] sm:$0xff]
        %v2528 = vld [vmem:[%s2513 + $0x70] sm:$0xff]
        %v2529 = vld [vmem:[%s2513 + $0x78] sm:$0xff]
        %2530 = vmatpush.msra.mxu0 %v2529
        %2531 = vmatpush.msra.mxu0 %v2528
        %2532 = vmatpush.msra.mxu0 %v2527
        %2533 = vmatpush.msra.mxu0 %v2526
        %2534 = vmatpush.msra.mxu0 %v2525
        %2535 = vmatpush.msra.mxu0 %v2524
        %2536 = vmatpush.msra.mxu0 %v2523
        %2537 = vmatpush.msra.mxu0 %v2522
        %2538 = vmatpush.msra.mxu0 %v2521
        %2539 = vmatpush.msra.mxu0 %v2520
        %2540 = vmatpush.msra.mxu0 %v2519
        %2541 = vmatpush.msra.mxu0 %v2518
        %2542 = vmatpush.msra.mxu0 %v2517
        %2543 = vmatpush.msra.mxu0 %v2516
        %2544 = vmatpush.msra.mxu0 %v2515
        %2545 = vmatpush.msra.mxu0 %v2514
        %2546 = vmatmul.f32.gmra.mxu0 %v2481
        %v2547 = vpop.f32.mrf.mxu0
        %v2548 = vadd.f32 0.0, %v2547
        %2549 = vmatmul.f32.gmra.mxu0 %v2482
        %v2550 = vpop.f32.mrf.mxu0
        %v2551 = vadd.f32 0.0, %v2550
        %2552 = vmatmul.f32.gmra.mxu0 %v2483
        %v2553 = vpop.f32.mrf.mxu0
        %v2554 = vadd.f32 0.0, %v2553
        %2555 = vmatmul.f32.gmra.mxu0 %v2484
        %v2556 = vpop.f32.mrf.mxu0
        %v2557 = vadd.f32 0.0, %v2556
        %2558 = vmatmul.f32.gmra.mxu0 %v2485
        %v2559 = vpop.f32.mrf.mxu0
        %v2560 = vadd.f32 0.0, %v2559
        %2561 = vmatmul.f32.gmra.mxu0 %v2486
        %v2562 = vpop.f32.mrf.mxu0
        %v2563 = vadd.f32 0.0, %v2562
        %2564 = vmatmul.f32.gmra.mxu0 %v2487
        %v2565 = vpop.f32.mrf.mxu0
        %v2566 = vadd.f32 0.0, %v2565
        %2567 = vmatmul.f32.gmra.mxu0 %v2488
        %v2568 = vpop.f32.mrf.mxu0
        %v2569 = vadd.f32 0.0, %v2568
        %2570 = vmatmul.f32.gmra.mxu0 %v2489
        %v2571 = vpop.f32.mrf.mxu0
        %v2572 = vadd.f32 0.0, %v2571
        %2573 = vmatmul.f32.gmra.mxu0 %v2490
        %v2574 = vpop.f32.mrf.mxu0
        %v2575 = vadd.f32 0.0, %v2574
        %2576 = vmatmul.f32.gmra.mxu0 %v2491
        %v2577 = vpop.f32.mrf.mxu0
        %v2578 = vadd.f32 0.0, %v2577
        %2579 = vmatmul.f32.gmra.mxu0 %v2492
        %v2580 = vpop.f32.mrf.mxu0
        %v2581 = vadd.f32 0.0, %v2580
        %2582 = vmatmul.f32.gmra.mxu0 %v2493
        %v2583 = vpop.f32.mrf.mxu0
        %v2584 = vadd.f32 0.0, %v2583
        %2585 = vmatmul.f32.gmra.mxu0 %v2494
        %v2586 = vpop.f32.mrf.mxu0
        %v2587 = vadd.f32 0.0, %v2586
        %2588 = vmatmul.f32.gmra.mxu0 %v2495
        %v2589 = vpop.f32.mrf.mxu0
        %v2590 = vadd.f32 0.0, %v2589
        %2591 = vmatmul.f32.gmra.mxu0 %v2496
        %v2592 = vpop.f32.mrf.mxu0
        %v2593 = vadd.f32 0.0, %v2592
        %2594 = vmatmul.f32.gmra.mxu0 %v2497
        %v2595 = vpop.f32.mrf.mxu0
        %v2596 = vadd.f32 0.0, %v2595
        %2597 = vmatmul.f32.gmra.mxu0 %v2498
        %v2598 = vpop.f32.mrf.mxu0
        %v2599 = vadd.f32 0.0, %v2598
        %2600 = vmatmul.f32.gmra.mxu0 %v2499
        %v2601 = vpop.f32.mrf.mxu0
        %v2602 = vadd.f32 0.0, %v2601
        %2603 = vmatmul.f32.gmra.mxu0 %v2500
        %v2604 = vpop.f32.mrf.mxu0
        %v2605 = vadd.f32 0.0, %v2604
        %2606 = vmatmul.f32.gmra.mxu0 %v2501
        %v2607 = vpop.f32.mrf.mxu0
        %v2608 = vadd.f32 0.0, %v2607
        %2609 = vmatmul.f32.gmra.mxu0 %v2502
        %v2610 = vpop.f32.mrf.mxu0
        %v2611 = vadd.f32 0.0, %v2610
        %2612 = vmatmul.f32.gmra.mxu0 %v2503
        %v2613 = vpop.f32.mrf.mxu0
        %v2614 = vadd.f32 0.0, %v2613
        %2615 = vmatmul.f32.gmra.mxu0 %v2504
        %v2616 = vpop.f32.mrf.mxu0
        %v2617 = vadd.f32 0.0, %v2616
        %2618 = vmatmul.f32.gmra.mxu0 %v2505
        %v2619 = vpop.f32.mrf.mxu0
        %v2620 = vadd.f32 0.0, %v2619
        %2621 = vmatmul.f32.gmra.mxu0 %v2506
        %v2622 = vpop.f32.mrf.mxu0
        %v2623 = vadd.f32 0.0, %v2622
        %2624 = vmatmul.f32.gmra.mxu0 %v2507
        %v2625 = vpop.f32.mrf.mxu0
        %v2626 = vadd.f32 0.0, %v2625
        %2627 = vmatmul.f32.gmra.mxu0 %v2508
        %v2628 = vpop.f32.mrf.mxu0
        %v2629 = vadd.f32 0.0, %v2628
        %2630 = vmatmul.f32.gmra.mxu0 %v2509
        %v2631 = vpop.f32.mrf.mxu0
        %v2632 = vadd.f32 0.0, %v2631
        %2633 = vmatmul.f32.gmra.mxu0 %v2510
        %v2634 = vpop.f32.mrf.mxu0
        %v2635 = vadd.f32 0.0, %v2634
        %2636 = vmatmul.f32.gmra.mxu0 %v2511
        %v2637 = vpop.f32.mrf.mxu0
        %v2638 = vadd.f32 0.0, %v2637
        %2639 = vmatmul.f32.gmra.mxu0 %v2512
        %v2640 = vpop.f32.mrf.mxu0
        %v2641 = vadd.f32 0.0, %v2640
        %2642 = vdwg.mxu0
        %v2643 = vadd.f32 %v2449, %v2548
        %v2644 = vadd.f32 %v2450, %v2551
        %v2645 = vadd.f32 %v2451, %v2554
        %v2646 = vadd.f32 %v2452, %v2557
        %v2647 = vadd.f32 %v2453, %v2560
        %v2648 = vadd.f32 %v2454, %v2563
        %v2649 = vadd.f32 %v2455, %v2566
        %v2650 = vadd.f32 %v2456, %v2569
        %v2651 = vadd.f32 %v2457, %v2572
        %v2652 = vadd.f32 %v2458, %v2575
        %v2653 = vadd.f32 %v2459, %v2578
        %v2654 = vadd.f32 %v2460, %v2581
        %v2655 = vadd.f32 %v2461, %v2584
        %v2656 = vadd.f32 %v2462, %v2587
        %v2657 = vadd.f32 %v2463, %v2590
        %v2658 = vadd.f32 %v2464, %v2593
        %v2659 = vadd.f32 %v2465, %v2596
        %v2660 = vadd.f32 %v2466, %v2599
        %v2661 = vadd.f32 %v2467, %v2602
        %v2662 = vadd.f32 %v2468, %v2605
        %v2663 = vadd.f32 %v2469, %v2608
        %v2664 = vadd.f32 %v2470, %v2611
        %v2665 = vadd.f32 %v2471, %v2614
        %v2666 = vadd.f32 %v2472, %v2617
        %v2667 = vadd.f32 %v2473, %v2620
        %v2668 = vadd.f32 %v2474, %v2623
        %v2669 = vadd.f32 %v2475, %v2626
        %v2670 = vadd.f32 %v2476, %v2629
        %v2671 = vadd.f32 %v2477, %v2632
        %v2672 = vadd.f32 %v2478, %v2635
        %v2673 = vadd.f32 %v2479, %v2638
        %v2674 = vadd.f32 %v2480, %v2641
        %s2675 = scalar_lea.vmem %s3, 512
        %v2676 = vld [vmem:[%s2675] sm:$0xff]
        %v2677 = vld [vmem:[%s2675 + $0x8] sm:$0xff]
        %v2678 = vld [vmem:[%s2675 + $0x10] sm:$0xff]
        %v2679 = vld [vmem:[%s2675 + $0x18] sm:$0xff]
        %v2680 = vld [vmem:[%s2675 + $0x20] sm:$0xff]
        %v2681 = vld [vmem:[%s2675 + $0x28] sm:$0xff]
        %v2682 = vld [vmem:[%s2675 + $0x30] sm:$0xff]
        %v2683 = vld [vmem:[%s2675 + $0x38] sm:$0xff]
        %v2684 = vld [vmem:[%s2675 + $0x40] sm:$0xff]
        %v2685 = vld [vmem:[%s2675 + $0x48] sm:$0xff]
        %v2686 = vld [vmem:[%s2675 + $0x50] sm:$0xff]
        %v2687 = vld [vmem:[%s2675 + $0x58] sm:$0xff]
        %v2688 = vld [vmem:[%s2675 + $0x60] sm:$0xff]
        %v2689 = vld [vmem:[%s2675 + $0x68] sm:$0xff]
        %v2690 = vld [vmem:[%s2675 + $0x70] sm:$0xff]
        %v2691 = vld [vmem:[%s2675 + $0x78] sm:$0xff]
        %2692 = vmatpush.msra.mxu0 %v2691
        %2693 = vmatpush.msra.mxu0 %v2690
        %2694 = vmatpush.msra.mxu0 %v2689
        %2695 = vmatpush.msra.mxu0 %v2688
        %2696 = vmatpush.msra.mxu0 %v2687
        %2697 = vmatpush.msra.mxu0 %v2686
        %2698 = vmatpush.msra.mxu0 %v2685
        %2699 = vmatpush.msra.mxu0 %v2684
        %2700 = vmatpush.msra.mxu0 %v2683
        %2701 = vmatpush.msra.mxu0 %v2682
        %2702 = vmatpush.msra.mxu0 %v2681
        %2703 = vmatpush.msra.mxu0 %v2680
        %2704 = vmatpush.msra.mxu0 %v2679
        %2705 = vmatpush.msra.mxu0 %v2678
        %2706 = vmatpush.msra.mxu0 %v2677
        %2707 = vmatpush.msra.mxu0 %v2676
        %2708 = vmatmul.f32.gmra.mxu0 %v1754
        %v2709 = vpop.f32.mrf.mxu0
        %v2710 = vadd.f32 0.0, %v2709
        %2711 = vmatmul.f32.gmra.mxu0 %v1755
        %v2712 = vpop.f32.mrf.mxu0
        %v2713 = vadd.f32 0.0, %v2712
        %2714 = vmatmul.f32.gmra.mxu0 %v1756
        %v2715 = vpop.f32.mrf.mxu0
        %v2716 = vadd.f32 0.0, %v2715
        %2717 = vmatmul.f32.gmra.mxu0 %v1757
        %v2718 = vpop.f32.mrf.mxu0
        %v2719 = vadd.f32 0.0, %v2718
        %2720 = vmatmul.f32.gmra.mxu0 %v1758
        %v2721 = vpop.f32.mrf.mxu0
        %v2722 = vadd.f32 0.0, %v2721
        %2723 = vmatmul.f32.gmra.mxu0 %v1759
        %v2724 = vpop.f32.mrf.mxu0
        %v2725 = vadd.f32 0.0, %v2724
        %2726 = vmatmul.f32.gmra.mxu0 %v1760
        %v2727 = vpop.f32.mrf.mxu0
        %v2728 = vadd.f32 0.0, %v2727
        %2729 = vmatmul.f32.gmra.mxu0 %v1761
        %v2730 = vpop.f32.mrf.mxu0
        %v2731 = vadd.f32 0.0, %v2730
        %2732 = vmatmul.f32.gmra.mxu0 %v1762
        %v2733 = vpop.f32.mrf.mxu0
        %v2734 = vadd.f32 0.0, %v2733
        %2735 = vmatmul.f32.gmra.mxu0 %v1763
        %v2736 = vpop.f32.mrf.mxu0
        %v2737 = vadd.f32 0.0, %v2736
        %2738 = vmatmul.f32.gmra.mxu0 %v1764
        %v2739 = vpop.f32.mrf.mxu0
        %v2740 = vadd.f32 0.0, %v2739
        %2741 = vmatmul.f32.gmra.mxu0 %v1765
        %v2742 = vpop.f32.mrf.mxu0
        %v2743 = vadd.f32 0.0, %v2742
        %2744 = vmatmul.f32.gmra.mxu0 %v1766
        %v2745 = vpop.f32.mrf.mxu0
        %v2746 = vadd.f32 0.0, %v2745
        %2747 = vmatmul.f32.gmra.mxu0 %v1767
        %v2748 = vpop.f32.mrf.mxu0
        %v2749 = vadd.f32 0.0, %v2748
        %2750 = vmatmul.f32.gmra.mxu0 %v1768
        %v2751 = vpop.f32.mrf.mxu0
        %v2752 = vadd.f32 0.0, %v2751
        %2753 = vmatmul.f32.gmra.mxu0 %v1769
        %v2754 = vpop.f32.mrf.mxu0
        %v2755 = vadd.f32 0.0, %v2754
        %2756 = vmatmul.f32.gmra.mxu0 %v1770
        %v2757 = vpop.f32.mrf.mxu0
        %v2758 = vadd.f32 0.0, %v2757
        %2759 = vmatmul.f32.gmra.mxu0 %v1771
        %v2760 = vpop.f32.mrf.mxu0
        %v2761 = vadd.f32 0.0, %v2760
        %2762 = vmatmul.f32.gmra.mxu0 %v1772
        %v2763 = vpop.f32.mrf.mxu0
        %v2764 = vadd.f32 0.0, %v2763
        %2765 = vmatmul.f32.gmra.mxu0 %v1773
        %v2766 = vpop.f32.mrf.mxu0
        %v2767 = vadd.f32 0.0, %v2766
        %2768 = vmatmul.f32.gmra.mxu0 %v1774
        %v2769 = vpop.f32.mrf.mxu0
        %v2770 = vadd.f32 0.0, %v2769
        %2771 = vmatmul.f32.gmra.mxu0 %v1775
        %v2772 = vpop.f32.mrf.mxu0
        %v2773 = vadd.f32 0.0, %v2772
        %2774 = vmatmul.f32.gmra.mxu0 %v1776
        %v2775 = vpop.f32.mrf.mxu0
        %v2776 = vadd.f32 0.0, %v2775
        %2777 = vmatmul.f32.gmra.mxu0 %v1777
        %v2778 = vpop.f32.mrf.mxu0
        %v2779 = vadd.f32 0.0, %v2778
        %2780 = vmatmul.f32.gmra.mxu0 %v1778
        %v2781 = vpop.f32.mrf.mxu0
        %v2782 = vadd.f32 0.0, %v2781
        %2783 = vmatmul.f32.gmra.mxu0 %v1779
        %v2784 = vpop.f32.mrf.mxu0
        %v2785 = vadd.f32 0.0, %v2784
        %2786 = vmatmul.f32.gmra.mxu0 %v1780
        %v2787 = vpop.f32.mrf.mxu0
        %v2788 = vadd.f32 0.0, %v2787
        %2789 = vmatmul.f32.gmra.mxu0 %v1781
        %v2790 = vpop.f32.mrf.mxu0
        %v2791 = vadd.f32 0.0, %v2790
        %2792 = vmatmul.f32.gmra.mxu0 %v1782
        %v2793 = vpop.f32.mrf.mxu0
        %v2794 = vadd.f32 0.0, %v2793
        %2795 = vmatmul.f32.gmra.mxu0 %v1783
        %v2796 = vpop.f32.mrf.mxu0
        %v2797 = vadd.f32 0.0, %v2796
        %2798 = vmatmul.f32.gmra.mxu0 %v1784
        %v2799 = vpop.f32.mrf.mxu0
        %v2800 = vadd.f32 0.0, %v2799
        %2801 = vmatmul.f32.gmra.mxu0 %v1785
        %v2802 = vpop.f32.mrf.mxu0
        %v2803 = vadd.f32 0.0, %v2802
        %2804 = vdwg.mxu0
        %v2805 = vadd.f32 %v2643, %v2710
        %v2806 = vadd.f32 %v2644, %v2713
        %v2807 = vadd.f32 %v2645, %v2716
        %v2808 = vadd.f32 %v2646, %v2719
        %v2809 = vadd.f32 %v2647, %v2722
        %v2810 = vadd.f32 %v2648, %v2725
        %v2811 = vadd.f32 %v2649, %v2728
        %v2812 = vadd.f32 %v2650, %v2731
        %v2813 = vadd.f32 %v2651, %v2734
        %v2814 = vadd.f32 %v2652, %v2737
        %v2815 = vadd.f32 %v2653, %v2740
        %v2816 = vadd.f32 %v2654, %v2743
        %v2817 = vadd.f32 %v2655, %v2746
        %v2818 = vadd.f32 %v2656, %v2749
        %v2819 = vadd.f32 %v2657, %v2752
        %v2820 = vadd.f32 %v2658, %v2755
        %v2821 = vadd.f32 %v2659, %v2758
        %v2822 = vadd.f32 %v2660, %v2761
        %v2823 = vadd.f32 %v2661, %v2764
        %v2824 = vadd.f32 %v2662, %v2767
        %v2825 = vadd.f32 %v2663, %v2770
        %v2826 = vadd.f32 %v2664, %v2773
        %v2827 = vadd.f32 %v2665, %v2776
        %v2828 = vadd.f32 %v2666, %v2779
        %v2829 = vadd.f32 %v2667, %v2782
        %v2830 = vadd.f32 %v2668, %v2785
        %v2831 = vadd.f32 %v2669, %v2788
        %v2832 = vadd.f32 %v2670, %v2791
        %v2833 = vadd.f32 %v2671, %v2794
        %v2834 = vadd.f32 %v2672, %v2797
        %v2835 = vadd.f32 %v2673, %v2800
        %v2836 = vadd.f32 %v2674, %v2803
        %v2837 = vld [vmem:[%s1753 + $0x18] sm:$0xff]
        %v2838 = vld [vmem:[%s1753 + $0x20] sm:$0xff]
        %v2839 = vld [vmem:[%s1753 + $0x50] sm:$0xff]
        %v2840 = vld [vmem:[%s1753 + $0x58] sm:$0xff]
        %v2841 = vld [vmem:[%s1753 + $0x88] sm:$0xff]
        %v2842 = vld [vmem:[%s1753 + $0x90] sm:$0xff]
        %v2843 = vld [vmem:[%s1753 + $0xc0] sm:$0xff]
        %v2844 = vld [vmem:[%s1753 + $0xc8] sm:$0xff]
        %v2845 = vld [vmem:[%s1753 + $0xf8] sm:$0xff]
        %v2846 = vld [vmem:[%s1753 + $0x100] sm:$0xff]
        %v2847 = vld [vmem:[%s1753 + $0x130] sm:$0xff]
        %v2848 = vld [vmem:[%s1753 + $0x138] sm:$0xff]
        %v2849 = vld [vmem:[%s1753 + $0x168] sm:$0xff]
        %v2850 = vld [vmem:[%s1753 + $0x170] sm:$0xff]
        %v2851 = vld [vmem:[%s1753 + $0x1a0] sm:$0xff]
        %v2852 = vld [vmem:[%s1753 + $0x1a8] sm:$0xff]
        %v2853 = vld [vmem:[%s1753 + $0x1d8] sm:$0xff]
        %v2854 = vld [vmem:[%s1753 + $0x1e0] sm:$0xff]
        %v2855 = vld [vmem:[%s1753 + $0x210] sm:$0xff]
        %v2856 = vld [vmem:[%s1753 + $0x218] sm:$0xff]
        %v2857 = vld [vmem:[%s1753 + $0x248] sm:$0xff]
        %v2858 = vld [vmem:[%s1753 + $0x250] sm:$0xff]
        %v2859 = vld [vmem:[%s1753 + $0x280] sm:$0xff]
        %v2860 = vld [vmem:[%s1753 + $0x288] sm:$0xff]
        %v2861 = vld [vmem:[%s1753 + $0x2b8] sm:$0xff]
        %v2862 = vld [vmem:[%s1753 + $0x2c0] sm:$0xff]
        %v2863 = vld [vmem:[%s1753 + $0x2f0] sm:$0xff]
        %v2864 = vld [vmem:[%s1753 + $0x2f8] sm:$0xff]
        %v2865 = vld [vmem:[%s1753 + $0x328] sm:$0xff]
        %v2866 = vld [vmem:[%s1753 + $0x330] sm:$0xff]
        %v2867 = vld [vmem:[%s1753 + $0x360] sm:$0xff]
        %v2868 = vld [vmem:[%s1753 + $0x368] sm:$0xff]
        %s2869 = scalar_lea.vmem %s3, 640
        %v2870 = vld [vmem:[%s2869] sm:$0xff]
        %v2871 = vld [vmem:[%s2869 + $0x8] sm:$0xff]
        %v2872 = vld [vmem:[%s2869 + $0x10] sm:$0xff]
        %v2873 = vld [vmem:[%s2869 + $0x18] sm:$0xff]
        %v2874 = vld [vmem:[%s2869 + $0x20] sm:$0xff]
        %v2875 = vld [vmem:[%s2869 + $0x28] sm:$0xff]
        %v2876 = vld [vmem:[%s2869 + $0x30] sm:$0xff]
        %v2877 = vld [vmem:[%s2869 + $0x38] sm:$0xff]
        %v2878 = vld [vmem:[%s2869 + $0x40] sm:$0xff]
        %v2879 = vld [vmem:[%s2869 + $0x48] sm:$0xff]
        %v2880 = vld [vmem:[%s2869 + $0x50] sm:$0xff]
        %v2881 = vld [vmem:[%s2869 + $0x58] sm:$0xff]
        %v2882 = vld [vmem:[%s2869 + $0x60] sm:$0xff]
        %v2883 = vld [vmem:[%s2869 + $0x68] sm:$0xff]
        %v2884 = vld [vmem:[%s2869 + $0x70] sm:$0xff]
        %v2885 = vld [vmem:[%s2869 + $0x78] sm:$0xff]
        %2886 = vmatpush.msra.mxu0 %v2885
        %2887 = vmatpush.msra.mxu0 %v2884
        %2888 = vmatpush.msra.mxu0 %v2883
        %2889 = vmatpush.msra.mxu0 %v2882
        %2890 = vmatpush.msra.mxu0 %v2881
        %2891 = vmatpush.msra.mxu0 %v2880
        %2892 = vmatpush.msra.mxu0 %v2879
        %2893 = vmatpush.msra.mxu0 %v2878
        %2894 = vmatpush.msra.mxu0 %v2877
        %2895 = vmatpush.msra.mxu0 %v2876
        %2896 = vmatpush.msra.mxu0 %v2875
        %2897 = vmatpush.msra.mxu0 %v2874
        %2898 = vmatpush.msra.mxu0 %v2873
        %2899 = vmatpush.msra.mxu0 %v2872
        %2900 = vmatpush.msra.mxu0 %v2871
        %2901 = vmatpush.msra.mxu0 %v2870
        %2902 = vmatmul.f32.gmra.mxu0 %v2837
        %v2903 = vpop.f32.mrf.mxu0
        %v2904 = vadd.f32 0.0, %v2903
        %2905 = vmatmul.f32.gmra.mxu0 %v2838
        %v2906 = vpop.f32.mrf.mxu0
        %v2907 = vadd.f32 0.0, %v2906
        %2908 = vmatmul.f32.gmra.mxu0 %v2839
        %v2909 = vpop.f32.mrf.mxu0
        %v2910 = vadd.f32 0.0, %v2909
        %2911 = vmatmul.f32.gmra.mxu0 %v2840
        %v2912 = vpop.f32.mrf.mxu0
        %v2913 = vadd.f32 0.0, %v2912
        %2914 = vmatmul.f32.gmra.mxu0 %v2841
        %v2915 = vpop.f32.mrf.mxu0
        %v2916 = vadd.f32 0.0, %v2915
        %2917 = vmatmul.f32.gmra.mxu0 %v2842
        %v2918 = vpop.f32.mrf.mxu0
        %v2919 = vadd.f32 0.0, %v2918
        %2920 = vmatmul.f32.gmra.mxu0 %v2843
        %v2921 = vpop.f32.mrf.mxu0
        %v2922 = vadd.f32 0.0, %v2921
        %2923 = vmatmul.f32.gmra.mxu0 %v2844
        %v2924 = vpop.f32.mrf.mxu0
        %v2925 = vadd.f32 0.0, %v2924
        %2926 = vmatmul.f32.gmra.mxu0 %v2845
        %v2927 = vpop.f32.mrf.mxu0
        %v2928 = vadd.f32 0.0, %v2927
        %2929 = vmatmul.f32.gmra.mxu0 %v2846
        %v2930 = vpop.f32.mrf.mxu0
        %v2931 = vadd.f32 0.0, %v2930
        %2932 = vmatmul.f32.gmra.mxu0 %v2847
        %v2933 = vpop.f32.mrf.mxu0
        %v2934 = vadd.f32 0.0, %v2933
        %2935 = vmatmul.f32.gmra.mxu0 %v2848
        %v2936 = vpop.f32.mrf.mxu0
        %v2937 = vadd.f32 0.0, %v2936
        %2938 = vmatmul.f32.gmra.mxu0 %v2849
        %v2939 = vpop.f32.mrf.mxu0
        %v2940 = vadd.f32 0.0, %v2939
        %2941 = vmatmul.f32.gmra.mxu0 %v2850
        %v2942 = vpop.f32.mrf.mxu0
        %v2943 = vadd.f32 0.0, %v2942
        %2944 = vmatmul.f32.gmra.mxu0 %v2851
        %v2945 = vpop.f32.mrf.mxu0
        %v2946 = vadd.f32 0.0, %v2945
        %2947 = vmatmul.f32.gmra.mxu0 %v2852
        %v2948 = vpop.f32.mrf.mxu0
        %v2949 = vadd.f32 0.0, %v2948
        %2950 = vmatmul.f32.gmra.mxu0 %v2853
        %v2951 = vpop.f32.mrf.mxu0
        %v2952 = vadd.f32 0.0, %v2951
        %2953 = vmatmul.f32.gmra.mxu0 %v2854
        %v2954 = vpop.f32.mrf.mxu0
        %v2955 = vadd.f32 0.0, %v2954
        %2956 = vmatmul.f32.gmra.mxu0 %v2855
        %v2957 = vpop.f32.mrf.mxu0
        %v2958 = vadd.f32 0.0, %v2957
        %2959 = vmatmul.f32.gmra.mxu0 %v2856
        %v2960 = vpop.f32.mrf.mxu0
        %v2961 = vadd.f32 0.0, %v2960
        %2962 = vmatmul.f32.gmra.mxu0 %v2857
        %v2963 = vpop.f32.mrf.mxu0
        %v2964 = vadd.f32 0.0, %v2963
        %2965 = vmatmul.f32.gmra.mxu0 %v2858
        %v2966 = vpop.f32.mrf.mxu0
        %v2967 = vadd.f32 0.0, %v2966
        %2968 = vmatmul.f32.gmra.mxu0 %v2859
        %v2969 = vpop.f32.mrf.mxu0
        %v2970 = vadd.f32 0.0, %v2969
        %2971 = vmatmul.f32.gmra.mxu0 %v2860
        %v2972 = vpop.f32.mrf.mxu0
        %v2973 = vadd.f32 0.0, %v2972
        %2974 = vmatmul.f32.gmra.mxu0 %v2861
        %v2975 = vpop.f32.mrf.mxu0
        %v2976 = vadd.f32 0.0, %v2975
        %2977 = vmatmul.f32.gmra.mxu0 %v2862
        %v2978 = vpop.f32.mrf.mxu0
        %v2979 = vadd.f32 0.0, %v2978
        %2980 = vmatmul.f32.gmra.mxu0 %v2863
        %v2981 = vpop.f32.mrf.mxu0
        %v2982 = vadd.f32 0.0, %v2981
        %2983 = vmatmul.f32.gmra.mxu0 %v2864
        %v2984 = vpop.f32.mrf.mxu0
        %v2985 = vadd.f32 0.0, %v2984
        %2986 = vmatmul.f32.gmra.mxu0 %v2865
        %v2987 = vpop.f32.mrf.mxu0
        %v2988 = vadd.f32 0.0, %v2987
        %2989 = vmatmul.f32.gmra.mxu0 %v2866
        %v2990 = vpop.f32.mrf.mxu0
        %v2991 = vadd.f32 0.0, %v2990
        %2992 = vmatmul.f32.gmra.mxu0 %v2867
        %v2993 = vpop.f32.mrf.mxu0
        %v2994 = vadd.f32 0.0, %v2993
        %2995 = vmatmul.f32.gmra.mxu0 %v2868
        %v2996 = vpop.f32.mrf.mxu0
        %v2997 = vadd.f32 0.0, %v2996
        %2998 = vdwg.mxu0
        %v2999 = vadd.f32 %v2805, %v2904
        %v3000 = vadd.f32 %v2806, %v2907
        %v3001 = vadd.f32 %v2807, %v2910
        %v3002 = vadd.f32 %v2808, %v2913
        %v3003 = vadd.f32 %v2809, %v2916
        %v3004 = vadd.f32 %v2810, %v2919
        %v3005 = vadd.f32 %v2811, %v2922
        %v3006 = vadd.f32 %v2812, %v2925
        %v3007 = vadd.f32 %v2813, %v2928
        %v3008 = vadd.f32 %v2814, %v2931
        %v3009 = vadd.f32 %v2815, %v2934
        %v3010 = vadd.f32 %v2816, %v2937
        %v3011 = vadd.f32 %v2817, %v2940
        %v3012 = vadd.f32 %v2818, %v2943
        %v3013 = vadd.f32 %v2819, %v2946
        %v3014 = vadd.f32 %v2820, %v2949
        %v3015 = vadd.f32 %v2821, %v2952
        %v3016 = vadd.f32 %v2822, %v2955
        %v3017 = vadd.f32 %v2823, %v2958
        %v3018 = vadd.f32 %v2824, %v2961
        %v3019 = vadd.f32 %v2825, %v2964
        %v3020 = vadd.f32 %v2826, %v2967
        %v3021 = vadd.f32 %v2827, %v2970
        %v3022 = vadd.f32 %v2828, %v2973
        %v3023 = vadd.f32 %v2829, %v2976
        %v3024 = vadd.f32 %v2830, %v2979
        %v3025 = vadd.f32 %v2831, %v2982
        %v3026 = vadd.f32 %v2832, %v2985
        %v3027 = vadd.f32 %v2833, %v2988
        %v3028 = vadd.f32 %v2834, %v2991
        %v3029 = vadd.f32 %v2835, %v2994
        %v3030 = vadd.f32 %v2836, %v2997
        %s3031 = scalar_lea.vmem %s979, 1344 [#allocation2]
        %v3032 = vld [vmem:[%s3031 + $0xc] sm:$0xff]
        %v3033 = vld [vmem:[%s3031 + $0x14] sm:$0xff]
        %v3034 = vld [vmem:[%s3031 + $0x44] sm:$0xff]
        %v3035 = vld [vmem:[%s3031 + $0x4c] sm:$0xff]
        %v3036 = vld [vmem:[%s3031 + $0x7c] sm:$0xff]
        %v3037 = vld [vmem:[%s3031 + $0x84] sm:$0xff]
        %v3038 = vld [vmem:[%s3031 + $0xb4] sm:$0xff]
        %v3039 = vld [vmem:[%s3031 + $0xbc] sm:$0xff]
        %v3040 = vld [vmem:[%s3031 + $0xec] sm:$0xff]
        %v3041 = vld [vmem:[%s3031 + $0xf4] sm:$0xff]
        %v3042 = vld [vmem:[%s3031 + $0x124] sm:$0xff]
        %v3043 = vld [vmem:[%s3031 + $0x12c] sm:$0xff]
        %v3044 = vld [vmem:[%s3031 + $0x15c] sm:$0xff]
        %v3045 = vld [vmem:[%s3031 + $0x164] sm:$0xff]
        %v3046 = vld [vmem:[%s3031 + $0x194] sm:$0xff]
        %v3047 = vld [vmem:[%s3031 + $0x19c] sm:$0xff]
        %v3048 = vld [vmem:[%s3031 + $0x1cc] sm:$0xff]
        %v3049 = vld [vmem:[%s3031 + $0x1d4] sm:$0xff]
        %v3050 = vld [vmem:[%s3031 + $0x204] sm:$0xff]
        %v3051 = vld [vmem:[%s3031 + $0x20c] sm:$0xff]
        %v3052 = vld [vmem:[%s3031 + $0x23c] sm:$0xff]
        %v3053 = vld [vmem:[%s3031 + $0x244] sm:$0xff]
        %v3054 = vld [vmem:[%s3031 + $0x274] sm:$0xff]
        %v3055 = vld [vmem:[%s3031 + $0x27c] sm:$0xff]
        %v3056 = vld [vmem:[%s3031 + $0x2ac] sm:$0xff]
        %v3057 = vld [vmem:[%s3031 + $0x2b4] sm:$0xff]
        %v3058 = vld [vmem:[%s3031 + $0x2e4] sm:$0xff]
        %v3059 = vld [vmem:[%s3031 + $0x2ec] sm:$0xff]
        %v3060 = vld [vmem:[%s3031 + $0x31c] sm:$0xff]
        %v3061 = vld [vmem:[%s3031 + $0x324] sm:$0xff]
        %v3062 = vld [vmem:[%s3031 + $0x354] sm:$0xff]
        %v3063 = vld [vmem:[%s3031 + $0x35c] sm:$0xff]
        %s3064 = scalar_lea.vmem %s3, 768
        %v3065 = vld [vmem:[%s3064] sm:$0xff]
        %v3066 = vld [vmem:[%s3064 + $0x8] sm:$0xff]
        %v3067 = vld [vmem:[%s3064 + $0x10] sm:$0xff]
        %v3068 = vld [vmem:[%s3064 + $0x18] sm:$0xff]
        %v3069 = vld [vmem:[%s3064 + $0x20] sm:$0xff]
        %v3070 = vld [vmem:[%s3064 + $0x28] sm:$0xff]
        %v3071 = vld [vmem:[%s3064 + $0x30] sm:$0xff]
        %v3072 = vld [vmem:[%s3064 + $0x38] sm:$0xff]
        %v3073 = vld [vmem:[%s3064 + $0x40] sm:$0xff]
        %v3074 = vld [vmem:[%s3064 + $0x48] sm:$0xff]
        %v3075 = vld [vmem:[%s3064 + $0x50] sm:$0xff]
        %v3076 = vld [vmem:[%s3064 + $0x58] sm:$0xff]
        %v3077 = vld [vmem:[%s3064 + $0x60] sm:$0xff]
        %v3078 = vld [vmem:[%s3064 + $0x68] sm:$0xff]
        %v3079 = vld [vmem:[%s3064 + $0x70] sm:$0xff]
        %v3080 = vld [vmem:[%s3064 + $0x78] sm:$0xff]
        %3081 = vmatpush.msra.mxu0 %v3080
        %3082 = vmatpush.msra.mxu0 %v3079
        %3083 = vmatpush.msra.mxu0 %v3078
        %3084 = vmatpush.msra.mxu0 %v3077
        %3085 = vmatpush.msra.mxu0 %v3076
        %3086 = vmatpush.msra.mxu0 %v3075
        %3087 = vmatpush.msra.mxu0 %v3074
        %3088 = vmatpush.msra.mxu0 %v3073
        %3089 = vmatpush.msra.mxu0 %v3072
        %3090 = vmatpush.msra.mxu0 %v3071
        %3091 = vmatpush.msra.mxu0 %v3070
        %3092 = vmatpush.msra.mxu0 %v3069
        %3093 = vmatpush.msra.mxu0 %v3068
        %3094 = vmatpush.msra.mxu0 %v3067
        %3095 = vmatpush.msra.mxu0 %v3066
        %3096 = vmatpush.msra.mxu0 %v3065
        %3097 = vmatmul.f32.gmra.mxu0 %v3032
        %v3098 = vpop.f32.mrf.mxu0
        %v3099 = vadd.f32 0.0, %v3098
        %3100 = vmatmul.f32.gmra.mxu0 %v3033
        %v3101 = vpop.f32.mrf.mxu0
        %v3102 = vadd.f32 0.0, %v3101
        %3103 = vmatmul.f32.gmra.mxu0 %v3034
        %v3104 = vpop.f32.mrf.mxu0
        %v3105 = vadd.f32 0.0, %v3104
        %3106 = vmatmul.f32.gmra.mxu0 %v3035
        %v3107 = vpop.f32.mrf.mxu0
        %v3108 = vadd.f32 0.0, %v3107
        %3109 = vmatmul.f32.gmra.mxu0 %v3036
        %v3110 = vpop.f32.mrf.mxu0
        %v3111 = vadd.f32 0.0, %v3110
        %3112 = vmatmul.f32.gmra.mxu0 %v3037
        %v3113 = vpop.f32.mrf.mxu0
        %v3114 = vadd.f32 0.0, %v3113
        %3115 = vmatmul.f32.gmra.mxu0 %v3038
        %v3116 = vpop.f32.mrf.mxu0
        %v3117 = vadd.f32 0.0, %v3116
        %3118 = vmatmul.f32.gmra.mxu0 %v3039
        %v3119 = vpop.f32.mrf.mxu0
        %v3120 = vadd.f32 0.0, %v3119
        %3121 = vmatmul.f32.gmra.mxu0 %v3040
        %v3122 = vpop.f32.mrf.mxu0
        %v3123 = vadd.f32 0.0, %v3122
        %3124 = vmatmul.f32.gmra.mxu0 %v3041
        %v3125 = vpop.f32.mrf.mxu0
        %v3126 = vadd.f32 0.0, %v3125
        %3127 = vmatmul.f32.gmra.mxu0 %v3042
        %v3128 = vpop.f32.mrf.mxu0
        %v3129 = vadd.f32 0.0, %v3128
        %3130 = vmatmul.f32.gmra.mxu0 %v3043
        %v3131 = vpop.f32.mrf.mxu0
        %v3132 = vadd.f32 0.0, %v3131
        %3133 = vmatmul.f32.gmra.mxu0 %v3044
        %v3134 = vpop.f32.mrf.mxu0
        %v3135 = vadd.f32 0.0, %v3134
        %3136 = vmatmul.f32.gmra.mxu0 %v3045
        %v3137 = vpop.f32.mrf.mxu0
        %v3138 = vadd.f32 0.0, %v3137
        %3139 = vmatmul.f32.gmra.mxu0 %v3046
        %v3140 = vpop.f32.mrf.mxu0
        %v3141 = vadd.f32 0.0, %v3140
        %3142 = vmatmul.f32.gmra.mxu0 %v3047
        %v3143 = vpop.f32.mrf.mxu0
        %v3144 = vadd.f32 0.0, %v3143
        %3145 = vmatmul.f32.gmra.mxu0 %v3048
        %v3146 = vpop.f32.mrf.mxu0
        %v3147 = vadd.f32 0.0, %v3146
        %3148 = vmatmul.f32.gmra.mxu0 %v3049
        %v3149 = vpop.f32.mrf.mxu0
        %v3150 = vadd.f32 0.0, %v3149
        %3151 = vmatmul.f32.gmra.mxu0 %v3050
        %v3152 = vpop.f32.mrf.mxu0
        %v3153 = vadd.f32 0.0, %v3152
        %3154 = vmatmul.f32.gmra.mxu0 %v3051
        %v3155 = vpop.f32.mrf.mxu0
        %v3156 = vadd.f32 0.0, %v3155
        %3157 = vmatmul.f32.gmra.mxu0 %v3052
        %v3158 = vpop.f32.mrf.mxu0
        %v3159 = vadd.f32 0.0, %v3158
        %3160 = vmatmul.f32.gmra.mxu0 %v3053
        %v3161 = vpop.f32.mrf.mxu0
        %v3162 = vadd.f32 0.0, %v3161
        %3163 = vmatmul.f32.gmra.mxu0 %v3054
        %v3164 = vpop.f32.mrf.mxu0
        %v3165 = vadd.f32 0.0, %v3164
        %3166 = vmatmul.f32.gmra.mxu0 %v3055
        %v3167 = vpop.f32.mrf.mxu0
        %v3168 = vadd.f32 0.0, %v3167
        %3169 = vmatmul.f32.gmra.mxu0 %v3056
        %v3170 = vpop.f32.mrf.mxu0
        %v3171 = vadd.f32 0.0, %v3170
        %3172 = vmatmul.f32.gmra.mxu0 %v3057
        %v3173 = vpop.f32.mrf.mxu0
        %v3174 = vadd.f32 0.0, %v3173
        %3175 = vmatmul.f32.gmra.mxu0 %v3058
        %v3176 = vpop.f32.mrf.mxu0
        %v3177 = vadd.f32 0.0, %v3176
        %3178 = vmatmul.f32.gmra.mxu0 %v3059
        %v3179 = vpop.f32.mrf.mxu0
        %v3180 = vadd.f32 0.0, %v3179
        %3181 = vmatmul.f32.gmra.mxu0 %v3060
        %v3182 = vpop.f32.mrf.mxu0
        %v3183 = vadd.f32 0.0, %v3182
        %3184 = vmatmul.f32.gmra.mxu0 %v3061
        %v3185 = vpop.f32.mrf.mxu0
        %v3186 = vadd.f32 0.0, %v3185
        %3187 = vmatmul.f32.gmra.mxu0 %v3062
        %v3188 = vpop.f32.mrf.mxu0
        %v3189 = vadd.f32 0.0, %v3188
        %3190 = vmatmul.f32.gmra.mxu0 %v3063
        %v3191 = vpop.f32.mrf.mxu0
        %v3192 = vadd.f32 0.0, %v3191
        %3193 = vdwg.mxu0
        %v3194 = vadd.f32 %v2999, %v3099
        %v3195 = vadd.f32 %v3000, %v3102
        %v3196 = vadd.f32 %v3001, %v3105
        %v3197 = vadd.f32 %v3002, %v3108
        %v3198 = vadd.f32 %v3003, %v3111
        %v3199 = vadd.f32 %v3004, %v3114
        %v3200 = vadd.f32 %v3005, %v3117
        %v3201 = vadd.f32 %v3006, %v3120
        %v3202 = vadd.f32 %v3007, %v3123
        %v3203 = vadd.f32 %v3008, %v3126
        %v3204 = vadd.f32 %v3009, %v3129
        %v3205 = vadd.f32 %v3010, %v3132
        %v3206 = vadd.f32 %v3011, %v3135
        %v3207 = vadd.f32 %v3012, %v3138
        %v3208 = vadd.f32 %v3013, %v3141
        %v3209 = vadd.f32 %v3014, %v3144
        %v3210 = vadd.f32 %v3015, %v3147
        %v3211 = vadd.f32 %v3016, %v3150
        %v3212 = vadd.f32 %v3017, %v3153
        %v3213 = vadd.f32 %v3018, %v3156
        %v3214 = vadd.f32 %v3019, %v3159
        %v3215 = vadd.f32 %v3020, %v3162
        %v3216 = vadd.f32 %v3021, %v3165
        %v3217 = vadd.f32 %v3022, %v3168
        %v3218 = vadd.f32 %v3023, %v3171
        %v3219 = vadd.f32 %v3024, %v3174
        %v3220 = vadd.f32 %v3025, %v3177
        %v3221 = vadd.f32 %v3026, %v3180
        %v3222 = vadd.f32 %v3027, %v3183
        %v3223 = vadd.f32 %v3028, %v3186
        %v3224 = vadd.f32 %v3029, %v3189
        %v3225 = vadd.f32 %v3030, %v3192
        %v3226 = vld [vmem:[%s3031 + $0x12] sm:$0xff]
        %v3227 = vld [vmem:[%s3031 + $0x1a] sm:$0xff]
        %v3228 = vld [vmem:[%s3031 + $0x4a] sm:$0xff]
        %v3229 = vld [vmem:[%s3031 + $0x52] sm:$0xff]
        %v3230 = vld [vmem:[%s3031 + $0x82] sm:$0xff]
        %v3231 = vld [vmem:[%s3031 + $0x8a] sm:$0xff]
        %v3232 = vld [vmem:[%s3031 + $0xba] sm:$0xff]
        %v3233 = vld [vmem:[%s3031 + $0xc2] sm:$0xff]
        %v3234 = vld [vmem:[%s3031 + $0xf2] sm:$0xff]
        %v3235 = vld [vmem:[%s3031 + $0xfa] sm:$0xff]
        %v3236 = vld [vmem:[%s3031 + $0x12a] sm:$0xff]
        %v3237 = vld [vmem:[%s3031 + $0x132] sm:$0xff]
        %v3238 = vld [vmem:[%s3031 + $0x162] sm:$0xff]
        %v3239 = vld [vmem:[%s3031 + $0x16a] sm:$0xff]
        %v3240 = vld [vmem:[%s3031 + $0x19a] sm:$0xff]
        %v3241 = vld [vmem:[%s3031 + $0x1a2] sm:$0xff]
        %v3242 = vld [vmem:[%s3031 + $0x1d2] sm:$0xff]
        %v3243 = vld [vmem:[%s3031 + $0x1da] sm:$0xff]
        %v3244 = vld [vmem:[%s3031 + $0x20a] sm:$0xff]
        %v3245 = vld [vmem:[%s3031 + $0x212] sm:$0xff]
        %v3246 = vld [vmem:[%s3031 + $0x242] sm:$0xff]
        %v3247 = vld [vmem:[%s3031 + $0x24a] sm:$0xff]
        %v3248 = vld [vmem:[%s3031 + $0x27a] sm:$0xff]
        %v3249 = vld [vmem:[%s3031 + $0x282] sm:$0xff]
        %v3250 = vld [vmem:[%s3031 + $0x2b2] sm:$0xff]
        %v3251 = vld [vmem:[%s3031 + $0x2ba] sm:$0xff]
        %v3252 = vld [vmem:[%s3031 + $0x2ea] sm:$0xff]
        %v3253 = vld [vmem:[%s3031 + $0x2f2] sm:$0xff]
        %v3254 = vld [vmem:[%s3031 + $0x322] sm:$0xff]
        %v3255 = vld [vmem:[%s3031 + $0x32a] sm:$0xff]
        %v3256 = vld [vmem:[%s3031 + $0x35a] sm:$0xff]
        %v3257 = vld [vmem:[%s3031 + $0x362] sm:$0xff]
        %s3258 = scalar_lea.vmem %s3, 896
        %v3259 = vld [vmem:[%s3258] sm:$0xff]
        %v3260 = vld [vmem:[%s3258 + $0x8] sm:$0xff]
        %v3261 = vld [vmem:[%s3258 + $0x10] sm:$0xff]
        %v3262 = vld [vmem:[%s3258 + $0x18] sm:$0xff]
        %v3263 = vld [vmem:[%s3258 + $0x20] sm:$0xff]
        %v3264 = vld [vmem:[%s3258 + $0x28] sm:$0xff]
        %v3265 = vld [vmem:[%s3258 + $0x30] sm:$0xff]
        %v3266 = vld [vmem:[%s3258 + $0x38] sm:$0xff]
        %v3267 = vld [vmem:[%s3258 + $0x40] sm:$0xff]
        %v3268 = vld [vmem:[%s3258 + $0x48] sm:$0xff]
        %v3269 = vld [vmem:[%s3258 + $0x50] sm:$0xff]
        %v3270 = vld [vmem:[%s3258 + $0x58] sm:$0xff]
        %v3271 = vld [vmem:[%s3258 + $0x60] sm:$0xff]
        %v3272 = vld [vmem:[%s3258 + $0x68] sm:$0xff]
        %v3273 = vld [vmem:[%s3258 + $0x70] sm:$0xff]
        %v3274 = vld [vmem:[%s3258 + $0x78] sm:$0xff]
        %3275 = vmatpush.msra.mxu0 %v3274
        %3276 = vmatpush.msra.mxu0 %v3273
        %3277 = vmatpush.msra.mxu0 %v3272
        %3278 = vmatpush.msra.mxu0 %v3271
        %3279 = vmatpush.msra.mxu0 %v3270
        %3280 = vmatpush.msra.mxu0 %v3269
        %3281 = vmatpush.msra.mxu0 %v3268
        %3282 = vmatpush.msra.mxu0 %v3267
        %3283 = vmatpush.msra.mxu0 %v3266
        %3284 = vmatpush.msra.mxu0 %v3265
        %3285 = vmatpush.msra.mxu0 %v3264
        %3286 = vmatpush.msra.mxu0 %v3263
        %3287 = vmatpush.msra.mxu0 %v3262
        %3288 = vmatpush.msra.mxu0 %v3261
        %3289 = vmatpush.msra.mxu0 %v3260
        %3290 = vmatpush.msra.mxu0 %v3259
        %3291 = vmatmul.f32.gmra.mxu0 %v3226
        %v3292 = vpop.f32.mrf.mxu0
        %v3293 = vadd.f32 0.0, %v3292
        %3294 = vmatmul.f32.gmra.mxu0 %v3227
        %v3295 = vpop.f32.mrf.mxu0
        %v3296 = vadd.f32 0.0, %v3295
        %3297 = vmatmul.f32.gmra.mxu0 %v3228
        %v3298 = vpop.f32.mrf.mxu0
        %v3299 = vadd.f32 0.0, %v3298
        %3300 = vmatmul.f32.gmra.mxu0 %v3229
        %v3301 = vpop.f32.mrf.mxu0
        %v3302 = vadd.f32 0.0, %v3301
        %3303 = vmatmul.f32.gmra.mxu0 %v3230
        %v3304 = vpop.f32.mrf.mxu0
        %v3305 = vadd.f32 0.0, %v3304
        %3306 = vmatmul.f32.gmra.mxu0 %v3231
        %v3307 = vpop.f32.mrf.mxu0
        %v3308 = vadd.f32 0.0, %v3307
        %3309 = vmatmul.f32.gmra.mxu0 %v3232
        %v3310 = vpop.f32.mrf.mxu0
        %v3311 = vadd.f32 0.0, %v3310
        %3312 = vmatmul.f32.gmra.mxu0 %v3233
        %v3313 = vpop.f32.mrf.mxu0
        %v3314 = vadd.f32 0.0, %v3313
        %3315 = vmatmul.f32.gmra.mxu0 %v3234
        %v3316 = vpop.f32.mrf.mxu0
        %v3317 = vadd.f32 0.0, %v3316
        %3318 = vmatmul.f32.gmra.mxu0 %v3235
        %v3319 = vpop.f32.mrf.mxu0
        %v3320 = vadd.f32 0.0, %v3319
        %3321 = vmatmul.f32.gmra.mxu0 %v3236
        %v3322 = vpop.f32.mrf.mxu0
        %v3323 = vadd.f32 0.0, %v3322
        %3324 = vmatmul.f32.gmra.mxu0 %v3237
        %v3325 = vpop.f32.mrf.mxu0
        %v3326 = vadd.f32 0.0, %v3325
        %3327 = vmatmul.f32.gmra.mxu0 %v3238
        %v3328 = vpop.f32.mrf.mxu0
        %v3329 = vadd.f32 0.0, %v3328
        %3330 = vmatmul.f32.gmra.mxu0 %v3239
        %v3331 = vpop.f32.mrf.mxu0
        %v3332 = vadd.f32 0.0, %v3331
        %3333 = vmatmul.f32.gmra.mxu0 %v3240
        %v3334 = vpop.f32.mrf.mxu0
        %v3335 = vadd.f32 0.0, %v3334
        %3336 = vmatmul.f32.gmra.mxu0 %v3241
        %v3337 = vpop.f32.mrf.mxu0
        %v3338 = vadd.f32 0.0, %v3337
        %3339 = vmatmul.f32.gmra.mxu0 %v3242
        %v3340 = vpop.f32.mrf.mxu0
        %v3341 = vadd.f32 0.0, %v3340
        %3342 = vmatmul.f32.gmra.mxu0 %v3243
        %v3343 = vpop.f32.mrf.mxu0
        %v3344 = vadd.f32 0.0, %v3343
        %3345 = vmatmul.f32.gmra.mxu0 %v3244
        %v3346 = vpop.f32.mrf.mxu0
        %v3347 = vadd.f32 0.0, %v3346
        %3348 = vmatmul.f32.gmra.mxu0 %v3245
        %v3349 = vpop.f32.mrf.mxu0
        %v3350 = vadd.f32 0.0, %v3349
        %3351 = vmatmul.f32.gmra.mxu0 %v3246
        %v3352 = vpop.f32.mrf.mxu0
        %v3353 = vadd.f32 0.0, %v3352
        %3354 = vmatmul.f32.gmra.mxu0 %v3247
        %v3355 = vpop.f32.mrf.mxu0
        %v3356 = vadd.f32 0.0, %v3355
        %3357 = vmatmul.f32.gmra.mxu0 %v3248
        %v3358 = vpop.f32.mrf.mxu0
        %v3359 = vadd.f32 0.0, %v3358
        %3360 = vmatmul.f32.gmra.mxu0 %v3249
        %v3361 = vpop.f32.mrf.mxu0
        %v3362 = vadd.f32 0.0, %v3361
        %3363 = vmatmul.f32.gmra.mxu0 %v3250
        %v3364 = vpop.f32.mrf.mxu0
        %v3365 = vadd.f32 0.0, %v3364
        %3366 = vmatmul.f32.gmra.mxu0 %v3251
        %v3367 = vpop.f32.mrf.mxu0
        %v3368 = vadd.f32 0.0, %v3367
        %3369 = vmatmul.f32.gmra.mxu0 %v3252
        %v3370 = vpop.f32.mrf.mxu0
        %v3371 = vadd.f32 0.0, %v3370
        %3372 = vmatmul.f32.gmra.mxu0 %v3253
        %v3373 = vpop.f32.mrf.mxu0
        %v3374 = vadd.f32 0.0, %v3373
        %3375 = vmatmul.f32.gmra.mxu0 %v3254
        %v3376 = vpop.f32.mrf.mxu0
        %v3377 = vadd.f32 0.0, %v3376
        %3378 = vmatmul.f32.gmra.mxu0 %v3255
        %v3379 = vpop.f32.mrf.mxu0
        %v3380 = vadd.f32 0.0, %v3379
        %3381 = vmatmul.f32.gmra.mxu0 %v3256
        %v3382 = vpop.f32.mrf.mxu0
        %v3383 = vadd.f32 0.0, %v3382
        %3384 = vmatmul.f32.gmra.mxu0 %v3257
        %v3385 = vpop.f32.mrf.mxu0
        %v3386 = vadd.f32 0.0, %v3385
        %3387 = vdwg.mxu0
        %v3388 = vadd.f32 %v3194, %v3293
        %v3389 = vadd.f32 %v3195, %v3296
        %v3390 = vadd.f32 %v3196, %v3299
        %v3391 = vadd.f32 %v3197, %v3302
        %v3392 = vadd.f32 %v3198, %v3305
        %v3393 = vadd.f32 %v3199, %v3308
        %v3394 = vadd.f32 %v3200, %v3311
        %v3395 = vadd.f32 %v3201, %v3314
        %v3396 = vadd.f32 %v3202, %v3317
        %v3397 = vadd.f32 %v3203, %v3320
        %v3398 = vadd.f32 %v3204, %v3323
        %v3399 = vadd.f32 %v3205, %v3326
        %v3400 = vadd.f32 %v3206, %v3329
        %v3401 = vadd.f32 %v3207, %v3332
        %v3402 = vadd.f32 %v3208, %v3335
        %v3403 = vadd.f32 %v3209, %v3338
        %v3404 = vadd.f32 %v3210, %v3341
        %v3405 = vadd.f32 %v3211, %v3344
        %v3406 = vadd.f32 %v3212, %v3347
        %v3407 = vadd.f32 %v3213, %v3350
        %v3408 = vadd.f32 %v3214, %v3353
        %v3409 = vadd.f32 %v3215, %v3356
        %v3410 = vadd.f32 %v3216, %v3359
        %v3411 = vadd.f32 %v3217, %v3362
        %v3412 = vadd.f32 %v3218, %v3365
        %v3413 = vadd.f32 %v3219, %v3368
        %v3414 = vadd.f32 %v3220, %v3371
        %v3415 = vadd.f32 %v3221, %v3374
        %v3416 = vadd.f32 %v3222, %v3377
        %v3417 = vadd.f32 %v3223, %v3380
        %v3418 = vadd.f32 %v3224, %v3383
        %v3419 = vadd.f32 %v3225, %v3386
        %v3420 = vld [vmem:[%s3031 + $0x18] sm:$0xff]
        %v3421 = vld [vmem:[%s3031 + $0x20] sm:$0xff]
        %v3422 = vld [vmem:[%s3031 + $0x50] sm:$0xff]
        %v3423 = vld [vmem:[%s3031 + $0x58] sm:$0xff]
        %v3424 = vld [vmem:[%s3031 + $0x88] sm:$0xff]
        %v3425 = vld [vmem:[%s3031 + $0x90] sm:$0xff]
        %v3426 = vld [vmem:[%s3031 + $0xc0] sm:$0xff]
        %v3427 = vld [vmem:[%s3031 + $0xc8] sm:$0xff]
        %v3428 = vld [vmem:[%s3031 + $0xf8] sm:$0xff]
        %v3429 = vld [vmem:[%s3031 + $0x100] sm:$0xff]
        %v3430 = vld [vmem:[%s3031 + $0x130] sm:$0xff]
        %v3431 = vld [vmem:[%s3031 + $0x138] sm:$0xff]
        %v3432 = vld [vmem:[%s3031 + $0x168] sm:$0xff]
        %v3433 = vld [vmem:[%s3031 + $0x170] sm:$0xff]
        %v3434 = vld [vmem:[%s3031 + $0x1a0] sm:$0xff]
        %v3435 = vld [vmem:[%s3031 + $0x1a8] sm:$0xff]
        %v3436 = vld [vmem:[%s3031 + $0x1d8] sm:$0xff]
        %v3437 = vld [vmem:[%s3031 + $0x1e0] sm:$0xff]
        %v3438 = vld [vmem:[%s3031 + $0x210] sm:$0xff]
        %v3439 = vld [vmem:[%s3031 + $0x218] sm:$0xff]
        %v3440 = vld [vmem:[%s3031 + $0x248] sm:$0xff]
        %v3441 = vld [vmem:[%s3031 + $0x250] sm:$0xff]
        %v3442 = vld [vmem:[%s3031 + $0x280] sm:$0xff]
        %v3443 = vld [vmem:[%s3031 + $0x288] sm:$0xff]
        %v3444 = vld [vmem:[%s3031 + $0x2b8] sm:$0xff]
        %v3445 = vld [vmem:[%s3031 + $0x2c0] sm:$0xff]
        %v3446 = vld [vmem:[%s3031 + $0x2f0] sm:$0xff]
        %v3447 = vld [vmem:[%s3031 + $0x2f8] sm:$0xff]
        %v3448 = vld [vmem:[%s3031 + $0x328] sm:$0xff]
        %v3449 = vld [vmem:[%s3031 + $0x330] sm:$0xff]
        %v3450 = vld [vmem:[%s3031 + $0x360] sm:$0xff]
        %v3451 = vld [vmem:[%s3031 + $0x368] sm:$0xff]
        %s3452 = scalar_lea.vmem %s3, 1024
        %v3453 = vld [vmem:[%s3452] sm:$0xff]
        %v3454 = vld [vmem:[%s3452 + $0x8] sm:$0xff]
        %v3455 = vld [vmem:[%s3452 + $0x10] sm:$0xff]
        %v3456 = vld [vmem:[%s3452 + $0x18] sm:$0xff]
        %v3457 = vld [vmem:[%s3452 + $0x20] sm:$0xff]
        %v3458 = vld [vmem:[%s3452 + $0x28] sm:$0xff]
        %v3459 = vld [vmem:[%s3452 + $0x30] sm:$0xff]
        %v3460 = vld [vmem:[%s3452 + $0x38] sm:$0xff]
        %v3461 = vld [vmem:[%s3452 + $0x40] sm:$0xff]
        %v3462 = vld [vmem:[%s3452 + $0x48] sm:$0xff]
        %v3463 = vld [vmem:[%s3452 + $0x50] sm:$0xff]
        %v3464 = vld [vmem:[%s3452 + $0x58] sm:$0xff]
        %v3465 = vld [vmem:[%s3452 + $0x60] sm:$0xff]
        %v3466 = vld [vmem:[%s3452 + $0x68] sm:$0xff]
        %v3467 = vld [vmem:[%s3452 + $0x70] sm:$0xff]
        %v3468 = vld [vmem:[%s3452 + $0x78] sm:$0xff]
        %3469 = vmatpush.msra.mxu0 %v3468
        %3470 = vmatpush.msra.mxu0 %v3467
        %3471 = vmatpush.msra.mxu0 %v3466
        %3472 = vmatpush.msra.mxu0 %v3465
        %3473 = vmatpush.msra.mxu0 %v3464
        %3474 = vmatpush.msra.mxu0 %v3463
        %3475 = vmatpush.msra.mxu0 %v3462
        %3476 = vmatpush.msra.mxu0 %v3461
        %3477 = vmatpush.msra.mxu0 %v3460
        %3478 = vmatpush.msra.mxu0 %v3459
        %3479 = vmatpush.msra.mxu0 %v3458
        %3480 = vmatpush.msra.mxu0 %v3457
        %3481 = vmatpush.msra.mxu0 %v3456
        %3482 = vmatpush.msra.mxu0 %v3455
        %3483 = vmatpush.msra.mxu0 %v3454
        %3484 = vmatpush.msra.mxu0 %v3453
        %3485 = vmatmul.f32.gmra.mxu0 %v3420
        %v3486 = vpop.f32.mrf.mxu0
        %v3487 = vadd.f32 0.0, %v3486
        %3488 = vmatmul.f32.gmra.mxu0 %v3421
        %v3489 = vpop.f32.mrf.mxu0
        %v3490 = vadd.f32 0.0, %v3489
        %3491 = vmatmul.f32.gmra.mxu0 %v3422
        %v3492 = vpop.f32.mrf.mxu0
        %v3493 = vadd.f32 0.0, %v3492
        %3494 = vmatmul.f32.gmra.mxu0 %v3423
        %v3495 = vpop.f32.mrf.mxu0
        %v3496 = vadd.f32 0.0, %v3495
        %3497 = vmatmul.f32.gmra.mxu0 %v3424
        %v3498 = vpop.f32.mrf.mxu0
        %v3499 = vadd.f32 0.0, %v3498
        %3500 = vmatmul.f32.gmra.mxu0 %v3425
        %v3501 = vpop.f32.mrf.mxu0
        %v3502 = vadd.f32 0.0, %v3501
        %3503 = vmatmul.f32.gmra.mxu0 %v3426
        %v3504 = vpop.f32.mrf.mxu0
        %v3505 = vadd.f32 0.0, %v3504
        %3506 = vmatmul.f32.gmra.mxu0 %v3427
        %v3507 = vpop.f32.mrf.mxu0
        %v3508 = vadd.f32 0.0, %v3507
        %3509 = vmatmul.f32.gmra.mxu0 %v3428
        %v3510 = vpop.f32.mrf.mxu0
        %v3511 = vadd.f32 0.0, %v3510
        %3512 = vmatmul.f32.gmra.mxu0 %v3429
        %v3513 = vpop.f32.mrf.mxu0
        %v3514 = vadd.f32 0.0, %v3513
        %3515 = vmatmul.f32.gmra.mxu0 %v3430
        %v3516 = vpop.f32.mrf.mxu0
        %v3517 = vadd.f32 0.0, %v3516
        %3518 = vmatmul.f32.gmra.mxu0 %v3431
        %v3519 = vpop.f32.mrf.mxu0
        %v3520 = vadd.f32 0.0, %v3519
        %3521 = vmatmul.f32.gmra.mxu0 %v3432
        %v3522 = vpop.f32.mrf.mxu0
        %v3523 = vadd.f32 0.0, %v3522
        %3524 = vmatmul.f32.gmra.mxu0 %v3433
        %v3525 = vpop.f32.mrf.mxu0
        %v3526 = vadd.f32 0.0, %v3525
        %3527 = vmatmul.f32.gmra.mxu0 %v3434
        %v3528 = vpop.f32.mrf.mxu0
        %v3529 = vadd.f32 0.0, %v3528
        %3530 = vmatmul.f32.gmra.mxu0 %v3435
        %v3531 = vpop.f32.mrf.mxu0
        %v3532 = vadd.f32 0.0, %v3531
        %3533 = vmatmul.f32.gmra.mxu0 %v3436
        %v3534 = vpop.f32.mrf.mxu0
        %v3535 = vadd.f32 0.0, %v3534
        %3536 = vmatmul.f32.gmra.mxu0 %v3437
        %v3537 = vpop.f32.mrf.mxu0
        %v3538 = vadd.f32 0.0, %v3537
        %3539 = vmatmul.f32.gmra.mxu0 %v3438
        %v3540 = vpop.f32.mrf.mxu0
        %v3541 = vadd.f32 0.0, %v3540
        %3542 = vmatmul.f32.gmra.mxu0 %v3439
        %v3543 = vpop.f32.mrf.mxu0
        %v3544 = vadd.f32 0.0, %v3543
        %3545 = vmatmul.f32.gmra.mxu0 %v3440
        %v3546 = vpop.f32.mrf.mxu0
        %v3547 = vadd.f32 0.0, %v3546
        %3548 = vmatmul.f32.gmra.mxu0 %v3441
        %v3549 = vpop.f32.mrf.mxu0
        %v3550 = vadd.f32 0.0, %v3549
        %3551 = vmatmul.f32.gmra.mxu0 %v3442
        %v3552 = vpop.f32.mrf.mxu0
        %v3553 = vadd.f32 0.0, %v3552
        %3554 = vmatmul.f32.gmra.mxu0 %v3443
        %v3555 = vpop.f32.mrf.mxu0
        %v3556 = vadd.f32 0.0, %v3555
        %3557 = vmatmul.f32.gmra.mxu0 %v3444
        %v3558 = vpop.f32.mrf.mxu0
        %v3559 = vadd.f32 0.0, %v3558
        %3560 = vmatmul.f32.gmra.mxu0 %v3445
        %v3561 = vpop.f32.mrf.mxu0
        %v3562 = vadd.f32 0.0, %v3561
        %3563 = vmatmul.f32.gmra.mxu0 %v3446
        %v3564 = vpop.f32.mrf.mxu0
        %v3565 = vadd.f32 0.0, %v3564
        %3566 = vmatmul.f32.gmra.mxu0 %v3447
        %v3567 = vpop.f32.mrf.mxu0
        %v3568 = vadd.f32 0.0, %v3567
        %3569 = vmatmul.f32.gmra.mxu0 %v3448
        %v3570 = vpop.f32.mrf.mxu0
        %v3571 = vadd.f32 0.0, %v3570
        %3572 = vmatmul.f32.gmra.mxu0 %v3449
        %v3573 = vpop.f32.mrf.mxu0
        %v3574 = vadd.f32 0.0, %v3573
        %3575 = vmatmul.f32.gmra.mxu0 %v3450
        %v3576 = vpop.f32.mrf.mxu0
        %v3577 = vadd.f32 0.0, %v3576
        %3578 = vmatmul.f32.gmra.mxu0 %v3451
        %v3579 = vpop.f32.mrf.mxu0
        %v3580 = vadd.f32 0.0, %v3579
        %3581 = vdwg.mxu0
        %v3582 = vadd.f32 %v3388, %v3487
        %v3583 = vadd.f32 %v3389, %v3490
        %v3584 = vadd.f32 %v3390, %v3493
        %v3585 = vadd.f32 %v3391, %v3496
        %v3586 = vadd.f32 %v3392, %v3499
        %v3587 = vadd.f32 %v3393, %v3502
        %v3588 = vadd.f32 %v3394, %v3505
        %v3589 = vadd.f32 %v3395, %v3508
        %v3590 = vadd.f32 %v3396, %v3511
        %v3591 = vadd.f32 %v3397, %v3514
        %v3592 = vadd.f32 %v3398, %v3517
        %v3593 = vadd.f32 %v3399, %v3520
        %v3594 = vadd.f32 %v3400, %v3523
        %v3595 = vadd.f32 %v3401, %v3526
        %v3596 = vadd.f32 %v3402, %v3529
        %v3597 = vadd.f32 %v3403, %v3532
        %v3598 = vadd.f32 %v3404, %v3535
        %v3599 = vadd.f32 %v3405, %v3538
        %v3600 = vadd.f32 %v3406, %v3541
        %v3601 = vadd.f32 %v3407, %v3544
        %v3602 = vadd.f32 %v3408, %v3547
        %v3603 = vadd.f32 %v3409, %v3550
        %v3604 = vadd.f32 %v3410, %v3553
        %v3605 = vadd.f32 %v3411, %v3556
        %v3606 = vadd.f32 %v3412, %v3559
        %v3607 = vadd.f32 %v3413, %v3562
        %v3608 = vadd.f32 %v3414, %v3565
        %v3609 = vadd.f32 %v3415, %v3568
        %v3610 = vadd.f32 %v3416, %v3571
        %v3611 = vadd.f32 %v3417, %v3574
        %v3612 = vadd.f32 %v3418, %v3577
        %v3613 = vadd.f32 %v3419, %v3580
        %v3614 = vmax.f32 %v3582, 0.0
        %v3615 = vmax.f32 %v3583, 0.0
        %v3616 = vmax.f32 %v3584, 0.0
        %v3617 = vmax.f32 %v3585, 0.0
        %v3618 = vmax.f32 %v3586, 0.0
        %v3619 = vmax.f32 %v3587, 0.0
        %v3620 = vmax.f32 %v3588, 0.0
        %v3621 = vmax.f32 %v3589, 0.0
        %v3622 = vmax.f32 %v3590, 0.0
        %v3623 = vmax.f32 %v3591, 0.0
        %v3624 = vmax.f32 %v3592, 0.0
        %v3625 = vmax.f32 %v3593, 0.0
        %v3626 = vmax.f32 %v3594, 0.0
        %v3627 = vmax.f32 %v3595, 0.0
        %v3628 = vmax.f32 %v3596, 0.0
        %v3629 = vmax.f32 %v3597, 0.0
        %v3630 = vmax.f32 %v3598, 0.0
        %v3631 = vmax.f32 %v3599, 0.0
        %v3632 = vmax.f32 %v3600, 0.0
        %v3633 = vmax.f32 %v3601, 0.0
        %v3634 = vmax.f32 %v3602, 0.0
        %v3635 = vmax.f32 %v3603, 0.0
        %v3636 = vmax.f32 %v3604, 0.0
        %v3637 = vmax.f32 %v3605, 0.0
        %v3638 = vmax.f32 %v3606, 0.0
        %v3639 = vmax.f32 %v3607, 0.0
        %v3640 = vmax.f32 %v3608, 0.0
        %v3641 = vmax.f32 %v3609, 0.0
        %v3642 = vmax.f32 %v3610, 0.0
        %v3643 = vmax.f32 %v3611, 0.0
        %v3644 = vmax.f32 %v3612, 0.0
        %v3645 = vmax.f32 %v3613, 0.0
        %s3646 = scalar_lea.vmem %s4, 128
        %v3647 = vld [vmem:[%s3646] sm:$0xff]
        %v3648 = vld [vmem:[%s3646 + $0x8] sm:$0xff]
        %v3649 = vld [vmem:[%s3646 + $0x10] sm:$0xff]
        %v3650 = vld [vmem:[%s3646 + $0x18] sm:$0xff]
        %v3651 = vld [vmem:[%s3646 + $0x20] sm:$0xff]
        %v3652 = vld [vmem:[%s3646 + $0x28] sm:$0xff]
        %v3653 = vld [vmem:[%s3646 + $0x30] sm:$0xff]
        %v3654 = vld [vmem:[%s3646 + $0x38] sm:$0xff]
        %v3655 = vld [vmem:[%s3646 + $0x40] sm:$0xff]
        %v3656 = vld [vmem:[%s3646 + $0x48] sm:$0xff]
        %v3657 = vld [vmem:[%s3646 + $0x50] sm:$0xff]
        %v3658 = vld [vmem:[%s3646 + $0x58] sm:$0xff]
        %v3659 = vld [vmem:[%s3646 + $0x60] sm:$0xff]
        %v3660 = vld [vmem:[%s3646 + $0x68] sm:$0xff]
        %v3661 = vld [vmem:[%s3646 + $0x70] sm:$0xff]
        %v3662 = vld [vmem:[%s3646 + $0x78] sm:$0xff]
        %3663 = vmatpush.msra.mxu0 %v3662
        %3664 = vmatpush.msra.mxu0 %v3661
        %3665 = vmatpush.msra.mxu0 %v3660
        %3666 = vmatpush.msra.mxu0 %v3659
        %3667 = vmatpush.msra.mxu0 %v3658
        %3668 = vmatpush.msra.mxu0 %v3657
        %3669 = vmatpush.msra.mxu0 %v3656
        %3670 = vmatpush.msra.mxu0 %v3655
        %3671 = vmatpush.msra.mxu0 %v3654
        %3672 = vmatpush.msra.mxu0 %v3653
        %3673 = vmatpush.msra.mxu0 %v3652
        %3674 = vmatpush.msra.mxu0 %v3651
        %3675 = vmatpush.msra.mxu0 %v3650
        %3676 = vmatpush.msra.mxu0 %v3649
        %3677 = vmatpush.msra.mxu0 %v3648
        %3678 = vmatpush.msra.mxu0 %v3647
        %3679 = vmatmul.f32.gmra.mxu0 %v3614
        %v3680 = vpop.f32.mrf.mxu0
        %v3681 = vadd.f32 0.0, %v3680
        %3682 = vmatmul.f32.gmra.mxu0 %v3615
        %v3683 = vpop.f32.mrf.mxu0
        %v3684 = vadd.f32 0.0, %v3683
        %3685 = vmatmul.f32.gmra.mxu0 %v3616
        %v3686 = vpop.f32.mrf.mxu0
        %v3687 = vadd.f32 0.0, %v3686
        %3688 = vmatmul.f32.gmra.mxu0 %v3617
        %v3689 = vpop.f32.mrf.mxu0
        %v3690 = vadd.f32 0.0, %v3689
        %3691 = vmatmul.f32.gmra.mxu0 %v3618
        %v3692 = vpop.f32.mrf.mxu0
        %v3693 = vadd.f32 0.0, %v3692
        %3694 = vmatmul.f32.gmra.mxu0 %v3619
        %v3695 = vpop.f32.mrf.mxu0
        %v3696 = vadd.f32 0.0, %v3695
        %3697 = vmatmul.f32.gmra.mxu0 %v3620
        %v3698 = vpop.f32.mrf.mxu0
        %v3699 = vadd.f32 0.0, %v3698
        %3700 = vmatmul.f32.gmra.mxu0 %v3621
        %v3701 = vpop.f32.mrf.mxu0
        %v3702 = vadd.f32 0.0, %v3701
        %3703 = vmatmul.f32.gmra.mxu0 %v3622
        %v3704 = vpop.f32.mrf.mxu0
        %v3705 = vadd.f32 0.0, %v3704
        %3706 = vmatmul.f32.gmra.mxu0 %v3623
        %v3707 = vpop.f32.mrf.mxu0
        %v3708 = vadd.f32 0.0, %v3707
        %3709 = vmatmul.f32.gmra.mxu0 %v3624
        %v3710 = vpop.f32.mrf.mxu0
        %v3711 = vadd.f32 0.0, %v3710
        %3712 = vmatmul.f32.gmra.mxu0 %v3625
        %v3713 = vpop.f32.mrf.mxu0
        %v3714 = vadd.f32 0.0, %v3713
        %3715 = vmatmul.f32.gmra.mxu0 %v3626
        %v3716 = vpop.f32.mrf.mxu0
        %v3717 = vadd.f32 0.0, %v3716
        %3718 = vmatmul.f32.gmra.mxu0 %v3627
        %v3719 = vpop.f32.mrf.mxu0
        %v3720 = vadd.f32 0.0, %v3719
        %3721 = vmatmul.f32.gmra.mxu0 %v3628
        %v3722 = vpop.f32.mrf.mxu0
        %v3723 = vadd.f32 0.0, %v3722
        %3724 = vmatmul.f32.gmra.mxu0 %v3629
        %v3725 = vpop.f32.mrf.mxu0
        %v3726 = vadd.f32 0.0, %v3725
        %3727 = vmatmul.f32.gmra.mxu0 %v3630
        %v3728 = vpop.f32.mrf.mxu0
        %v3729 = vadd.f32 0.0, %v3728
        %3730 = vmatmul.f32.gmra.mxu0 %v3631
        %v3731 = vpop.f32.mrf.mxu0
        %v3732 = vadd.f32 0.0, %v3731
        %3733 = vmatmul.f32.gmra.mxu0 %v3632
        %v3734 = vpop.f32.mrf.mxu0
        %v3735 = vadd.f32 0.0, %v3734
        %3736 = vmatmul.f32.gmra.mxu0 %v3633
        %v3737 = vpop.f32.mrf.mxu0
        %v3738 = vadd.f32 0.0, %v3737
        %3739 = vmatmul.f32.gmra.mxu0 %v3634
        %v3740 = vpop.f32.mrf.mxu0
        %v3741 = vadd.f32 0.0, %v3740
        %3742 = vmatmul.f32.gmra.mxu0 %v3635
        %v3743 = vpop.f32.mrf.mxu0
        %v3744 = vadd.f32 0.0, %v3743
        %3745 = vmatmul.f32.gmra.mxu0 %v3636
        %v3746 = vpop.f32.mrf.mxu0
        %v3747 = vadd.f32 0.0, %v3746
        %3748 = vmatmul.f32.gmra.mxu0 %v3637
        %v3749 = vpop.f32.mrf.mxu0
        %v3750 = vadd.f32 0.0, %v3749
        %3751 = vmatmul.f32.gmra.mxu0 %v3638
        %v3752 = vpop.f32.mrf.mxu0
        %v3753 = vadd.f32 0.0, %v3752
        %3754 = vmatmul.f32.gmra.mxu0 %v3639
        %v3755 = vpop.f32.mrf.mxu0
        %v3756 = vadd.f32 0.0, %v3755
        %3757 = vmatmul.f32.gmra.mxu0 %v3640
        %v3758 = vpop.f32.mrf.mxu0
        %v3759 = vadd.f32 0.0, %v3758
        %3760 = vmatmul.f32.gmra.mxu0 %v3641
        %v3761 = vpop.f32.mrf.mxu0
        %v3762 = vadd.f32 0.0, %v3761
        %3763 = vmatmul.f32.gmra.mxu0 %v3642
        %v3764 = vpop.f32.mrf.mxu0
        %v3765 = vadd.f32 0.0, %v3764
        %3766 = vmatmul.f32.gmra.mxu0 %v3643
        %v3767 = vpop.f32.mrf.mxu0
        %v3768 = vadd.f32 0.0, %v3767
        %3769 = vmatmul.f32.gmra.mxu0 %v3644
        %v3770 = vpop.f32.mrf.mxu0
        %v3771 = vadd.f32 0.0, %v3770
        %3772 = vmatmul.f32.gmra.mxu0 %v3645
        %v3773 = vpop.f32.mrf.mxu0
        %v3774 = vadd.f32 0.0, %v3773
        %3775 = vdwg.mxu0
        %3776 = vmatpush.msra.mxu0 %v1962
        %3777 = vmatpush.msra.mxu0 %v1961
        %3778 = vmatpush.msra.mxu0 %v1960
        %3779 = vmatpush.msra.mxu0 %v1959
        %3780 = vmatpush.msra.mxu0 %v1958
        %3781 = vmatpush.msra.mxu0 %v1957
        %3782 = vmatpush.msra.mxu0 %v1956
        %3783 = vmatpush.msra.mxu0 %v1955
        %3784 = vmatpush.msra.mxu0 %v1954
        %3785 = vmatpush.msra.mxu0 %v1953
        %3786 = vmatpush.msra.mxu0 %v1952
        %3787 = vmatpush.msra.mxu0 %v1951
        %3788 = vmatpush.msra.mxu0 %v1950
        %3789 = vmatpush.msra.mxu0 %v1949
        %3790 = vmatpush.msra.mxu0 %v1948
        %3791 = vmatpush.msra.mxu0 %v1947
        %3792 = vmatmul.f32.gmra.mxu0 %v1915
        %v3793 = vpop.f32.mrf.mxu0
        %v3794 = vadd.f32 %v3681, %v3793
        %3795 = vmatmul.f32.gmra.mxu0 %v1916
        %v3796 = vpop.f32.mrf.mxu0
        %v3797 = vadd.f32 %v3684, %v3796
        %3798 = vmatmul.f32.gmra.mxu0 %v1917
        %v3799 = vpop.f32.mrf.mxu0
        %v3800 = vadd.f32 %v3687, %v3799
        %3801 = vmatmul.f32.gmra.mxu0 %v1918
        %v3802 = vpop.f32.mrf.mxu0
        %v3803 = vadd.f32 %v3690, %v3802
        %3804 = vmatmul.f32.gmra.mxu0 %v1919
        %v3805 = vpop.f32.mrf.mxu0
        %v3806 = vadd.f32 %v3693, %v3805
        %3807 = vmatmul.f32.gmra.mxu0 %v1920
        %v3808 = vpop.f32.mrf.mxu0
        %v3809 = vadd.f32 %v3696, %v3808
        %3810 = vmatmul.f32.gmra.mxu0 %v1921
        %v3811 = vpop.f32.mrf.mxu0
        %v3812 = vadd.f32 %v3699, %v3811
        %3813 = vmatmul.f32.gmra.mxu0 %v1922
        %v3814 = vpop.f32.mrf.mxu0
        %v3815 = vadd.f32 %v3702, %v3814
        %3816 = vmatmul.f32.gmra.mxu0 %v1923
        %v3817 = vpop.f32.mrf.mxu0
        %v3818 = vadd.f32 %v3705, %v3817
        %3819 = vmatmul.f32.gmra.mxu0 %v1924
        %v3820 = vpop.f32.mrf.mxu0
        %v3821 = vadd.f32 %v3708, %v3820
        %3822 = vmatmul.f32.gmra.mxu0 %v1925
        %v3823 = vpop.f32.mrf.mxu0
        %v3824 = vadd.f32 %v3711, %v3823
        %3825 = vmatmul.f32.gmra.mxu0 %v1926
        %v3826 = vpop.f32.mrf.mxu0
        %v3827 = vadd.f32 %v3714, %v3826
        %3828 = vmatmul.f32.gmra.mxu0 %v1927
        %v3829 = vpop.f32.mrf.mxu0
        %v3830 = vadd.f32 %v3717, %v3829
        %3831 = vmatmul.f32.gmra.mxu0 %v1928
        %v3832 = vpop.f32.mrf.mxu0
        %v3833 = vadd.f32 %v3720, %v3832
        %3834 = vmatmul.f32.gmra.mxu0 %v1929
        %v3835 = vpop.f32.mrf.mxu0
        %v3836 = vadd.f32 %v3723, %v3835
        %3837 = vmatmul.f32.gmra.mxu0 %v1930
        %v3838 = vpop.f32.mrf.mxu0
        %v3839 = vadd.f32 %v3726, %v3838
        %3840 = vmatmul.f32.gmra.mxu0 %v1931
        %v3841 = vpop.f32.mrf.mxu0
        %v3842 = vadd.f32 %v3729, %v3841
        %3843 = vmatmul.f32.gmra.mxu0 %v1932
        %v3844 = vpop.f32.mrf.mxu0
        %v3845 = vadd.f32 %v3732, %v3844
        %3846 = vmatmul.f32.gmra.mxu0 %v1933
        %v3847 = vpop.f32.mrf.mxu0
        %v3848 = vadd.f32 %v3735, %v3847
        %3849 = vmatmul.f32.gmra.mxu0 %v1934
        %v3850 = vpop.f32.mrf.mxu0
        %v3851 = vadd.f32 %v3738, %v3850
        %3852 = vmatmul.f32.gmra.mxu0 %v1935
        %v3853 = vpop.f32.mrf.mxu0
        %v3854 = vadd.f32 %v3741, %v3853
        %3855 = vmatmul.f32.gmra.mxu0 %v1936
        %v3856 = vpop.f32.mrf.mxu0
        %v3857 = vadd.f32 %v3744, %v3856
        %3858 = vmatmul.f32.gmra.mxu0 %v1937
        %v3859 = vpop.f32.mrf.mxu0
        %v3860 = vadd.f32 %v3747, %v3859
        %3861 = vmatmul.f32.gmra.mxu0 %v1938
        %v3862 = vpop.f32.mrf.mxu0
        %v3863 = vadd.f32 %v3750, %v3862
        %3864 = vmatmul.f32.gmra.mxu0 %v1939
        %v3865 = vpop.f32.mrf.mxu0
        %v3866 = vadd.f32 %v3753, %v3865
        %3867 = vmatmul.f32.gmra.mxu0 %v1940
        %v3868 = vpop.f32.mrf.mxu0
        %v3869 = vadd.f32 %v3756, %v3868
        %3870 = vmatmul.f32.gmra.mxu0 %v1941
        %v3871 = vpop.f32.mrf.mxu0
        %v3872 = vadd.f32 %v3759, %v3871
        %3873 = vmatmul.f32.gmra.mxu0 %v1942
        %v3874 = vpop.f32.mrf.mxu0
        %v3875 = vadd.f32 %v3762, %v3874
        %3876 = vmatmul.f32.gmra.mxu0 %v1943
        %v3877 = vpop.f32.mrf.mxu0
        %v3878 = vadd.f32 %v3765, %v3877
        %3879 = vmatmul.f32.gmra.mxu0 %v1944
        %v3880 = vpop.f32.mrf.mxu0
        %v3881 = vadd.f32 %v3768, %v3880
        %3882 = vmatmul.f32.gmra.mxu0 %v1945
        %v3883 = vpop.f32.mrf.mxu0
        %v3884 = vadd.f32 %v3771, %v3883
        %3885 = vmatmul.f32.gmra.mxu0 %v1946
        %v3886 = vpop.f32.mrf.mxu0
        %v3887 = vadd.f32 %v3774, %v3886
        %3888 = vdwg.mxu0
        %s3889 = scalar_lea.vmem %s979, 336 [#allocation2]
        %v3890 = vld [vmem:[%s3889 + $0x6] sm:$0xff]
        %v3891 = vld [vmem:[%s3889 + $0xe] sm:$0xff]
        %v3892 = vld [vmem:[%s3889 + $0x3e] sm:$0xff]
        %v3893 = vld [vmem:[%s3889 + $0x46] sm:$0xff]
        %v3894 = vld [vmem:[%s3889 + $0x76] sm:$0xff]
        %v3895 = vld [vmem:[%s3889 + $0x7e] sm:$0xff]
        %v3896 = vld [vmem:[%s3889 + $0xae] sm:$0xff]
        %v3897 = vld [vmem:[%s3889 + $0xb6] sm:$0xff]
        %v3898 = vld [vmem:[%s3889 + $0xe6] sm:$0xff]
        %v3899 = vld [vmem:[%s3889 + $0xee] sm:$0xff]
        %v3900 = vld [vmem:[%s3889 + $0x11e] sm:$0xff]
        %v3901 = vld [vmem:[%s3889 + $0x126] sm:$0xff]
        %v3902 = vld [vmem:[%s3889 + $0x156] sm:$0xff]
        %v3903 = vld [vmem:[%s3889 + $0x15e] sm:$0xff]
        %v3904 = vld [vmem:[%s3889 + $0x18e] sm:$0xff]
        %v3905 = vld [vmem:[%s3889 + $0x196] sm:$0xff]
        %v3906 = vld [vmem:[%s3889 + $0x1c6] sm:$0xff]
        %v3907 = vld [vmem:[%s3889 + $0x1ce] sm:$0xff]
        %v3908 = vld [vmem:[%s3889 + $0x1fe] sm:$0xff]
        %v3909 = vld [vmem:[%s3889 + $0x206] sm:$0xff]
        %v3910 = vld [vmem:[%s3889 + $0x236] sm:$0xff]
        %v3911 = vld [vmem:[%s3889 + $0x23e] sm:$0xff]
        %v3912 = vld [vmem:[%s3889 + $0x26e] sm:$0xff]
        %v3913 = vld [vmem:[%s3889 + $0x276] sm:$0xff]
        %v3914 = vld [vmem:[%s3889 + $0x2a6] sm:$0xff]
        %v3915 = vld [vmem:[%s3889 + $0x2ae] sm:$0xff]
        %v3916 = vld [vmem:[%s3889 + $0x2de] sm:$0xff]
        %v3917 = vld [vmem:[%s3889 + $0x2e6] sm:$0xff]
        %v3918 = vld [vmem:[%s3889 + $0x316] sm:$0xff]
        %v3919 = vld [vmem:[%s3889 + $0x31e] sm:$0xff]
        %v3920 = vld [vmem:[%s3889 + $0x34e] sm:$0xff]
        %v3921 = vld [vmem:[%s3889 + $0x356] sm:$0xff]
        %s3922 = scalar_lea.vmem %s3, 1152
        %v3923 = vld [vmem:[%s3922] sm:$0xff]
        %v3924 = vld [vmem:[%s3922 + $0x8] sm:$0xff]
        %v3925 = vld [vmem:[%s3922 + $0x10] sm:$0xff]
        %v3926 = vld [vmem:[%s3922 + $0x18] sm:$0xff]
        %v3927 = vld [vmem:[%s3922 + $0x20] sm:$0xff]
        %v3928 = vld [vmem:[%s3922 + $0x28] sm:$0xff]
        %v3929 = vld [vmem:[%s3922 + $0x30] sm:$0xff]
        %v3930 = vld [vmem:[%s3922 + $0x38] sm:$0xff]
        %v3931 = vld [vmem:[%s3922 + $0x40] sm:$0xff]
        %v3932 = vld [vmem:[%s3922 + $0x48] sm:$0xff]
        %v3933 = vld [vmem:[%s3922 + $0x50] sm:$0xff]
        %v3934 = vld [vmem:[%s3922 + $0x58] sm:$0xff]
        %v3935 = vld [vmem:[%s3922 + $0x60] sm:$0xff]
        %v3936 = vld [vmem:[%s3922 + $0x68] sm:$0xff]
        %v3937 = vld [vmem:[%s3922 + $0x70] sm:$0xff]
        %v3938 = vld [vmem:[%s3922 + $0x78] sm:$0xff]
        %v3939 = vld [vmem:[%s3889 + $0x12] sm:$0xff]
        %v3940 = vld [vmem:[%s3889 + $0x1a] sm:$0xff]
        %v3941 = vld [vmem:[%s3889 + $0x4a] sm:$0xff]
        %v3942 = vld [vmem:[%s3889 + $0x52] sm:$0xff]
        %v3943 = vld [vmem:[%s3889 + $0x82] sm:$0xff]
        %v3944 = vld [vmem:[%s3889 + $0x8a] sm:$0xff]
        %v3945 = vld [vmem:[%s3889 + $0xba] sm:$0xff]
        %v3946 = vld [vmem:[%s3889 + $0xc2] sm:$0xff]
        %v3947 = vld [vmem:[%s3889 + $0xf2] sm:$0xff]
        %v3948 = vld [vmem:[%s3889 + $0xfa] sm:$0xff]
        %v3949 = vld [vmem:[%s3889 + $0x12a] sm:$0xff]
        %v3950 = vld [vmem:[%s3889 + $0x132] sm:$0xff]
        %v3951 = vld [vmem:[%s3889 + $0x162] sm:$0xff]
        %v3952 = vld [vmem:[%s3889 + $0x16a] sm:$0xff]
        %v3953 = vld [vmem:[%s3889 + $0x19a] sm:$0xff]
        %v3954 = vld [vmem:[%s3889 + $0x1a2] sm:$0xff]
        %v3955 = vld [vmem:[%s3889 + $0x1d2] sm:$0xff]
        %v3956 = vld [vmem:[%s3889 + $0x1da] sm:$0xff]
        %v3957 = vld [vmem:[%s3889 + $0x20a] sm:$0xff]
        %v3958 = vld [vmem:[%s3889 + $0x212] sm:$0xff]
        %v3959 = vld [vmem:[%s3889 + $0x242] sm:$0xff]
        %v3960 = vld [vmem:[%s3889 + $0x24a] sm:$0xff]
        %v3961 = vld [vmem:[%s3889 + $0x27a] sm:$0xff]
        %v3962 = vld [vmem:[%s3889 + $0x282] sm:$0xff]
        %v3963 = vld [vmem:[%s3889 + $0x2b2] sm:$0xff]
        %v3964 = vld [vmem:[%s3889 + $0x2ba] sm:$0xff]
        %v3965 = vld [vmem:[%s3889 + $0x2ea] sm:$0xff]
        %v3966 = vld [vmem:[%s3889 + $0x2f2] sm:$0xff]
        %v3967 = vld [vmem:[%s3889 + $0x322] sm:$0xff]
        %v3968 = vld [vmem:[%s3889 + $0x32a] sm:$0xff]
        %v3969 = vld [vmem:[%s3889 + $0x35a] sm:$0xff]
        %v3970 = vld [vmem:[%s3889 + $0x362] sm:$0xff]
        %s3971 = scalar_lea.vmem %s3, 1280
        %v3972 = vld [vmem:[%s3971] sm:$0xff]
        %v3973 = vld [vmem:[%s3971 + $0x8] sm:$0xff]
        %v3974 = vld [vmem:[%s3971 + $0x10] sm:$0xff]
        %v3975 = vld [vmem:[%s3971 + $0x18] sm:$0xff]
        %v3976 = vld [vmem:[%s3971 + $0x20] sm:$0xff]
        %v3977 = vld [vmem:[%s3971 + $0x28] sm:$0xff]
        %v3978 = vld [vmem:[%s3971 + $0x30] sm:$0xff]
        %v3979 = vld [vmem:[%s3971 + $0x38] sm:$0xff]
        %v3980 = vld [vmem:[%s3971 + $0x40] sm:$0xff]
        %v3981 = vld [vmem:[%s3971 + $0x48] sm:$0xff]
        %v3982 = vld [vmem:[%s3971 + $0x50] sm:$0xff]
        %v3983 = vld [vmem:[%s3971 + $0x58] sm:$0xff]
        %v3984 = vld [vmem:[%s3971 + $0x60] sm:$0xff]
        %v3985 = vld [vmem:[%s3971 + $0x68] sm:$0xff]
        %v3986 = vld [vmem:[%s3971 + $0x70] sm:$0xff]
        %v3987 = vld [vmem:[%s3971 + $0x78] sm:$0xff]
        %3988 = vmatpush.msra.mxu0 %v3987
        %3989 = vmatpush.msra.mxu0 %v3986
        %3990 = vmatpush.msra.mxu0 %v3985
        %3991 = vmatpush.msra.mxu0 %v3984
        %3992 = vmatpush.msra.mxu0 %v3983
        %3993 = vmatpush.msra.mxu0 %v3982
        %3994 = vmatpush.msra.mxu0 %v3981
        %3995 = vmatpush.msra.mxu0 %v3980
        %3996 = vmatpush.msra.mxu0 %v3979
        %3997 = vmatpush.msra.mxu0 %v3978
        %3998 = vmatpush.msra.mxu0 %v3977
        %3999 = vmatpush.msra.mxu0 %v3976
        %4000 = vmatpush.msra.mxu0 %v3975
        %4001 = vmatpush.msra.mxu0 %v3974
        %4002 = vmatpush.msra.mxu0 %v3973
        %4003 = vmatpush.msra.mxu0 %v3972
        %4004 = vmatmul.f32.gmra.mxu0 %v3939
        %v4005 = vpop.f32.mrf.mxu0
        %v4006 = vadd.f32 0.0, %v4005
        %4007 = vmatmul.f32.gmra.mxu0 %v3940
        %v4008 = vpop.f32.mrf.mxu0
        %v4009 = vadd.f32 0.0, %v4008
        %4010 = vmatmul.f32.gmra.mxu0 %v3941
        %v4011 = vpop.f32.mrf.mxu0
        %v4012 = vadd.f32 0.0, %v4011
        %4013 = vmatmul.f32.gmra.mxu0 %v3942
        %v4014 = vpop.f32.mrf.mxu0
        %v4015 = vadd.f32 0.0, %v4014
        %4016 = vmatmul.f32.gmra.mxu0 %v3943
        %v4017 = vpop.f32.mrf.mxu0
        %v4018 = vadd.f32 0.0, %v4017
        %4019 = vmatmul.f32.gmra.mxu0 %v3944
        %v4020 = vpop.f32.mrf.mxu0
        %v4021 = vadd.f32 0.0, %v4020
        %4022 = vmatmul.f32.gmra.mxu0 %v3945
        %v4023 = vpop.f32.mrf.mxu0
        %v4024 = vadd.f32 0.0, %v4023
        %4025 = vmatmul.f32.gmra.mxu0 %v3946
        %v4026 = vpop.f32.mrf.mxu0
        %v4027 = vadd.f32 0.0, %v4026
        %4028 = vmatmul.f32.gmra.mxu0 %v3947
        %v4029 = vpop.f32.mrf.mxu0
        %v4030 = vadd.f32 0.0, %v4029
        %4031 = vmatmul.f32.gmra.mxu0 %v3948
        %v4032 = vpop.f32.mrf.mxu0
        %v4033 = vadd.f32 0.0, %v4032
        %4034 = vmatmul.f32.gmra.mxu0 %v3949
        %v4035 = vpop.f32.mrf.mxu0
        %v4036 = vadd.f32 0.0, %v4035
        %4037 = vmatmul.f32.gmra.mxu0 %v3950
        %v4038 = vpop.f32.mrf.mxu0
        %v4039 = vadd.f32 0.0, %v4038
        %4040 = vmatmul.f32.gmra.mxu0 %v3951
        %v4041 = vpop.f32.mrf.mxu0
        %v4042 = vadd.f32 0.0, %v4041
        %4043 = vmatmul.f32.gmra.mxu0 %v3952
        %v4044 = vpop.f32.mrf.mxu0
        %v4045 = vadd.f32 0.0, %v4044
        %4046 = vmatmul.f32.gmra.mxu0 %v3953
        %v4047 = vpop.f32.mrf.mxu0
        %v4048 = vadd.f32 0.0, %v4047
        %4049 = vmatmul.f32.gmra.mxu0 %v3954
        %v4050 = vpop.f32.mrf.mxu0
        %v4051 = vadd.f32 0.0, %v4050
        %4052 = vmatmul.f32.gmra.mxu0 %v3955
        %v4053 = vpop.f32.mrf.mxu0
        %v4054 = vadd.f32 0.0, %v4053
        %4055 = vmatmul.f32.gmra.mxu0 %v3956
        %v4056 = vpop.f32.mrf.mxu0
        %v4057 = vadd.f32 0.0, %v4056
        %4058 = vmatmul.f32.gmra.mxu0 %v3957
        %v4059 = vpop.f32.mrf.mxu0
        %v4060 = vadd.f32 0.0, %v4059
        %4061 = vmatmul.f32.gmra.mxu0 %v3958
        %v4062 = vpop.f32.mrf.mxu0
        %v4063 = vadd.f32 0.0, %v4062
        %4064 = vmatmul.f32.gmra.mxu0 %v3959
        %v4065 = vpop.f32.mrf.mxu0
        %v4066 = vadd.f32 0.0, %v4065
        %4067 = vmatmul.f32.gmra.mxu0 %v3960
        %v4068 = vpop.f32.mrf.mxu0
        %v4069 = vadd.f32 0.0, %v4068
        %4070 = vmatmul.f32.gmra.mxu0 %v3961
        %v4071 = vpop.f32.mrf.mxu0
        %v4072 = vadd.f32 0.0, %v4071
        %4073 = vmatmul.f32.gmra.mxu0 %v3962
        %v4074 = vpop.f32.mrf.mxu0
        %v4075 = vadd.f32 0.0, %v4074
        %4076 = vmatmul.f32.gmra.mxu0 %v3963
        %v4077 = vpop.f32.mrf.mxu0
        %v4078 = vadd.f32 0.0, %v4077
        %4079 = vmatmul.f32.gmra.mxu0 %v3964
        %v4080 = vpop.f32.mrf.mxu0
        %v4081 = vadd.f32 0.0, %v4080
        %4082 = vmatmul.f32.gmra.mxu0 %v3965
        %v4083 = vpop.f32.mrf.mxu0
        %v4084 = vadd.f32 0.0, %v4083
        %4085 = vmatmul.f32.gmra.mxu0 %v3966
        %v4086 = vpop.f32.mrf.mxu0
        %v4087 = vadd.f32 0.0, %v4086
        %4088 = vmatmul.f32.gmra.mxu0 %v3967
        %v4089 = vpop.f32.mrf.mxu0
        %v4090 = vadd.f32 0.0, %v4089
        %4091 = vmatmul.f32.gmra.mxu0 %v3968
        %v4092 = vpop.f32.mrf.mxu0
        %v4093 = vadd.f32 0.0, %v4092
        %4094 = vmatmul.f32.gmra.mxu0 %v3969
        %v4095 = vpop.f32.mrf.mxu0
        %v4096 = vadd.f32 0.0, %v4095
        %4097 = vmatmul.f32.gmra.mxu0 %v3970
        %v4098 = vpop.f32.mrf.mxu0
        %v4099 = vadd.f32 0.0, %v4098
        %4100 = vdwg.mxu0
        %4101 = vmatpush.msra.mxu0 %v3938
        %4102 = vmatpush.msra.mxu0 %v3937
        %4103 = vmatpush.msra.mxu0 %v3936
        %4104 = vmatpush.msra.mxu0 %v3935
        %4105 = vmatpush.msra.mxu0 %v3934
        %4106 = vmatpush.msra.mxu0 %v3933
        %4107 = vmatpush.msra.mxu0 %v3932
        %4108 = vmatpush.msra.mxu0 %v3931
        %4109 = vmatpush.msra.mxu0 %v3930
        %4110 = vmatpush.msra.mxu0 %v3929
        %4111 = vmatpush.msra.mxu0 %v3928
        %4112 = vmatpush.msra.mxu0 %v3927
        %4113 = vmatpush.msra.mxu0 %v3926
        %4114 = vmatpush.msra.mxu0 %v3925
        %4115 = vmatpush.msra.mxu0 %v3924
        %4116 = vmatpush.msra.mxu0 %v3923
        %4117 = vmatmul.f32.gmra.mxu0 %v3890
        %v4118 = vpop.f32.mrf.mxu0
        %v4119 = vadd.f32 %v4006, %v4118
        %4120 = vmatmul.f32.gmra.mxu0 %v3891
        %v4121 = vpop.f32.mrf.mxu0
        %v4122 = vadd.f32 %v4009, %v4121
        %4123 = vmatmul.f32.gmra.mxu0 %v3892
        %v4124 = vpop.f32.mrf.mxu0
        %v4125 = vadd.f32 %v4012, %v4124
        %4126 = vmatmul.f32.gmra.mxu0 %v3893
        %v4127 = vpop.f32.mrf.mxu0
        %v4128 = vadd.f32 %v4015, %v4127
        %4129 = vmatmul.f32.gmra.mxu0 %v3894
        %v4130 = vpop.f32.mrf.mxu0
        %v4131 = vadd.f32 %v4018, %v4130
        %4132 = vmatmul.f32.gmra.mxu0 %v3895
        %v4133 = vpop.f32.mrf.mxu0
        %v4134 = vadd.f32 %v4021, %v4133
        %4135 = vmatmul.f32.gmra.mxu0 %v3896
        %v4136 = vpop.f32.mrf.mxu0
        %v4137 = vadd.f32 %v4024, %v4136
        %4138 = vmatmul.f32.gmra.mxu0 %v3897
        %v4139 = vpop.f32.mrf.mxu0
        %v4140 = vadd.f32 %v4027, %v4139
        %4141 = vmatmul.f32.gmra.mxu0 %v3898
        %v4142 = vpop.f32.mrf.mxu0
        %v4143 = vadd.f32 %v4030, %v4142
        %4144 = vmatmul.f32.gmra.mxu0 %v3899
        %v4145 = vpop.f32.mrf.mxu0
        %v4146 = vadd.f32 %v4033, %v4145
        %4147 = vmatmul.f32.gmra.mxu0 %v3900
        %v4148 = vpop.f32.mrf.mxu0
        %v4149 = vadd.f32 %v4036, %v4148
        %4150 = vmatmul.f32.gmra.mxu0 %v3901
        %v4151 = vpop.f32.mrf.mxu0
        %v4152 = vadd.f32 %v4039, %v4151
        %4153 = vmatmul.f32.gmra.mxu0 %v3902
        %v4154 = vpop.f32.mrf.mxu0
        %v4155 = vadd.f32 %v4042, %v4154
        %4156 = vmatmul.f32.gmra.mxu0 %v3903
        %v4157 = vpop.f32.mrf.mxu0
        %v4158 = vadd.f32 %v4045, %v4157
        %4159 = vmatmul.f32.gmra.mxu0 %v3904
        %v4160 = vpop.f32.mrf.mxu0
        %v4161 = vadd.f32 %v4048, %v4160
        %4162 = vmatmul.f32.gmra.mxu0 %v3905
        %v4163 = vpop.f32.mrf.mxu0
        %v4164 = vadd.f32 %v4051, %v4163
        %4165 = vmatmul.f32.gmra.mxu0 %v3906
        %v4166 = vpop.f32.mrf.mxu0
        %v4167 = vadd.f32 %v4054, %v4166
        %4168 = vmatmul.f32.gmra.mxu0 %v3907
        %v4169 = vpop.f32.mrf.mxu0
        %v4170 = vadd.f32 %v4057, %v4169
        %4171 = vmatmul.f32.gmra.mxu0 %v3908
        %v4172 = vpop.f32.mrf.mxu0
        %v4173 = vadd.f32 %v4060, %v4172
        %4174 = vmatmul.f32.gmra.mxu0 %v3909
        %v4175 = vpop.f32.mrf.mxu0
        %v4176 = vadd.f32 %v4063, %v4175
        %4177 = vmatmul.f32.gmra.mxu0 %v3910
        %v4178 = vpop.f32.mrf.mxu0
        %v4179 = vadd.f32 %v4066, %v4178
        %4180 = vmatmul.f32.gmra.mxu0 %v3911
        %v4181 = vpop.f32.mrf.mxu0
        %v4182 = vadd.f32 %v4069, %v4181
        %4183 = vmatmul.f32.gmra.mxu0 %v3912
        %v4184 = vpop.f32.mrf.mxu0
        %v4185 = vadd.f32 %v4072, %v4184
        %4186 = vmatmul.f32.gmra.mxu0 %v3913
        %v4187 = vpop.f32.mrf.mxu0
        %v4188 = vadd.f32 %v4075, %v4187
        %4189 = vmatmul.f32.gmra.mxu0 %v3914
        %v4190 = vpop.f32.mrf.mxu0
        %v4191 = vadd.f32 %v4078, %v4190
        %4192 = vmatmul.f32.gmra.mxu0 %v3915
        %v4193 = vpop.f32.mrf.mxu0
        %v4194 = vadd.f32 %v4081, %v4193
        %4195 = vmatmul.f32.gmra.mxu0 %v3916
        %v4196 = vpop.f32.mrf.mxu0
        %v4197 = vadd.f32 %v4084, %v4196
        %4198 = vmatmul.f32.gmra.mxu0 %v3917
        %v4199 = vpop.f32.mrf.mxu0
        %v4200 = vadd.f32 %v4087, %v4199
        %4201 = vmatmul.f32.gmra.mxu0 %v3918
        %v4202 = vpop.f32.mrf.mxu0
        %v4203 = vadd.f32 %v4090, %v4202
        %4204 = vmatmul.f32.gmra.mxu0 %v3919
        %v4205 = vpop.f32.mrf.mxu0
        %v4206 = vadd.f32 %v4093, %v4205
        %4207 = vmatmul.f32.gmra.mxu0 %v3920
        %v4208 = vpop.f32.mrf.mxu0
        %v4209 = vadd.f32 %v4096, %v4208
        %4210 = vmatmul.f32.gmra.mxu0 %v3921
        %v4211 = vpop.f32.mrf.mxu0
        %v4212 = vadd.f32 %v4099, %v4211
        %4213 = vdwg.mxu0
        %v4214 = vld [vmem:[%s3889 + $0x1e] sm:$0xff]
        %v4215 = vld [vmem:[%s3889 + $0x26] sm:$0xff]
        %v4216 = vld [vmem:[%s3889 + $0x56] sm:$0xff]
        %v4217 = vld [vmem:[%s3889 + $0x5e] sm:$0xff]
        %v4218 = vld [vmem:[%s3889 + $0x8e] sm:$0xff]
        %v4219 = vld [vmem:[%s3889 + $0x96] sm:$0xff]
        %v4220 = vld [vmem:[%s3889 + $0xc6] sm:$0xff]
        %v4221 = vld [vmem:[%s3889 + $0xce] sm:$0xff]
        %v4222 = vld [vmem:[%s3889 + $0xfe] sm:$0xff]
        %v4223 = vld [vmem:[%s3889 + $0x106] sm:$0xff]
        %v4224 = vld [vmem:[%s3889 + $0x136] sm:$0xff]
        %v4225 = vld [vmem:[%s3889 + $0x13e] sm:$0xff]
        %v4226 = vld [vmem:[%s3889 + $0x16e] sm:$0xff]
        %v4227 = vld [vmem:[%s3889 + $0x176] sm:$0xff]
        %v4228 = vld [vmem:[%s3889 + $0x1a6] sm:$0xff]
        %v4229 = vld [vmem:[%s3889 + $0x1ae] sm:$0xff]
        %v4230 = vld [vmem:[%s3889 + $0x1de] sm:$0xff]
        %v4231 = vld [vmem:[%s3889 + $0x1e6] sm:$0xff]
        %v4232 = vld [vmem:[%s3889 + $0x216] sm:$0xff]
        %v4233 = vld [vmem:[%s3889 + $0x21e] sm:$0xff]
        %v4234 = vld [vmem:[%s3889 + $0x24e] sm:$0xff]
        %v4235 = vld [vmem:[%s3889 + $0x256] sm:$0xff]
        %v4236 = vld [vmem:[%s3889 + $0x286] sm:$0xff]
        %v4237 = vld [vmem:[%s3889 + $0x28e] sm:$0xff]
        %v4238 = vld [vmem:[%s3889 + $0x2be] sm:$0xff]
        %v4239 = vld [vmem:[%s3889 + $0x2c6] sm:$0xff]
        %v4240 = vld [vmem:[%s3889 + $0x2f6] sm:$0xff]
        %v4241 = vld [vmem:[%s3889 + $0x2fe] sm:$0xff]
        %v4242 = vld [vmem:[%s3889 + $0x32e] sm:$0xff]
        %v4243 = vld [vmem:[%s3889 + $0x336] sm:$0xff]
        %v4244 = vld [vmem:[%s3889 + $0x366] sm:$0xff]
        %v4245 = vld [vmem:[%s3889 + $0x36e] sm:$0xff]
        %s4246 = scalar_lea.vmem %s3, 1408
        %v4247 = vld [vmem:[%s4246] sm:$0xff]
        %v4248 = vld [vmem:[%s4246 + $0x8] sm:$0xff]
        %v4249 = vld [vmem:[%s4246 + $0x10] sm:$0xff]
        %v4250 = vld [vmem:[%s4246 + $0x18] sm:$0xff]
        %v4251 = vld [vmem:[%s4246 + $0x20] sm:$0xff]
        %v4252 = vld [vmem:[%s4246 + $0x28] sm:$0xff]
        %v4253 = vld [vmem:[%s4246 + $0x30] sm:$0xff]
        %v4254 = vld [vmem:[%s4246 + $0x38] sm:$0xff]
        %v4255 = vld [vmem:[%s4246 + $0x40] sm:$0xff]
        %v4256 = vld [vmem:[%s4246 + $0x48] sm:$0xff]
        %v4257 = vld [vmem:[%s4246 + $0x50] sm:$0xff]
        %v4258 = vld [vmem:[%s4246 + $0x58] sm:$0xff]
        %v4259 = vld [vmem:[%s4246 + $0x60] sm:$0xff]
        %v4260 = vld [vmem:[%s4246 + $0x68] sm:$0xff]
        %v4261 = vld [vmem:[%s4246 + $0x70] sm:$0xff]
        %v4262 = vld [vmem:[%s4246 + $0x78] sm:$0xff]
        %4263 = vmatpush.msra.mxu0 %v4262
        %4264 = vmatpush.msra.mxu0 %v4261
        %4265 = vmatpush.msra.mxu0 %v4260
        %4266 = vmatpush.msra.mxu0 %v4259
        %4267 = vmatpush.msra.mxu0 %v4258
        %4268 = vmatpush.msra.mxu0 %v4257
        %4269 = vmatpush.msra.mxu0 %v4256
        %4270 = vmatpush.msra.mxu0 %v4255
        %4271 = vmatpush.msra.mxu0 %v4254
        %4272 = vmatpush.msra.mxu0 %v4253
        %4273 = vmatpush.msra.mxu0 %v4252
        %4274 = vmatpush.msra.mxu0 %v4251
        %4275 = vmatpush.msra.mxu0 %v4250
        %4276 = vmatpush.msra.mxu0 %v4249
        %4277 = vmatpush.msra.mxu0 %v4248
        %4278 = vmatpush.msra.mxu0 %v4247
        %4279 = vmatmul.f32.gmra.mxu0 %v4214
        %v4280 = vpop.f32.mrf.mxu0
        %v4281 = vadd.f32 0.0, %v4280
        %4282 = vmatmul.f32.gmra.mxu0 %v4215
        %v4283 = vpop.f32.mrf.mxu0
        %v4284 = vadd.f32 0.0, %v4283
        %4285 = vmatmul.f32.gmra.mxu0 %v4216
        %v4286 = vpop.f32.mrf.mxu0
        %v4287 = vadd.f32 0.0, %v4286
        %4288 = vmatmul.f32.gmra.mxu0 %v4217
        %v4289 = vpop.f32.mrf.mxu0
        %v4290 = vadd.f32 0.0, %v4289
        %4291 = vmatmul.f32.gmra.mxu0 %v4218
        %v4292 = vpop.f32.mrf.mxu0
        %v4293 = vadd.f32 0.0, %v4292
        %4294 = vmatmul.f32.gmra.mxu0 %v4219
        %v4295 = vpop.f32.mrf.mxu0
        %v4296 = vadd.f32 0.0, %v4295
        %4297 = vmatmul.f32.gmra.mxu0 %v4220
        %v4298 = vpop.f32.mrf.mxu0
        %v4299 = vadd.f32 0.0, %v4298
        %4300 = vmatmul.f32.gmra.mxu0 %v4221
        %v4301 = vpop.f32.mrf.mxu0
        %v4302 = vadd.f32 0.0, %v4301
        %4303 = vmatmul.f32.gmra.mxu0 %v4222
        %v4304 = vpop.f32.mrf.mxu0
        %v4305 = vadd.f32 0.0, %v4304
        %4306 = vmatmul.f32.gmra.mxu0 %v4223
        %v4307 = vpop.f32.mrf.mxu0
        %v4308 = vadd.f32 0.0, %v4307
        %4309 = vmatmul.f32.gmra.mxu0 %v4224
        %v4310 = vpop.f32.mrf.mxu0
        %v4311 = vadd.f32 0.0, %v4310
        %4312 = vmatmul.f32.gmra.mxu0 %v4225
        %v4313 = vpop.f32.mrf.mxu0
        %v4314 = vadd.f32 0.0, %v4313
        %4315 = vmatmul.f32.gmra.mxu0 %v4226
        %v4316 = vpop.f32.mrf.mxu0
        %v4317 = vadd.f32 0.0, %v4316
        %4318 = vmatmul.f32.gmra.mxu0 %v4227
        %v4319 = vpop.f32.mrf.mxu0
        %v4320 = vadd.f32 0.0, %v4319
        %4321 = vmatmul.f32.gmra.mxu0 %v4228
        %v4322 = vpop.f32.mrf.mxu0
        %v4323 = vadd.f32 0.0, %v4322
        %4324 = vmatmul.f32.gmra.mxu0 %v4229
        %v4325 = vpop.f32.mrf.mxu0
        %v4326 = vadd.f32 0.0, %v4325
        %4327 = vmatmul.f32.gmra.mxu0 %v4230
        %v4328 = vpop.f32.mrf.mxu0
        %v4329 = vadd.f32 0.0, %v4328
        %4330 = vmatmul.f32.gmra.mxu0 %v4231
        %v4331 = vpop.f32.mrf.mxu0
        %v4332 = vadd.f32 0.0, %v4331
        %4333 = vmatmul.f32.gmra.mxu0 %v4232
        %v4334 = vpop.f32.mrf.mxu0
        %v4335 = vadd.f32 0.0, %v4334
        %4336 = vmatmul.f32.gmra.mxu0 %v4233
        %v4337 = vpop.f32.mrf.mxu0
        %v4338 = vadd.f32 0.0, %v4337
        %4339 = vmatmul.f32.gmra.mxu0 %v4234
        %v4340 = vpop.f32.mrf.mxu0
        %v4341 = vadd.f32 0.0, %v4340
        %4342 = vmatmul.f32.gmra.mxu0 %v4235
        %v4343 = vpop.f32.mrf.mxu0
        %v4344 = vadd.f32 0.0, %v4343
        %4345 = vmatmul.f32.gmra.mxu0 %v4236
        %v4346 = vpop.f32.mrf.mxu0
        %v4347 = vadd.f32 0.0, %v4346
        %4348 = vmatmul.f32.gmra.mxu0 %v4237
        %v4349 = vpop.f32.mrf.mxu0
        %v4350 = vadd.f32 0.0, %v4349
        %4351 = vmatmul.f32.gmra.mxu0 %v4238
        %v4352 = vpop.f32.mrf.mxu0
        %v4353 = vadd.f32 0.0, %v4352
        %4354 = vmatmul.f32.gmra.mxu0 %v4239
        %v4355 = vpop.f32.mrf.mxu0
        %v4356 = vadd.f32 0.0, %v4355
        %4357 = vmatmul.f32.gmra.mxu0 %v4240
        %v4358 = vpop.f32.mrf.mxu0
        %v4359 = vadd.f32 0.0, %v4358
        %4360 = vmatmul.f32.gmra.mxu0 %v4241
        %v4361 = vpop.f32.mrf.mxu0
        %v4362 = vadd.f32 0.0, %v4361
        %4363 = vmatmul.f32.gmra.mxu0 %v4242
        %v4364 = vpop.f32.mrf.mxu0
        %v4365 = vadd.f32 0.0, %v4364
        %4366 = vmatmul.f32.gmra.mxu0 %v4243
        %v4367 = vpop.f32.mrf.mxu0
        %v4368 = vadd.f32 0.0, %v4367
        %4369 = vmatmul.f32.gmra.mxu0 %v4244
        %v4370 = vpop.f32.mrf.mxu0
        %v4371 = vadd.f32 0.0, %v4370
        %4372 = vmatmul.f32.gmra.mxu0 %v4245
        %v4373 = vpop.f32.mrf.mxu0
        %v4374 = vadd.f32 0.0, %v4373
        %4375 = vdwg.mxu0
        %v4376 = vadd.f32 %v4119, %v4281
        %v4377 = vadd.f32 %v4122, %v4284
        %v4378 = vadd.f32 %v4125, %v4287
        %v4379 = vadd.f32 %v4128, %v4290
        %v4380 = vadd.f32 %v4131, %v4293
        %v4381 = vadd.f32 %v4134, %v4296
        %v4382 = vadd.f32 %v4137, %v4299
        %v4383 = vadd.f32 %v4140, %v4302
        %v4384 = vadd.f32 %v4143, %v4305
        %v4385 = vadd.f32 %v4146, %v4308
        %v4386 = vadd.f32 %v4149, %v4311
        %v4387 = vadd.f32 %v4152, %v4314
        %v4388 = vadd.f32 %v4155, %v4317
        %v4389 = vadd.f32 %v4158, %v4320
        %v4390 = vadd.f32 %v4161, %v4323
        %v4391 = vadd.f32 %v4164, %v4326
        %v4392 = vadd.f32 %v4167, %v4329
        %v4393 = vadd.f32 %v4170, %v4332
        %v4394 = vadd.f32 %v4173, %v4335
        %v4395 = vadd.f32 %v4176, %v4338
        %v4396 = vadd.f32 %v4179, %v4341
        %v4397 = vadd.f32 %v4182, %v4344
        %v4398 = vadd.f32 %v4185, %v4347
        %v4399 = vadd.f32 %v4188, %v4350
        %v4400 = vadd.f32 %v4191, %v4353
        %v4401 = vadd.f32 %v4194, %v4356
        %v4402 = vadd.f32 %v4197, %v4359
        %v4403 = vadd.f32 %v4200, %v4362
        %v4404 = vadd.f32 %v4203, %v4365
        %v4405 = vadd.f32 %v4206, %v4368
        %v4406 = vadd.f32 %v4209, %v4371
        %v4407 = vadd.f32 %v4212, %v4374
        %v4408 = vld [vmem:[%s1753 + $0x6] sm:$0xff]
        %v4409 = vld [vmem:[%s1753 + $0xe] sm:$0xff]
        %v4410 = vld [vmem:[%s1753 + $0x3e] sm:$0xff]
        %v4411 = vld [vmem:[%s1753 + $0x46] sm:$0xff]
        %v4412 = vld [vmem:[%s1753 + $0x76] sm:$0xff]
        %v4413 = vld [vmem:[%s1753 + $0x7e] sm:$0xff]
        %v4414 = vld [vmem:[%s1753 + $0xae] sm:$0xff]
        %v4415 = vld [vmem:[%s1753 + $0xb6] sm:$0xff]
        %v4416 = vld [vmem:[%s1753 + $0xe6] sm:$0xff]
        %v4417 = vld [vmem:[%s1753 + $0xee] sm:$0xff]
        %v4418 = vld [vmem:[%s1753 + $0x11e] sm:$0xff]
        %v4419 = vld [vmem:[%s1753 + $0x126] sm:$0xff]
        %v4420 = vld [vmem:[%s1753 + $0x156] sm:$0xff]
        %v4421 = vld [vmem:[%s1753 + $0x15e] sm:$0xff]
        %v4422 = vld [vmem:[%s1753 + $0x18e] sm:$0xff]
        %v4423 = vld [vmem:[%s1753 + $0x196] sm:$0xff]
        %v4424 = vld [vmem:[%s1753 + $0x1c6] sm:$0xff]
        %v4425 = vld [vmem:[%s1753 + $0x1ce] sm:$0xff]
        %v4426 = vld [vmem:[%s1753 + $0x1fe] sm:$0xff]
        %v4427 = vld [vmem:[%s1753 + $0x206] sm:$0xff]
        %v4428 = vld [vmem:[%s1753 + $0x236] sm:$0xff]
        %v4429 = vld [vmem:[%s1753 + $0x23e] sm:$0xff]
        %v4430 = vld [vmem:[%s1753 + $0x26e] sm:$0xff]
        %v4431 = vld [vmem:[%s1753 + $0x276] sm:$0xff]
        %v4432 = vld [vmem:[%s1753 + $0x2a6] sm:$0xff]
        %v4433 = vld [vmem:[%s1753 + $0x2ae] sm:$0xff]
        %v4434 = vld [vmem:[%s1753 + $0x2de] sm:$0xff]
        %v4435 = vld [vmem:[%s1753 + $0x2e6] sm:$0xff]
        %v4436 = vld [vmem:[%s1753 + $0x316] sm:$0xff]
        %v4437 = vld [vmem:[%s1753 + $0x31e] sm:$0xff]
        %v4438 = vld [vmem:[%s1753 + $0x34e] sm:$0xff]
        %v4439 = vld [vmem:[%s1753 + $0x356] sm:$0xff]
        %s4440 = scalar_lea.vmem %s3, 1536
        %v4441 = vld [vmem:[%s4440] sm:$0xff]
        %v4442 = vld [vmem:[%s4440 + $0x8] sm:$0xff]
        %v4443 = vld [vmem:[%s4440 + $0x10] sm:$0xff]
        %v4444 = vld [vmem:[%s4440 + $0x18] sm:$0xff]
        %v4445 = vld [vmem:[%s4440 + $0x20] sm:$0xff]
        %v4446 = vld [vmem:[%s4440 + $0x28] sm:$0xff]
        %v4447 = vld [vmem:[%s4440 + $0x30] sm:$0xff]
        %v4448 = vld [vmem:[%s4440 + $0x38] sm:$0xff]
        %v4449 = vld [vmem:[%s4440 + $0x40] sm:$0xff]
        %v4450 = vld [vmem:[%s4440 + $0x48] sm:$0xff]
        %v4451 = vld [vmem:[%s4440 + $0x50] sm:$0xff]
        %v4452 = vld [vmem:[%s4440 + $0x58] sm:$0xff]
        %v4453 = vld [vmem:[%s4440 + $0x60] sm:$0xff]
        %v4454 = vld [vmem:[%s4440 + $0x68] sm:$0xff]
        %v4455 = vld [vmem:[%s4440 + $0x70] sm:$0xff]
        %v4456 = vld [vmem:[%s4440 + $0x78] sm:$0xff]
        %4457 = vmatpush.msra.mxu0 %v4456
        %4458 = vmatpush.msra.mxu0 %v4455
        %4459 = vmatpush.msra.mxu0 %v4454
        %4460 = vmatpush.msra.mxu0 %v4453
        %4461 = vmatpush.msra.mxu0 %v4452
        %4462 = vmatpush.msra.mxu0 %v4451
        %4463 = vmatpush.msra.mxu0 %v4450
        %4464 = vmatpush.msra.mxu0 %v4449
        %4465 = vmatpush.msra.mxu0 %v4448
        %4466 = vmatpush.msra.mxu0 %v4447
        %4467 = vmatpush.msra.mxu0 %v4446
        %4468 = vmatpush.msra.mxu0 %v4445
        %4469 = vmatpush.msra.mxu0 %v4444
        %4470 = vmatpush.msra.mxu0 %v4443
        %4471 = vmatpush.msra.mxu0 %v4442
        %4472 = vmatpush.msra.mxu0 %v4441
        %4473 = vmatmul.f32.gmra.mxu0 %v4408
        %v4474 = vpop.f32.mrf.mxu0
        %v4475 = vadd.f32 0.0, %v4474
        %4476 = vmatmul.f32.gmra.mxu0 %v4409
        %v4477 = vpop.f32.mrf.mxu0
        %v4478 = vadd.f32 0.0, %v4477
        %4479 = vmatmul.f32.gmra.mxu0 %v4410
        %v4480 = vpop.f32.mrf.mxu0
        %v4481 = vadd.f32 0.0, %v4480
        %4482 = vmatmul.f32.gmra.mxu0 %v4411
        %v4483 = vpop.f32.mrf.mxu0
        %v4484 = vadd.f32 0.0, %v4483
        %4485 = vmatmul.f32.gmra.mxu0 %v4412
        %v4486 = vpop.f32.mrf.mxu0
        %v4487 = vadd.f32 0.0, %v4486
        %4488 = vmatmul.f32.gmra.mxu0 %v4413
        %v4489 = vpop.f32.mrf.mxu0
        %v4490 = vadd.f32 0.0, %v4489
        %4491 = vmatmul.f32.gmra.mxu0 %v4414
        %v4492 = vpop.f32.mrf.mxu0
        %v4493 = vadd.f32 0.0, %v4492
        %4494 = vmatmul.f32.gmra.mxu0 %v4415
        %v4495 = vpop.f32.mrf.mxu0
        %v4496 = vadd.f32 0.0, %v4495
        %4497 = vmatmul.f32.gmra.mxu0 %v4416
        %v4498 = vpop.f32.mrf.mxu0
        %v4499 = vadd.f32 0.0, %v4498
        %4500 = vmatmul.f32.gmra.mxu0 %v4417
        %v4501 = vpop.f32.mrf.mxu0
        %v4502 = vadd.f32 0.0, %v4501
        %4503 = vmatmul.f32.gmra.mxu0 %v4418
        %v4504 = vpop.f32.mrf.mxu0
        %v4505 = vadd.f32 0.0, %v4504
        %4506 = vmatmul.f32.gmra.mxu0 %v4419
        %v4507 = vpop.f32.mrf.mxu0
        %v4508 = vadd.f32 0.0, %v4507
        %4509 = vmatmul.f32.gmra.mxu0 %v4420
        %v4510 = vpop.f32.mrf.mxu0
        %v4511 = vadd.f32 0.0, %v4510
        %4512 = vmatmul.f32.gmra.mxu0 %v4421
        %v4513 = vpop.f32.mrf.mxu0
        %v4514 = vadd.f32 0.0, %v4513
        %4515 = vmatmul.f32.gmra.mxu0 %v4422
        %v4516 = vpop.f32.mrf.mxu0
        %v4517 = vadd.f32 0.0, %v4516
        %4518 = vmatmul.f32.gmra.mxu0 %v4423
        %v4519 = vpop.f32.mrf.mxu0
        %v4520 = vadd.f32 0.0, %v4519
        %4521 = vmatmul.f32.gmra.mxu0 %v4424
        %v4522 = vpop.f32.mrf.mxu0
        %v4523 = vadd.f32 0.0, %v4522
        %4524 = vmatmul.f32.gmra.mxu0 %v4425
        %v4525 = vpop.f32.mrf.mxu0
        %v4526 = vadd.f32 0.0, %v4525
        %4527 = vmatmul.f32.gmra.mxu0 %v4426
        %v4528 = vpop.f32.mrf.mxu0
        %v4529 = vadd.f32 0.0, %v4528
        %4530 = vmatmul.f32.gmra.mxu0 %v4427
        %v4531 = vpop.f32.mrf.mxu0
        %v4532 = vadd.f32 0.0, %v4531
        %4533 = vmatmul.f32.gmra.mxu0 %v4428
        %v4534 = vpop.f32.mrf.mxu0
        %v4535 = vadd.f32 0.0, %v4534
        %4536 = vmatmul.f32.gmra.mxu0 %v4429
        %v4537 = vpop.f32.mrf.mxu0
        %v4538 = vadd.f32 0.0, %v4537
        %4539 = vmatmul.f32.gmra.mxu0 %v4430
        %v4540 = vpop.f32.mrf.mxu0
        %v4541 = vadd.f32 0.0, %v4540
        %4542 = vmatmul.f32.gmra.mxu0 %v4431
        %v4543 = vpop.f32.mrf.mxu0
        %v4544 = vadd.f32 0.0, %v4543
        %4545 = vmatmul.f32.gmra.mxu0 %v4432
        %v4546 = vpop.f32.mrf.mxu0
        %v4547 = vadd.f32 0.0, %v4546
        %4548 = vmatmul.f32.gmra.mxu0 %v4433
        %v4549 = vpop.f32.mrf.mxu0
        %v4550 = vadd.f32 0.0, %v4549
        %4551 = vmatmul.f32.gmra.mxu0 %v4434
        %v4552 = vpop.f32.mrf.mxu0
        %v4553 = vadd.f32 0.0, %v4552
        %4554 = vmatmul.f32.gmra.mxu0 %v4435
        %v4555 = vpop.f32.mrf.mxu0
        %v4556 = vadd.f32 0.0, %v4555
        %4557 = vmatmul.f32.gmra.mxu0 %v4436
        %v4558 = vpop.f32.mrf.mxu0
        %v4559 = vadd.f32 0.0, %v4558
        %4560 = vmatmul.f32.gmra.mxu0 %v4437
        %v4561 = vpop.f32.mrf.mxu0
        %v4562 = vadd.f32 0.0, %v4561
        %4563 = vmatmul.f32.gmra.mxu0 %v4438
        %v4564 = vpop.f32.mrf.mxu0
        %v4565 = vadd.f32 0.0, %v4564
        %4566 = vmatmul.f32.gmra.mxu0 %v4439
        %v4567 = vpop.f32.mrf.mxu0
        %v4568 = vadd.f32 0.0, %v4567
        %4569 = vdwg.mxu0
        %v4570 = vadd.f32 %v4376, %v4475
        %v4571 = vadd.f32 %v4377, %v4478
        %v4572 = vadd.f32 %v4378, %v4481
        %v4573 = vadd.f32 %v4379, %v4484
        %v4574 = vadd.f32 %v4380, %v4487
        %v4575 = vadd.f32 %v4381, %v4490
        %v4576 = vadd.f32 %v4382, %v4493
        %v4577 = vadd.f32 %v4383, %v4496
        %v4578 = vadd.f32 %v4384, %v4499
        %v4579 = vadd.f32 %v4385, %v4502
        %v4580 = vadd.f32 %v4386, %v4505
        %v4581 = vadd.f32 %v4387, %v4508
        %v4582 = vadd.f32 %v4388, %v4511
        %v4583 = vadd.f32 %v4389, %v4514
        %v4584 = vadd.f32 %v4390, %v4517
        %v4585 = vadd.f32 %v4391, %v4520
        %v4586 = vadd.f32 %v4392, %v4523
        %v4587 = vadd.f32 %v4393, %v4526
        %v4588 = vadd.f32 %v4394, %v4529
        %v4589 = vadd.f32 %v4395, %v4532
        %v4590 = vadd.f32 %v4396, %v4535
        %v4591 = vadd.f32 %v4397, %v4538
        %v4592 = vadd.f32 %v4398, %v4541
        %v4593 = vadd.f32 %v4399, %v4544
        %v4594 = vadd.f32 %v4400, %v4547
        %v4595 = vadd.f32 %v4401, %v4550
        %v4596 = vadd.f32 %v4402, %v4553
        %v4597 = vadd.f32 %v4403, %v4556
        %v4598 = vadd.f32 %v4404, %v4559
        %v4599 = vadd.f32 %v4405, %v4562
        %v4600 = vadd.f32 %v4406, %v4565
        %v4601 = vadd.f32 %v4407, %v4568
        %s4602 = scalar_lea.vmem %s3, 1664
        %v4603 = vld [vmem:[%s4602] sm:$0xff]
        %v4604 = vld [vmem:[%s4602 + $0x8] sm:$0xff]
        %v4605 = vld [vmem:[%s4602 + $0x10] sm:$0xff]
        %v4606 = vld [vmem:[%s4602 + $0x18] sm:$0xff]
        %v4607 = vld [vmem:[%s4602 + $0x20] sm:$0xff]
        %v4608 = vld [vmem:[%s4602 + $0x28] sm:$0xff]
        %v4609 = vld [vmem:[%s4602 + $0x30] sm:$0xff]
        %v4610 = vld [vmem:[%s4602 + $0x38] sm:$0xff]
        %v4611 = vld [vmem:[%s4602 + $0x40] sm:$0xff]
        %v4612 = vld [vmem:[%s4602 + $0x48] sm:$0xff]
        %v4613 = vld [vmem:[%s4602 + $0x50] sm:$0xff]
        %v4614 = vld [vmem:[%s4602 + $0x58] sm:$0xff]
        %v4615 = vld [vmem:[%s4602 + $0x60] sm:$0xff]
        %v4616 = vld [vmem:[%s4602 + $0x68] sm:$0xff]
        %v4617 = vld [vmem:[%s4602 + $0x70] sm:$0xff]
        %v4618 = vld [vmem:[%s4602 + $0x78] sm:$0xff]
        %4619 = vmatpush.msra.mxu0 %v4618
        %4620 = vmatpush.msra.mxu0 %v4617
        %4621 = vmatpush.msra.mxu0 %v4616
        %4622 = vmatpush.msra.mxu0 %v4615
        %4623 = vmatpush.msra.mxu0 %v4614
        %4624 = vmatpush.msra.mxu0 %v4613
        %4625 = vmatpush.msra.mxu0 %v4612
        %4626 = vmatpush.msra.mxu0 %v4611
        %4627 = vmatpush.msra.mxu0 %v4610
        %4628 = vmatpush.msra.mxu0 %v4609
        %4629 = vmatpush.msra.mxu0 %v4608
        %4630 = vmatpush.msra.mxu0 %v4607
        %4631 = vmatpush.msra.mxu0 %v4606
        %4632 = vmatpush.msra.mxu0 %v4605
        %4633 = vmatpush.msra.mxu0 %v4604
        %4634 = vmatpush.msra.mxu0 %v4603
        %4635 = vmatmul.f32.gmra.mxu0 %v1754
        %v4636 = vpop.f32.mrf.mxu0
        %v4637 = vadd.f32 0.0, %v4636
        %4638 = vmatmul.f32.gmra.mxu0 %v1755
        %v4639 = vpop.f32.mrf.mxu0
        %v4640 = vadd.f32 0.0, %v4639
        %4641 = vmatmul.f32.gmra.mxu0 %v1756
        %v4642 = vpop.f32.mrf.mxu0
        %v4643 = vadd.f32 0.0, %v4642
        %4644 = vmatmul.f32.gmra.mxu0 %v1757
        %v4645 = vpop.f32.mrf.mxu0
        %v4646 = vadd.f32 0.0, %v4645
        %4647 = vmatmul.f32.gmra.mxu0 %v1758
        %v4648 = vpop.f32.mrf.mxu0
        %v4649 = vadd.f32 0.0, %v4648
        %4650 = vmatmul.f32.gmra.mxu0 %v1759
        %v4651 = vpop.f32.mrf.mxu0
        %v4652 = vadd.f32 0.0, %v4651
        %4653 = vmatmul.f32.gmra.mxu0 %v1760
        %v4654 = vpop.f32.mrf.mxu0
        %v4655 = vadd.f32 0.0, %v4654
        %4656 = vmatmul.f32.gmra.mxu0 %v1761
        %v4657 = vpop.f32.mrf.mxu0
        %v4658 = vadd.f32 0.0, %v4657
        %4659 = vmatmul.f32.gmra.mxu0 %v1762
        %v4660 = vpop.f32.mrf.mxu0
        %v4661 = vadd.f32 0.0, %v4660
        %4662 = vmatmul.f32.gmra.mxu0 %v1763
        %v4663 = vpop.f32.mrf.mxu0
        %v4664 = vadd.f32 0.0, %v4663
        %4665 = vmatmul.f32.gmra.mxu0 %v1764
        %v4666 = vpop.f32.mrf.mxu0
        %v4667 = vadd.f32 0.0, %v4666
        %4668 = vmatmul.f32.gmra.mxu0 %v1765
        %v4669 = vpop.f32.mrf.mxu0
        %v4670 = vadd.f32 0.0, %v4669
        %4671 = vmatmul.f32.gmra.mxu0 %v1766
        %v4672 = vpop.f32.mrf.mxu0
        %v4673 = vadd.f32 0.0, %v4672
        %4674 = vmatmul.f32.gmra.mxu0 %v1767
        %v4675 = vpop.f32.mrf.mxu0
        %v4676 = vadd.f32 0.0, %v4675
        %4677 = vmatmul.f32.gmra.mxu0 %v1768
        %v4678 = vpop.f32.mrf.mxu0
        %v4679 = vadd.f32 0.0, %v4678
        %4680 = vmatmul.f32.gmra.mxu0 %v1769
        %v4681 = vpop.f32.mrf.mxu0
        %v4682 = vadd.f32 0.0, %v4681
        %4683 = vmatmul.f32.gmra.mxu0 %v1770
        %v4684 = vpop.f32.mrf.mxu0
        %v4685 = vadd.f32 0.0, %v4684
        %4686 = vmatmul.f32.gmra.mxu0 %v1771
        %v4687 = vpop.f32.mrf.mxu0
        %v4688 = vadd.f32 0.0, %v4687
        %4689 = vmatmul.f32.gmra.mxu0 %v1772
        %v4690 = vpop.f32.mrf.mxu0
        %v4691 = vadd.f32 0.0, %v4690
        %4692 = vmatmul.f32.gmra.mxu0 %v1773
        %v4693 = vpop.f32.mrf.mxu0
        %v4694 = vadd.f32 0.0, %v4693
        %4695 = vmatmul.f32.gmra.mxu0 %v1774
        %v4696 = vpop.f32.mrf.mxu0
        %v4697 = vadd.f32 0.0, %v4696
        %4698 = vmatmul.f32.gmra.mxu0 %v1775
        %v4699 = vpop.f32.mrf.mxu0
        %v4700 = vadd.f32 0.0, %v4699
        %4701 = vmatmul.f32.gmra.mxu0 %v1776
        %v4702 = vpop.f32.mrf.mxu0
        %v4703 = vadd.f32 0.0, %v4702
        %4704 = vmatmul.f32.gmra.mxu0 %v1777
        %v4705 = vpop.f32.mrf.mxu0
        %v4706 = vadd.f32 0.0, %v4705
        %4707 = vmatmul.f32.gmra.mxu0 %v1778
        %v4708 = vpop.f32.mrf.mxu0
        %v4709 = vadd.f32 0.0, %v4708
        %4710 = vmatmul.f32.gmra.mxu0 %v1779
        %v4711 = vpop.f32.mrf.mxu0
        %v4712 = vadd.f32 0.0, %v4711
        %4713 = vmatmul.f32.gmra.mxu0 %v1780
        %v4714 = vpop.f32.mrf.mxu0
        %v4715 = vadd.f32 0.0, %v4714
        %4716 = vmatmul.f32.gmra.mxu0 %v1781
        %v4717 = vpop.f32.mrf.mxu0
        %v4718 = vadd.f32 0.0, %v4717
        %4719 = vmatmul.f32.gmra.mxu0 %v1782
        %v4720 = vpop.f32.mrf.mxu0
        %v4721 = vadd.f32 0.0, %v4720
        %4722 = vmatmul.f32.gmra.mxu0 %v1783
        %v4723 = vpop.f32.mrf.mxu0
        %v4724 = vadd.f32 0.0, %v4723
        %4725 = vmatmul.f32.gmra.mxu0 %v1784
        %v4726 = vpop.f32.mrf.mxu0
        %v4727 = vadd.f32 0.0, %v4726
        %4728 = vmatmul.f32.gmra.mxu0 %v1785
        %v4729 = vpop.f32.mrf.mxu0
        %v4730 = vadd.f32 0.0, %v4729
        %4731 = vdwg.mxu0
        %v4732 = vadd.f32 %v4570, %v4637
        %v4733 = vadd.f32 %v4571, %v4640
        %v4734 = vadd.f32 %v4572, %v4643
        %v4735 = vadd.f32 %v4573, %v4646
        %v4736 = vadd.f32 %v4574, %v4649
        %v4737 = vadd.f32 %v4575, %v4652
        %v4738 = vadd.f32 %v4576, %v4655
        %v4739 = vadd.f32 %v4577, %v4658
        %v4740 = vadd.f32 %v4578, %v4661
        %v4741 = vadd.f32 %v4579, %v4664
        %v4742 = vadd.f32 %v4580, %v4667
        %v4743 = vadd.f32 %v4581, %v4670
        %v4744 = vadd.f32 %v4582, %v4673
        %v4745 = vadd.f32 %v4583, %v4676
        %v4746 = vadd.f32 %v4584, %v4679
        %v4747 = vadd.f32 %v4585, %v4682
        %v4748 = vadd.f32 %v4586, %v4685
        %v4749 = vadd.f32 %v4587, %v4688
        %v4750 = vadd.f32 %v4588, %v4691
        %v4751 = vadd.f32 %v4589, %v4694
        %v4752 = vadd.f32 %v4590, %v4697
        %v4753 = vadd.f32 %v4591, %v4700
        %v4754 = vadd.f32 %v4592, %v4703
        %v4755 = vadd.f32 %v4593, %v4706
        %v4756 = vadd.f32 %v4594, %v4709
        %v4757 = vadd.f32 %v4595, %v4712
        %v4758 = vadd.f32 %v4596, %v4715
        %v4759 = vadd.f32 %v4597, %v4718
        %v4760 = vadd.f32 %v4598, %v4721
        %v4761 = vadd.f32 %v4599, %v4724
        %v4762 = vadd.f32 %v4600, %v4727
        %v4763 = vadd.f32 %v4601, %v4730
        %v4764 = vld [vmem:[%s1753 + $0x1e] sm:$0xff]
        %v4765 = vld [vmem:[%s1753 + $0x26] sm:$0xff]
        %v4766 = vld [vmem:[%s1753 + $0x56] sm:$0xff]
        %v4767 = vld [vmem:[%s1753 + $0x5e] sm:$0xff]
        %v4768 = vld [vmem:[%s1753 + $0x8e] sm:$0xff]
        %v4769 = vld [vmem:[%s1753 + $0x96] sm:$0xff]
        %v4770 = vld [vmem:[%s1753 + $0xc6] sm:$0xff]
        %v4771 = vld [vmem:[%s1753 + $0xce] sm:$0xff]
        %v4772 = vld [vmem:[%s1753 + $0xfe] sm:$0xff]
        %v4773 = vld [vmem:[%s1753 + $0x106] sm:$0xff]
        %v4774 = vld [vmem:[%s1753 + $0x136] sm:$0xff]
        %v4775 = vld [vmem:[%s1753 + $0x13e] sm:$0xff]
        %v4776 = vld [vmem:[%s1753 + $0x16e] sm:$0xff]
        %v4777 = vld [vmem:[%s1753 + $0x176] sm:$0xff]
        %v4778 = vld [vmem:[%s1753 + $0x1a6] sm:$0xff]
        %v4779 = vld [vmem:[%s1753 + $0x1ae] sm:$0xff]
        %v4780 = vld [vmem:[%s1753 + $0x1de] sm:$0xff]
        %v4781 = vld [vmem:[%s1753 + $0x1e6] sm:$0xff]
        %v4782 = vld [vmem:[%s1753 + $0x216] sm:$0xff]
        %v4783 = vld [vmem:[%s1753 + $0x21e] sm:$0xff]
        %v4784 = vld [vmem:[%s1753 + $0x24e] sm:$0xff]
        %v4785 = vld [vmem:[%s1753 + $0x256] sm:$0xff]
        %v4786 = vld [vmem:[%s1753 + $0x286] sm:$0xff]
        %v4787 = vld [vmem:[%s1753 + $0x28e] sm:$0xff]
        %v4788 = vld [vmem:[%s1753 + $0x2be] sm:$0xff]
        %v4789 = vld [vmem:[%s1753 + $0x2c6] sm:$0xff]
        %v4790 = vld [vmem:[%s1753 + $0x2f6] sm:$0xff]
        %v4791 = vld [vmem:[%s1753 + $0x2fe] sm:$0xff]
        %v4792 = vld [vmem:[%s1753 + $0x32e] sm:$0xff]
        %v4793 = vld [vmem:[%s1753 + $0x336] sm:$0xff]
        %v4794 = vld [vmem:[%s1753 + $0x366] sm:$0xff]
        %v4795 = vld [vmem:[%s1753 + $0x36e] sm:$0xff]
        %s4796 = scalar_lea.vmem %s3, 1792
        %v4797 = vld [vmem:[%s4796] sm:$0xff]
        %v4798 = vld [vmem:[%s4796 + $0x8] sm:$0xff]
        %v4799 = vld [vmem:[%s4796 + $0x10] sm:$0xff]
        %v4800 = vld [vmem:[%s4796 + $0x18] sm:$0xff]
        %v4801 = vld [vmem:[%s4796 + $0x20] sm:$0xff]
        %v4802 = vld [vmem:[%s4796 + $0x28] sm:$0xff]
        %v4803 = vld [vmem:[%s4796 + $0x30] sm:$0xff]
        %v4804 = vld [vmem:[%s4796 + $0x38] sm:$0xff]
        %v4805 = vld [vmem:[%s4796 + $0x40] sm:$0xff]
        %v4806 = vld [vmem:[%s4796 + $0x48] sm:$0xff]
        %v4807 = vld [vmem:[%s4796 + $0x50] sm:$0xff]
        %v4808 = vld [vmem:[%s4796 + $0x58] sm:$0xff]
        %v4809 = vld [vmem:[%s4796 + $0x60] sm:$0xff]
        %v4810 = vld [vmem:[%s4796 + $0x68] sm:$0xff]
        %v4811 = vld [vmem:[%s4796 + $0x70] sm:$0xff]
        %v4812 = vld [vmem:[%s4796 + $0x78] sm:$0xff]
        %4813 = vmatpush.msra.mxu0 %v4812
        %4814 = vmatpush.msra.mxu0 %v4811
        %4815 = vmatpush.msra.mxu0 %v4810
        %4816 = vmatpush.msra.mxu0 %v4809
        %4817 = vmatpush.msra.mxu0 %v4808
        %4818 = vmatpush.msra.mxu0 %v4807
        %4819 = vmatpush.msra.mxu0 %v4806
        %4820 = vmatpush.msra.mxu0 %v4805
        %4821 = vmatpush.msra.mxu0 %v4804
        %4822 = vmatpush.msra.mxu0 %v4803
        %4823 = vmatpush.msra.mxu0 %v4802
        %4824 = vmatpush.msra.mxu0 %v4801
        %4825 = vmatpush.msra.mxu0 %v4800
        %4826 = vmatpush.msra.mxu0 %v4799
        %4827 = vmatpush.msra.mxu0 %v4798
        %4828 = vmatpush.msra.mxu0 %v4797
        %4829 = vmatmul.f32.gmra.mxu0 %v4764
        %v4830 = vpop.f32.mrf.mxu0
        %v4831 = vadd.f32 0.0, %v4830
        %4832 = vmatmul.f32.gmra.mxu0 %v4765
        %v4833 = vpop.f32.mrf.mxu0
        %v4834 = vadd.f32 0.0, %v4833
        %4835 = vmatmul.f32.gmra.mxu0 %v4766
        %v4836 = vpop.f32.mrf.mxu0
        %v4837 = vadd.f32 0.0, %v4836
        %4838 = vmatmul.f32.gmra.mxu0 %v4767
        %v4839 = vpop.f32.mrf.mxu0
        %v4840 = vadd.f32 0.0, %v4839
        %4841 = vmatmul.f32.gmra.mxu0 %v4768
        %v4842 = vpop.f32.mrf.mxu0
        %v4843 = vadd.f32 0.0, %v4842
        %4844 = vmatmul.f32.gmra.mxu0 %v4769
        %v4845 = vpop.f32.mrf.mxu0
        %v4846 = vadd.f32 0.0, %v4845
        %4847 = vmatmul.f32.gmra.mxu0 %v4770
        %v4848 = vpop.f32.mrf.mxu0
        %v4849 = vadd.f32 0.0, %v4848
        %4850 = vmatmul.f32.gmra.mxu0 %v4771
        %v4851 = vpop.f32.mrf.mxu0
        %v4852 = vadd.f32 0.0, %v4851
        %4853 = vmatmul.f32.gmra.mxu0 %v4772
        %v4854 = vpop.f32.mrf.mxu0
        %v4855 = vadd.f32 0.0, %v4854
        %4856 = vmatmul.f32.gmra.mxu0 %v4773
        %v4857 = vpop.f32.mrf.mxu0
        %v4858 = vadd.f32 0.0, %v4857
        %4859 = vmatmul.f32.gmra.mxu0 %v4774
        %v4860 = vpop.f32.mrf.mxu0
        %v4861 = vadd.f32 0.0, %v4860
        %4862 = vmatmul.f32.gmra.mxu0 %v4775
        %v4863 = vpop.f32.mrf.mxu0
        %v4864 = vadd.f32 0.0, %v4863
        %4865 = vmatmul.f32.gmra.mxu0 %v4776
        %v4866 = vpop.f32.mrf.mxu0
        %v4867 = vadd.f32 0.0, %v4866
        %4868 = vmatmul.f32.gmra.mxu0 %v4777
        %v4869 = vpop.f32.mrf.mxu0
        %v4870 = vadd.f32 0.0, %v4869
        %4871 = vmatmul.f32.gmra.mxu0 %v4778
        %v4872 = vpop.f32.mrf.mxu0
        %v4873 = vadd.f32 0.0, %v4872
        %4874 = vmatmul.f32.gmra.mxu0 %v4779
        %v4875 = vpop.f32.mrf.mxu0
        %v4876 = vadd.f32 0.0, %v4875
        %4877 = vmatmul.f32.gmra.mxu0 %v4780
        %v4878 = vpop.f32.mrf.mxu0
        %v4879 = vadd.f32 0.0, %v4878
        %4880 = vmatmul.f32.gmra.mxu0 %v4781
        %v4881 = vpop.f32.mrf.mxu0
        %v4882 = vadd.f32 0.0, %v4881
        %4883 = vmatmul.f32.gmra.mxu0 %v4782
        %v4884 = vpop.f32.mrf.mxu0
        %v4885 = vadd.f32 0.0, %v4884
        %4886 = vmatmul.f32.gmra.mxu0 %v4783
        %v4887 = vpop.f32.mrf.mxu0
        %v4888 = vadd.f32 0.0, %v4887
        %4889 = vmatmul.f32.gmra.mxu0 %v4784
        %v4890 = vpop.f32.mrf.mxu0
        %v4891 = vadd.f32 0.0, %v4890
        %4892 = vmatmul.f32.gmra.mxu0 %v4785
        %v4893 = vpop.f32.mrf.mxu0
        %v4894 = vadd.f32 0.0, %v4893
        %4895 = vmatmul.f32.gmra.mxu0 %v4786
        %v4896 = vpop.f32.mrf.mxu0
        %v4897 = vadd.f32 0.0, %v4896
        %4898 = vmatmul.f32.gmra.mxu0 %v4787
        %v4899 = vpop.f32.mrf.mxu0
        %v4900 = vadd.f32 0.0, %v4899
        %4901 = vmatmul.f32.gmra.mxu0 %v4788
        %v4902 = vpop.f32.mrf.mxu0
        %v4903 = vadd.f32 0.0, %v4902
        %4904 = vmatmul.f32.gmra.mxu0 %v4789
        %v4905 = vpop.f32.mrf.mxu0
        %v4906 = vadd.f32 0.0, %v4905
        %4907 = vmatmul.f32.gmra.mxu0 %v4790
        %v4908 = vpop.f32.mrf.mxu0
        %v4909 = vadd.f32 0.0, %v4908
        %4910 = vmatmul.f32.gmra.mxu0 %v4791
        %v4911 = vpop.f32.mrf.mxu0
        %v4912 = vadd.f32 0.0, %v4911
        %4913 = vmatmul.f32.gmra.mxu0 %v4792
        %v4914 = vpop.f32.mrf.mxu0
        %v4915 = vadd.f32 0.0, %v4914
        %4916 = vmatmul.f32.gmra.mxu0 %v4793
        %v4917 = vpop.f32.mrf.mxu0
        %v4918 = vadd.f32 0.0, %v4917
        %4919 = vmatmul.f32.gmra.mxu0 %v4794
        %v4920 = vpop.f32.mrf.mxu0
        %v4921 = vadd.f32 0.0, %v4920
        %4922 = vmatmul.f32.gmra.mxu0 %v4795
        %v4923 = vpop.f32.mrf.mxu0
        %v4924 = vadd.f32 0.0, %v4923
        %4925 = vdwg.mxu0
        %v4926 = vadd.f32 %v4732, %v4831
        %v4927 = vadd.f32 %v4733, %v4834
        %v4928 = vadd.f32 %v4734, %v4837
        %v4929 = vadd.f32 %v4735, %v4840
        %v4930 = vadd.f32 %v4736, %v4843
        %v4931 = vadd.f32 %v4737, %v4846
        %v4932 = vadd.f32 %v4738, %v4849
        %v4933 = vadd.f32 %v4739, %v4852
        %v4934 = vadd.f32 %v4740, %v4855
        %v4935 = vadd.f32 %v4741, %v4858
        %v4936 = vadd.f32 %v4742, %v4861
        %v4937 = vadd.f32 %v4743, %v4864
        %v4938 = vadd.f32 %v4744, %v4867
        %v4939 = vadd.f32 %v4745, %v4870
        %v4940 = vadd.f32 %v4746, %v4873
        %v4941 = vadd.f32 %v4747, %v4876
        %v4942 = vadd.f32 %v4748, %v4879
        %v4943 = vadd.f32 %v4749, %v4882
        %v4944 = vadd.f32 %v4750, %v4885
        %v4945 = vadd.f32 %v4751, %v4888
        %v4946 = vadd.f32 %v4752, %v4891
        %v4947 = vadd.f32 %v4753, %v4894
        %v4948 = vadd.f32 %v4754, %v4897
        %v4949 = vadd.f32 %v4755, %v4900
        %v4950 = vadd.f32 %v4756, %v4903
        %v4951 = vadd.f32 %v4757, %v4906
        %v4952 = vadd.f32 %v4758, %v4909
        %v4953 = vadd.f32 %v4759, %v4912
        %v4954 = vadd.f32 %v4760, %v4915
        %v4955 = vadd.f32 %v4761, %v4918
        %v4956 = vadd.f32 %v4762, %v4921
        %v4957 = vadd.f32 %v4763, %v4924
        %s4958 = scalar_lea.vmem %s979, 1680 [#allocation2]
        %v4959 = vld [vmem:[%s4958 + $0x6] sm:$0xff]
        %v4960 = vld [vmem:[%s4958 + $0xe] sm:$0xff]
        %v4961 = vld [vmem:[%s4958 + $0x3e] sm:$0xff]
        %v4962 = vld [vmem:[%s4958 + $0x46] sm:$0xff]
        %v4963 = vld [vmem:[%s4958 + $0x76] sm:$0xff]
        %v4964 = vld [vmem:[%s4958 + $0x7e] sm:$0xff]
        %v4965 = vld [vmem:[%s4958 + $0xae] sm:$0xff]
        %v4966 = vld [vmem:[%s4958 + $0xb6] sm:$0xff]
        %v4967 = vld [vmem:[%s4958 + $0xe6] sm:$0xff]
        %v4968 = vld [vmem:[%s4958 + $0xee] sm:$0xff]
        %v4969 = vld [vmem:[%s4958 + $0x11e] sm:$0xff]
        %v4970 = vld [vmem:[%s4958 + $0x126] sm:$0xff]
        %v4971 = vld [vmem:[%s4958 + $0x156] sm:$0xff]
        %v4972 = vld [vmem:[%s4958 + $0x15e] sm:$0xff]
        %v4973 = vld [vmem:[%s4958 + $0x18e] sm:$0xff]
        %v4974 = vld [vmem:[%s4958 + $0x196] sm:$0xff]
        %v4975 = vld [vmem:[%s4958 + $0x1c6] sm:$0xff]
        %v4976 = vld [vmem:[%s4958 + $0x1ce] sm:$0xff]
        %v4977 = vld [vmem:[%s4958 + $0x1fe] sm:$0xff]
        %v4978 = vld [vmem:[%s4958 + $0x206] sm:$0xff]
        %v4979 = vld [vmem:[%s4958 + $0x236] sm:$0xff]
        %v4980 = vld [vmem:[%s4958 + $0x23e] sm:$0xff]
        %v4981 = vld [vmem:[%s4958 + $0x26e] sm:$0xff]
        %v4982 = vld [vmem:[%s4958 + $0x276] sm:$0xff]
        %v4983 = vld [vmem:[%s4958 + $0x2a6] sm:$0xff]
        %v4984 = vld [vmem:[%s4958 + $0x2ae] sm:$0xff]
        %v4985 = vld [vmem:[%s4958 + $0x2de] sm:$0xff]
        %v4986 = vld [vmem:[%s4958 + $0x2e6] sm:$0xff]
        %v4987 = vld [vmem:[%s4958 + $0x316] sm:$0xff]
        %v4988 = vld [vmem:[%s4958 + $0x31e] sm:$0xff]
        %v4989 = vld [vmem:[%s4958 + $0x34e] sm:$0xff]
        %v4990 = vld [vmem:[%s4958 + $0x356] sm:$0xff]
        %s4991 = scalar_lea.vmem %s3, 1920
        %v4992 = vld [vmem:[%s4991] sm:$0xff]
        %v4993 = vld [vmem:[%s4991 + $0x8] sm:$0xff]
        %v4994 = vld [vmem:[%s4991 + $0x10] sm:$0xff]
        %v4995 = vld [vmem:[%s4991 + $0x18] sm:$0xff]
        %v4996 = vld [vmem:[%s4991 + $0x20] sm:$0xff]
        %v4997 = vld [vmem:[%s4991 + $0x28] sm:$0xff]
        %v4998 = vld [vmem:[%s4991 + $0x30] sm:$0xff]
        %v4999 = vld [vmem:[%s4991 + $0x38] sm:$0xff]
        %v5000 = vld [vmem:[%s4991 + $0x40] sm:$0xff]
        %v5001 = vld [vmem:[%s4991 + $0x48] sm:$0xff]
        %v5002 = vld [vmem:[%s4991 + $0x50] sm:$0xff]
        %v5003 = vld [vmem:[%s4991 + $0x58] sm:$0xff]
        %v5004 = vld [vmem:[%s4991 + $0x60] sm:$0xff]
        %v5005 = vld [vmem:[%s4991 + $0x68] sm:$0xff]
        %v5006 = vld [vmem:[%s4991 + $0x70] sm:$0xff]
        %v5007 = vld [vmem:[%s4991 + $0x78] sm:$0xff]
        %5008 = vmatpush.msra.mxu0 %v5007
        %5009 = vmatpush.msra.mxu0 %v5006
        %5010 = vmatpush.msra.mxu0 %v5005
        %5011 = vmatpush.msra.mxu0 %v5004
        %5012 = vmatpush.msra.mxu0 %v5003
        %5013 = vmatpush.msra.mxu0 %v5002
        %5014 = vmatpush.msra.mxu0 %v5001
        %5015 = vmatpush.msra.mxu0 %v5000
        %5016 = vmatpush.msra.mxu0 %v4999
        %5017 = vmatpush.msra.mxu0 %v4998
        %5018 = vmatpush.msra.mxu0 %v4997
        %5019 = vmatpush.msra.mxu0 %v4996
        %5020 = vmatpush.msra.mxu0 %v4995
        %5021 = vmatpush.msra.mxu0 %v4994
        %5022 = vmatpush.msra.mxu0 %v4993
        %5023 = vmatpush.msra.mxu0 %v4992
        %5024 = vmatmul.f32.gmra.mxu0 %v4959
        %v5025 = vpop.f32.mrf.mxu0
        %v5026 = vadd.f32 0.0, %v5025
        %5027 = vmatmul.f32.gmra.mxu0 %v4960
        %v5028 = vpop.f32.mrf.mxu0
        %v5029 = vadd.f32 0.0, %v5028
        %5030 = vmatmul.f32.gmra.mxu0 %v4961
        %v5031 = vpop.f32.mrf.mxu0
        %v5032 = vadd.f32 0.0, %v5031
        %5033 = vmatmul.f32.gmra.mxu0 %v4962
        %v5034 = vpop.f32.mrf.mxu0
        %v5035 = vadd.f32 0.0, %v5034
        %5036 = vmatmul.f32.gmra.mxu0 %v4963
        %v5037 = vpop.f32.mrf.mxu0
        %v5038 = vadd.f32 0.0, %v5037
        %5039 = vmatmul.f32.gmra.mxu0 %v4964
        %v5040 = vpop.f32.mrf.mxu0
        %v5041 = vadd.f32 0.0, %v5040
        %5042 = vmatmul.f32.gmra.mxu0 %v4965
        %v5043 = vpop.f32.mrf.mxu0
        %v5044 = vadd.f32 0.0, %v5043
        %5045 = vmatmul.f32.gmra.mxu0 %v4966
        %v5046 = vpop.f32.mrf.mxu0
        %v5047 = vadd.f32 0.0, %v5046
        %5048 = vmatmul.f32.gmra.mxu0 %v4967
        %v5049 = vpop.f32.mrf.mxu0
        %v5050 = vadd.f32 0.0, %v5049
        %5051 = vmatmul.f32.gmra.mxu0 %v4968
        %v5052 = vpop.f32.mrf.mxu0
        %v5053 = vadd.f32 0.0, %v5052
        %5054 = vmatmul.f32.gmra.mxu0 %v4969
        %v5055 = vpop.f32.mrf.mxu0
        %v5056 = vadd.f32 0.0, %v5055
        %5057 = vmatmul.f32.gmra.mxu0 %v4970
        %v5058 = vpop.f32.mrf.mxu0
        %v5059 = vadd.f32 0.0, %v5058
        %5060 = vmatmul.f32.gmra.mxu0 %v4971
        %v5061 = vpop.f32.mrf.mxu0
        %v5062 = vadd.f32 0.0, %v5061
        %5063 = vmatmul.f32.gmra.mxu0 %v4972
        %v5064 = vpop.f32.mrf.mxu0
        %v5065 = vadd.f32 0.0, %v5064
        %5066 = vmatmul.f32.gmra.mxu0 %v4973
        %v5067 = vpop.f32.mrf.mxu0
        %v5068 = vadd.f32 0.0, %v5067
        %5069 = vmatmul.f32.gmra.mxu0 %v4974
        %v5070 = vpop.f32.mrf.mxu0
        %v5071 = vadd.f32 0.0, %v5070
        %5072 = vmatmul.f32.gmra.mxu0 %v4975
        %v5073 = vpop.f32.mrf.mxu0
        %v5074 = vadd.f32 0.0, %v5073
        %5075 = vmatmul.f32.gmra.mxu0 %v4976
        %v5076 = vpop.f32.mrf.mxu0
        %v5077 = vadd.f32 0.0, %v5076
        %5078 = vmatmul.f32.gmra.mxu0 %v4977
        %v5079 = vpop.f32.mrf.mxu0
        %v5080 = vadd.f32 0.0, %v5079
        %5081 = vmatmul.f32.gmra.mxu0 %v4978
        %v5082 = vpop.f32.mrf.mxu0
        %v5083 = vadd.f32 0.0, %v5082
        %5084 = vmatmul.f32.gmra.mxu0 %v4979
        %v5085 = vpop.f32.mrf.mxu0
        %v5086 = vadd.f32 0.0, %v5085
        %5087 = vmatmul.f32.gmra.mxu0 %v4980
        %v5088 = vpop.f32.mrf.mxu0
        %v5089 = vadd.f32 0.0, %v5088
        %5090 = vmatmul.f32.gmra.mxu0 %v4981
        %v5091 = vpop.f32.mrf.mxu0
        %v5092 = vadd.f32 0.0, %v5091
        %5093 = vmatmul.f32.gmra.mxu0 %v4982
        %v5094 = vpop.f32.mrf.mxu0
        %v5095 = vadd.f32 0.0, %v5094
        %5096 = vmatmul.f32.gmra.mxu0 %v4983
        %v5097 = vpop.f32.mrf.mxu0
        %v5098 = vadd.f32 0.0, %v5097
        %5099 = vmatmul.f32.gmra.mxu0 %v4984
        %v5100 = vpop.f32.mrf.mxu0
        %v5101 = vadd.f32 0.0, %v5100
        %5102 = vmatmul.f32.gmra.mxu0 %v4985
        %v5103 = vpop.f32.mrf.mxu0
        %v5104 = vadd.f32 0.0, %v5103
        %5105 = vmatmul.f32.gmra.mxu0 %v4986
        %v5106 = vpop.f32.mrf.mxu0
        %v5107 = vadd.f32 0.0, %v5106
        %5108 = vmatmul.f32.gmra.mxu0 %v4987
        %v5109 = vpop.f32.mrf.mxu0
        %v5110 = vadd.f32 0.0, %v5109
        %5111 = vmatmul.f32.gmra.mxu0 %v4988
        %v5112 = vpop.f32.mrf.mxu0
        %v5113 = vadd.f32 0.0, %v5112
        %5114 = vmatmul.f32.gmra.mxu0 %v4989
        %v5115 = vpop.f32.mrf.mxu0
        %v5116 = vadd.f32 0.0, %v5115
        %5117 = vmatmul.f32.gmra.mxu0 %v4990
        %v5118 = vpop.f32.mrf.mxu0
        %v5119 = vadd.f32 0.0, %v5118
        %5120 = vdwg.mxu0
        %v5121 = vadd.f32 %v4926, %v5026
        %v5122 = vadd.f32 %v4927, %v5029
        %v5123 = vadd.f32 %v4928, %v5032
        %v5124 = vadd.f32 %v4929, %v5035
        %v5125 = vadd.f32 %v4930, %v5038
        %v5126 = vadd.f32 %v4931, %v5041
        %v5127 = vadd.f32 %v4932, %v5044
        %v5128 = vadd.f32 %v4933, %v5047
        %v5129 = vadd.f32 %v4934, %v5050
        %v5130 = vadd.f32 %v4935, %v5053
        %v5131 = vadd.f32 %v4936, %v5056
        %v5132 = vadd.f32 %v4937, %v5059
        %v5133 = vadd.f32 %v4938, %v5062
        %v5134 = vadd.f32 %v4939, %v5065
        %v5135 = vadd.f32 %v4940, %v5068
        %v5136 = vadd.f32 %v4941, %v5071
        %v5137 = vadd.f32 %v4942, %v5074
        %v5138 = vadd.f32 %v4943, %v5077
        %v5139 = vadd.f32 %v4944, %v5080
        %v5140 = vadd.f32 %v4945, %v5083
        %v5141 = vadd.f32 %v4946, %v5086
        %v5142 = vadd.f32 %v4947, %v5089
        %v5143 = vadd.f32 %v4948, %v5092
        %v5144 = vadd.f32 %v4949, %v5095
        %v5145 = vadd.f32 %v4950, %v5098
        %v5146 = vadd.f32 %v4951, %v5101
        %v5147 = vadd.f32 %v4952, %v5104
        %v5148 = vadd.f32 %v4953, %v5107
        %v5149 = vadd.f32 %v4954, %v5110
        %v5150 = vadd.f32 %v4955, %v5113
        %v5151 = vadd.f32 %v4956, %v5116
        %v5152 = vadd.f32 %v4957, %v5119
        %v5153 = vld [vmem:[%s4958 + $0x12] sm:$0xff]
        %v5154 = vld [vmem:[%s4958 + $0x1a] sm:$0xff]
        %v5155 = vld [vmem:[%s4958 + $0x4a] sm:$0xff]
        %v5156 = vld [vmem:[%s4958 + $0x52] sm:$0xff]
        %v5157 = vld [vmem:[%s4958 + $0x82] sm:$0xff]
        %v5158 = vld [vmem:[%s4958 + $0x8a] sm:$0xff]
        %v5159 = vld [vmem:[%s4958 + $0xba] sm:$0xff]
        %v5160 = vld [vmem:[%s4958 + $0xc2] sm:$0xff]
        %v5161 = vld [vmem:[%s4958 + $0xf2] sm:$0xff]
        %v5162 = vld [vmem:[%s4958 + $0xfa] sm:$0xff]
        %v5163 = vld [vmem:[%s4958 + $0x12a] sm:$0xff]
        %v5164 = vld [vmem:[%s4958 + $0x132] sm:$0xff]
        %v5165 = vld [vmem:[%s4958 + $0x162] sm:$0xff]
        %v5166 = vld [vmem:[%s4958 + $0x16a] sm:$0xff]
        %v5167 = vld [vmem:[%s4958 + $0x19a] sm:$0xff]
        %v5168 = vld [vmem:[%s4958 + $0x1a2] sm:$0xff]
        %v5169 = vld [vmem:[%s4958 + $0x1d2] sm:$0xff]
        %v5170 = vld [vmem:[%s4958 + $0x1da] sm:$0xff]
        %v5171 = vld [vmem:[%s4958 + $0x20a] sm:$0xff]
        %v5172 = vld [vmem:[%s4958 + $0x212] sm:$0xff]
        %v5173 = vld [vmem:[%s4958 + $0x242] sm:$0xff]
        %v5174 = vld [vmem:[%s4958 + $0x24a] sm:$0xff]
        %v5175 = vld [vmem:[%s4958 + $0x27a] sm:$0xff]
        %v5176 = vld [vmem:[%s4958 + $0x282] sm:$0xff]
        %v5177 = vld [vmem:[%s4958 + $0x2b2] sm:$0xff]
        %v5178 = vld [vmem:[%s4958 + $0x2ba] sm:$0xff]
        %v5179 = vld [vmem:[%s4958 + $0x2ea] sm:$0xff]
        %v5180 = vld [vmem:[%s4958 + $0x2f2] sm:$0xff]
        %v5181 = vld [vmem:[%s4958 + $0x322] sm:$0xff]
        %v5182 = vld [vmem:[%s4958 + $0x32a] sm:$0xff]
        %v5183 = vld [vmem:[%s4958 + $0x35a] sm:$0xff]
        %v5184 = vld [vmem:[%s4958 + $0x362] sm:$0xff]
        %s5185 = scalar_lea.vmem %s3, 2048
        %v5186 = vld [vmem:[%s5185] sm:$0xff]
        %v5187 = vld [vmem:[%s5185 + $0x8] sm:$0xff]
        %v5188 = vld [vmem:[%s5185 + $0x10] sm:$0xff]
        %v5189 = vld [vmem:[%s5185 + $0x18] sm:$0xff]
        %v5190 = vld [vmem:[%s5185 + $0x20] sm:$0xff]
        %v5191 = vld [vmem:[%s5185 + $0x28] sm:$0xff]
        %v5192 = vld [vmem:[%s5185 + $0x30] sm:$0xff]
        %v5193 = vld [vmem:[%s5185 + $0x38] sm:$0xff]
        %v5194 = vld [vmem:[%s5185 + $0x40] sm:$0xff]
        %v5195 = vld [vmem:[%s5185 + $0x48] sm:$0xff]
        %v5196 = vld [vmem:[%s5185 + $0x50] sm:$0xff]
        %v5197 = vld [vmem:[%s5185 + $0x58] sm:$0xff]
        %v5198 = vld [vmem:[%s5185 + $0x60] sm:$0xff]
        %v5199 = vld [vmem:[%s5185 + $0x68] sm:$0xff]
        %v5200 = vld [vmem:[%s5185 + $0x70] sm:$0xff]
        %v5201 = vld [vmem:[%s5185 + $0x78] sm:$0xff]
        %5202 = vmatpush.msra.mxu0 %v5201
        %5203 = vmatpush.msra.mxu0 %v5200
        %5204 = vmatpush.msra.mxu0 %v5199
        %5205 = vmatpush.msra.mxu0 %v5198
        %5206 = vmatpush.msra.mxu0 %v5197
        %5207 = vmatpush.msra.mxu0 %v5196
        %5208 = vmatpush.msra.mxu0 %v5195
        %5209 = vmatpush.msra.mxu0 %v5194
        %5210 = vmatpush.msra.mxu0 %v5193
        %5211 = vmatpush.msra.mxu0 %v5192
        %5212 = vmatpush.msra.mxu0 %v5191
        %5213 = vmatpush.msra.mxu0 %v5190
        %5214 = vmatpush.msra.mxu0 %v5189
        %5215 = vmatpush.msra.mxu0 %v5188
        %5216 = vmatpush.msra.mxu0 %v5187
        %5217 = vmatpush.msra.mxu0 %v5186
        %5218 = vmatmul.f32.gmra.mxu0 %v5153
        %v5219 = vpop.f32.mrf.mxu0
        %v5220 = vadd.f32 0.0, %v5219
        %5221 = vmatmul.f32.gmra.mxu0 %v5154
        %v5222 = vpop.f32.mrf.mxu0
        %v5223 = vadd.f32 0.0, %v5222
        %5224 = vmatmul.f32.gmra.mxu0 %v5155
        %v5225 = vpop.f32.mrf.mxu0
        %v5226 = vadd.f32 0.0, %v5225
        %5227 = vmatmul.f32.gmra.mxu0 %v5156
        %v5228 = vpop.f32.mrf.mxu0
        %v5229 = vadd.f32 0.0, %v5228
        %5230 = vmatmul.f32.gmra.mxu0 %v5157
        %v5231 = vpop.f32.mrf.mxu0
        %v5232 = vadd.f32 0.0, %v5231
        %5233 = vmatmul.f32.gmra.mxu0 %v5158
        %v5234 = vpop.f32.mrf.mxu0
        %v5235 = vadd.f32 0.0, %v5234
        %5236 = vmatmul.f32.gmra.mxu0 %v5159
        %v5237 = vpop.f32.mrf.mxu0
        %v5238 = vadd.f32 0.0, %v5237
        %5239 = vmatmul.f32.gmra.mxu0 %v5160
        %v5240 = vpop.f32.mrf.mxu0
        %v5241 = vadd.f32 0.0, %v5240
        %5242 = vmatmul.f32.gmra.mxu0 %v5161
        %v5243 = vpop.f32.mrf.mxu0
        %v5244 = vadd.f32 0.0, %v5243
        %5245 = vmatmul.f32.gmra.mxu0 %v5162
        %v5246 = vpop.f32.mrf.mxu0
        %v5247 = vadd.f32 0.0, %v5246
        %5248 = vmatmul.f32.gmra.mxu0 %v5163
        %v5249 = vpop.f32.mrf.mxu0
        %v5250 = vadd.f32 0.0, %v5249
        %5251 = vmatmul.f32.gmra.mxu0 %v5164
        %v5252 = vpop.f32.mrf.mxu0
        %v5253 = vadd.f32 0.0, %v5252
        %5254 = vmatmul.f32.gmra.mxu0 %v5165
        %v5255 = vpop.f32.mrf.mxu0
        %v5256 = vadd.f32 0.0, %v5255
        %5257 = vmatmul.f32.gmra.mxu0 %v5166
        %v5258 = vpop.f32.mrf.mxu0
        %v5259 = vadd.f32 0.0, %v5258
        %5260 = vmatmul.f32.gmra.mxu0 %v5167
        %v5261 = vpop.f32.mrf.mxu0
        %v5262 = vadd.f32 0.0, %v5261
        %5263 = vmatmul.f32.gmra.mxu0 %v5168
        %v5264 = vpop.f32.mrf.mxu0
        %v5265 = vadd.f32 0.0, %v5264
        %5266 = vmatmul.f32.gmra.mxu0 %v5169
        %v5267 = vpop.f32.mrf.mxu0
        %v5268 = vadd.f32 0.0, %v5267
        %5269 = vmatmul.f32.gmra.mxu0 %v5170
        %v5270 = vpop.f32.mrf.mxu0
        %v5271 = vadd.f32 0.0, %v5270
        %5272 = vmatmul.f32.gmra.mxu0 %v5171
        %v5273 = vpop.f32.mrf.mxu0
        %v5274 = vadd.f32 0.0, %v5273
        %5275 = vmatmul.f32.gmra.mxu0 %v5172
        %v5276 = vpop.f32.mrf.mxu0
        %v5277 = vadd.f32 0.0, %v5276
        %5278 = vmatmul.f32.gmra.mxu0 %v5173
        %v5279 = vpop.f32.mrf.mxu0
        %v5280 = vadd.f32 0.0, %v5279
        %5281 = vmatmul.f32.gmra.mxu0 %v5174
        %v5282 = vpop.f32.mrf.mxu0
        %v5283 = vadd.f32 0.0, %v5282
        %5284 = vmatmul.f32.gmra.mxu0 %v5175
        %v5285 = vpop.f32.mrf.mxu0
        %v5286 = vadd.f32 0.0, %v5285
        %5287 = vmatmul.f32.gmra.mxu0 %v5176
        %v5288 = vpop.f32.mrf.mxu0
        %v5289 = vadd.f32 0.0, %v5288
        %5290 = vmatmul.f32.gmra.mxu0 %v5177
        %v5291 = vpop.f32.mrf.mxu0
        %v5292 = vadd.f32 0.0, %v5291
        %5293 = vmatmul.f32.gmra.mxu0 %v5178
        %v5294 = vpop.f32.mrf.mxu0
        %v5295 = vadd.f32 0.0, %v5294
        %5296 = vmatmul.f32.gmra.mxu0 %v5179
        %v5297 = vpop.f32.mrf.mxu0
        %v5298 = vadd.f32 0.0, %v5297
        %5299 = vmatmul.f32.gmra.mxu0 %v5180
        %v5300 = vpop.f32.mrf.mxu0
        %v5301 = vadd.f32 0.0, %v5300
        %5302 = vmatmul.f32.gmra.mxu0 %v5181
        %v5303 = vpop.f32.mrf.mxu0
        %v5304 = vadd.f32 0.0, %v5303
        %5305 = vmatmul.f32.gmra.mxu0 %v5182
        %v5306 = vpop.f32.mrf.mxu0
        %v5307 = vadd.f32 0.0, %v5306
        %5308 = vmatmul.f32.gmra.mxu0 %v5183
        %v5309 = vpop.f32.mrf.mxu0
        %v5310 = vadd.f32 0.0, %v5309
        %5311 = vmatmul.f32.gmra.mxu0 %v5184
        %v5312 = vpop.f32.mrf.mxu0
        %v5313 = vadd.f32 0.0, %v5312
        %5314 = vdwg.mxu0
        %v5315 = vadd.f32 %v5121, %v5220
        %v5316 = vadd.f32 %v5122, %v5223
        %v5317 = vadd.f32 %v5123, %v5226
        %v5318 = vadd.f32 %v5124, %v5229
        %v5319 = vadd.f32 %v5125, %v5232
        %v5320 = vadd.f32 %v5126, %v5235
        %v5321 = vadd.f32 %v5127, %v5238
        %v5322 = vadd.f32 %v5128, %v5241
        %v5323 = vadd.f32 %v5129, %v5244
        %v5324 = vadd.f32 %v5130, %v5247
        %v5325 = vadd.f32 %v5131, %v5250
        %v5326 = vadd.f32 %v5132, %v5253
        %v5327 = vadd.f32 %v5133, %v5256
        %v5328 = vadd.f32 %v5134, %v5259
        %v5329 = vadd.f32 %v5135, %v5262
        %v5330 = vadd.f32 %v5136, %v5265
        %v5331 = vadd.f32 %v5137, %v5268
        %v5332 = vadd.f32 %v5138, %v5271
        %v5333 = vadd.f32 %v5139, %v5274
        %v5334 = vadd.f32 %v5140, %v5277
        %v5335 = vadd.f32 %v5141, %v5280
        %v5336 = vadd.f32 %v5142, %v5283
        %v5337 = vadd.f32 %v5143, %v5286
        %v5338 = vadd.f32 %v5144, %v5289
        %v5339 = vadd.f32 %v5145, %v5292
        %v5340 = vadd.f32 %v5146, %v5295
        %v5341 = vadd.f32 %v5147, %v5298
        %v5342 = vadd.f32 %v5148, %v5301
        %v5343 = vadd.f32 %v5149, %v5304
        %v5344 = vadd.f32 %v5150, %v5307
        %v5345 = vadd.f32 %v5151, %v5310
        %v5346 = vadd.f32 %v5152, %v5313
        %v5347 = vld [vmem:[%s4958 + $0x1e] sm:$0xff]
        %v5348 = vld [vmem:[%s4958 + $0x26] sm:$0xff]
        %v5349 = vld [vmem:[%s4958 + $0x56] sm:$0xff]
        %v5350 = vld [vmem:[%s4958 + $0x5e] sm:$0xff]
        %v5351 = vld [vmem:[%s4958 + $0x8e] sm:$0xff]
        %v5352 = vld [vmem:[%s4958 + $0x96] sm:$0xff]
        %v5353 = vld [vmem:[%s4958 + $0xc6] sm:$0xff]
        %v5354 = vld [vmem:[%s4958 + $0xce] sm:$0xff]
        %v5355 = vld [vmem:[%s4958 + $0xfe] sm:$0xff]
        %v5356 = vld [vmem:[%s4958 + $0x106] sm:$0xff]
        %v5357 = vld [vmem:[%s4958 + $0x136] sm:$0xff]
        %v5358 = vld [vmem:[%s4958 + $0x13e] sm:$0xff]
        %v5359 = vld [vmem:[%s4958 + $0x16e] sm:$0xff]
        %v5360 = vld [vmem:[%s4958 + $0x176] sm:$0xff]
        %v5361 = vld [vmem:[%s4958 + $0x1a6] sm:$0xff]
        %v5362 = vld [vmem:[%s4958 + $0x1ae] sm:$0xff]
        %v5363 = vld [vmem:[%s4958 + $0x1de] sm:$0xff]
        %v5364 = vld [vmem:[%s4958 + $0x1e6] sm:$0xff]
        %v5365 = vld [vmem:[%s4958 + $0x216] sm:$0xff]
        %v5366 = vld [vmem:[%s4958 + $0x21e] sm:$0xff]
        %v5367 = vld [vmem:[%s4958 + $0x24e] sm:$0xff]
        %v5368 = vld [vmem:[%s4958 + $0x256] sm:$0xff]
        %v5369 = vld [vmem:[%s4958 + $0x286] sm:$0xff]
        %v5370 = vld [vmem:[%s4958 + $0x28e] sm:$0xff]
        %v5371 = vld [vmem:[%s4958 + $0x2be] sm:$0xff]
        %v5372 = vld [vmem:[%s4958 + $0x2c6] sm:$0xff]
        %v5373 = vld [vmem:[%s4958 + $0x2f6] sm:$0xff]
        %v5374 = vld [vmem:[%s4958 + $0x2fe] sm:$0xff]
        %v5375 = vld [vmem:[%s4958 + $0x32e] sm:$0xff]
        %v5376 = vld [vmem:[%s4958 + $0x336] sm:$0xff]
        %v5377 = vld [vmem:[%s4958 + $0x366] sm:$0xff]
        %v5378 = vld [vmem:[%s4958 + $0x36e] sm:$0xff]
        %s5379 = scalar_lea.vmem %s3, 2176
        %v5380 = vld [vmem:[%s5379] sm:$0xff]
        %v5381 = vld [vmem:[%s5379 + $0x8] sm:$0xff]
        %v5382 = vld [vmem:[%s5379 + $0x10] sm:$0xff]
        %v5383 = vld [vmem:[%s5379 + $0x18] sm:$0xff]
        %v5384 = vld [vmem:[%s5379 + $0x20] sm:$0xff]
        %v5385 = vld [vmem:[%s5379 + $0x28] sm:$0xff]
        %v5386 = vld [vmem:[%s5379 + $0x30] sm:$0xff]
        %v5387 = vld [vmem:[%s5379 + $0x38] sm:$0xff]
        %v5388 = vld [vmem:[%s5379 + $0x40] sm:$0xff]
        %v5389 = vld [vmem:[%s5379 + $0x48] sm:$0xff]
        %v5390 = vld [vmem:[%s5379 + $0x50] sm:$0xff]
        %v5391 = vld [vmem:[%s5379 + $0x58] sm:$0xff]
        %v5392 = vld [vmem:[%s5379 + $0x60] sm:$0xff]
        %v5393 = vld [vmem:[%s5379 + $0x68] sm:$0xff]
        %v5394 = vld [vmem:[%s5379 + $0x70] sm:$0xff]
        %v5395 = vld [vmem:[%s5379 + $0x78] sm:$0xff]
        %5396 = vmatpush.msra.mxu0 %v5395
        %5397 = vmatpush.msra.mxu0 %v5394
        %5398 = vmatpush.msra.mxu0 %v5393
        %5399 = vmatpush.msra.mxu0 %v5392
        %5400 = vmatpush.msra.mxu0 %v5391
        %5401 = vmatpush.msra.mxu0 %v5390
        %5402 = vmatpush.msra.mxu0 %v5389
        %5403 = vmatpush.msra.mxu0 %v5388
        %5404 = vmatpush.msra.mxu0 %v5387
        %5405 = vmatpush.msra.mxu0 %v5386
        %5406 = vmatpush.msra.mxu0 %v5385
        %5407 = vmatpush.msra.mxu0 %v5384
        %5408 = vmatpush.msra.mxu0 %v5383
        %5409 = vmatpush.msra.mxu0 %v5382
        %5410 = vmatpush.msra.mxu0 %v5381
        %5411 = vmatpush.msra.mxu0 %v5380
        %5412 = vmatmul.f32.gmra.mxu0 %v5347
        %v5413 = vpop.f32.mrf.mxu0
        %v5414 = vadd.f32 0.0, %v5413
        %5415 = vmatmul.f32.gmra.mxu0 %v5348
        %v5416 = vpop.f32.mrf.mxu0
        %v5417 = vadd.f32 0.0, %v5416
        %5418 = vmatmul.f32.gmra.mxu0 %v5349
        %v5419 = vpop.f32.mrf.mxu0
        %v5420 = vadd.f32 0.0, %v5419
        %5421 = vmatmul.f32.gmra.mxu0 %v5350
        %v5422 = vpop.f32.mrf.mxu0
        %v5423 = vadd.f32 0.0, %v5422
        %5424 = vmatmul.f32.gmra.mxu0 %v5351
        %v5425 = vpop.f32.mrf.mxu0
        %v5426 = vadd.f32 0.0, %v5425
        %5427 = vmatmul.f32.gmra.mxu0 %v5352
        %v5428 = vpop.f32.mrf.mxu0
        %v5429 = vadd.f32 0.0, %v5428
        %5430 = vmatmul.f32.gmra.mxu0 %v5353
        %v5431 = vpop.f32.mrf.mxu0
        %v5432 = vadd.f32 0.0, %v5431
        %5433 = vmatmul.f32.gmra.mxu0 %v5354
        %v5434 = vpop.f32.mrf.mxu0
        %v5435 = vadd.f32 0.0, %v5434
        %5436 = vmatmul.f32.gmra.mxu0 %v5355
        %v5437 = vpop.f32.mrf.mxu0
        %v5438 = vadd.f32 0.0, %v5437
        %5439 = vmatmul.f32.gmra.mxu0 %v5356
        %v5440 = vpop.f32.mrf.mxu0
        %v5441 = vadd.f32 0.0, %v5440
        %5442 = vmatmul.f32.gmra.mxu0 %v5357
        %v5443 = vpop.f32.mrf.mxu0
        %v5444 = vadd.f32 0.0, %v5443
        %5445 = vmatmul.f32.gmra.mxu0 %v5358
        %v5446 = vpop.f32.mrf.mxu0
        %v5447 = vadd.f32 0.0, %v5446
        %5448 = vmatmul.f32.gmra.mxu0 %v5359
        %v5449 = vpop.f32.mrf.mxu0
        %v5450 = vadd.f32 0.0, %v5449
        %5451 = vmatmul.f32.gmra.mxu0 %v5360
        %v5452 = vpop.f32.mrf.mxu0
        %v5453 = vadd.f32 0.0, %v5452
        %5454 = vmatmul.f32.gmra.mxu0 %v5361
        %v5455 = vpop.f32.mrf.mxu0
        %v5456 = vadd.f32 0.0, %v5455
        %5457 = vmatmul.f32.gmra.mxu0 %v5362
        %v5458 = vpop.f32.mrf.mxu0
        %v5459 = vadd.f32 0.0, %v5458
        %5460 = vmatmul.f32.gmra.mxu0 %v5363
        %v5461 = vpop.f32.mrf.mxu0
        %v5462 = vadd.f32 0.0, %v5461
        %5463 = vmatmul.f32.gmra.mxu0 %v5364
        %v5464 = vpop.f32.mrf.mxu0
        %v5465 = vadd.f32 0.0, %v5464
        %5466 = vmatmul.f32.gmra.mxu0 %v5365
        %v5467 = vpop.f32.mrf.mxu0
        %v5468 = vadd.f32 0.0, %v5467
        %5469 = vmatmul.f32.gmra.mxu0 %v5366
        %v5470 = vpop.f32.mrf.mxu0
        %v5471 = vadd.f32 0.0, %v5470
        %5472 = vmatmul.f32.gmra.mxu0 %v5367
        %v5473 = vpop.f32.mrf.mxu0
        %v5474 = vadd.f32 0.0, %v5473
        %5475 = vmatmul.f32.gmra.mxu0 %v5368
        %v5476 = vpop.f32.mrf.mxu0
        %v5477 = vadd.f32 0.0, %v5476
        %5478 = vmatmul.f32.gmra.mxu0 %v5369
        %v5479 = vpop.f32.mrf.mxu0
        %v5480 = vadd.f32 0.0, %v5479
        %5481 = vmatmul.f32.gmra.mxu0 %v5370
        %v5482 = vpop.f32.mrf.mxu0
        %v5483 = vadd.f32 0.0, %v5482
        %5484 = vmatmul.f32.gmra.mxu0 %v5371
        %v5485 = vpop.f32.mrf.mxu0
        %v5486 = vadd.f32 0.0, %v5485
        %5487 = vmatmul.f32.gmra.mxu0 %v5372
        %v5488 = vpop.f32.mrf.mxu0
        %v5489 = vadd.f32 0.0, %v5488
        %5490 = vmatmul.f32.gmra.mxu0 %v5373
        %v5491 = vpop.f32.mrf.mxu0
        %v5492 = vadd.f32 0.0, %v5491
        %5493 = vmatmul.f32.gmra.mxu0 %v5374
        %v5494 = vpop.f32.mrf.mxu0
        %v5495 = vadd.f32 0.0, %v5494
        %5496 = vmatmul.f32.gmra.mxu0 %v5375
        %v5497 = vpop.f32.mrf.mxu0
        %v5498 = vadd.f32 0.0, %v5497
        %5499 = vmatmul.f32.gmra.mxu0 %v5376
        %v5500 = vpop.f32.mrf.mxu0
        %v5501 = vadd.f32 0.0, %v5500
        %5502 = vmatmul.f32.gmra.mxu0 %v5377
        %v5503 = vpop.f32.mrf.mxu0
        %v5504 = vadd.f32 0.0, %v5503
        %5505 = vmatmul.f32.gmra.mxu0 %v5378
        %v5506 = vpop.f32.mrf.mxu0
        %v5507 = vadd.f32 0.0, %v5506
        %5508 = vdwg.mxu0
        %v5509 = vadd.f32 %v5315, %v5414
        %v5510 = vadd.f32 %v5316, %v5417
        %v5511 = vadd.f32 %v5317, %v5420
        %v5512 = vadd.f32 %v5318, %v5423
        %v5513 = vadd.f32 %v5319, %v5426
        %v5514 = vadd.f32 %v5320, %v5429
        %v5515 = vadd.f32 %v5321, %v5432
        %v5516 = vadd.f32 %v5322, %v5435
        %v5517 = vadd.f32 %v5323, %v5438
        %v5518 = vadd.f32 %v5324, %v5441
        %v5519 = vadd.f32 %v5325, %v5444
        %v5520 = vadd.f32 %v5326, %v5447
        %v5521 = vadd.f32 %v5327, %v5450
        %v5522 = vadd.f32 %v5328, %v5453
        %v5523 = vadd.f32 %v5329, %v5456
        %v5524 = vadd.f32 %v5330, %v5459
        %v5525 = vadd.f32 %v5331, %v5462
        %v5526 = vadd.f32 %v5332, %v5465
        %v5527 = vadd.f32 %v5333, %v5468
        %v5528 = vadd.f32 %v5334, %v5471
        %v5529 = vadd.f32 %v5335, %v5474
        %v5530 = vadd.f32 %v5336, %v5477
        %v5531 = vadd.f32 %v5337, %v5480
        %v5532 = vadd.f32 %v5338, %v5483
        %v5533 = vadd.f32 %v5339, %v5486
        %v5534 = vadd.f32 %v5340, %v5489
        %v5535 = vadd.f32 %v5341, %v5492
        %v5536 = vadd.f32 %v5342, %v5495
        %v5537 = vadd.f32 %v5343, %v5498
        %v5538 = vadd.f32 %v5344, %v5501
        %v5539 = vadd.f32 %v5345, %v5504
        %v5540 = vadd.f32 %v5346, %v5507
        %v5541 = vmax.f32 %v5509, 0.0
        %v5542 = vmax.f32 %v5510, 0.0
        %v5543 = vmax.f32 %v5511, 0.0
        %v5544 = vmax.f32 %v5512, 0.0
        %v5545 = vmax.f32 %v5513, 0.0
        %v5546 = vmax.f32 %v5514, 0.0
        %v5547 = vmax.f32 %v5515, 0.0
        %v5548 = vmax.f32 %v5516, 0.0
        %v5549 = vmax.f32 %v5517, 0.0
        %v5550 = vmax.f32 %v5518, 0.0
        %v5551 = vmax.f32 %v5519, 0.0
        %v5552 = vmax.f32 %v5520, 0.0
        %v5553 = vmax.f32 %v5521, 0.0
        %v5554 = vmax.f32 %v5522, 0.0
        %v5555 = vmax.f32 %v5523, 0.0
        %v5556 = vmax.f32 %v5524, 0.0
        %v5557 = vmax.f32 %v5525, 0.0
        %v5558 = vmax.f32 %v5526, 0.0
        %v5559 = vmax.f32 %v5527, 0.0
        %v5560 = vmax.f32 %v5528, 0.0
        %v5561 = vmax.f32 %v5529, 0.0
        %v5562 = vmax.f32 %v5530, 0.0
        %v5563 = vmax.f32 %v5531, 0.0
        %v5564 = vmax.f32 %v5532, 0.0
        %v5565 = vmax.f32 %v5533, 0.0
        %v5566 = vmax.f32 %v5534, 0.0
        %v5567 = vmax.f32 %v5535, 0.0
        %v5568 = vmax.f32 %v5536, 0.0
        %v5569 = vmax.f32 %v5537, 0.0
        %v5570 = vmax.f32 %v5538, 0.0
        %v5571 = vmax.f32 %v5539, 0.0
        %v5572 = vmax.f32 %v5540, 0.0
        %s5573 = scalar_lea.vmem %s4, 256
        %v5574 = vld [vmem:[%s5573] sm:$0xff]
        %v5575 = vld [vmem:[%s5573 + $0x8] sm:$0xff]
        %v5576 = vld [vmem:[%s5573 + $0x10] sm:$0xff]
        %v5577 = vld [vmem:[%s5573 + $0x18] sm:$0xff]
        %v5578 = vld [vmem:[%s5573 + $0x20] sm:$0xff]
        %v5579 = vld [vmem:[%s5573 + $0x28] sm:$0xff]
        %v5580 = vld [vmem:[%s5573 + $0x30] sm:$0xff]
        %v5581 = vld [vmem:[%s5573 + $0x38] sm:$0xff]
        %v5582 = vld [vmem:[%s5573 + $0x40] sm:$0xff]
        %v5583 = vld [vmem:[%s5573 + $0x48] sm:$0xff]
        %v5584 = vld [vmem:[%s5573 + $0x50] sm:$0xff]
        %v5585 = vld [vmem:[%s5573 + $0x58] sm:$0xff]
        %v5586 = vld [vmem:[%s5573 + $0x60] sm:$0xff]
        %v5587 = vld [vmem:[%s5573 + $0x68] sm:$0xff]
        %v5588 = vld [vmem:[%s5573 + $0x70] sm:$0xff]
        %v5589 = vld [vmem:[%s5573 + $0x78] sm:$0xff]
        %5590 = vmatpush.msra.mxu0 %v5589
        %5591 = vmatpush.msra.mxu0 %v5588
        %5592 = vmatpush.msra.mxu0 %v5587
        %5593 = vmatpush.msra.mxu0 %v5586
        %5594 = vmatpush.msra.mxu0 %v5585
        %5595 = vmatpush.msra.mxu0 %v5584
        %5596 = vmatpush.msra.mxu0 %v5583
        %5597 = vmatpush.msra.mxu0 %v5582
        %5598 = vmatpush.msra.mxu0 %v5581
        %5599 = vmatpush.msra.mxu0 %v5580
        %5600 = vmatpush.msra.mxu0 %v5579
        %5601 = vmatpush.msra.mxu0 %v5578
        %5602 = vmatpush.msra.mxu0 %v5577
        %5603 = vmatpush.msra.mxu0 %v5576
        %5604 = vmatpush.msra.mxu0 %v5575
        %5605 = vmatpush.msra.mxu0 %v5574
        %5606 = vmatmul.f32.gmra.mxu0 %v5541
        %v5607 = vpop.f32.mrf.mxu0
        %v5608 = vadd.f32 0.0, %v5607
        %5609 = vmatmul.f32.gmra.mxu0 %v5542
        %v5610 = vpop.f32.mrf.mxu0
        %v5611 = vadd.f32 0.0, %v5610
        %5612 = vmatmul.f32.gmra.mxu0 %v5543
        %v5613 = vpop.f32.mrf.mxu0
        %v5614 = vadd.f32 0.0, %v5613
        %5615 = vmatmul.f32.gmra.mxu0 %v5544
        %v5616 = vpop.f32.mrf.mxu0
        %v5617 = vadd.f32 0.0, %v5616
        %5618 = vmatmul.f32.gmra.mxu0 %v5545
        %v5619 = vpop.f32.mrf.mxu0
        %v5620 = vadd.f32 0.0, %v5619
        %5621 = vmatmul.f32.gmra.mxu0 %v5546
        %v5622 = vpop.f32.mrf.mxu0
        %v5623 = vadd.f32 0.0, %v5622
        %5624 = vmatmul.f32.gmra.mxu0 %v5547
        %v5625 = vpop.f32.mrf.mxu0
        %v5626 = vadd.f32 0.0, %v5625
        %5627 = vmatmul.f32.gmra.mxu0 %v5548
        %v5628 = vpop.f32.mrf.mxu0
        %v5629 = vadd.f32 0.0, %v5628
        %5630 = vmatmul.f32.gmra.mxu0 %v5549
        %v5631 = vpop.f32.mrf.mxu0
        %v5632 = vadd.f32 0.0, %v5631
        %5633 = vmatmul.f32.gmra.mxu0 %v5550
        %v5634 = vpop.f32.mrf.mxu0
        %v5635 = vadd.f32 0.0, %v5634
        %5636 = vmatmul.f32.gmra.mxu0 %v5551
        %v5637 = vpop.f32.mrf.mxu0
        %v5638 = vadd.f32 0.0, %v5637
        %5639 = vmatmul.f32.gmra.mxu0 %v5552
        %v5640 = vpop.f32.mrf.mxu0
        %v5641 = vadd.f32 0.0, %v5640
        %5642 = vmatmul.f32.gmra.mxu0 %v5553
        %v5643 = vpop.f32.mrf.mxu0
        %v5644 = vadd.f32 0.0, %v5643
        %5645 = vmatmul.f32.gmra.mxu0 %v5554
        %v5646 = vpop.f32.mrf.mxu0
        %v5647 = vadd.f32 0.0, %v5646
        %5648 = vmatmul.f32.gmra.mxu0 %v5555
        %v5649 = vpop.f32.mrf.mxu0
        %v5650 = vadd.f32 0.0, %v5649
        %5651 = vmatmul.f32.gmra.mxu0 %v5556
        %v5652 = vpop.f32.mrf.mxu0
        %v5653 = vadd.f32 0.0, %v5652
        %5654 = vmatmul.f32.gmra.mxu0 %v5557
        %v5655 = vpop.f32.mrf.mxu0
        %v5656 = vadd.f32 0.0, %v5655
        %5657 = vmatmul.f32.gmra.mxu0 %v5558
        %v5658 = vpop.f32.mrf.mxu0
        %v5659 = vadd.f32 0.0, %v5658
        %5660 = vmatmul.f32.gmra.mxu0 %v5559
        %v5661 = vpop.f32.mrf.mxu0
        %v5662 = vadd.f32 0.0, %v5661
        %5663 = vmatmul.f32.gmra.mxu0 %v5560
        %v5664 = vpop.f32.mrf.mxu0
        %v5665 = vadd.f32 0.0, %v5664
        %5666 = vmatmul.f32.gmra.mxu0 %v5561
        %v5667 = vpop.f32.mrf.mxu0
        %v5668 = vadd.f32 0.0, %v5667
        %5669 = vmatmul.f32.gmra.mxu0 %v5562
        %v5670 = vpop.f32.mrf.mxu0
        %v5671 = vadd.f32 0.0, %v5670
        %5672 = vmatmul.f32.gmra.mxu0 %v5563
        %v5673 = vpop.f32.mrf.mxu0
        %v5674 = vadd.f32 0.0, %v5673
        %5675 = vmatmul.f32.gmra.mxu0 %v5564
        %v5676 = vpop.f32.mrf.mxu0
        %v5677 = vadd.f32 0.0, %v5676
        %5678 = vmatmul.f32.gmra.mxu0 %v5565
        %v5679 = vpop.f32.mrf.mxu0
        %v5680 = vadd.f32 0.0, %v5679
        %5681 = vmatmul.f32.gmra.mxu0 %v5566
        %v5682 = vpop.f32.mrf.mxu0
        %v5683 = vadd.f32 0.0, %v5682
        %5684 = vmatmul.f32.gmra.mxu0 %v5567
        %v5685 = vpop.f32.mrf.mxu0
        %v5686 = vadd.f32 0.0, %v5685
        %5687 = vmatmul.f32.gmra.mxu0 %v5568
        %v5688 = vpop.f32.mrf.mxu0
        %v5689 = vadd.f32 0.0, %v5688
        %5690 = vmatmul.f32.gmra.mxu0 %v5569
        %v5691 = vpop.f32.mrf.mxu0
        %v5692 = vadd.f32 0.0, %v5691
        %5693 = vmatmul.f32.gmra.mxu0 %v5570
        %v5694 = vpop.f32.mrf.mxu0
        %v5695 = vadd.f32 0.0, %v5694
        %5696 = vmatmul.f32.gmra.mxu0 %v5571
        %v5697 = vpop.f32.mrf.mxu0
        %v5698 = vadd.f32 0.0, %v5697
        %5699 = vmatmul.f32.gmra.mxu0 %v5572
        %v5700 = vpop.f32.mrf.mxu0
        %v5701 = vadd.f32 0.0, %v5700
        %5702 = vdwg.mxu0
        %v5703 = vadd.f32 %v3794, %v5608
        %v5704 = vadd.f32 %v3797, %v5611
        %v5705 = vadd.f32 %v3800, %v5614
        %v5706 = vadd.f32 %v3803, %v5617
        %v5707 = vadd.f32 %v3806, %v5620
        %v5708 = vadd.f32 %v3809, %v5623
        %v5709 = vadd.f32 %v3812, %v5626
        %v5710 = vadd.f32 %v3815, %v5629
        %v5711 = vadd.f32 %v3818, %v5632
        %v5712 = vadd.f32 %v3821, %v5635
        %v5713 = vadd.f32 %v3824, %v5638
        %v5714 = vadd.f32 %v3827, %v5641
        %v5715 = vadd.f32 %v3830, %v5644
        %v5716 = vadd.f32 %v3833, %v5647
        %v5717 = vadd.f32 %v3836, %v5650
        %v5718 = vadd.f32 %v3839, %v5653
        %v5719 = vadd.f32 %v3842, %v5656
        %v5720 = vadd.f32 %v3845, %v5659
        %v5721 = vadd.f32 %v3848, %v5662
        %v5722 = vadd.f32 %v3851, %v5665
        %v5723 = vadd.f32 %v3854, %v5668
        %v5724 = vadd.f32 %v3857, %v5671
        %v5725 = vadd.f32 %v3860, %v5674
        %v5726 = vadd.f32 %v3863, %v5677
        %v5727 = vadd.f32 %v3866, %v5680
        %v5728 = vadd.f32 %v3869, %v5683
        %v5729 = vadd.f32 %v3872, %v5686
        %v5730 = vadd.f32 %v3875, %v5689
        %v5731 = vadd.f32 %v3878, %v5692
        %v5732 = vadd.f32 %v3881, %v5695
        %v5733 = vadd.f32 %v3884, %v5698
        %v5734 = vadd.f32 %v3887, %v5701
        %v5735 = vld [vmem:[%s979] sm:$0xff]
        %v5736 = vld [vmem:[%s979 + $0x8] sm:$0xff]
        %v5737 = vld [vmem:[%s979 + $0x38] sm:$0xff]
        %v5738 = vld [vmem:[%s979 + $0x40] sm:$0xff]
        %v5739 = vld [vmem:[%s979 + $0x70] sm:$0xff]
        %v5740 = vld [vmem:[%s979 + $0x78] sm:$0xff]
        %v5741 = vld [vmem:[%s979 + $0xa8] sm:$0xff]
        %v5742 = vld [vmem:[%s979 + $0xb0] sm:$0xff]
        %v5743 = vld [vmem:[%s979 + $0xe0] sm:$0xff]
        %v5744 = vld [vmem:[%s979 + $0xe8] sm:$0xff]
        %v5745 = vld [vmem:[%s979 + $0x118] sm:$0xff]
        %v5746 = vld [vmem:[%s979 + $0x120] sm:$0xff]
        %v5747 = vld [vmem:[%s979 + $0x150] sm:$0xff]
        %v5748 = vld [vmem:[%s979 + $0x158] sm:$0xff]
        %v5749 = vld [vmem:[%s979 + $0x188] sm:$0xff]
        %v5750 = vld [vmem:[%s979 + $0x190] sm:$0xff]
        %v5751 = vld [vmem:[%s979 + $0x1c0] sm:$0xff]
        %v5752 = vld [vmem:[%s979 + $0x1c8] sm:$0xff]
        %v5753 = vld [vmem:[%s979 + $0x1f8] sm:$0xff]
        %v5754 = vld [vmem:[%s979 + $0x200] sm:$0xff]
        %v5755 = vld [vmem:[%s979 + $0x230] sm:$0xff]
        %v5756 = vld [vmem:[%s979 + $0x238] sm:$0xff]
        %v5757 = vld [vmem:[%s979 + $0x268] sm:$0xff]
        %v5758 = vld [vmem:[%s979 + $0x270] sm:$0xff]
        %v5759 = vld [vmem:[%s979 + $0x2a0] sm:$0xff]
        %v5760 = vld [vmem:[%s979 + $0x2a8] sm:$0xff]
        %v5761 = vld [vmem:[%s979 + $0x2d8] sm:$0xff]
        %v5762 = vld [vmem:[%s979 + $0x2e0] sm:$0xff]
        %v5763 = vld [vmem:[%s979 + $0x310] sm:$0xff]
        %v5764 = vld [vmem:[%s979 + $0x318] sm:$0xff]
        %v5765 = vld [vmem:[%s979 + $0x348] sm:$0xff]
        %v5766 = vld [vmem:[%s979 + $0x350] sm:$0xff]
        %s5767 = scalar_lea.vmem %s3, 2304
        %v5768 = vld [vmem:[%s5767] sm:$0xff]
        %v5769 = vld [vmem:[%s5767 + $0x8] sm:$0xff]
        %v5770 = vld [vmem:[%s5767 + $0x10] sm:$0xff]
        %v5771 = vld [vmem:[%s5767 + $0x18] sm:$0xff]
        %v5772 = vld [vmem:[%s5767 + $0x20] sm:$0xff]
        %v5773 = vld [vmem:[%s5767 + $0x28] sm:$0xff]
        %v5774 = vld [vmem:[%s5767 + $0x30] sm:$0xff]
        %v5775 = vld [vmem:[%s5767 + $0x38] sm:$0xff]
        %v5776 = vld [vmem:[%s5767 + $0x40] sm:$0xff]
        %v5777 = vld [vmem:[%s5767 + $0x48] sm:$0xff]
        %v5778 = vld [vmem:[%s5767 + $0x50] sm:$0xff]
        %v5779 = vld [vmem:[%s5767 + $0x58] sm:$0xff]
        %v5780 = vld [vmem:[%s5767 + $0x60] sm:$0xff]
        %v5781 = vld [vmem:[%s5767 + $0x68] sm:$0xff]
        %v5782 = vld [vmem:[%s5767 + $0x70] sm:$0xff]
        %v5783 = vld [vmem:[%s5767 + $0x78] sm:$0xff]
        %v5784 = vld [vmem:[%s979 + $0x12] sm:$0xff]
        %v5785 = vld [vmem:[%s979 + $0x1a] sm:$0xff]
        %v5786 = vld [vmem:[%s979 + $0x4a] sm:$0xff]
        %v5787 = vld [vmem:[%s979 + $0x52] sm:$0xff]
        %v5788 = vld [vmem:[%s979 + $0x82] sm:$0xff]
        %v5789 = vld [vmem:[%s979 + $0x8a] sm:$0xff]
        %v5790 = vld [vmem:[%s979 + $0xba] sm:$0xff]
        %v5791 = vld [vmem:[%s979 + $0xc2] sm:$0xff]
        %v5792 = vld [vmem:[%s979 + $0xf2] sm:$0xff]
        %v5793 = vld [vmem:[%s979 + $0xfa] sm:$0xff]
        %v5794 = vld [vmem:[%s979 + $0x12a] sm:$0xff]
        %v5795 = vld [vmem:[%s979 + $0x132] sm:$0xff]
        %v5796 = vld [vmem:[%s979 + $0x162] sm:$0xff]
        %v5797 = vld [vmem:[%s979 + $0x16a] sm:$0xff]
        %v5798 = vld [vmem:[%s979 + $0x19a] sm:$0xff]
        %v5799 = vld [vmem:[%s979 + $0x1a2] sm:$0xff]
        %v5800 = vld [vmem:[%s979 + $0x1d2] sm:$0xff]
        %v5801 = vld [vmem:[%s979 + $0x1da] sm:$0xff]
        %v5802 = vld [vmem:[%s979 + $0x20a] sm:$0xff]
        %v5803 = vld [vmem:[%s979 + $0x212] sm:$0xff]
        %v5804 = vld [vmem:[%s979 + $0x242] sm:$0xff]
        %v5805 = vld [vmem:[%s979 + $0x24a] sm:$0xff]
        %v5806 = vld [vmem:[%s979 + $0x27a] sm:$0xff]
        %v5807 = vld [vmem:[%s979 + $0x282] sm:$0xff]
        %v5808 = vld [vmem:[%s979 + $0x2b2] sm:$0xff]
        %v5809 = vld [vmem:[%s979 + $0x2ba] sm:$0xff]
        %v5810 = vld [vmem:[%s979 + $0x2ea] sm:$0xff]
        %v5811 = vld [vmem:[%s979 + $0x2f2] sm:$0xff]
        %v5812 = vld [vmem:[%s979 + $0x322] sm:$0xff]
        %v5813 = vld [vmem:[%s979 + $0x32a] sm:$0xff]
        %v5814 = vld [vmem:[%s979 + $0x35a] sm:$0xff]
        %v5815 = vld [vmem:[%s979 + $0x362] sm:$0xff]
        %s5816 = scalar_lea.vmem %s3, 2432
        %v5817 = vld [vmem:[%s5816] sm:$0xff]
        %v5818 = vld [vmem:[%s5816 + $0x8] sm:$0xff]
        %v5819 = vld [vmem:[%s5816 + $0x10] sm:$0xff]
        %v5820 = vld [vmem:[%s5816 + $0x18] sm:$0xff]
        %v5821 = vld [vmem:[%s5816 + $0x20] sm:$0xff]
        %v5822 = vld [vmem:[%s5816 + $0x28] sm:$0xff]
        %v5823 = vld [vmem:[%s5816 + $0x30] sm:$0xff]
        %v5824 = vld [vmem:[%s5816 + $0x38] sm:$0xff]
        %v5825 = vld [vmem:[%s5816 + $0x40] sm:$0xff]
        %v5826 = vld [vmem:[%s5816 + $0x48] sm:$0xff]
        %v5827 = vld [vmem:[%s5816 + $0x50] sm:$0xff]
        %v5828 = vld [vmem:[%s5816 + $0x58] sm:$0xff]
        %v5829 = vld [vmem:[%s5816 + $0x60] sm:$0xff]
        %v5830 = vld [vmem:[%s5816 + $0x68] sm:$0xff]
        %v5831 = vld [vmem:[%s5816 + $0x70] sm:$0xff]
        %v5832 = vld [vmem:[%s5816 + $0x78] sm:$0xff]
        %5833 = vmatpush.msra.mxu0 %v5832
        %5834 = vmatpush.msra.mxu0 %v5831
        %5835 = vmatpush.msra.mxu0 %v5830
        %5836 = vmatpush.msra.mxu0 %v5829
        %5837 = vmatpush.msra.mxu0 %v5828
        %5838 = vmatpush.msra.mxu0 %v5827
        %5839 = vmatpush.msra.mxu0 %v5826
        %5840 = vmatpush.msra.mxu0 %v5825
        %5841 = vmatpush.msra.mxu0 %v5824
        %5842 = vmatpush.msra.mxu0 %v5823
        %5843 = vmatpush.msra.mxu0 %v5822
        %5844 = vmatpush.msra.mxu0 %v5821
        %5845 = vmatpush.msra.mxu0 %v5820
        %5846 = vmatpush.msra.mxu0 %v5819
        %5847 = vmatpush.msra.mxu0 %v5818
        %5848 = vmatpush.msra.mxu0 %v5817
        %5849 = vmatmul.f32.gmra.mxu0 %v5784
        %v5850 = vpop.f32.mrf.mxu0
        %v5851 = vadd.f32 0.0, %v5850
        %5852 = vmatmul.f32.gmra.mxu0 %v5785
        %v5853 = vpop.f32.mrf.mxu0
        %v5854 = vadd.f32 0.0, %v5853
        %5855 = vmatmul.f32.gmra.mxu0 %v5786
        %v5856 = vpop.f32.mrf.mxu0
        %v5857 = vadd.f32 0.0, %v5856
        %5858 = vmatmul.f32.gmra.mxu0 %v5787
        %v5859 = vpop.f32.mrf.mxu0
        %v5860 = vadd.f32 0.0, %v5859
        %5861 = vmatmul.f32.gmra.mxu0 %v5788
        %v5862 = vpop.f32.mrf.mxu0
        %v5863 = vadd.f32 0.0, %v5862
        %5864 = vmatmul.f32.gmra.mxu0 %v5789
        %v5865 = vpop.f32.mrf.mxu0
        %v5866 = vadd.f32 0.0, %v5865
        %5867 = vmatmul.f32.gmra.mxu0 %v5790
        %v5868 = vpop.f32.mrf.mxu0
        %v5869 = vadd.f32 0.0, %v5868
        %5870 = vmatmul.f32.gmra.mxu0 %v5791
        %v5871 = vpop.f32.mrf.mxu0
        %v5872 = vadd.f32 0.0, %v5871
        %5873 = vmatmul.f32.gmra.mxu0 %v5792
        %v5874 = vpop.f32.mrf.mxu0
        %v5875 = vadd.f32 0.0, %v5874
        %5876 = vmatmul.f32.gmra.mxu0 %v5793
        %v5877 = vpop.f32.mrf.mxu0
        %v5878 = vadd.f32 0.0, %v5877
        %5879 = vmatmul.f32.gmra.mxu0 %v5794
        %v5880 = vpop.f32.mrf.mxu0
        %v5881 = vadd.f32 0.0, %v5880
        %5882 = vmatmul.f32.gmra.mxu0 %v5795
        %v5883 = vpop.f32.mrf.mxu0
        %v5884 = vadd.f32 0.0, %v5883
        %5885 = vmatmul.f32.gmra.mxu0 %v5796
        %v5886 = vpop.f32.mrf.mxu0
        %v5887 = vadd.f32 0.0, %v5886
        %5888 = vmatmul.f32.gmra.mxu0 %v5797
        %v5889 = vpop.f32.mrf.mxu0
        %v5890 = vadd.f32 0.0, %v5889
        %5891 = vmatmul.f32.gmra.mxu0 %v5798
        %v5892 = vpop.f32.mrf.mxu0
        %v5893 = vadd.f32 0.0, %v5892
        %5894 = vmatmul.f32.gmra.mxu0 %v5799
        %v5895 = vpop.f32.mrf.mxu0
        %v5896 = vadd.f32 0.0, %v5895
        %5897 = vmatmul.f32.gmra.mxu0 %v5800
        %v5898 = vpop.f32.mrf.mxu0
        %v5899 = vadd.f32 0.0, %v5898
        %5900 = vmatmul.f32.gmra.mxu0 %v5801
        %v5901 = vpop.f32.mrf.mxu0
        %v5902 = vadd.f32 0.0, %v5901
        %5903 = vmatmul.f32.gmra.mxu0 %v5802
        %v5904 = vpop.f32.mrf.mxu0
        %v5905 = vadd.f32 0.0, %v5904
        %5906 = vmatmul.f32.gmra.mxu0 %v5803
        %v5907 = vpop.f32.mrf.mxu0
        %v5908 = vadd.f32 0.0, %v5907
        %5909 = vmatmul.f32.gmra.mxu0 %v5804
        %v5910 = vpop.f32.mrf.mxu0
        %v5911 = vadd.f32 0.0, %v5910
        %5912 = vmatmul.f32.gmra.mxu0 %v5805
        %v5913 = vpop.f32.mrf.mxu0
        %v5914 = vadd.f32 0.0, %v5913
        %5915 = vmatmul.f32.gmra.mxu0 %v5806
        %v5916 = vpop.f32.mrf.mxu0
        %v5917 = vadd.f32 0.0, %v5916
        %5918 = vmatmul.f32.gmra.mxu0 %v5807
        %v5919 = vpop.f32.mrf.mxu0
        %v5920 = vadd.f32 0.0, %v5919
        %5921 = vmatmul.f32.gmra.mxu0 %v5808
        %v5922 = vpop.f32.mrf.mxu0
        %v5923 = vadd.f32 0.0, %v5922
        %5924 = vmatmul.f32.gmra.mxu0 %v5809
        %v5925 = vpop.f32.mrf.mxu0
        %v5926 = vadd.f32 0.0, %v5925
        %5927 = vmatmul.f32.gmra.mxu0 %v5810
        %v5928 = vpop.f32.mrf.mxu0
        %v5929 = vadd.f32 0.0, %v5928
        %5930 = vmatmul.f32.gmra.mxu0 %v5811
        %v5931 = vpop.f32.mrf.mxu0
        %v5932 = vadd.f32 0.0, %v5931
        %5933 = vmatmul.f32.gmra.mxu0 %v5812
        %v5934 = vpop.f32.mrf.mxu0
        %v5935 = vadd.f32 0.0, %v5934
        %5936 = vmatmul.f32.gmra.mxu0 %v5813
        %v5937 = vpop.f32.mrf.mxu0
        %v5938 = vadd.f32 0.0, %v5937
        %5939 = vmatmul.f32.gmra.mxu0 %v5814
        %v5940 = vpop.f32.mrf.mxu0
        %v5941 = vadd.f32 0.0, %v5940
        %5942 = vmatmul.f32.gmra.mxu0 %v5815
        %v5943 = vpop.f32.mrf.mxu0
        %v5944 = vadd.f32 0.0, %v5943
        %5945 = vdwg.mxu0
        %5946 = vmatpush.msra.mxu0 %v5783
        %5947 = vmatpush.msra.mxu0 %v5782
        %5948 = vmatpush.msra.mxu0 %v5781
        %5949 = vmatpush.msra.mxu0 %v5780
        %5950 = vmatpush.msra.mxu0 %v5779
        %5951 = vmatpush.msra.mxu0 %v5778
        %5952 = vmatpush.msra.mxu0 %v5777
        %5953 = vmatpush.msra.mxu0 %v5776
        %5954 = vmatpush.msra.mxu0 %v5775
        %5955 = vmatpush.msra.mxu0 %v5774
        %5956 = vmatpush.msra.mxu0 %v5773
        %5957 = vmatpush.msra.mxu0 %v5772
        %5958 = vmatpush.msra.mxu0 %v5771
        %5959 = vmatpush.msra.mxu0 %v5770
        %5960 = vmatpush.msra.mxu0 %v5769
        %5961 = vmatpush.msra.mxu0 %v5768
        %5962 = vmatmul.f32.gmra.mxu0 %v5735
        %v5963 = vpop.f32.mrf.mxu0
        %v5964 = vadd.f32 %v5851, %v5963
        %5965 = vmatmul.f32.gmra.mxu0 %v5736
        %v5966 = vpop.f32.mrf.mxu0
        %v5967 = vadd.f32 %v5854, %v5966
        %5968 = vmatmul.f32.gmra.mxu0 %v5737
        %v5969 = vpop.f32.mrf.mxu0
        %v5970 = vadd.f32 %v5857, %v5969
        %5971 = vmatmul.f32.gmra.mxu0 %v5738
        %v5972 = vpop.f32.mrf.mxu0
        %v5973 = vadd.f32 %v5860, %v5972
        %5974 = vmatmul.f32.gmra.mxu0 %v5739
        %v5975 = vpop.f32.mrf.mxu0
        %v5976 = vadd.f32 %v5863, %v5975
        %5977 = vmatmul.f32.gmra.mxu0 %v5740
        %v5978 = vpop.f32.mrf.mxu0
        %v5979 = vadd.f32 %v5866, %v5978
        %5980 = vmatmul.f32.gmra.mxu0 %v5741
        %v5981 = vpop.f32.mrf.mxu0
        %v5982 = vadd.f32 %v5869, %v5981
        %5983 = vmatmul.f32.gmra.mxu0 %v5742
        %v5984 = vpop.f32.mrf.mxu0
        %v5985 = vadd.f32 %v5872, %v5984
        %5986 = vmatmul.f32.gmra.mxu0 %v5743
        %v5987 = vpop.f32.mrf.mxu0
        %v5988 = vadd.f32 %v5875, %v5987
        %5989 = vmatmul.f32.gmra.mxu0 %v5744
        %v5990 = vpop.f32.mrf.mxu0
        %v5991 = vadd.f32 %v5878, %v5990
        %5992 = vmatmul.f32.gmra.mxu0 %v5745
        %v5993 = vpop.f32.mrf.mxu0
        %v5994 = vadd.f32 %v5881, %v5993
        %5995 = vmatmul.f32.gmra.mxu0 %v5746
        %v5996 = vpop.f32.mrf.mxu0
        %v5997 = vadd.f32 %v5884, %v5996
        %5998 = vmatmul.f32.gmra.mxu0 %v5747
        %v5999 = vpop.f32.mrf.mxu0
        %v6000 = vadd.f32 %v5887, %v5999
        %6001 = vmatmul.f32.gmra.mxu0 %v5748
        %v6002 = vpop.f32.mrf.mxu0
        %v6003 = vadd.f32 %v5890, %v6002
        %6004 = vmatmul.f32.gmra.mxu0 %v5749
        %v6005 = vpop.f32.mrf.mxu0
        %v6006 = vadd.f32 %v5893, %v6005
        %6007 = vmatmul.f32.gmra.mxu0 %v5750
        %v6008 = vpop.f32.mrf.mxu0
        %v6009 = vadd.f32 %v5896, %v6008
        %6010 = vmatmul.f32.gmra.mxu0 %v5751
        %v6011 = vpop.f32.mrf.mxu0
        %v6012 = vadd.f32 %v5899, %v6011
        %6013 = vmatmul.f32.gmra.mxu0 %v5752
        %v6014 = vpop.f32.mrf.mxu0
        %v6015 = vadd.f32 %v5902, %v6014
        %6016 = vmatmul.f32.gmra.mxu0 %v5753
        %v6017 = vpop.f32.mrf.mxu0
        %v6018 = vadd.f32 %v5905, %v6017
        %6019 = vmatmul.f32.gmra.mxu0 %v5754
        %v6020 = vpop.f32.mrf.mxu0
        %v6021 = vadd.f32 %v5908, %v6020
        %6022 = vmatmul.f32.gmra.mxu0 %v5755
        %v6023 = vpop.f32.mrf.mxu0
        %v6024 = vadd.f32 %v5911, %v6023
        %6025 = vmatmul.f32.gmra.mxu0 %v5756
        %v6026 = vpop.f32.mrf.mxu0
        %v6027 = vadd.f32 %v5914, %v6026
        %6028 = vmatmul.f32.gmra.mxu0 %v5757
        %v6029 = vpop.f32.mrf.mxu0
        %v6030 = vadd.f32 %v5917, %v6029
        %6031 = vmatmul.f32.gmra.mxu0 %v5758
        %v6032 = vpop.f32.mrf.mxu0
        %v6033 = vadd.f32 %v5920, %v6032
        %6034 = vmatmul.f32.gmra.mxu0 %v5759
        %v6035 = vpop.f32.mrf.mxu0
        %v6036 = vadd.f32 %v5923, %v6035
        %6037 = vmatmul.f32.gmra.mxu0 %v5760
        %v6038 = vpop.f32.mrf.mxu0
        %v6039 = vadd.f32 %v5926, %v6038
        %6040 = vmatmul.f32.gmra.mxu0 %v5761
        %v6041 = vpop.f32.mrf.mxu0
        %v6042 = vadd.f32 %v5929, %v6041
        %6043 = vmatmul.f32.gmra.mxu0 %v5762
        %v6044 = vpop.f32.mrf.mxu0
        %v6045 = vadd.f32 %v5932, %v6044
        %6046 = vmatmul.f32.gmra.mxu0 %v5763
        %v6047 = vpop.f32.mrf.mxu0
        %v6048 = vadd.f32 %v5935, %v6047
        %6049 = vmatmul.f32.gmra.mxu0 %v5764
        %v6050 = vpop.f32.mrf.mxu0
        %v6051 = vadd.f32 %v5938, %v6050
        %6052 = vmatmul.f32.gmra.mxu0 %v5765
        %v6053 = vpop.f32.mrf.mxu0
        %v6054 = vadd.f32 %v5941, %v6053
        %6055 = vmatmul.f32.gmra.mxu0 %v5766
        %v6056 = vpop.f32.mrf.mxu0
        %v6057 = vadd.f32 %v5944, %v6056
        %6058 = vdwg.mxu0
        %v6059 = vld [vmem:[%s979 + $0x24] sm:$0xff]
        %v6060 = vld [vmem:[%s979 + $0x2c] sm:$0xff]
        %v6061 = vld [vmem:[%s979 + $0x5c] sm:$0xff]
        %v6062 = vld [vmem:[%s979 + $0x64] sm:$0xff]
        %v6063 = vld [vmem:[%s979 + $0x94] sm:$0xff]
        %v6064 = vld [vmem:[%s979 + $0x9c] sm:$0xff]
        %v6065 = vld [vmem:[%s979 + $0xcc] sm:$0xff]
        %v6066 = vld [vmem:[%s979 + $0xd4] sm:$0xff]
        %v6067 = vld [vmem:[%s979 + $0x104] sm:$0xff]
        %v6068 = vld [vmem:[%s979 + $0x10c] sm:$0xff]
        %v6069 = vld [vmem:[%s979 + $0x13c] sm:$0xff]
        %v6070 = vld [vmem:[%s979 + $0x144] sm:$0xff]
        %v6071 = vld [vmem:[%s979 + $0x174] sm:$0xff]
        %v6072 = vld [vmem:[%s979 + $0x17c] sm:$0xff]
        %v6073 = vld [vmem:[%s979 + $0x1ac] sm:$0xff]
        %v6074 = vld [vmem:[%s979 + $0x1b4] sm:$0xff]
        %v6075 = vld [vmem:[%s979 + $0x1e4] sm:$0xff]
        %v6076 = vld [vmem:[%s979 + $0x1ec] sm:$0xff]
        %v6077 = vld [vmem:[%s979 + $0x21c] sm:$0xff]
        %v6078 = vld [vmem:[%s979 + $0x224] sm:$0xff]
        %v6079 = vld [vmem:[%s979 + $0x254] sm:$0xff]
        %v6080 = vld [vmem:[%s979 + $0x25c] sm:$0xff]
        %v6081 = vld [vmem:[%s979 + $0x28c] sm:$0xff]
        %v6082 = vld [vmem:[%s979 + $0x294] sm:$0xff]
        %v6083 = vld [vmem:[%s979 + $0x2c4] sm:$0xff]
        %v6084 = vld [vmem:[%s979 + $0x2cc] sm:$0xff]
        %v6085 = vld [vmem:[%s979 + $0x2fc] sm:$0xff]
        %v6086 = vld [vmem:[%s979 + $0x304] sm:$0xff]
        %v6087 = vld [vmem:[%s979 + $0x334] sm:$0xff]
        %v6088 = vld [vmem:[%s979 + $0x33c] sm:$0xff]
        %v6089 = vld [vmem:[%s979 + $0x36c] sm:$0xff]
        %v6090 = vld [vmem:[%s979 + $0x374] sm:$0xff]
        %s6091 = scalar_lea.vmem %s3, 2560
        %v6092 = vld [vmem:[%s6091] sm:$0xff]
        %v6093 = vld [vmem:[%s6091 + $0x8] sm:$0xff]
        %v6094 = vld [vmem:[%s6091 + $0x10] sm:$0xff]
        %v6095 = vld [vmem:[%s6091 + $0x18] sm:$0xff]
        %v6096 = vld [vmem:[%s6091 + $0x20] sm:$0xff]
        %v6097 = vld [vmem:[%s6091 + $0x28] sm:$0xff]
        %v6098 = vld [vmem:[%s6091 + $0x30] sm:$0xff]
        %v6099 = vld [vmem:[%s6091 + $0x38] sm:$0xff]
        %v6100 = vld [vmem:[%s6091 + $0x40] sm:$0xff]
        %v6101 = vld [vmem:[%s6091 + $0x48] sm:$0xff]
        %v6102 = vld [vmem:[%s6091 + $0x50] sm:$0xff]
        %v6103 = vld [vmem:[%s6091 + $0x58] sm:$0xff]
        %v6104 = vld [vmem:[%s6091 + $0x60] sm:$0xff]
        %v6105 = vld [vmem:[%s6091 + $0x68] sm:$0xff]
        %v6106 = vld [vmem:[%s6091 + $0x70] sm:$0xff]
        %v6107 = vld [vmem:[%s6091 + $0x78] sm:$0xff]
        %6108 = vmatpush.msra.mxu0 %v6107
        %6109 = vmatpush.msra.mxu0 %v6106
        %6110 = vmatpush.msra.mxu0 %v6105
        %6111 = vmatpush.msra.mxu0 %v6104
        %6112 = vmatpush.msra.mxu0 %v6103
        %6113 = vmatpush.msra.mxu0 %v6102
        %6114 = vmatpush.msra.mxu0 %v6101
        %6115 = vmatpush.msra.mxu0 %v6100
        %6116 = vmatpush.msra.mxu0 %v6099
        %6117 = vmatpush.msra.mxu0 %v6098
        %6118 = vmatpush.msra.mxu0 %v6097
        %6119 = vmatpush.msra.mxu0 %v6096
        %6120 = vmatpush.msra.mxu0 %v6095
        %6121 = vmatpush.msra.mxu0 %v6094
        %6122 = vmatpush.msra.mxu0 %v6093
        %6123 = vmatpush.msra.mxu0 %v6092
        %6124 = vmatmul.f32.gmra.mxu0 %v6059
        %v6125 = vpop.f32.mrf.mxu0
        %v6126 = vadd.f32 0.0, %v6125
        %6127 = vmatmul.f32.gmra.mxu0 %v6060
        %v6128 = vpop.f32.mrf.mxu0
        %v6129 = vadd.f32 0.0, %v6128
        %6130 = vmatmul.f32.gmra.mxu0 %v6061
        %v6131 = vpop.f32.mrf.mxu0
        %v6132 = vadd.f32 0.0, %v6131
        %6133 = vmatmul.f32.gmra.mxu0 %v6062
        %v6134 = vpop.f32.mrf.mxu0
        %v6135 = vadd.f32 0.0, %v6134
        %6136 = vmatmul.f32.gmra.mxu0 %v6063
        %v6137 = vpop.f32.mrf.mxu0
        %v6138 = vadd.f32 0.0, %v6137
        %6139 = vmatmul.f32.gmra.mxu0 %v6064
        %v6140 = vpop.f32.mrf.mxu0
        %v6141 = vadd.f32 0.0, %v6140
        %6142 = vmatmul.f32.gmra.mxu0 %v6065
        %v6143 = vpop.f32.mrf.mxu0
        %v6144 = vadd.f32 0.0, %v6143
        %6145 = vmatmul.f32.gmra.mxu0 %v6066
        %v6146 = vpop.f32.mrf.mxu0
        %v6147 = vadd.f32 0.0, %v6146
        %6148 = vmatmul.f32.gmra.mxu0 %v6067
        %v6149 = vpop.f32.mrf.mxu0
        %v6150 = vadd.f32 0.0, %v6149
        %6151 = vmatmul.f32.gmra.mxu0 %v6068
        %v6152 = vpop.f32.mrf.mxu0
        %v6153 = vadd.f32 0.0, %v6152
        %6154 = vmatmul.f32.gmra.mxu0 %v6069
        %v6155 = vpop.f32.mrf.mxu0
        %v6156 = vadd.f32 0.0, %v6155
        %6157 = vmatmul.f32.gmra.mxu0 %v6070
        %v6158 = vpop.f32.mrf.mxu0
        %v6159 = vadd.f32 0.0, %v6158
        %6160 = vmatmul.f32.gmra.mxu0 %v6071
        %v6161 = vpop.f32.mrf.mxu0
        %v6162 = vadd.f32 0.0, %v6161
        %6163 = vmatmul.f32.gmra.mxu0 %v6072
        %v6164 = vpop.f32.mrf.mxu0
        %v6165 = vadd.f32 0.0, %v6164
        %6166 = vmatmul.f32.gmra.mxu0 %v6073
        %v6167 = vpop.f32.mrf.mxu0
        %v6168 = vadd.f32 0.0, %v6167
        %6169 = vmatmul.f32.gmra.mxu0 %v6074
        %v6170 = vpop.f32.mrf.mxu0
        %v6171 = vadd.f32 0.0, %v6170
        %6172 = vmatmul.f32.gmra.mxu0 %v6075
        %v6173 = vpop.f32.mrf.mxu0
        %v6174 = vadd.f32 0.0, %v6173
        %6175 = vmatmul.f32.gmra.mxu0 %v6076
        %v6176 = vpop.f32.mrf.mxu0
        %v6177 = vadd.f32 0.0, %v6176
        %6178 = vmatmul.f32.gmra.mxu0 %v6077
        %v6179 = vpop.f32.mrf.mxu0
        %v6180 = vadd.f32 0.0, %v6179
        %6181 = vmatmul.f32.gmra.mxu0 %v6078
        %v6182 = vpop.f32.mrf.mxu0
        %v6183 = vadd.f32 0.0, %v6182
        %6184 = vmatmul.f32.gmra.mxu0 %v6079
        %v6185 = vpop.f32.mrf.mxu0
        %v6186 = vadd.f32 0.0, %v6185
        %6187 = vmatmul.f32.gmra.mxu0 %v6080
        %v6188 = vpop.f32.mrf.mxu0
        %v6189 = vadd.f32 0.0, %v6188
        %6190 = vmatmul.f32.gmra.mxu0 %v6081
        %v6191 = vpop.f32.mrf.mxu0
        %v6192 = vadd.f32 0.0, %v6191
        %6193 = vmatmul.f32.gmra.mxu0 %v6082
        %v6194 = vpop.f32.mrf.mxu0
        %v6195 = vadd.f32 0.0, %v6194
        %6196 = vmatmul.f32.gmra.mxu0 %v6083
        %v6197 = vpop.f32.mrf.mxu0
        %v6198 = vadd.f32 0.0, %v6197
        %6199 = vmatmul.f32.gmra.mxu0 %v6084
        %v6200 = vpop.f32.mrf.mxu0
        %v6201 = vadd.f32 0.0, %v6200
        %6202 = vmatmul.f32.gmra.mxu0 %v6085
        %v6203 = vpop.f32.mrf.mxu0
        %v6204 = vadd.f32 0.0, %v6203
        %6205 = vmatmul.f32.gmra.mxu0 %v6086
        %v6206 = vpop.f32.mrf.mxu0
        %v6207 = vadd.f32 0.0, %v6206
        %6208 = vmatmul.f32.gmra.mxu0 %v6087
        %v6209 = vpop.f32.mrf.mxu0
        %v6210 = vadd.f32 0.0, %v6209
        %6211 = vmatmul.f32.gmra.mxu0 %v6088
        %v6212 = vpop.f32.mrf.mxu0
        %v6213 = vadd.f32 0.0, %v6212
        %6214 = vmatmul.f32.gmra.mxu0 %v6089
        %v6215 = vpop.f32.mrf.mxu0
        %v6216 = vadd.f32 0.0, %v6215
        %6217 = vmatmul.f32.gmra.mxu0 %v6090
        %v6218 = vpop.f32.mrf.mxu0
        %v6219 = vadd.f32 0.0, %v6218
        %6220 = vdwg.mxu0
        %v6221 = vadd.f32 %v5964, %v6126
        %v6222 = vadd.f32 %v5967, %v6129
        %v6223 = vadd.f32 %v5970, %v6132
        %v6224 = vadd.f32 %v5973, %v6135
        %v6225 = vadd.f32 %v5976, %v6138
        %v6226 = vadd.f32 %v5979, %v6141
        %v6227 = vadd.f32 %v5982, %v6144
        %v6228 = vadd.f32 %v5985, %v6147
        %v6229 = vadd.f32 %v5988, %v6150
        %v6230 = vadd.f32 %v5991, %v6153
        %v6231 = vadd.f32 %v5994, %v6156
        %v6232 = vadd.f32 %v5997, %v6159
        %v6233 = vadd.f32 %v6000, %v6162
        %v6234 = vadd.f32 %v6003, %v6165
        %v6235 = vadd.f32 %v6006, %v6168
        %v6236 = vadd.f32 %v6009, %v6171
        %v6237 = vadd.f32 %v6012, %v6174
        %v6238 = vadd.f32 %v6015, %v6177
        %v6239 = vadd.f32 %v6018, %v6180
        %v6240 = vadd.f32 %v6021, %v6183
        %v6241 = vadd.f32 %v6024, %v6186
        %v6242 = vadd.f32 %v6027, %v6189
        %v6243 = vadd.f32 %v6030, %v6192
        %v6244 = vadd.f32 %v6033, %v6195
        %v6245 = vadd.f32 %v6036, %v6198
        %v6246 = vadd.f32 %v6039, %v6201
        %v6247 = vadd.f32 %v6042, %v6204
        %v6248 = vadd.f32 %v6045, %v6207
        %v6249 = vadd.f32 %v6048, %v6210
        %v6250 = vadd.f32 %v6051, %v6213
        %v6251 = vadd.f32 %v6054, %v6216
        %v6252 = vadd.f32 %v6057, %v6219
        %v6253 = vld [vmem:[%s1753] sm:$0xff]
        %v6254 = vld [vmem:[%s1753 + $0x8] sm:$0xff]
        %v6255 = vld [vmem:[%s1753 + $0x38] sm:$0xff]
        %v6256 = vld [vmem:[%s1753 + $0x40] sm:$0xff]
        %v6257 = vld [vmem:[%s1753 + $0x70] sm:$0xff]
        %v6258 = vld [vmem:[%s1753 + $0x78] sm:$0xff]
        %v6259 = vld [vmem:[%s1753 + $0xa8] sm:$0xff]
        %v6260 = vld [vmem:[%s1753 + $0xb0] sm:$0xff]
        %v6261 = vld [vmem:[%s1753 + $0xe0] sm:$0xff]
        %v6262 = vld [vmem:[%s1753 + $0xe8] sm:$0xff]
        %v6263 = vld [vmem:[%s1753 + $0x118] sm:$0xff]
        %v6264 = vld [vmem:[%s1753 + $0x120] sm:$0xff]
        %v6265 = vld [vmem:[%s1753 + $0x150] sm:$0xff]
        %v6266 = vld [vmem:[%s1753 + $0x158] sm:$0xff]
        %v6267 = vld [vmem:[%s1753 + $0x188] sm:$0xff]
        %v6268 = vld [vmem:[%s1753 + $0x190] sm:$0xff]
        %v6269 = vld [vmem:[%s1753 + $0x1c0] sm:$0xff]
        %v6270 = vld [vmem:[%s1753 + $0x1c8] sm:$0xff]
        %v6271 = vld [vmem:[%s1753 + $0x1f8] sm:$0xff]
        %v6272 = vld [vmem:[%s1753 + $0x200] sm:$0xff]
        %v6273 = vld [vmem:[%s1753 + $0x230] sm:$0xff]
        %v6274 = vld [vmem:[%s1753 + $0x238] sm:$0xff]
        %v6275 = vld [vmem:[%s1753 + $0x268] sm:$0xff]
        %v6276 = vld [vmem:[%s1753 + $0x270] sm:$0xff]
        %v6277 = vld [vmem:[%s1753 + $0x2a0] sm:$0xff]
        %v6278 = vld [vmem:[%s1753 + $0x2a8] sm:$0xff]
        %v6279 = vld [vmem:[%s1753 + $0x2d8] sm:$0xff]
        %v6280 = vld [vmem:[%s1753 + $0x2e0] sm:$0xff]
        %v6281 = vld [vmem:[%s1753 + $0x310] sm:$0xff]
        %v6282 = vld [vmem:[%s1753 + $0x318] sm:$0xff]
        %v6283 = vld [vmem:[%s1753 + $0x348] sm:$0xff]
        %v6284 = vld [vmem:[%s1753 + $0x350] sm:$0xff]
        %s6285 = scalar_lea.vmem %s3, 2688
        %v6286 = vld [vmem:[%s6285] sm:$0xff]
        %v6287 = vld [vmem:[%s6285 + $0x8] sm:$0xff]
        %v6288 = vld [vmem:[%s6285 + $0x10] sm:$0xff]
        %v6289 = vld [vmem:[%s6285 + $0x18] sm:$0xff]
        %v6290 = vld [vmem:[%s6285 + $0x20] sm:$0xff]
        %v6291 = vld [vmem:[%s6285 + $0x28] sm:$0xff]
        %v6292 = vld [vmem:[%s6285 + $0x30] sm:$0xff]
        %v6293 = vld [vmem:[%s6285 + $0x38] sm:$0xff]
        %v6294 = vld [vmem:[%s6285 + $0x40] sm:$0xff]
        %v6295 = vld [vmem:[%s6285 + $0x48] sm:$0xff]
        %v6296 = vld [vmem:[%s6285 + $0x50] sm:$0xff]
        %v6297 = vld [vmem:[%s6285 + $0x58] sm:$0xff]
        %v6298 = vld [vmem:[%s6285 + $0x60] sm:$0xff]
        %v6299 = vld [vmem:[%s6285 + $0x68] sm:$0xff]
        %v6300 = vld [vmem:[%s6285 + $0x70] sm:$0xff]
        %v6301 = vld [vmem:[%s6285 + $0x78] sm:$0xff]
        %6302 = vmatpush.msra.mxu0 %v6301
        %6303 = vmatpush.msra.mxu0 %v6300
        %6304 = vmatpush.msra.mxu0 %v6299
        %6305 = vmatpush.msra.mxu0 %v6298
        %6306 = vmatpush.msra.mxu0 %v6297
        %6307 = vmatpush.msra.mxu0 %v6296
        %6308 = vmatpush.msra.mxu0 %v6295
        %6309 = vmatpush.msra.mxu0 %v6294
        %6310 = vmatpush.msra.mxu0 %v6293
        %6311 = vmatpush.msra.mxu0 %v6292
        %6312 = vmatpush.msra.mxu0 %v6291
        %6313 = vmatpush.msra.mxu0 %v6290
        %6314 = vmatpush.msra.mxu0 %v6289
        %6315 = vmatpush.msra.mxu0 %v6288
        %6316 = vmatpush.msra.mxu0 %v6287
        %6317 = vmatpush.msra.mxu0 %v6286
        %6318 = vmatmul.f32.gmra.mxu0 %v6253
        %v6319 = vpop.f32.mrf.mxu0
        %v6320 = vadd.f32 0.0, %v6319
        %6321 = vmatmul.f32.gmra.mxu0 %v6254
        %v6322 = vpop.f32.mrf.mxu0
        %v6323 = vadd.f32 0.0, %v6322
        %6324 = vmatmul.f32.gmra.mxu0 %v6255
        %v6325 = vpop.f32.mrf.mxu0
        %v6326 = vadd.f32 0.0, %v6325
        %6327 = vmatmul.f32.gmra.mxu0 %v6256
        %v6328 = vpop.f32.mrf.mxu0
        %v6329 = vadd.f32 0.0, %v6328
        %6330 = vmatmul.f32.gmra.mxu0 %v6257
        %v6331 = vpop.f32.mrf.mxu0
        %v6332 = vadd.f32 0.0, %v6331
        %6333 = vmatmul.f32.gmra.mxu0 %v6258
        %v6334 = vpop.f32.mrf.mxu0
        %v6335 = vadd.f32 0.0, %v6334
        %6336 = vmatmul.f32.gmra.mxu0 %v6259
        %v6337 = vpop.f32.mrf.mxu0
        %v6338 = vadd.f32 0.0, %v6337
        %6339 = vmatmul.f32.gmra.mxu0 %v6260
        %v6340 = vpop.f32.mrf.mxu0
        %v6341 = vadd.f32 0.0, %v6340
        %6342 = vmatmul.f32.gmra.mxu0 %v6261
        %v6343 = vpop.f32.mrf.mxu0
        %v6344 = vadd.f32 0.0, %v6343
        %6345 = vmatmul.f32.gmra.mxu0 %v6262
        %v6346 = vpop.f32.mrf.mxu0
        %v6347 = vadd.f32 0.0, %v6346
        %6348 = vmatmul.f32.gmra.mxu0 %v6263
        %v6349 = vpop.f32.mrf.mxu0
        %v6350 = vadd.f32 0.0, %v6349
        %6351 = vmatmul.f32.gmra.mxu0 %v6264
        %v6352 = vpop.f32.mrf.mxu0
        %v6353 = vadd.f32 0.0, %v6352
        %6354 = vmatmul.f32.gmra.mxu0 %v6265
        %v6355 = vpop.f32.mrf.mxu0
        %v6356 = vadd.f32 0.0, %v6355
        %6357 = vmatmul.f32.gmra.mxu0 %v6266
        %v6358 = vpop.f32.mrf.mxu0
        %v6359 = vadd.f32 0.0, %v6358
        %6360 = vmatmul.f32.gmra.mxu0 %v6267
        %v6361 = vpop.f32.mrf.mxu0
        %v6362 = vadd.f32 0.0, %v6361
        %6363 = vmatmul.f32.gmra.mxu0 %v6268
        %v6364 = vpop.f32.mrf.mxu0
        %v6365 = vadd.f32 0.0, %v6364
        %6366 = vmatmul.f32.gmra.mxu0 %v6269
        %v6367 = vpop.f32.mrf.mxu0
        %v6368 = vadd.f32 0.0, %v6367
        %6369 = vmatmul.f32.gmra.mxu0 %v6270
        %v6370 = vpop.f32.mrf.mxu0
        %v6371 = vadd.f32 0.0, %v6370
        %6372 = vmatmul.f32.gmra.mxu0 %v6271
        %v6373 = vpop.f32.mrf.mxu0
        %v6374 = vadd.f32 0.0, %v6373
        %6375 = vmatmul.f32.gmra.mxu0 %v6272
        %v6376 = vpop.f32.mrf.mxu0
        %v6377 = vadd.f32 0.0, %v6376
        %6378 = vmatmul.f32.gmra.mxu0 %v6273
        %v6379 = vpop.f32.mrf.mxu0
        %v6380 = vadd.f32 0.0, %v6379
        %6381 = vmatmul.f32.gmra.mxu0 %v6274
        %v6382 = vpop.f32.mrf.mxu0
        %v6383 = vadd.f32 0.0, %v6382
        %6384 = vmatmul.f32.gmra.mxu0 %v6275
        %v6385 = vpop.f32.mrf.mxu0
        %v6386 = vadd.f32 0.0, %v6385
        %6387 = vmatmul.f32.gmra.mxu0 %v6276
        %v6388 = vpop.f32.mrf.mxu0
        %v6389 = vadd.f32 0.0, %v6388
        %6390 = vmatmul.f32.gmra.mxu0 %v6277
        %v6391 = vpop.f32.mrf.mxu0
        %v6392 = vadd.f32 0.0, %v6391
        %6393 = vmatmul.f32.gmra.mxu0 %v6278
        %v6394 = vpop.f32.mrf.mxu0
        %v6395 = vadd.f32 0.0, %v6394
        %6396 = vmatmul.f32.gmra.mxu0 %v6279
        %v6397 = vpop.f32.mrf.mxu0
        %v6398 = vadd.f32 0.0, %v6397
        %6399 = vmatmul.f32.gmra.mxu0 %v6280
        %v6400 = vpop.f32.mrf.mxu0
        %v6401 = vadd.f32 0.0, %v6400
        %6402 = vmatmul.f32.gmra.mxu0 %v6281
        %v6403 = vpop.f32.mrf.mxu0
        %v6404 = vadd.f32 0.0, %v6403
        %6405 = vmatmul.f32.gmra.mxu0 %v6282
        %v6406 = vpop.f32.mrf.mxu0
        %v6407 = vadd.f32 0.0, %v6406
        %6408 = vmatmul.f32.gmra.mxu0 %v6283
        %v6409 = vpop.f32.mrf.mxu0
        %v6410 = vadd.f32 0.0, %v6409
        %6411 = vmatmul.f32.gmra.mxu0 %v6284
        %v6412 = vpop.f32.mrf.mxu0
        %v6413 = vadd.f32 0.0, %v6412
        %6414 = vdwg.mxu0
        %v6415 = vadd.f32 %v6221, %v6320
        %v6416 = vadd.f32 %v6222, %v6323
        %v6417 = vadd.f32 %v6223, %v6326
        %v6418 = vadd.f32 %v6224, %v6329
        %v6419 = vadd.f32 %v6225, %v6332
        %v6420 = vadd.f32 %v6226, %v6335
        %v6421 = vadd.f32 %v6227, %v6338
        %v6422 = vadd.f32 %v6228, %v6341
        %v6423 = vadd.f32 %v6229, %v6344
        %v6424 = vadd.f32 %v6230, %v6347
        %v6425 = vadd.f32 %v6231, %v6350
        %v6426 = vadd.f32 %v6232, %v6353
        %v6427 = vadd.f32 %v6233, %v6356
        %v6428 = vadd.f32 %v6234, %v6359
        %v6429 = vadd.f32 %v6235, %v6362
        %v6430 = vadd.f32 %v6236, %v6365
        %v6431 = vadd.f32 %v6237, %v6368
        %v6432 = vadd.f32 %v6238, %v6371
        %v6433 = vadd.f32 %v6239, %v6374
        %v6434 = vadd.f32 %v6240, %v6377
        %v6435 = vadd.f32 %v6241, %v6380
        %v6436 = vadd.f32 %v6242, %v6383
        %v6437 = vadd.f32 %v6243, %v6386
        %v6438 = vadd.f32 %v6244, %v6389
        %v6439 = vadd.f32 %v6245, %v6392
        %v6440 = vadd.f32 %v6246, %v6395
        %v6441 = vadd.f32 %v6247, %v6398
        %v6442 = vadd.f32 %v6248, %v6401
        %v6443 = vadd.f32 %v6249, %v6404
        %v6444 = vadd.f32 %v6250, %v6407
        %v6445 = vadd.f32 %v6251, %v6410
        %v6446 = vadd.f32 %v6252, %v6413
        %s6447 = scalar_lea.vmem %s3, 2816
        %v6448 = vld [vmem:[%s6447] sm:$0xff]
        %v6449 = vld [vmem:[%s6447 + $0x8] sm:$0xff]
        %v6450 = vld [vmem:[%s6447 + $0x10] sm:$0xff]
        %v6451 = vld [vmem:[%s6447 + $0x18] sm:$0xff]
        %v6452 = vld [vmem:[%s6447 + $0x20] sm:$0xff]
        %v6453 = vld [vmem:[%s6447 + $0x28] sm:$0xff]
        %v6454 = vld [vmem:[%s6447 + $0x30] sm:$0xff]
        %v6455 = vld [vmem:[%s6447 + $0x38] sm:$0xff]
        %v6456 = vld [vmem:[%s6447 + $0x40] sm:$0xff]
        %v6457 = vld [vmem:[%s6447 + $0x48] sm:$0xff]
        %v6458 = vld [vmem:[%s6447 + $0x50] sm:$0xff]
        %v6459 = vld [vmem:[%s6447 + $0x58] sm:$0xff]
        %v6460 = vld [vmem:[%s6447 + $0x60] sm:$0xff]
        %v6461 = vld [vmem:[%s6447 + $0x68] sm:$0xff]
        %v6462 = vld [vmem:[%s6447 + $0x70] sm:$0xff]
        %v6463 = vld [vmem:[%s6447 + $0x78] sm:$0xff]
        %6464 = vmatpush.msra.mxu0 %v6463
        %6465 = vmatpush.msra.mxu0 %v6462
        %6466 = vmatpush.msra.mxu0 %v6461
        %6467 = vmatpush.msra.mxu0 %v6460
        %6468 = vmatpush.msra.mxu0 %v6459
        %6469 = vmatpush.msra.mxu0 %v6458
        %6470 = vmatpush.msra.mxu0 %v6457
        %6471 = vmatpush.msra.mxu0 %v6456
        %6472 = vmatpush.msra.mxu0 %v6455
        %6473 = vmatpush.msra.mxu0 %v6454
        %6474 = vmatpush.msra.mxu0 %v6453
        %6475 = vmatpush.msra.mxu0 %v6452
        %6476 = vmatpush.msra.mxu0 %v6451
        %6477 = vmatpush.msra.mxu0 %v6450
        %6478 = vmatpush.msra.mxu0 %v6449
        %6479 = vmatpush.msra.mxu0 %v6448
        %6480 = vmatmul.f32.gmra.mxu0 %v1754
        %v6481 = vpop.f32.mrf.mxu0
        %v6482 = vadd.f32 0.0, %v6481
        %6483 = vmatmul.f32.gmra.mxu0 %v1755
        %v6484 = vpop.f32.mrf.mxu0
        %v6485 = vadd.f32 0.0, %v6484
        %6486 = vmatmul.f32.gmra.mxu0 %v1756
        %v6487 = vpop.f32.mrf.mxu0
        %v6488 = vadd.f32 0.0, %v6487
        %6489 = vmatmul.f32.gmra.mxu0 %v1757
        %v6490 = vpop.f32.mrf.mxu0
        %v6491 = vadd.f32 0.0, %v6490
        %6492 = vmatmul.f32.gmra.mxu0 %v1758
        %v6493 = vpop.f32.mrf.mxu0
        %v6494 = vadd.f32 0.0, %v6493
        %6495 = vmatmul.f32.gmra.mxu0 %v1759
        %v6496 = vpop.f32.mrf.mxu0
        %v6497 = vadd.f32 0.0, %v6496
        %6498 = vmatmul.f32.gmra.mxu0 %v1760
        %v6499 = vpop.f32.mrf.mxu0
        %v6500 = vadd.f32 0.0, %v6499
        %6501 = vmatmul.f32.gmra.mxu0 %v1761
        %v6502 = vpop.f32.mrf.mxu0
        %v6503 = vadd.f32 0.0, %v6502
        %6504 = vmatmul.f32.gmra.mxu0 %v1762
        %v6505 = vpop.f32.mrf.mxu0
        %v6506 = vadd.f32 0.0, %v6505
        %6507 = vmatmul.f32.gmra.mxu0 %v1763
        %v6508 = vpop.f32.mrf.mxu0
        %v6509 = vadd.f32 0.0, %v6508
        %6510 = vmatmul.f32.gmra.mxu0 %v1764
        %v6511 = vpop.f32.mrf.mxu0
        %v6512 = vadd.f32 0.0, %v6511
        %6513 = vmatmul.f32.gmra.mxu0 %v1765
        %v6514 = vpop.f32.mrf.mxu0
        %v6515 = vadd.f32 0.0, %v6514
        %6516 = vmatmul.f32.gmra.mxu0 %v1766
        %v6517 = vpop.f32.mrf.mxu0
        %v6518 = vadd.f32 0.0, %v6517
        %6519 = vmatmul.f32.gmra.mxu0 %v1767
        %v6520 = vpop.f32.mrf.mxu0
        %v6521 = vadd.f32 0.0, %v6520
        %6522 = vmatmul.f32.gmra.mxu0 %v1768
        %v6523 = vpop.f32.mrf.mxu0
        %v6524 = vadd.f32 0.0, %v6523
        %6525 = vmatmul.f32.gmra.mxu0 %v1769
        %v6526 = vpop.f32.mrf.mxu0
        %v6527 = vadd.f32 0.0, %v6526
        %6528 = vmatmul.f32.gmra.mxu0 %v1770
        %v6529 = vpop.f32.mrf.mxu0
        %v6530 = vadd.f32 0.0, %v6529
        %6531 = vmatmul.f32.gmra.mxu0 %v1771
        %v6532 = vpop.f32.mrf.mxu0
        %v6533 = vadd.f32 0.0, %v6532
        %6534 = vmatmul.f32.gmra.mxu0 %v1772
        %v6535 = vpop.f32.mrf.mxu0
        %v6536 = vadd.f32 0.0, %v6535
        %6537 = vmatmul.f32.gmra.mxu0 %v1773
        %v6538 = vpop.f32.mrf.mxu0
        %v6539 = vadd.f32 0.0, %v6538
        %6540 = vmatmul.f32.gmra.mxu0 %v1774
        %v6541 = vpop.f32.mrf.mxu0
        %v6542 = vadd.f32 0.0, %v6541
        %6543 = vmatmul.f32.gmra.mxu0 %v1775
        %v6544 = vpop.f32.mrf.mxu0
        %v6545 = vadd.f32 0.0, %v6544
        %6546 = vmatmul.f32.gmra.mxu0 %v1776
        %v6547 = vpop.f32.mrf.mxu0
        %v6548 = vadd.f32 0.0, %v6547
        %6549 = vmatmul.f32.gmra.mxu0 %v1777
        %v6550 = vpop.f32.mrf.mxu0
        %v6551 = vadd.f32 0.0, %v6550
        %6552 = vmatmul.f32.gmra.mxu0 %v1778
        %v6553 = vpop.f32.mrf.mxu0
        %v6554 = vadd.f32 0.0, %v6553
        %6555 = vmatmul.f32.gmra.mxu0 %v1779
        %v6556 = vpop.f32.mrf.mxu0
        %v6557 = vadd.f32 0.0, %v6556
        %6558 = vmatmul.f32.gmra.mxu0 %v1780
        %v6559 = vpop.f32.mrf.mxu0
        %v6560 = vadd.f32 0.0, %v6559
        %6561 = vmatmul.f32.gmra.mxu0 %v1781
        %v6562 = vpop.f32.mrf.mxu0
        %v6563 = vadd.f32 0.0, %v6562
        %6564 = vmatmul.f32.gmra.mxu0 %v1782
        %v6565 = vpop.f32.mrf.mxu0
        %v6566 = vadd.f32 0.0, %v6565
        %6567 = vmatmul.f32.gmra.mxu0 %v1783
        %v6568 = vpop.f32.mrf.mxu0
        %v6569 = vadd.f32 0.0, %v6568
        %6570 = vmatmul.f32.gmra.mxu0 %v1784
        %v6571 = vpop.f32.mrf.mxu0
        %v6572 = vadd.f32 0.0, %v6571
        %6573 = vmatmul.f32.gmra.mxu0 %v1785
        %v6574 = vpop.f32.mrf.mxu0
        %v6575 = vadd.f32 0.0, %v6574
        %6576 = vdwg.mxu0
        %v6577 = vadd.f32 %v6415, %v6482
        %v6578 = vadd.f32 %v6416, %v6485
        %v6579 = vadd.f32 %v6417, %v6488
        %v6580 = vadd.f32 %v6418, %v6491
        %v6581 = vadd.f32 %v6419, %v6494
        %v6582 = vadd.f32 %v6420, %v6497
        %v6583 = vadd.f32 %v6421, %v6500
        %v6584 = vadd.f32 %v6422, %v6503
        %v6585 = vadd.f32 %v6423, %v6506
        %v6586 = vadd.f32 %v6424, %v6509
        %v6587 = vadd.f32 %v6425, %v6512
        %v6588 = vadd.f32 %v6426, %v6515
        %v6589 = vadd.f32 %v6427, %v6518
        %v6590 = vadd.f32 %v6428, %v6521
        %v6591 = vadd.f32 %v6429, %v6524
        %v6592 = vadd.f32 %v6430, %v6527
        %v6593 = vadd.f32 %v6431, %v6530
        %v6594 = vadd.f32 %v6432, %v6533
        %v6595 = vadd.f32 %v6433, %v6536
        %v6596 = vadd.f32 %v6434, %v6539
        %v6597 = vadd.f32 %v6435, %v6542
        %v6598 = vadd.f32 %v6436, %v6545
        %v6599 = vadd.f32 %v6437, %v6548
        %v6600 = vadd.f32 %v6438, %v6551
        %v6601 = vadd.f32 %v6439, %v6554
        %v6602 = vadd.f32 %v6440, %v6557
        %v6603 = vadd.f32 %v6441, %v6560
        %v6604 = vadd.f32 %v6442, %v6563
        %v6605 = vadd.f32 %v6443, %v6566
        %v6606 = vadd.f32 %v6444, %v6569
        %v6607 = vadd.f32 %v6445, %v6572
        %v6608 = vadd.f32 %v6446, %v6575
        %v6609 = vld [vmem:[%s1753 + $0x24] sm:$0xff]
        %v6610 = vld [vmem:[%s1753 + $0x2c] sm:$0xff]
        %v6611 = vld [vmem:[%s1753 + $0x5c] sm:$0xff]
        %v6612 = vld [vmem:[%s1753 + $0x64] sm:$0xff]
        %v6613 = vld [vmem:[%s1753 + $0x94] sm:$0xff]
        %v6614 = vld [vmem:[%s1753 + $0x9c] sm:$0xff]
        %v6615 = vld [vmem:[%s1753 + $0xcc] sm:$0xff]
        %v6616 = vld [vmem:[%s1753 + $0xd4] sm:$0xff]
        %v6617 = vld [vmem:[%s1753 + $0x104] sm:$0xff]
        %v6618 = vld [vmem:[%s1753 + $0x10c] sm:$0xff]
        %v6619 = vld [vmem:[%s1753 + $0x13c] sm:$0xff]
        %v6620 = vld [vmem:[%s1753 + $0x144] sm:$0xff]
        %v6621 = vld [vmem:[%s1753 + $0x174] sm:$0xff]
        %v6622 = vld [vmem:[%s1753 + $0x17c] sm:$0xff]
        %v6623 = vld [vmem:[%s1753 + $0x1ac] sm:$0xff]
        %v6624 = vld [vmem:[%s1753 + $0x1b4] sm:$0xff]
        %v6625 = vld [vmem:[%s1753 + $0x1e4] sm:$0xff]
        %v6626 = vld [vmem:[%s1753 + $0x1ec] sm:$0xff]
        %v6627 = vld [vmem:[%s1753 + $0x21c] sm:$0xff]
        %v6628 = vld [vmem:[%s1753 + $0x224] sm:$0xff]
        %v6629 = vld [vmem:[%s1753 + $0x254] sm:$0xff]
        %v6630 = vld [vmem:[%s1753 + $0x25c] sm:$0xff]
        %v6631 = vld [vmem:[%s1753 + $0x28c] sm:$0xff]
        %v6632 = vld [vmem:[%s1753 + $0x294] sm:$0xff]
        %v6633 = vld [vmem:[%s1753 + $0x2c4] sm:$0xff]
        %v6634 = vld [vmem:[%s1753 + $0x2cc] sm:$0xff]
        %v6635 = vld [vmem:[%s1753 + $0x2fc] sm:$0xff]
        %v6636 = vld [vmem:[%s1753 + $0x304] sm:$0xff]
        %v6637 = vld [vmem:[%s1753 + $0x334] sm:$0xff]
        %v6638 = vld [vmem:[%s1753 + $0x33c] sm:$0xff]
        %v6639 = vld [vmem:[%s1753 + $0x36c] sm:$0xff]
        %v6640 = vld [vmem:[%s1753 + $0x374] sm:$0xff]
        %s6641 = scalar_lea.vmem %s3, 2944
        %v6642 = vld [vmem:[%s6641] sm:$0xff]
        %v6643 = vld [vmem:[%s6641 + $0x8] sm:$0xff]
        %v6644 = vld [vmem:[%s6641 + $0x10] sm:$0xff]
        %v6645 = vld [vmem:[%s6641 + $0x18] sm:$0xff]
        %v6646 = vld [vmem:[%s6641 + $0x20] sm:$0xff]
        %v6647 = vld [vmem:[%s6641 + $0x28] sm:$0xff]
        %v6648 = vld [vmem:[%s6641 + $0x30] sm:$0xff]
        %v6649 = vld [vmem:[%s6641 + $0x38] sm:$0xff]
        %v6650 = vld [vmem:[%s6641 + $0x40] sm:$0xff]
        %v6651 = vld [vmem:[%s6641 + $0x48] sm:$0xff]
        %v6652 = vld [vmem:[%s6641 + $0x50] sm:$0xff]
        %v6653 = vld [vmem:[%s6641 + $0x58] sm:$0xff]
        %v6654 = vld [vmem:[%s6641 + $0x60] sm:$0xff]
        %v6655 = vld [vmem:[%s6641 + $0x68] sm:$0xff]
        %v6656 = vld [vmem:[%s6641 + $0x70] sm:$0xff]
        %v6657 = vld [vmem:[%s6641 + $0x78] sm:$0xff]
        %6658 = vmatpush.msra.mxu0 %v6657
        %6659 = vmatpush.msra.mxu0 %v6656
        %6660 = vmatpush.msra.mxu0 %v6655
        %6661 = vmatpush.msra.mxu0 %v6654
        %6662 = vmatpush.msra.mxu0 %v6653
        %6663 = vmatpush.msra.mxu0 %v6652
        %6664 = vmatpush.msra.mxu0 %v6651
        %6665 = vmatpush.msra.mxu0 %v6650
        %6666 = vmatpush.msra.mxu0 %v6649
        %6667 = vmatpush.msra.mxu0 %v6648
        %6668 = vmatpush.msra.mxu0 %v6647
        %6669 = vmatpush.msra.mxu0 %v6646
        %6670 = vmatpush.msra.mxu0 %v6645
        %6671 = vmatpush.msra.mxu0 %v6644
        %6672 = vmatpush.msra.mxu0 %v6643
        %6673 = vmatpush.msra.mxu0 %v6642
        %6674 = vmatmul.f32.gmra.mxu0 %v6609
        %v6675 = vpop.f32.mrf.mxu0
        %v6676 = vadd.f32 0.0, %v6675
        %6677 = vmatmul.f32.gmra.mxu0 %v6610
        %v6678 = vpop.f32.mrf.mxu0
        %v6679 = vadd.f32 0.0, %v6678
        %6680 = vmatmul.f32.gmra.mxu0 %v6611
        %v6681 = vpop.f32.mrf.mxu0
        %v6682 = vadd.f32 0.0, %v6681
        %6683 = vmatmul.f32.gmra.mxu0 %v6612
        %v6684 = vpop.f32.mrf.mxu0
        %v6685 = vadd.f32 0.0, %v6684
        %6686 = vmatmul.f32.gmra.mxu0 %v6613
        %v6687 = vpop.f32.mrf.mxu0
        %v6688 = vadd.f32 0.0, %v6687
        %6689 = vmatmul.f32.gmra.mxu0 %v6614
        %v6690 = vpop.f32.mrf.mxu0
        %v6691 = vadd.f32 0.0, %v6690
        %6692 = vmatmul.f32.gmra.mxu0 %v6615
        %v6693 = vpop.f32.mrf.mxu0
        %v6694 = vadd.f32 0.0, %v6693
        %6695 = vmatmul.f32.gmra.mxu0 %v6616
        %v6696 = vpop.f32.mrf.mxu0
        %v6697 = vadd.f32 0.0, %v6696
        %6698 = vmatmul.f32.gmra.mxu0 %v6617
        %v6699 = vpop.f32.mrf.mxu0
        %v6700 = vadd.f32 0.0, %v6699
        %6701 = vmatmul.f32.gmra.mxu0 %v6618
        %v6702 = vpop.f32.mrf.mxu0
        %v6703 = vadd.f32 0.0, %v6702
        %6704 = vmatmul.f32.gmra.mxu0 %v6619
        %v6705 = vpop.f32.mrf.mxu0
        %v6706 = vadd.f32 0.0, %v6705
        %6707 = vmatmul.f32.gmra.mxu0 %v6620
        %v6708 = vpop.f32.mrf.mxu0
        %v6709 = vadd.f32 0.0, %v6708
        %6710 = vmatmul.f32.gmra.mxu0 %v6621
        %v6711 = vpop.f32.mrf.mxu0
        %v6712 = vadd.f32 0.0, %v6711
        %6713 = vmatmul.f32.gmra.mxu0 %v6622
        %v6714 = vpop.f32.mrf.mxu0
        %v6715 = vadd.f32 0.0, %v6714
        %6716 = vmatmul.f32.gmra.mxu0 %v6623
        %v6717 = vpop.f32.mrf.mxu0
        %v6718 = vadd.f32 0.0, %v6717
        %6719 = vmatmul.f32.gmra.mxu0 %v6624
        %v6720 = vpop.f32.mrf.mxu0
        %v6721 = vadd.f32 0.0, %v6720
        %6722 = vmatmul.f32.gmra.mxu0 %v6625
        %v6723 = vpop.f32.mrf.mxu0
        %v6724 = vadd.f32 0.0, %v6723
        %6725 = vmatmul.f32.gmra.mxu0 %v6626
        %v6726 = vpop.f32.mrf.mxu0
        %v6727 = vadd.f32 0.0, %v6726
        %6728 = vmatmul.f32.gmra.mxu0 %v6627
        %v6729 = vpop.f32.mrf.mxu0
        %v6730 = vadd.f32 0.0, %v6729
        %6731 = vmatmul.f32.gmra.mxu0 %v6628
        %v6732 = vpop.f32.mrf.mxu0
        %v6733 = vadd.f32 0.0, %v6732
        %6734 = vmatmul.f32.gmra.mxu0 %v6629
        %v6735 = vpop.f32.mrf.mxu0
        %v6736 = vadd.f32 0.0, %v6735
        %6737 = vmatmul.f32.gmra.mxu0 %v6630
        %v6738 = vpop.f32.mrf.mxu0
        %v6739 = vadd.f32 0.0, %v6738
        %6740 = vmatmul.f32.gmra.mxu0 %v6631
        %v6741 = vpop.f32.mrf.mxu0
        %v6742 = vadd.f32 0.0, %v6741
        %6743 = vmatmul.f32.gmra.mxu0 %v6632
        %v6744 = vpop.f32.mrf.mxu0
        %v6745 = vadd.f32 0.0, %v6744
        %6746 = vmatmul.f32.gmra.mxu0 %v6633
        %v6747 = vpop.f32.mrf.mxu0
        %v6748 = vadd.f32 0.0, %v6747
        %6749 = vmatmul.f32.gmra.mxu0 %v6634
        %v6750 = vpop.f32.mrf.mxu0
        %v6751 = vadd.f32 0.0, %v6750
        %6752 = vmatmul.f32.gmra.mxu0 %v6635
        %v6753 = vpop.f32.mrf.mxu0
        %v6754 = vadd.f32 0.0, %v6753
        %6755 = vmatmul.f32.gmra.mxu0 %v6636
        %v6756 = vpop.f32.mrf.mxu0
        %v6757 = vadd.f32 0.0, %v6756
        %6758 = vmatmul.f32.gmra.mxu0 %v6637
        %v6759 = vpop.f32.mrf.mxu0
        %v6760 = vadd.f32 0.0, %v6759
        %6761 = vmatmul.f32.gmra.mxu0 %v6638
        %v6762 = vpop.f32.mrf.mxu0
        %v6763 = vadd.f32 0.0, %v6762
        %6764 = vmatmul.f32.gmra.mxu0 %v6639
        %v6765 = vpop.f32.mrf.mxu0
        %v6766 = vadd.f32 0.0, %v6765
        %6767 = vmatmul.f32.gmra.mxu0 %v6640
        %v6768 = vpop.f32.mrf.mxu0
        %v6769 = vadd.f32 0.0, %v6768
        %6770 = vdwg.mxu0
        %v6771 = vadd.f32 %v6577, %v6676
        %v6772 = vadd.f32 %v6578, %v6679
        %v6773 = vadd.f32 %v6579, %v6682
        %v6774 = vadd.f32 %v6580, %v6685
        %v6775 = vadd.f32 %v6581, %v6688
        %v6776 = vadd.f32 %v6582, %v6691
        %v6777 = vadd.f32 %v6583, %v6694
        %v6778 = vadd.f32 %v6584, %v6697
        %v6779 = vadd.f32 %v6585, %v6700
        %v6780 = vadd.f32 %v6586, %v6703
        %v6781 = vadd.f32 %v6587, %v6706
        %v6782 = vadd.f32 %v6588, %v6709
        %v6783 = vadd.f32 %v6589, %v6712
        %v6784 = vadd.f32 %v6590, %v6715
        %v6785 = vadd.f32 %v6591, %v6718
        %v6786 = vadd.f32 %v6592, %v6721
        %v6787 = vadd.f32 %v6593, %v6724
        %v6788 = vadd.f32 %v6594, %v6727
        %v6789 = vadd.f32 %v6595, %v6730
        %v6790 = vadd.f32 %v6596, %v6733
        %v6791 = vadd.f32 %v6597, %v6736
        %v6792 = vadd.f32 %v6598, %v6739
        %v6793 = vadd.f32 %v6599, %v6742
        %v6794 = vadd.f32 %v6600, %v6745
        %v6795 = vadd.f32 %v6601, %v6748
        %v6796 = vadd.f32 %v6602, %v6751
        %v6797 = vadd.f32 %v6603, %v6754
        %v6798 = vadd.f32 %v6604, %v6757
        %v6799 = vadd.f32 %v6605, %v6760
        %v6800 = vadd.f32 %v6606, %v6763
        %v6801 = vadd.f32 %v6607, %v6766
        %v6802 = vadd.f32 %v6608, %v6769
        %s6803 = scalar_lea.vmem %s979, 2016 [#allocation2]
        %v6804 = vld [vmem:[%s6803] sm:$0xff]
        %v6805 = vld [vmem:[%s6803 + $0x8] sm:$0xff]
        %v6806 = vld [vmem:[%s6803 + $0x38] sm:$0xff]
        %v6807 = vld [vmem:[%s6803 + $0x40] sm:$0xff]
        %v6808 = vld [vmem:[%s6803 + $0x70] sm:$0xff]
        %v6809 = vld [vmem:[%s6803 + $0x78] sm:$0xff]
        %v6810 = vld [vmem:[%s6803 + $0xa8] sm:$0xff]
        %v6811 = vld [vmem:[%s6803 + $0xb0] sm:$0xff]
        %v6812 = vld [vmem:[%s6803 + $0xe0] sm:$0xff]
        %v6813 = vld [vmem:[%s6803 + $0xe8] sm:$0xff]
        %v6814 = vld [vmem:[%s6803 + $0x118] sm:$0xff]
        %v6815 = vld [vmem:[%s6803 + $0x120] sm:$0xff]
        %v6816 = vld [vmem:[%s6803 + $0x150] sm:$0xff]
        %v6817 = vld [vmem:[%s6803 + $0x158] sm:$0xff]
        %v6818 = vld [vmem:[%s6803 + $0x188] sm:$0xff]
        %v6819 = vld [vmem:[%s6803 + $0x190] sm:$0xff]
        %v6820 = vld [vmem:[%s6803 + $0x1c0] sm:$0xff]
        %v6821 = vld [vmem:[%s6803 + $0x1c8] sm:$0xff]
        %v6822 = vld [vmem:[%s6803 + $0x1f8] sm:$0xff]
        %v6823 = vld [vmem:[%s6803 + $0x200] sm:$0xff]
        %v6824 = vld [vmem:[%s6803 + $0x230] sm:$0xff]
        %v6825 = vld [vmem:[%s6803 + $0x238] sm:$0xff]
        %v6826 = vld [vmem:[%s6803 + $0x268] sm:$0xff]
        %v6827 = vld [vmem:[%s6803 + $0x270] sm:$0xff]
        %v6828 = vld [vmem:[%s6803 + $0x2a0] sm:$0xff]
        %v6829 = vld [vmem:[%s6803 + $0x2a8] sm:$0xff]
        %v6830 = vld [vmem:[%s6803 + $0x2d8] sm:$0xff]
        %v6831 = vld [vmem:[%s6803 + $0x2e0] sm:$0xff]
        %v6832 = vld [vmem:[%s6803 + $0x310] sm:$0xff]
        %v6833 = vld [vmem:[%s6803 + $0x318] sm:$0xff]
        %v6834 = vld [vmem:[%s6803 + $0x348] sm:$0xff]
        %v6835 = vld [vmem:[%s6803 + $0x350] sm:$0xff]
        %s6836 = scalar_lea.vmem %s3, 3072
        %v6837 = vld [vmem:[%s6836] sm:$0xff]
        %v6838 = vld [vmem:[%s6836 + $0x8] sm:$0xff]
        %v6839 = vld [vmem:[%s6836 + $0x10] sm:$0xff]
        %v6840 = vld [vmem:[%s6836 + $0x18] sm:$0xff]
        %v6841 = vld [vmem:[%s6836 + $0x20] sm:$0xff]
        %v6842 = vld [vmem:[%s6836 + $0x28] sm:$0xff]
        %v6843 = vld [vmem:[%s6836 + $0x30] sm:$0xff]
        %v6844 = vld [vmem:[%s6836 + $0x38] sm:$0xff]
        %v6845 = vld [vmem:[%s6836 + $0x40] sm:$0xff]
        %v6846 = vld [vmem:[%s6836 + $0x48] sm:$0xff]
        %v6847 = vld [vmem:[%s6836 + $0x50] sm:$0xff]
        %v6848 = vld [vmem:[%s6836 + $0x58] sm:$0xff]
        %v6849 = vld [vmem:[%s6836 + $0x60] sm:$0xff]
        %v6850 = vld [vmem:[%s6836 + $0x68] sm:$0xff]
        %v6851 = vld [vmem:[%s6836 + $0x70] sm:$0xff]
        %v6852 = vld [vmem:[%s6836 + $0x78] sm:$0xff]
        %6853 = vmatpush.msra.mxu0 %v6852
        %6854 = vmatpush.msra.mxu0 %v6851
        %6855 = vmatpush.msra.mxu0 %v6850
        %6856 = vmatpush.msra.mxu0 %v6849
        %6857 = vmatpush.msra.mxu0 %v6848
        %6858 = vmatpush.msra.mxu0 %v6847
        %6859 = vmatpush.msra.mxu0 %v6846
        %6860 = vmatpush.msra.mxu0 %v6845
        %6861 = vmatpush.msra.mxu0 %v6844
        %6862 = vmatpush.msra.mxu0 %v6843
        %6863 = vmatpush.msra.mxu0 %v6842
        %6864 = vmatpush.msra.mxu0 %v6841
        %6865 = vmatpush.msra.mxu0 %v6840
        %6866 = vmatpush.msra.mxu0 %v6839
        %6867 = vmatpush.msra.mxu0 %v6838
        %6868 = vmatpush.msra.mxu0 %v6837
        %6869 = vmatmul.f32.gmra.mxu0 %v6804
        %v6870 = vpop.f32.mrf.mxu0
        %v6871 = vadd.f32 0.0, %v6870
        %6872 = vmatmul.f32.gmra.mxu0 %v6805
        %v6873 = vpop.f32.mrf.mxu0
        %v6874 = vadd.f32 0.0, %v6873
        %6875 = vmatmul.f32.gmra.mxu0 %v6806
        %v6876 = vpop.f32.mrf.mxu0
        %v6877 = vadd.f32 0.0, %v6876
        %6878 = vmatmul.f32.gmra.mxu0 %v6807
        %v6879 = vpop.f32.mrf.mxu0
        %v6880 = vadd.f32 0.0, %v6879
        %6881 = vmatmul.f32.gmra.mxu0 %v6808
        %v6882 = vpop.f32.mrf.mxu0
        %v6883 = vadd.f32 0.0, %v6882
        %6884 = vmatmul.f32.gmra.mxu0 %v6809
        %v6885 = vpop.f32.mrf.mxu0
        %v6886 = vadd.f32 0.0, %v6885
        %6887 = vmatmul.f32.gmra.mxu0 %v6810
        %v6888 = vpop.f32.mrf.mxu0
        %v6889 = vadd.f32 0.0, %v6888
        %6890 = vmatmul.f32.gmra.mxu0 %v6811
        %v6891 = vpop.f32.mrf.mxu0
        %v6892 = vadd.f32 0.0, %v6891
        %6893 = vmatmul.f32.gmra.mxu0 %v6812
        %v6894 = vpop.f32.mrf.mxu0
        %v6895 = vadd.f32 0.0, %v6894
        %6896 = vmatmul.f32.gmra.mxu0 %v6813
        %v6897 = vpop.f32.mrf.mxu0
        %v6898 = vadd.f32 0.0, %v6897
        %6899 = vmatmul.f32.gmra.mxu0 %v6814
        %v6900 = vpop.f32.mrf.mxu0
        %v6901 = vadd.f32 0.0, %v6900
        %6902 = vmatmul.f32.gmra.mxu0 %v6815
        %v6903 = vpop.f32.mrf.mxu0
        %v6904 = vadd.f32 0.0, %v6903
        %6905 = vmatmul.f32.gmra.mxu0 %v6816
        %v6906 = vpop.f32.mrf.mxu0
        %v6907 = vadd.f32 0.0, %v6906
        %6908 = vmatmul.f32.gmra.mxu0 %v6817
        %v6909 = vpop.f32.mrf.mxu0
        %v6910 = vadd.f32 0.0, %v6909
        %6911 = vmatmul.f32.gmra.mxu0 %v6818
        %v6912 = vpop.f32.mrf.mxu0
        %v6913 = vadd.f32 0.0, %v6912
        %6914 = vmatmul.f32.gmra.mxu0 %v6819
        %v6915 = vpop.f32.mrf.mxu0
        %v6916 = vadd.f32 0.0, %v6915
        %6917 = vmatmul.f32.gmra.mxu0 %v6820
        %v6918 = vpop.f32.mrf.mxu0
        %v6919 = vadd.f32 0.0, %v6918
        %6920 = vmatmul.f32.gmra.mxu0 %v6821
        %v6921 = vpop.f32.mrf.mxu0
        %v6922 = vadd.f32 0.0, %v6921
        %6923 = vmatmul.f32.gmra.mxu0 %v6822
        %v6924 = vpop.f32.mrf.mxu0
        %v6925 = vadd.f32 0.0, %v6924
        %6926 = vmatmul.f32.gmra.mxu0 %v6823
        %v6927 = vpop.f32.mrf.mxu0
        %v6928 = vadd.f32 0.0, %v6927
        %6929 = vmatmul.f32.gmra.mxu0 %v6824
        %v6930 = vpop.f32.mrf.mxu0
        %v6931 = vadd.f32 0.0, %v6930
        %6932 = vmatmul.f32.gmra.mxu0 %v6825
        %v6933 = vpop.f32.mrf.mxu0
        %v6934 = vadd.f32 0.0, %v6933
        %6935 = vmatmul.f32.gmra.mxu0 %v6826
        %v6936 = vpop.f32.mrf.mxu0
        %v6937 = vadd.f32 0.0, %v6936
        %6938 = vmatmul.f32.gmra.mxu0 %v6827
        %v6939 = vpop.f32.mrf.mxu0
        %v6940 = vadd.f32 0.0, %v6939
        %6941 = vmatmul.f32.gmra.mxu0 %v6828
        %v6942 = vpop.f32.mrf.mxu0
        %v6943 = vadd.f32 0.0, %v6942
        %6944 = vmatmul.f32.gmra.mxu0 %v6829
        %v6945 = vpop.f32.mrf.mxu0
        %v6946 = vadd.f32 0.0, %v6945
        %6947 = vmatmul.f32.gmra.mxu0 %v6830
        %v6948 = vpop.f32.mrf.mxu0
        %v6949 = vadd.f32 0.0, %v6948
        %6950 = vmatmul.f32.gmra.mxu0 %v6831
        %v6951 = vpop.f32.mrf.mxu0
        %v6952 = vadd.f32 0.0, %v6951
        %6953 = vmatmul.f32.gmra.mxu0 %v6832
        %v6954 = vpop.f32.mrf.mxu0
        %v6955 = vadd.f32 0.0, %v6954
        %6956 = vmatmul.f32.gmra.mxu0 %v6833
        %v6957 = vpop.f32.mrf.mxu0
        %v6958 = vadd.f32 0.0, %v6957
        %6959 = vmatmul.f32.gmra.mxu0 %v6834
        %v6960 = vpop.f32.mrf.mxu0
        %v6961 = vadd.f32 0.0, %v6960
        %6962 = vmatmul.f32.gmra.mxu0 %v6835
        %v6963 = vpop.f32.mrf.mxu0
        %v6964 = vadd.f32 0.0, %v6963
        %6965 = vdwg.mxu0
        %v6966 = vadd.f32 %v6771, %v6871
        %v6967 = vadd.f32 %v6772, %v6874
        %v6968 = vadd.f32 %v6773, %v6877
        %v6969 = vadd.f32 %v6774, %v6880
        %v6970 = vadd.f32 %v6775, %v6883
        %v6971 = vadd.f32 %v6776, %v6886
        %v6972 = vadd.f32 %v6777, %v6889
        %v6973 = vadd.f32 %v6778, %v6892
        %v6974 = vadd.f32 %v6779, %v6895
        %v6975 = vadd.f32 %v6780, %v6898
        %v6976 = vadd.f32 %v6781, %v6901
        %v6977 = vadd.f32 %v6782, %v6904
        %v6978 = vadd.f32 %v6783, %v6907
        %v6979 = vadd.f32 %v6784, %v6910
        %v6980 = vadd.f32 %v6785, %v6913
        %v6981 = vadd.f32 %v6786, %v6916
        %v6982 = vadd.f32 %v6787, %v6919
        %v6983 = vadd.f32 %v6788, %v6922
        %v6984 = vadd.f32 %v6789, %v6925
        %v6985 = vadd.f32 %v6790, %v6928
        %v6986 = vadd.f32 %v6791, %v6931
        %v6987 = vadd.f32 %v6792, %v6934
        %v6988 = vadd.f32 %v6793, %v6937
        %v6989 = vadd.f32 %v6794, %v6940
        %v6990 = vadd.f32 %v6795, %v6943
        %v6991 = vadd.f32 %v6796, %v6946
        %v6992 = vadd.f32 %v6797, %v6949
        %v6993 = vadd.f32 %v6798, %v6952
        %v6994 = vadd.f32 %v6799, %v6955
        %v6995 = vadd.f32 %v6800, %v6958
        %v6996 = vadd.f32 %v6801, %v6961
        %v6997 = vadd.f32 %v6802, %v6964
        %v6998 = vld [vmem:[%s6803 + $0x12] sm:$0xff]
        %v6999 = vld [vmem:[%s6803 + $0x1a] sm:$0xff]
        %v7000 = vld [vmem:[%s6803 + $0x4a] sm:$0xff]
        %v7001 = vld [vmem:[%s6803 + $0x52] sm:$0xff]
        %v7002 = vld [vmem:[%s6803 + $0x82] sm:$0xff]
        %v7003 = vld [vmem:[%s6803 + $0x8a] sm:$0xff]
        %v7004 = vld [vmem:[%s6803 + $0xba] sm:$0xff]
        %v7005 = vld [vmem:[%s6803 + $0xc2] sm:$0xff]
        %v7006 = vld [vmem:[%s6803 + $0xf2] sm:$0xff]
        %v7007 = vld [vmem:[%s6803 + $0xfa] sm:$0xff]
        %v7008 = vld [vmem:[%s6803 + $0x12a] sm:$0xff]
        %v7009 = vld [vmem:[%s6803 + $0x132] sm:$0xff]
        %v7010 = vld [vmem:[%s6803 + $0x162] sm:$0xff]
        %v7011 = vld [vmem:[%s6803 + $0x16a] sm:$0xff]
        %v7012 = vld [vmem:[%s6803 + $0x19a] sm:$0xff]
        %v7013 = vld [vmem:[%s6803 + $0x1a2] sm:$0xff]
        %v7014 = vld [vmem:[%s6803 + $0x1d2] sm:$0xff]
        %v7015 = vld [vmem:[%s6803 + $0x1da] sm:$0xff]
        %v7016 = vld [vmem:[%s6803 + $0x20a] sm:$0xff]
        %v7017 = vld [vmem:[%s6803 + $0x212] sm:$0xff]
        %v7018 = vld [vmem:[%s6803 + $0x242] sm:$0xff]
        %v7019 = vld [vmem:[%s6803 + $0x24a] sm:$0xff]
        %v7020 = vld [vmem:[%s6803 + $0x27a] sm:$0xff]
        %v7021 = vld [vmem:[%s6803 + $0x282] sm:$0xff]
        %v7022 = vld [vmem:[%s6803 + $0x2b2] sm:$0xff]
        %v7023 = vld [vmem:[%s6803 + $0x2ba] sm:$0xff]
        %v7024 = vld [vmem:[%s6803 + $0x2ea] sm:$0xff]
        %v7025 = vld [vmem:[%s6803 + $0x2f2] sm:$0xff]
        %v7026 = vld [vmem:[%s6803 + $0x322] sm:$0xff]
        %v7027 = vld [vmem:[%s6803 + $0x32a] sm:$0xff]
        %v7028 = vld [vmem:[%s6803 + $0x35a] sm:$0xff]
        %v7029 = vld [vmem:[%s6803 + $0x362] sm:$0xff]
        %s7030 = scalar_lea.vmem %s3, 3200
        %v7031 = vld [vmem:[%s7030] sm:$0xff]
        %v7032 = vld [vmem:[%s7030 + $0x8] sm:$0xff]
        %v7033 = vld [vmem:[%s7030 + $0x10] sm:$0xff]
        %v7034 = vld [vmem:[%s7030 + $0x18] sm:$0xff]
        %v7035 = vld [vmem:[%s7030 + $0x20] sm:$0xff]
        %v7036 = vld [vmem:[%s7030 + $0x28] sm:$0xff]
        %v7037 = vld [vmem:[%s7030 + $0x30] sm:$0xff]
        %v7038 = vld [vmem:[%s7030 + $0x38] sm:$0xff]
        %v7039 = vld [vmem:[%s7030 + $0x40] sm:$0xff]
        %v7040 = vld [vmem:[%s7030 + $0x48] sm:$0xff]
        %v7041 = vld [vmem:[%s7030 + $0x50] sm:$0xff]
        %v7042 = vld [vmem:[%s7030 + $0x58] sm:$0xff]
        %v7043 = vld [vmem:[%s7030 + $0x60] sm:$0xff]
        %v7044 = vld [vmem:[%s7030 + $0x68] sm:$0xff]
        %v7045 = vld [vmem:[%s7030 + $0x70] sm:$0xff]
        %v7046 = vld [vmem:[%s7030 + $0x78] sm:$0xff]
        %7047 = vmatpush.msra.mxu0 %v7046
        %7048 = vmatpush.msra.mxu0 %v7045
        %7049 = vmatpush.msra.mxu0 %v7044
        %7050 = vmatpush.msra.mxu0 %v7043
        %7051 = vmatpush.msra.mxu0 %v7042
        %7052 = vmatpush.msra.mxu0 %v7041
        %7053 = vmatpush.msra.mxu0 %v7040
        %7054 = vmatpush.msra.mxu0 %v7039
        %7055 = vmatpush.msra.mxu0 %v7038
        %7056 = vmatpush.msra.mxu0 %v7037
        %7057 = vmatpush.msra.mxu0 %v7036
        %7058 = vmatpush.msra.mxu0 %v7035
        %7059 = vmatpush.msra.mxu0 %v7034
        %7060 = vmatpush.msra.mxu0 %v7033
        %7061 = vmatpush.msra.mxu0 %v7032
        %7062 = vmatpush.msra.mxu0 %v7031
        %7063 = vmatmul.f32.gmra.mxu0 %v6998
        %v7064 = vpop.f32.mrf.mxu0
        %v7065 = vadd.f32 0.0, %v7064
        %7066 = vmatmul.f32.gmra.mxu0 %v6999
        %v7067 = vpop.f32.mrf.mxu0
        %v7068 = vadd.f32 0.0, %v7067
        %7069 = vmatmul.f32.gmra.mxu0 %v7000
        %v7070 = vpop.f32.mrf.mxu0
        %v7071 = vadd.f32 0.0, %v7070
        %7072 = vmatmul.f32.gmra.mxu0 %v7001
        %v7073 = vpop.f32.mrf.mxu0
        %v7074 = vadd.f32 0.0, %v7073
        %7075 = vmatmul.f32.gmra.mxu0 %v7002
        %v7076 = vpop.f32.mrf.mxu0
        %v7077 = vadd.f32 0.0, %v7076
        %7078 = vmatmul.f32.gmra.mxu0 %v7003
        %v7079 = vpop.f32.mrf.mxu0
        %v7080 = vadd.f32 0.0, %v7079
        %7081 = vmatmul.f32.gmra.mxu0 %v7004
        %v7082 = vpop.f32.mrf.mxu0
        %v7083 = vadd.f32 0.0, %v7082
        %7084 = vmatmul.f32.gmra.mxu0 %v7005
        %v7085 = vpop.f32.mrf.mxu0
        %v7086 = vadd.f32 0.0, %v7085
        %7087 = vmatmul.f32.gmra.mxu0 %v7006
        %v7088 = vpop.f32.mrf.mxu0
        %v7089 = vadd.f32 0.0, %v7088
        %7090 = vmatmul.f32.gmra.mxu0 %v7007
        %v7091 = vpop.f32.mrf.mxu0
        %v7092 = vadd.f32 0.0, %v7091
        %7093 = vmatmul.f32.gmra.mxu0 %v7008
        %v7094 = vpop.f32.mrf.mxu0
        %v7095 = vadd.f32 0.0, %v7094
        %7096 = vmatmul.f32.gmra.mxu0 %v7009
        %v7097 = vpop.f32.mrf.mxu0
        %v7098 = vadd.f32 0.0, %v7097
        %7099 = vmatmul.f32.gmra.mxu0 %v7010
        %v7100 = vpop.f32.mrf.mxu0
        %v7101 = vadd.f32 0.0, %v7100
        %7102 = vmatmul.f32.gmra.mxu0 %v7011
        %v7103 = vpop.f32.mrf.mxu0
        %v7104 = vadd.f32 0.0, %v7103
        %7105 = vmatmul.f32.gmra.mxu0 %v7012
        %v7106 = vpop.f32.mrf.mxu0
        %v7107 = vadd.f32 0.0, %v7106
        %7108 = vmatmul.f32.gmra.mxu0 %v7013
        %v7109 = vpop.f32.mrf.mxu0
        %v7110 = vadd.f32 0.0, %v7109
        %7111 = vmatmul.f32.gmra.mxu0 %v7014
        %v7112 = vpop.f32.mrf.mxu0
        %v7113 = vadd.f32 0.0, %v7112
        %7114 = vmatmul.f32.gmra.mxu0 %v7015
        %v7115 = vpop.f32.mrf.mxu0
        %v7116 = vadd.f32 0.0, %v7115
        %7117 = vmatmul.f32.gmra.mxu0 %v7016
        %v7118 = vpop.f32.mrf.mxu0
        %v7119 = vadd.f32 0.0, %v7118
        %7120 = vmatmul.f32.gmra.mxu0 %v7017
        %v7121 = vpop.f32.mrf.mxu0
        %v7122 = vadd.f32 0.0, %v7121
        %7123 = vmatmul.f32.gmra.mxu0 %v7018
        %v7124 = vpop.f32.mrf.mxu0
        %v7125 = vadd.f32 0.0, %v7124
        %7126 = vmatmul.f32.gmra.mxu0 %v7019
        %v7127 = vpop.f32.mrf.mxu0
        %v7128 = vadd.f32 0.0, %v7127
        %7129 = vmatmul.f32.gmra.mxu0 %v7020
        %v7130 = vpop.f32.mrf.mxu0
        %v7131 = vadd.f32 0.0, %v7130
        %7132 = vmatmul.f32.gmra.mxu0 %v7021
        %v7133 = vpop.f32.mrf.mxu0
        %v7134 = vadd.f32 0.0, %v7133
        %7135 = vmatmul.f32.gmra.mxu0 %v7022
        %v7136 = vpop.f32.mrf.mxu0
        %v7137 = vadd.f32 0.0, %v7136
        %7138 = vmatmul.f32.gmra.mxu0 %v7023
        %v7139 = vpop.f32.mrf.mxu0
        %v7140 = vadd.f32 0.0, %v7139
        %7141 = vmatmul.f32.gmra.mxu0 %v7024
        %v7142 = vpop.f32.mrf.mxu0
        %v7143 = vadd.f32 0.0, %v7142
        %7144 = vmatmul.f32.gmra.mxu0 %v7025
        %v7145 = vpop.f32.mrf.mxu0
        %v7146 = vadd.f32 0.0, %v7145
        %7147 = vmatmul.f32.gmra.mxu0 %v7026
        %v7148 = vpop.f32.mrf.mxu0
        %v7149 = vadd.f32 0.0, %v7148
        %7150 = vmatmul.f32.gmra.mxu0 %v7027
        %v7151 = vpop.f32.mrf.mxu0
        %v7152 = vadd.f32 0.0, %v7151
        %7153 = vmatmul.f32.gmra.mxu0 %v7028
        %v7154 = vpop.f32.mrf.mxu0
        %v7155 = vadd.f32 0.0, %v7154
        %7156 = vmatmul.f32.gmra.mxu0 %v7029
        %v7157 = vpop.f32.mrf.mxu0
        %v7158 = vadd.f32 0.0, %v7157
        %7159 = vdwg.mxu0
        %v7160 = vadd.f32 %v6966, %v7065
        %v7161 = vadd.f32 %v6967, %v7068
        %v7162 = vadd.f32 %v6968, %v7071
        %v7163 = vadd.f32 %v6969, %v7074
        %v7164 = vadd.f32 %v6970, %v7077
        %v7165 = vadd.f32 %v6971, %v7080
        %v7166 = vadd.f32 %v6972, %v7083
        %v7167 = vadd.f32 %v6973, %v7086
        %v7168 = vadd.f32 %v6974, %v7089
        %v7169 = vadd.f32 %v6975, %v7092
        %v7170 = vadd.f32 %v6976, %v7095
        %v7171 = vadd.f32 %v6977, %v7098
        %v7172 = vadd.f32 %v6978, %v7101
        %v7173 = vadd.f32 %v6979, %v7104
        %v7174 = vadd.f32 %v6980, %v7107
        %v7175 = vadd.f32 %v6981, %v7110
        %v7176 = vadd.f32 %v6982, %v7113
        %v7177 = vadd.f32 %v6983, %v7116
        %v7178 = vadd.f32 %v6984, %v7119
        %v7179 = vadd.f32 %v6985, %v7122
        %v7180 = vadd.f32 %v6986, %v7125
        %v7181 = vadd.f32 %v6987, %v7128
        %v7182 = vadd.f32 %v6988, %v7131
        %v7183 = vadd.f32 %v6989, %v7134
        %v7184 = vadd.f32 %v6990, %v7137
        %v7185 = vadd.f32 %v6991, %v7140
        %v7186 = vadd.f32 %v6992, %v7143
        %v7187 = vadd.f32 %v6993, %v7146
        %v7188 = vadd.f32 %v6994, %v7149
        %v7189 = vadd.f32 %v6995, %v7152
        %v7190 = vadd.f32 %v6996, %v7155
        %v7191 = vadd.f32 %v6997, %v7158
        %v7192 = vld [vmem:[%s6803 + $0x24] sm:$0xff]
        %v7193 = vld [vmem:[%s6803 + $0x2c] sm:$0xff]
        %v7194 = vld [vmem:[%s6803 + $0x5c] sm:$0xff]
        %v7195 = vld [vmem:[%s6803 + $0x64] sm:$0xff]
        %v7196 = vld [vmem:[%s6803 + $0x94] sm:$0xff]
        %v7197 = vld [vmem:[%s6803 + $0x9c] sm:$0xff]
        %v7198 = vld [vmem:[%s6803 + $0xcc] sm:$0xff]
        %v7199 = vld [vmem:[%s6803 + $0xd4] sm:$0xff]
        %v7200 = vld [vmem:[%s6803 + $0x104] sm:$0xff]
        %v7201 = vld [vmem:[%s6803 + $0x10c] sm:$0xff]
        %v7202 = vld [vmem:[%s6803 + $0x13c] sm:$0xff]
        %v7203 = vld [vmem:[%s6803 + $0x144] sm:$0xff]
        %v7204 = vld [vmem:[%s6803 + $0x174] sm:$0xff]
        %v7205 = vld [vmem:[%s6803 + $0x17c] sm:$0xff]
        %v7206 = vld [vmem:[%s6803 + $0x1ac] sm:$0xff]
        %v7207 = vld [vmem:[%s6803 + $0x1b4] sm:$0xff]
        %v7208 = vld [vmem:[%s6803 + $0x1e4] sm:$0xff]
        %v7209 = vld [vmem:[%s6803 + $0x1ec] sm:$0xff]
        %v7210 = vld [vmem:[%s6803 + $0x21c] sm:$0xff]
        %v7211 = vld [vmem:[%s6803 + $0x224] sm:$0xff]
        %v7212 = vld [vmem:[%s6803 + $0x254] sm:$0xff]
        %v7213 = vld [vmem:[%s6803 + $0x25c] sm:$0xff]
        %v7214 = vld [vmem:[%s6803 + $0x28c] sm:$0xff]
        %v7215 = vld [vmem:[%s6803 + $0x294] sm:$0xff]
        %v7216 = vld [vmem:[%s6803 + $0x2c4] sm:$0xff]
        %v7217 = vld [vmem:[%s6803 + $0x2cc] sm:$0xff]
        %v7218 = vld [vmem:[%s6803 + $0x2fc] sm:$0xff]
        %v7219 = vld [vmem:[%s6803 + $0x304] sm:$0xff]
        %v7220 = vld [vmem:[%s6803 + $0x334] sm:$0xff]
        %v7221 = vld [vmem:[%s6803 + $0x33c] sm:$0xff]
        %v7222 = vld [vmem:[%s6803 + $0x36c] sm:$0xff]
        %v7223 = vld [vmem:[%s6803 + $0x374] sm:$0xff]
        %s7224 = scalar_lea.vmem %s3, 3328
        %v7225 = vld [vmem:[%s7224] sm:$0xff]
        %v7226 = vld [vmem:[%s7224 + $0x8] sm:$0xff]
        %v7227 = vld [vmem:[%s7224 + $0x10] sm:$0xff]
        %v7228 = vld [vmem:[%s7224 + $0x18] sm:$0xff]
        %v7229 = vld [vmem:[%s7224 + $0x20] sm:$0xff]
        %v7230 = vld [vmem:[%s7224 + $0x28] sm:$0xff]
        %v7231 = vld [vmem:[%s7224 + $0x30] sm:$0xff]
        %v7232 = vld [vmem:[%s7224 + $0x38] sm:$0xff]
        %v7233 = vld [vmem:[%s7224 + $0x40] sm:$0xff]
        %v7234 = vld [vmem:[%s7224 + $0x48] sm:$0xff]
        %v7235 = vld [vmem:[%s7224 + $0x50] sm:$0xff]
        %v7236 = vld [vmem:[%s7224 + $0x58] sm:$0xff]
        %v7237 = vld [vmem:[%s7224 + $0x60] sm:$0xff]
        %v7238 = vld [vmem:[%s7224 + $0x68] sm:$0xff]
        %v7239 = vld [vmem:[%s7224 + $0x70] sm:$0xff]
        %v7240 = vld [vmem:[%s7224 + $0x78] sm:$0xff]
        %7241 = vmatpush.msra.mxu0 %v7240
        %7242 = vmatpush.msra.mxu0 %v7239
        %7243 = vmatpush.msra.mxu0 %v7238
        %7244 = vmatpush.msra.mxu0 %v7237
        %7245 = vmatpush.msra.mxu0 %v7236
        %7246 = vmatpush.msra.mxu0 %v7235
        %7247 = vmatpush.msra.mxu0 %v7234
        %7248 = vmatpush.msra.mxu0 %v7233
        %7249 = vmatpush.msra.mxu0 %v7232
        %7250 = vmatpush.msra.mxu0 %v7231
        %7251 = vmatpush.msra.mxu0 %v7230
        %7252 = vmatpush.msra.mxu0 %v7229
        %7253 = vmatpush.msra.mxu0 %v7228
        %7254 = vmatpush.msra.mxu0 %v7227
        %7255 = vmatpush.msra.mxu0 %v7226
        %7256 = vmatpush.msra.mxu0 %v7225
        %7257 = vmatmul.f32.gmra.mxu0 %v7192
        %v7258 = vpop.f32.mrf.mxu0
        %v7259 = vadd.f32 0.0, %v7258
        %7260 = vmatmul.f32.gmra.mxu0 %v7193
        %v7261 = vpop.f32.mrf.mxu0
        %v7262 = vadd.f32 0.0, %v7261
        %7263 = vmatmul.f32.gmra.mxu0 %v7194
        %v7264 = vpop.f32.mrf.mxu0
        %v7265 = vadd.f32 0.0, %v7264
        %7266 = vmatmul.f32.gmra.mxu0 %v7195
        %v7267 = vpop.f32.mrf.mxu0
        %v7268 = vadd.f32 0.0, %v7267
        %7269 = vmatmul.f32.gmra.mxu0 %v7196
        %v7270 = vpop.f32.mrf.mxu0
        %v7271 = vadd.f32 0.0, %v7270
        %7272 = vmatmul.f32.gmra.mxu0 %v7197
        %v7273 = vpop.f32.mrf.mxu0
        %v7274 = vadd.f32 0.0, %v7273
        %7275 = vmatmul.f32.gmra.mxu0 %v7198
        %v7276 = vpop.f32.mrf.mxu0
        %v7277 = vadd.f32 0.0, %v7276
        %7278 = vmatmul.f32.gmra.mxu0 %v7199
        %v7279 = vpop.f32.mrf.mxu0
        %v7280 = vadd.f32 0.0, %v7279
        %7281 = vmatmul.f32.gmra.mxu0 %v7200
        %v7282 = vpop.f32.mrf.mxu0
        %v7283 = vadd.f32 0.0, %v7282
        %7284 = vmatmul.f32.gmra.mxu0 %v7201
        %v7285 = vpop.f32.mrf.mxu0
        %v7286 = vadd.f32 0.0, %v7285
        %7287 = vmatmul.f32.gmra.mxu0 %v7202
        %v7288 = vpop.f32.mrf.mxu0
        %v7289 = vadd.f32 0.0, %v7288
        %7290 = vmatmul.f32.gmra.mxu0 %v7203
        %v7291 = vpop.f32.mrf.mxu0
        %v7292 = vadd.f32 0.0, %v7291
        %7293 = vmatmul.f32.gmra.mxu0 %v7204
        %v7294 = vpop.f32.mrf.mxu0
        %v7295 = vadd.f32 0.0, %v7294
        %7296 = vmatmul.f32.gmra.mxu0 %v7205
        %v7297 = vpop.f32.mrf.mxu0
        %v7298 = vadd.f32 0.0, %v7297
        %7299 = vmatmul.f32.gmra.mxu0 %v7206
        %v7300 = vpop.f32.mrf.mxu0
        %v7301 = vadd.f32 0.0, %v7300
        %7302 = vmatmul.f32.gmra.mxu0 %v7207
        %v7303 = vpop.f32.mrf.mxu0
        %v7304 = vadd.f32 0.0, %v7303
        %7305 = vmatmul.f32.gmra.mxu0 %v7208
        %v7306 = vpop.f32.mrf.mxu0
        %v7307 = vadd.f32 0.0, %v7306
        %7308 = vmatmul.f32.gmra.mxu0 %v7209
        %v7309 = vpop.f32.mrf.mxu0
        %v7310 = vadd.f32 0.0, %v7309
        %7311 = vmatmul.f32.gmra.mxu0 %v7210
        %v7312 = vpop.f32.mrf.mxu0
        %v7313 = vadd.f32 0.0, %v7312
        %7314 = vmatmul.f32.gmra.mxu0 %v7211
        %v7315 = vpop.f32.mrf.mxu0
        %v7316 = vadd.f32 0.0, %v7315
        %7317 = vmatmul.f32.gmra.mxu0 %v7212
        %v7318 = vpop.f32.mrf.mxu0
        %v7319 = vadd.f32 0.0, %v7318
        %7320 = vmatmul.f32.gmra.mxu0 %v7213
        %v7321 = vpop.f32.mrf.mxu0
        %v7322 = vadd.f32 0.0, %v7321
        %7323 = vmatmul.f32.gmra.mxu0 %v7214
        %v7324 = vpop.f32.mrf.mxu0
        %v7325 = vadd.f32 0.0, %v7324
        %7326 = vmatmul.f32.gmra.mxu0 %v7215
        %v7327 = vpop.f32.mrf.mxu0
        %v7328 = vadd.f32 0.0, %v7327
        %7329 = vmatmul.f32.gmra.mxu0 %v7216
        %v7330 = vpop.f32.mrf.mxu0
        %v7331 = vadd.f32 0.0, %v7330
        %7332 = vmatmul.f32.gmra.mxu0 %v7217
        %v7333 = vpop.f32.mrf.mxu0
        %v7334 = vadd.f32 0.0, %v7333
        %7335 = vmatmul.f32.gmra.mxu0 %v7218
        %v7336 = vpop.f32.mrf.mxu0
        %v7337 = vadd.f32 0.0, %v7336
        %7338 = vmatmul.f32.gmra.mxu0 %v7219
        %v7339 = vpop.f32.mrf.mxu0
        %v7340 = vadd.f32 0.0, %v7339
        %7341 = vmatmul.f32.gmra.mxu0 %v7220
        %v7342 = vpop.f32.mrf.mxu0
        %v7343 = vadd.f32 0.0, %v7342
        %7344 = vmatmul.f32.gmra.mxu0 %v7221
        %v7345 = vpop.f32.mrf.mxu0
        %v7346 = vadd.f32 0.0, %v7345
        %7347 = vmatmul.f32.gmra.mxu0 %v7222
        %v7348 = vpop.f32.mrf.mxu0
        %v7349 = vadd.f32 0.0, %v7348
        %7350 = vmatmul.f32.gmra.mxu0 %v7223
        %v7351 = vpop.f32.mrf.mxu0
        %v7352 = vadd.f32 0.0, %v7351
        %7353 = vdwg.mxu0
        %v7354 = vadd.f32 %v7160, %v7259
        %v7355 = vadd.f32 %v7161, %v7262
        %v7356 = vadd.f32 %v7162, %v7265
        %v7357 = vadd.f32 %v7163, %v7268
        %v7358 = vadd.f32 %v7164, %v7271
        %v7359 = vadd.f32 %v7165, %v7274
        %v7360 = vadd.f32 %v7166, %v7277
        %v7361 = vadd.f32 %v7167, %v7280
        %v7362 = vadd.f32 %v7168, %v7283
        %v7363 = vadd.f32 %v7169, %v7286
        %v7364 = vadd.f32 %v7170, %v7289
        %v7365 = vadd.f32 %v7171, %v7292
        %v7366 = vadd.f32 %v7172, %v7295
        %v7367 = vadd.f32 %v7173, %v7298
        %v7368 = vadd.f32 %v7174, %v7301
        %v7369 = vadd.f32 %v7175, %v7304
        %v7370 = vadd.f32 %v7176, %v7307
        %v7371 = vadd.f32 %v7177, %v7310
        %v7372 = vadd.f32 %v7178, %v7313
        %v7373 = vadd.f32 %v7179, %v7316
        %v7374 = vadd.f32 %v7180, %v7319
        %v7375 = vadd.f32 %v7181, %v7322
        %v7376 = vadd.f32 %v7182, %v7325
        %v7377 = vadd.f32 %v7183, %v7328
        %v7378 = vadd.f32 %v7184, %v7331
        %v7379 = vadd.f32 %v7185, %v7334
        %v7380 = vadd.f32 %v7186, %v7337
        %v7381 = vadd.f32 %v7187, %v7340
        %v7382 = vadd.f32 %v7188, %v7343
        %v7383 = vadd.f32 %v7189, %v7346
        %v7384 = vadd.f32 %v7190, %v7349
        %v7385 = vadd.f32 %v7191, %v7352
        %v7386 = vmax.f32 %v7354, 0.0
        %v7387 = vmax.f32 %v7355, 0.0
        %v7388 = vmax.f32 %v7356, 0.0
        %v7389 = vmax.f32 %v7357, 0.0
        %v7390 = vmax.f32 %v7358, 0.0
        %v7391 = vmax.f32 %v7359, 0.0
        %v7392 = vmax.f32 %v7360, 0.0
        %v7393 = vmax.f32 %v7361, 0.0
        %v7394 = vmax.f32 %v7362, 0.0
        %v7395 = vmax.f32 %v7363, 0.0
        %v7396 = vmax.f32 %v7364, 0.0
        %v7397 = vmax.f32 %v7365, 0.0
        %v7398 = vmax.f32 %v7366, 0.0
        %v7399 = vmax.f32 %v7367, 0.0
        %v7400 = vmax.f32 %v7368, 0.0
        %v7401 = vmax.f32 %v7369, 0.0
        %v7402 = vmax.f32 %v7370, 0.0
        %v7403 = vmax.f32 %v7371, 0.0
        %v7404 = vmax.f32 %v7372, 0.0
        %v7405 = vmax.f32 %v7373, 0.0
        %v7406 = vmax.f32 %v7374, 0.0
        %v7407 = vmax.f32 %v7375, 0.0
        %v7408 = vmax.f32 %v7376, 0.0
        %v7409 = vmax.f32 %v7377, 0.0
        %v7410 = vmax.f32 %v7378, 0.0
        %v7411 = vmax.f32 %v7379, 0.0
        %v7412 = vmax.f32 %v7380, 0.0
        %v7413 = vmax.f32 %v7381, 0.0
        %v7414 = vmax.f32 %v7382, 0.0
        %v7415 = vmax.f32 %v7383, 0.0
        %v7416 = vmax.f32 %v7384, 0.0
        %v7417 = vmax.f32 %v7385, 0.0
        %s7418 = scalar_lea.vmem %s4, 384
        %v7419 = vld [vmem:[%s7418] sm:$0xff]
        %v7420 = vld [vmem:[%s7418 + $0x8] sm:$0xff]
        %v7421 = vld [vmem:[%s7418 + $0x10] sm:$0xff]
        %v7422 = vld [vmem:[%s7418 + $0x18] sm:$0xff]
        %v7423 = vld [vmem:[%s7418 + $0x20] sm:$0xff]
        %v7424 = vld [vmem:[%s7418 + $0x28] sm:$0xff]
        %v7425 = vld [vmem:[%s7418 + $0x30] sm:$0xff]
        %v7426 = vld [vmem:[%s7418 + $0x38] sm:$0xff]
        %v7427 = vld [vmem:[%s7418 + $0x40] sm:$0xff]
        %v7428 = vld [vmem:[%s7418 + $0x48] sm:$0xff]
        %v7429 = vld [vmem:[%s7418 + $0x50] sm:$0xff]
        %v7430 = vld [vmem:[%s7418 + $0x58] sm:$0xff]
        %v7431 = vld [vmem:[%s7418 + $0x60] sm:$0xff]
        %v7432 = vld [vmem:[%s7418 + $0x68] sm:$0xff]
        %v7433 = vld [vmem:[%s7418 + $0x70] sm:$0xff]
        %v7434 = vld [vmem:[%s7418 + $0x78] sm:$0xff]
        %7435 = vmatpush.msra.mxu0 %v7434
        %7436 = vmatpush.msra.mxu0 %v7433
        %7437 = vmatpush.msra.mxu0 %v7432
        %7438 = vmatpush.msra.mxu0 %v7431
        %7439 = vmatpush.msra.mxu0 %v7430
        %7440 = vmatpush.msra.mxu0 %v7429
        %7441 = vmatpush.msra.mxu0 %v7428
        %7442 = vmatpush.msra.mxu0 %v7427
        %7443 = vmatpush.msra.mxu0 %v7426
        %7444 = vmatpush.msra.mxu0 %v7425
        %7445 = vmatpush.msra.mxu0 %v7424
        %7446 = vmatpush.msra.mxu0 %v7423
        %7447 = vmatpush.msra.mxu0 %v7422
        %7448 = vmatpush.msra.mxu0 %v7421
        %7449 = vmatpush.msra.mxu0 %v7420
        %7450 = vmatpush.msra.mxu0 %v7419
        %7451 = vmatmul.f32.gmra.mxu0 %v7386
        %v7452 = vpop.f32.mrf.mxu0
        %v7453 = vadd.f32 0.0, %v7452
        %7454 = vmatmul.f32.gmra.mxu0 %v7387
        %v7455 = vpop.f32.mrf.mxu0
        %v7456 = vadd.f32 0.0, %v7455
        %7457 = vmatmul.f32.gmra.mxu0 %v7388
        %v7458 = vpop.f32.mrf.mxu0
        %v7459 = vadd.f32 0.0, %v7458
        %7460 = vmatmul.f32.gmra.mxu0 %v7389
        %v7461 = vpop.f32.mrf.mxu0
        %v7462 = vadd.f32 0.0, %v7461
        %7463 = vmatmul.f32.gmra.mxu0 %v7390
        %v7464 = vpop.f32.mrf.mxu0
        %v7465 = vadd.f32 0.0, %v7464
        %7466 = vmatmul.f32.gmra.mxu0 %v7391
        %v7467 = vpop.f32.mrf.mxu0
        %v7468 = vadd.f32 0.0, %v7467
        %7469 = vmatmul.f32.gmra.mxu0 %v7392
        %v7470 = vpop.f32.mrf.mxu0
        %v7471 = vadd.f32 0.0, %v7470
        %7472 = vmatmul.f32.gmra.mxu0 %v7393
        %v7473 = vpop.f32.mrf.mxu0
        %v7474 = vadd.f32 0.0, %v7473
        %7475 = vmatmul.f32.gmra.mxu0 %v7394
        %v7476 = vpop.f32.mrf.mxu0
        %v7477 = vadd.f32 0.0, %v7476
        %7478 = vmatmul.f32.gmra.mxu0 %v7395
        %v7479 = vpop.f32.mrf.mxu0
        %v7480 = vadd.f32 0.0, %v7479
        %7481 = vmatmul.f32.gmra.mxu0 %v7396
        %v7482 = vpop.f32.mrf.mxu0
        %v7483 = vadd.f32 0.0, %v7482
        %7484 = vmatmul.f32.gmra.mxu0 %v7397
        %v7485 = vpop.f32.mrf.mxu0
        %v7486 = vadd.f32 0.0, %v7485
        %7487 = vmatmul.f32.gmra.mxu0 %v7398
        %v7488 = vpop.f32.mrf.mxu0
        %v7489 = vadd.f32 0.0, %v7488
        %7490 = vmatmul.f32.gmra.mxu0 %v7399
        %v7491 = vpop.f32.mrf.mxu0
        %v7492 = vadd.f32 0.0, %v7491
        %7493 = vmatmul.f32.gmra.mxu0 %v7400
        %v7494 = vpop.f32.mrf.mxu0
        %v7495 = vadd.f32 0.0, %v7494
        %7496 = vmatmul.f32.gmra.mxu0 %v7401
        %v7497 = vpop.f32.mrf.mxu0
        %v7498 = vadd.f32 0.0, %v7497
        %7499 = vmatmul.f32.gmra.mxu0 %v7402
        %v7500 = vpop.f32.mrf.mxu0
        %v7501 = vadd.f32 0.0, %v7500
        %7502 = vmatmul.f32.gmra.mxu0 %v7403
        %v7503 = vpop.f32.mrf.mxu0
        %v7504 = vadd.f32 0.0, %v7503
        %7505 = vmatmul.f32.gmra.mxu0 %v7404
        %v7506 = vpop.f32.mrf.mxu0
        %v7507 = vadd.f32 0.0, %v7506
        %7508 = vmatmul.f32.gmra.mxu0 %v7405
        %v7509 = vpop.f32.mrf.mxu0
        %v7510 = vadd.f32 0.0, %v7509
        %7511 = vmatmul.f32.gmra.mxu0 %v7406
        %v7512 = vpop.f32.mrf.mxu0
        %v7513 = vadd.f32 0.0, %v7512
        %7514 = vmatmul.f32.gmra.mxu0 %v7407
        %v7515 = vpop.f32.mrf.mxu0
        %v7516 = vadd.f32 0.0, %v7515
        %7517 = vmatmul.f32.gmra.mxu0 %v7408
        %v7518 = vpop.f32.mrf.mxu0
        %v7519 = vadd.f32 0.0, %v7518
        %7520 = vmatmul.f32.gmra.mxu0 %v7409
        %v7521 = vpop.f32.mrf.mxu0
        %v7522 = vadd.f32 0.0, %v7521
        %7523 = vmatmul.f32.gmra.mxu0 %v7410
        %v7524 = vpop.f32.mrf.mxu0
        %v7525 = vadd.f32 0.0, %v7524
        %7526 = vmatmul.f32.gmra.mxu0 %v7411
        %v7527 = vpop.f32.mrf.mxu0
        %v7528 = vadd.f32 0.0, %v7527
        %7529 = vmatmul.f32.gmra.mxu0 %v7412
        %v7530 = vpop.f32.mrf.mxu0
        %v7531 = vadd.f32 0.0, %v7530
        %7532 = vmatmul.f32.gmra.mxu0 %v7413
        %v7533 = vpop.f32.mrf.mxu0
        %v7534 = vadd.f32 0.0, %v7533
        %7535 = vmatmul.f32.gmra.mxu0 %v7414
        %v7536 = vpop.f32.mrf.mxu0
        %v7537 = vadd.f32 0.0, %v7536
        %7538 = vmatmul.f32.gmra.mxu0 %v7415
        %v7539 = vpop.f32.mrf.mxu0
        %v7540 = vadd.f32 0.0, %v7539
        %7541 = vmatmul.f32.gmra.mxu0 %v7416
        %v7542 = vpop.f32.mrf.mxu0
        %v7543 = vadd.f32 0.0, %v7542
        %7544 = vmatmul.f32.gmra.mxu0 %v7417
        %v7545 = vpop.f32.mrf.mxu0
        %v7546 = vadd.f32 0.0, %v7545
        %7547 = vdwg.mxu0
        %v7548 = vadd.f32 %v5703, %v7453
        %v7549 = vadd.f32 %v5704, %v7456
        %v7550 = vadd.f32 %v5705, %v7459
        %v7551 = vadd.f32 %v5706, %v7462
        %v7552 = vadd.f32 %v5707, %v7465
        %v7553 = vadd.f32 %v5708, %v7468
        %v7554 = vadd.f32 %v5709, %v7471
        %v7555 = vadd.f32 %v5710, %v7474
        %v7556 = vadd.f32 %v5711, %v7477
        %v7557 = vadd.f32 %v5712, %v7480
        %v7558 = vadd.f32 %v5713, %v7483
        %v7559 = vadd.f32 %v5714, %v7486
        %v7560 = vadd.f32 %v5715, %v7489
        %v7561 = vadd.f32 %v5716, %v7492
        %v7562 = vadd.f32 %v5717, %v7495
        %v7563 = vadd.f32 %v5718, %v7498
        %v7564 = vadd.f32 %v5719, %v7501
        %v7565 = vadd.f32 %v5720, %v7504
        %v7566 = vadd.f32 %v5721, %v7507
        %v7567 = vadd.f32 %v5722, %v7510
        %v7568 = vadd.f32 %v5723, %v7513
        %v7569 = vadd.f32 %v5724, %v7516
        %v7570 = vadd.f32 %v5725, %v7519
        %v7571 = vadd.f32 %v5726, %v7522
        %v7572 = vadd.f32 %v5727, %v7525
        %v7573 = vadd.f32 %v5728, %v7528
        %v7574 = vadd.f32 %v5729, %v7531
        %v7575 = vadd.f32 %v5730, %v7534
        %v7576 = vadd.f32 %v5731, %v7537
        %v7577 = vadd.f32 %v5732, %v7540
        %v7578 = vadd.f32 %v5733, %v7543
        %v7579 = vadd.f32 %v5734, %v7546
        %v7580 = vld [vmem:[%s204] sm:$0x1]
        %v7582 = vperm.slane %v7580, 0
        %v7584 = vadd.f32 %v7548, %v7582
        %v7585 = vadd.f32 %v7549, %v7582
        %v7586 = vadd.f32 %v7550, %v7582
        %v7587 = vadd.f32 %v7551, %v7582
        %v7588 = vadd.f32 %v7552, %v7582
        %v7589 = vadd.f32 %v7553, %v7582
        %v7590 = vadd.f32 %v7554, %v7582
        %v7591 = vadd.f32 %v7555, %v7582
        %v7592 = vadd.f32 %v7556, %v7582
        %v7593 = vadd.f32 %v7557, %v7582
        %v7594 = vadd.f32 %v7558, %v7582
        %v7595 = vadd.f32 %v7559, %v7582
        %v7596 = vadd.f32 %v7560, %v7582
        %v7597 = vadd.f32 %v7561, %v7582
        %v7598 = vadd.f32 %v7562, %v7582
        %v7599 = vadd.f32 %v7563, %v7582
        %v7600 = vadd.f32 %v7564, %v7582
        %v7601 = vadd.f32 %v7565, %v7582
        %v7602 = vadd.f32 %v7566, %v7582
        %v7603 = vadd.f32 %v7567, %v7582
        %v7604 = vadd.f32 %v7568, %v7582
        %v7605 = vadd.f32 %v7569, %v7582
        %v7606 = vadd.f32 %v7570, %v7582
        %v7607 = vadd.f32 %v7571, %v7582
        %v7608 = vadd.f32 %v7572, %v7582
        %v7609 = vadd.f32 %v7573, %v7582
        %v7610 = vadd.f32 %v7574, %v7582
        %v7611 = vadd.f32 %v7575, %v7582
        %v7612 = vadd.f32 %v7576, %v7582
        %v7613 = vadd.f32 %v7577, %v7582
        %v7614 = vadd.f32 %v7578, %v7582
        %v7615 = vadd.f32 %v7579, %v7582
        %7616 = vst [vmem:[%s201] sm:$0xff] %v7584
        %7617 = vst [vmem:[%s201 + $0x8] sm:$0xff] %v7585
        %7618 = vst [vmem:[%s201 + $0x10] sm:$0xff] %v7586
        %7619 = vst [vmem:[%s201 + $0x18] sm:$0xff] %v7587
        %7620 = vst [vmem:[%s201 + $0x20] sm:$0xff] %v7588
        %7621 = vst [vmem:[%s201 + $0x28] sm:$0xff] %v7589
        %7622 = vst [vmem:[%s201 + $0x30] sm:$0xff] %v7590
        %7623 = vst [vmem:[%s201 + $0x38] sm:$0xff] %v7591
        %7624 = vst [vmem:[%s201 + $0x40] sm:$0xff] %v7592
        %7625 = vst [vmem:[%s201 + $0x48] sm:$0xff] %v7593
        %7626 = vst [vmem:[%s201 + $0x50] sm:$0xff] %v7594
        %7627 = vst [vmem:[%s201 + $0x58] sm:$0xff] %v7595
        %7628 = vst [vmem:[%s201 + $0x60] sm:$0xff] %v7596
        %7629 = vst [vmem:[%s201 + $0x68] sm:$0xff] %v7597
        %7630 = vst [vmem:[%s201 + $0x70] sm:$0xff] %v7598
        %7631 = vst [vmem:[%s201 + $0x78] sm:$0xff] %v7599
        %7632 = vst [vmem:[%s201 + $0x80] sm:$0xff] %v7600
        %7633 = vst [vmem:[%s201 + $0x88] sm:$0xff] %v7601
        %7634 = vst [vmem:[%s201 + $0x90] sm:$0xff] %v7602
        %7635 = vst [vmem:[%s201 + $0x98] sm:$0xff] %v7603
        %7636 = vst [vmem:[%s201 + $0xa0] sm:$0xff] %v7604
        %7637 = vst [vmem:[%s201 + $0xa8] sm:$0xff] %v7605
        %7638 = vst [vmem:[%s201 + $0xb0] sm:$0xff] %v7606
        %7639 = vst [vmem:[%s201 + $0xb8] sm:$0xff] %v7607
        %7640 = vst [vmem:[%s201 + $0xc0] sm:$0xff] %v7608
        %7641 = vst [vmem:[%s201 + $0xc8] sm:$0xff] %v7609
        %7642 = vst [vmem:[%s201 + $0xd0] sm:$0xff] %v7610
        %7643 = vst [vmem:[%s201 + $0xd8] sm:$0xff] %v7611
        %7644 = vst [vmem:[%s201 + $0xe0] sm:$0xff] %v7612
        %7645 = vst [vmem:[%s201 + $0xe8] sm:$0xff] %v7613
        %7646 = vst [vmem:[%s201 + $0xf0] sm:$0xff] %v7614
        %7647 = vst [vmem:[%s201 + $0xf8] sm:$0xff] %v7615
        %s7648 = sand.u32 %s130, 1
        %s7649 = scalar_lea.sflag [#allocation5], %s7648
        %s7650 = sand.u32 %s130, 1
        %s7651 = smul.addr %s7650, 256
        %s7652 = scalar_lea.vmem [#allocation4], %s7651
        // Predicated region
        $region89: #{tpu_custom_call.1} parent=35 // pred_check
          %p7653 = pneg %p140
        $region90: #{tpu_custom_call.1} parent=35 // pred_check_branch
          %7655 = sbr.rel (%p7653) target = $region92
        $region91: #{tpu_custom_call.1} parent=35 // pred_region
          %s7656 = smul.u32 16, %s24
          %7658 = vsyncadd %s7649, 0
          %s7659 = smul.addr %s7656, 2
          %s7660 = smul.addr %s23, 32
          %s7661 = sadd.s32 %s7659, %s7660
          %s7662 = smul.addr %s7661, 8
          %s7663 = scalar_lea.hbm %s5, %s7662
          %s7664 = sshll.u32 %s7652, 4
          %s7665 = int_to_ptr.vmem [resolvable:$true] %s7664
          %s7666 = sshll.u32 %s7663, 4
          %s7667 = int_to_ptr.hbm [resolvable:$true] %s7666
          %7672 = dma.vmem_to_hbm [thread:$0]  %s7665, 4096, %s7667, %s7649, 128, 128, 8
        $region92: #{tpu_custom_call.1} parent=35 // pred_fallthru
          _
      $region36: #{tpu_custom_call.1} parent=5 // pred_fallthru
        _
      %p7673 = scmp.le.s32.totalorder 2, %s14
      // Predicated region
      $region93: #{tpu_custom_call.1} parent=5 // pred_check
        %p7674 = pneg %p7673
      $region94: #{tpu_custom_call.1} parent=5 // pred_check_branch
        %7676 = sbr.rel (%p7674) target = $region96
      $region95: #{tpu_custom_call.1} parent=5 // pred_region
        %s7677 = ssub.s32 %s14, 2
        // Predicated region
        $region97: #{tpu_custom_call.1} parent=95 // pred_check
          %p7678 = pneg %p146
        $region98: #{tpu_custom_call.1} parent=95 // pred_check_branch
          %7680 = sbr.rel (%p7678) target = $region100
        $region99: #{tpu_custom_call.1} parent=95 // pred_region
          %s7681 = sand.u32 %s131, 1
          %s7682 = scalar_lea.sflag [#allocation5], %s7681
          %s7683 = sand.u32 %s131, 1
          %s7684 = smul.addr %s7683, 256
          %s7685 = scalar_lea.vmem [#allocation4], %s7684
          %7687 = dma.done %s7682, 4096
        $region100: #{tpu_custom_call.1} parent=95 // pred_fallthru
          _
      $region96: #{tpu_custom_call.1} parent=5 // pred_fallthru
        _
    $region6: #{tpu_custom_call.1} parent=1 // loop_footer
      %s18 = sadd.s32 1, %s14
    $region7: #{tpu_custom_call.1} parent=1 // loop_footer_branch
      %13 = sbr.rel target = $region3
    $region8: #{tpu_custom_call.1} parent=1 // loop_exit
      _
    %7688 = vsyncpa [#allocation5], 1
    %s7689 = scalar_lea.sflag [#allocation5], 1
    %7690 = vsyncpa %s7689, 1
  %7691 = vsyncmov [#allocation3]
  %s7692 = vpop.sfrf %7691
  %p7693 = scmp.eq.s32.totalorder %s7692, 0
  %p7694 = pneg %p7693
  %7696 = shalt.err (%p7694)
  %s7697 = scalar_lea.sflag [#allocation3], 1
  %7698 = vsyncmov %s7697
  %s7699 = vpop.sfrf %7698
  %p7700 = scmp.eq.s32.totalorder %s7699, 0
  %p7701 = pneg %p7700
  %7703 = shalt.err (%p7701)

</llo_original>
